<compile_context>
chip_gen: v5e
topology: v5e:2x2
jax: 0.10.0
libtpu: 0.0.40
codegen_flags: <defaults>
</compile_context>

<pallas_src>
import math
from functools import partial

import jax
import jax.numpy as jnp
from jax import lax
from jax.experimental import pallas as pl
from jax.experimental.pallas import tpu as pltpu


# ----------------------------- Pallas kernel -----------------------------
def _mspoe_rope_cache_kernel(inv_ratio_ref, cos_ref, sin_ref, *, base):
    """One grid step = (one head, one sequence block).

    inv_ratio_ref : (num_heads,) f32 SMEM  -- precomputed 1/compress_ratio per head
    cos_ref/sin_ref : (1, seq_block, dim) VMEM output tiles, already in target dtype
    """
    h = pl.program_id(0)           # head index
    sb = pl.program_id(1)          # sequence-block index
    _, s_blk, d = cos_ref.shape
    d2 = d // 2

    # ---- column-only math, hoisted onto a single (1, d) row (not the full tile) ----
    col = lax.broadcasted_iota(jnp.int32, (1, d), 1)
    if (d2 & (d2 - 1)) == 0:                      # head_dim/2 power of two -> bitwise AND
        m = (col & (d2 - 1)).astype(jnp.float32)
    else:                                          # generic fallback
        m = lax.rem(col, d2).astype(jnp.float32)
    # inv_freq[m] = base ** (-2*m/d)   (one tiny EUP exp on a single row)
    inv_freq = jnp.exp(m * (-2.0 * math.log(base) / d))
    # Per-head MsPoE compression folded into the row: one SMEM scalar read + row mul.
    scaled_freq = inv_freq * inv_ratio_ref[h]      # (1, d)

    # ---- row-dependent positions over the full tile (hardware iota + one convert) ----
    pos_i = lax.broadcasted_iota(jnp.int32, (s_blk, d), 0) + sb * s_blk
    pos = pos_i.astype(jnp.float32)

    # torch's cat((freqs, freqs), -1) is encoded by the modular column index above;
    # the (1, d) row broadcasts across sublanes in this single VPU multiply.
    angle = pos * scaled_freq                      # (s_blk, d)

    # NOTE: half-lane cos/sin dedup intentionally skipped for d == 128 (no vreg saving).
    cos_ref[0] = jnp.cos(angle).astype(cos_ref.dtype)
    sin_ref[0] = jnp.sin(angle).astype(sin_ref.dtype)


def mspoe_rope_cos_sin(seq_len, *, dim, num_heads, base=10000.0,
                       min_ratio=1.0, max_ratio=3.0, dtype=jnp.float32,
                       seq_block=None):
    """Full (num_heads, seq_len, dim) MsPoE cos/sin cache in one pallas_call,
    emitted directly in `dtype` (cast at the in-kernel store)."""
    assert dim % 2 == 0, "rotary dim must be even"
    if seq_block is None:
        # Amortize the ~0.35 us/step overhead with big blocks; 2048 rows x 128 f32
        # = 1 MiB per output tile (x2 outputs x2 pipeline buffers = 4 MiB) -> fits
        # comfortably inside v5e's 16 MiB scoped VMEM and v7x's 64 MiB physical VMEM.
        seq_block = seq_len if seq_len <= 2048 else 2048

    # Per-head compression ratios exactly as the torch buffer: min + (max-min)*h/H.
    ratios = (min_ratio + (max_ratio - min_ratio)
              * (jnp.arange(num_heads, dtype=jnp.float32) / num_heads))
    inv_ratios = 1.0 / ratios                      # precomputed; kernel only multiplies

    grid = (num_heads, pl.cdiv(seq_len, seq_block))
    out_spec = pl.BlockSpec((1, seq_block, dim), lambda h, s: (h, s, 0))

    cos, sin = pl.pallas_call(
        partial(_mspoe_rope_cache_kernel, base=float(base)),
        out_shape=(jax.ShapeDtypeStruct((num_heads, seq_len, dim), dtype),
                   jax.ShapeDtypeStruct((num_heads, seq_len, dim), dtype)),
        grid=grid,
        in_specs=[pl.BlockSpec(memory_space=pltpu.MemorySpace.SMEM)],
        out_specs=(out_spec, out_spec),
        compiler_params=pltpu.CompilerParams(
            dimension_semantics=("parallel", "parallel")),
    )(inv_ratios)
    return cos, sin


# ----------------------------- module-equivalent wrapper -----------------------------
class MsPoELlamaRotaryEmbedding:
    """JAX/Pallas port of the PyTorch MsPoELlamaRotaryEmbedding module."""

    def __init__(self, dim, min_cratio=1, max_cratio=3, num_heads=32,
                 max_position_embeddings=2048, base=10000, dtype=jnp.float32):
        self.dim = dim
        self.min_ratio = float(min_cratio)
        self.max_ratio = float(max_cratio)
        self.num_heads = num_heads
        self.max_position_embeddings = max_position_embeddings
        self.base = float(base)
        self._set_cos_sin_cache(max_position_embeddings, dtype)

    def _set_cos_sin_cache(self, seq_len, dtype):
        self.max_seq_len_cached = seq_len
        self._cached_dtype = dtype
        self.cos_cached, self.sin_cached = mspoe_rope_cos_sin(
            seq_len, dim=self.dim, num_heads=self.num_heads, base=self.base,
            min_ratio=self.min_ratio, max_ratio=self.max_ratio, dtype=dtype)

    def __call__(self, x, seq_len=None):
        # Mirrors the torch forward: grow the cache if needed, slice, and return in
        # x.dtype.  The dtype cast is done inside the kernel (regenerate on dtype
        # change) so no separate full-cache HBM cast pass ever runs.
        if seq_len > self.max_seq_len_cached or x.dtype != self._cached_dtype:
            self._set_cos_sin_cache(max(seq_len, self.max_seq_len_cached), x.dtype)
        return self.cos_cached[:, :seq_len], self.sin_cached[:, :seq_len]


# ----------------------------- pure-JAX reference (sanity check) -----------------------------
def reference_cos_sin(seq_len, dim, num_heads, base, min_ratio, max_ratio):
    inv_freq = 1.0 / (base ** (jnp.arange(0, dim, 2, dtype=jnp.float32) / dim))
    t = jnp.broadcast_to(jnp.arange(seq_len, dtype=jnp.float32)[None, :],
                         (num_heads, seq_len))
    ratio = (min_ratio + (max_ratio - min_ratio)
             * (jnp.arange(num_heads, dtype=jnp.float32) / num_heads))
    t = t / ratio[:, None]
    freqs = jnp.einsum('ki,j->kij', t, inv_freq)
    emb = jnp.concatenate([freqs, freqs], axis=-1)
    return jnp.cos(emb), jnp.sin(emb)


# ----------------------------- main -----------------------------
if __name__ == "__main__":
    DIM = 128            # head_dim -> lane-dense last axis
    NUM_HEADS = 8
    MAX_POS = 256
    SEQ_LEN = 192        # forward slices the cache, like the torch module
    BASE = 10000.0
    MIN_R, MAX_R = 1.0, 3.0

    key = jax.random.PRNGKey(0)
    # x is only used for its dtype in the module's forward signature.
    x = jax.random.normal(key, (2, SEQ_LEN, NUM_HEADS, DIM), jnp.float32)

    rope = MsPoELlamaRotaryEmbedding(DIM, min_cratio=MIN_R, max_cratio=MAX_R,
                                     num_heads=NUM_HEADS,
                                     max_position_embeddings=MAX_POS, base=BASE)
    cos, sin = rope(x, seq_len=SEQ_LEN)
    cos, sin = jax.block_until_ready((cos, sin))

    assert cos.shape == (NUM_HEADS, SEQ_LEN, DIM)
    assert sin.shape == (NUM_HEADS, SEQ_LEN, DIM)
    assert cos.dtype == x.dtype and sin.dtype == x.dtype
    assert bool(jnp.all(jnp.isfinite(cos))) and bool(jnp.all(jnp.isfinite(sin)))

    cos_ref_full, sin_ref_full = reference_cos_sin(
        MAX_POS, DIM, NUM_HEADS, BASE, MIN_R, MAX_R)
    assert bool(jnp.allclose(cos, cos_ref_full[:, :SEQ_LEN], rtol=1e-3, atol=2e-3)), \
        "cos mismatch vs reference"
    assert bool(jnp.allclose(sin, sin_ref_full[:, :SEQ_LEN], rtol=1e-3, atol=2e-3)), \
        "sin mismatch vs reference"
    # Also verify the full cached tables (the kernel's raw output).
    assert bool(jnp.allclose(rope.cos_cached, cos_ref_full, rtol=1e-3, atol=2e-3))
    assert bool(jnp.allclose(rope.sin_cached, sin_ref_full, rtol=1e-3, atol=2e-3))

    # bf16 path: cache is regenerated directly in bf16 inside the kernel (no post-cast pass).
    x_bf16 = x.astype(jnp.bfloat16)
    cos_bf, sin_bf = rope(x_bf16, seq_len=SEQ_LEN)
    cos_bf, sin_bf = jax.block_until_ready((cos_bf, sin_bf))
    assert cos_bf.dtype == jnp.bfloat16 and sin_bf.dtype == jnp.bfloat16
    assert bool(jnp.allclose(cos_bf.astype(jnp.float32),
                             cos_ref_full[:, :SEQ_LEN], rtol=2e-2, atol=2e-2))
    assert bool(jnp.allclose(sin_bf.astype(jnp.float32),
                             sin_ref_full[:, :SEQ_LEN], rtol=2e-2, atol=2e-2))

    print("KERNEL_OK")
</pallas_src>

<mosaic_0001>
module attributes {stable_mosaic.version = 11 : i64} {
  func.func @_mspoe_rope_cache_kernel(%arg0: i32, %arg1: i32, %arg2: memref<8xf32, #tpu.memory_space<smem>>, %arg3: memref<1x256x128xf32, #tpu.memory_space<vmem>>, %arg4: memref<1x256x128xf32, #tpu.memory_space<vmem>>) attributes {dimension_semantics = [#tpu.dimension_semantics<parallel>, #tpu.dimension_semantics<parallel>], iteration_bounds = array<i64: 8, 1>, scalar_prefetch = 0 : i64, scratch_operands = 0 : i64, tpu.core_type = #tpu.core_type<tc>, window_params = [{transform_indices = @transform_0, window_bounds = array<i64: 8>}, {transform_indices = @transform_1, window_bounds = array<i64: 1, 256, 128>}, {transform_indices = @transform_2, window_bounds = array<i64: 1, 256, 128>}]} {
    %0 = tpu.iota {dimensions = array<i32: 1>} : vector<1x128xi32>
    %c63_i32 = arith.constant 63 : i32
    %1 = vector.broadcast %c63_i32 : i32 to vector<1x128xi32>
    %2 = arith.andi %0, %1 : vector<1x128xi32>
    %3 = arith.sitofp %2 : vector<1x128xi32> to vector<1x128xf32>
    %cst = arith.constant -0.14391157 : f32
    %4 = vector.broadcast %cst : f32 to vector<1x128xf32>
    %5 = arith.mulf %3, %4 : vector<1x128xf32>
    %6 = math.exp %5 : vector<1x128xf32>
    %7 = arith.index_cast %arg0 : i32 to index
    %8 = memref.load %arg2[%7] : memref<8xf32, #tpu.memory_space<smem>>
    %9 = vector.broadcast %8 : f32 to vector<1x128xf32>
    %10 = arith.mulf %6, %9 : vector<1x128xf32>
    %11 = tpu.iota {dimensions = array<i32: 0>} : vector<256x128xi32>
    %c256_i32 = arith.constant 256 : i32
    %12 = arith.muli %arg1, %c256_i32 : i32
    %13 = vector.broadcast %12 : i32 to vector<256x128xi32>
    %14 = arith.addi %11, %13 : vector<256x128xi32>
    %15 = arith.sitofp %14 : vector<256x128xi32> to vector<256x128xf32>
    %16 = vector.broadcast %10 : vector<1x128xf32> to vector<256x128xf32>
    %17 = arith.mulf %15, %16 : vector<256x128xf32>
    %18 = math.cos %17 : vector<256x128xf32>
    %c0 = arith.constant 0 : index
    %c0_0 = arith.constant 0 : index
    %c0_1 = arith.constant 0 : index
    %19 = vector.load %arg3[%c0, %c0_0, %c0_1] : memref<1x256x128xf32, #tpu.memory_space<vmem>>, vector<1x256x128xf32>
    %20 = vector.shape_cast %19 : vector<1x256x128xf32> to vector<256x128xf32>
    %21 = vector.shape_cast %18 : vector<256x128xf32> to vector<1x256x128xf32>
    tpu.vector_store %arg3[%c0, %c0_0, %c0_1], %21 {strides = array<i32>} : memref<1x256x128xf32, #tpu.memory_space<vmem>>, vector<1x256x128xf32>,
    %22 = math.sin %17 : vector<256x128xf32>
    %c0_2 = arith.constant 0 : index
    %c0_3 = arith.constant 0 : index
    %c0_4 = arith.constant 0 : index
    %23 = vector.load %arg4[%c0_2, %c0_3, %c0_4] : memref<1x256x128xf32, #tpu.memory_space<vmem>>, vector<1x256x128xf32>
    %24 = vector.shape_cast %23 : vector<1x256x128xf32> to vector<256x128xf32>
    %25 = vector.shape_cast %22 : vector<256x128xf32> to vector<1x256x128xf32>
    tpu.vector_store %arg4[%c0_2, %c0_3, %c0_4], %25 {strides = array<i32>} : memref<1x256x128xf32, #tpu.memory_space<vmem>>, vector<1x256x128xf32>,
    return
  }
  func.func @transform_0(%arg0: i32, %arg1: i32) -> i32 {
    %c0_i32 = arith.constant 0 : i32
    %c0_i32_0 = arith.constant 0 : i32
    return %c0_i32 : i32
  }
  func.func @transform_1(%arg0: i32, %arg1: i32) -> (i32, i32, i32) {
    %c0_i32 = arith.constant 0 : i32
    %c0_i32_0 = arith.constant 0 : i32
    return %arg0, %arg1, %c0_i32 : i32, i32, i32
  }
  func.func @transform_2(%arg0: i32, %arg1: i32) -> (i32, i32, i32) {
    %c0_i32 = arith.constant 0 : i32
    %c0_i32_0 = arith.constant 0 : i32
    return %arg0, %arg1, %c0_i32 : i32, i32, i32
  }
}

</mosaic_0001>

<llo_original>
// kernel: tpu_custom_call.1
$region0: #{tpu_custom_call.1}
  #allocation0 [shape = 'u32[]', space=smem, size = 0x4, offset = 0x4, fixed_abs, tag = 'smem constant byte address 0x4 - core index']
  #allocation1 [shape = 'u32[72,128]{1,0:T(1,128)}', space=vmem, size = 0x9000, scoped, tag = 'internal scratch']
  %s0 = inlined_call_operand.hbm [shape: f32[8], index: 0, kind: input, shape index: {}]
  %s1 = inlined_call_operand.hbm [shape: f32[8,256,128], index: 1, kind: output, shape index: {0}]
  %s2 = inlined_call_operand.hbm [shape: f32[8,256,128], index: 2, kind: output, shape index: {1}]
  %3 = xla_tuple %s1, %s2
  %s4 = sld [smem:[#allocation0]]
  $region49: #{tpu_custom_call.1} parent=0
    _
  %s6 = ssub.s32 1, %s4
  %s7 = scalar_select 0, %s6, %s4
  $region1: #{tpu_custom_call.1} parent=0
    #allocation2 [shape = 'u8[512]{0}', space=smem, size = 0x200, scoped, tag = 'input window, operand 0, single buffered']
    #allocation3 [shape = 's32[2]{0}', space=sflag, size = 0x8, scoped, tag = 'scoped memory for tpu_custom_call.1']
    #allocation4 [shape = 's32[2]{0}', space=sflag, size = 0x8, scoped, tag = 'scoped memory for tpu_custom_call.1']
    #allocation5 [shape = 'u8[262144]{0}', space=vmem, size = 0x40000, scoped, tag = 'output window, operand 0']
    #allocation6 [shape = 'u8[262144]{0}', space=vmem, size = 0x40000, scoped, tag = 'output window, operand 1']
    #allocation7 [shape = 's32[2]{0}', space=sflag, size = 0x8, scoped, tag = 'scoped memory for tpu_custom_call.1']
    %8 = vsyncpa [#allocation4], 0
    %9 = vsyncpa [#allocation3], 0
    %s10 = scalar_lea.sflag [#allocation3], 1
    %11 = vsyncpa %s10, 0
    %12 = vsyncpa [#allocation7], 0
    %s13 = scalar_lea.sflag [#allocation7], 1
    %14 = vsyncpa %s13, 0
    loop: start=0, step=1, limit=10
    $region2: #{tpu_custom_call.1} parent=1 // loop_pre_header
      _
    $region3: #{tpu_custom_call.1} parent=1 // loop_header
      %s16 = sphi 0, %s20
      %p17 = scmp.ge.s32.totalorder %s16, 10
      %s23 = sphi 0, %s35
      %s24 = sphi 0, %s31
      %s25 = sphi 0, %s23
      %s26 = sphi 0, %s24
      %s27 = sphi 0, %s25
      %s28 = sphi 0, %s26
      %s36 = sphi 0, %s36
      %s38 = sphi 0, %s36
      %s39 = sphi 0, %s38
      %s53 = sphi 0, %s39
      %s61 = sphi 0, %s63
      %s64 = sphi 0, %s61
      %s65 = sphi 0, %s64
      %s81 = sphi 0, %s65
      %s89 = sphi 0, %s91
      %s92 = sphi 0, %s89
      %s93 = sphi 0, %s92
      %s109 = sphi 0, %s93
    $region4: #{tpu_custom_call.1} parent=1 // loop_header_branch
      %19 = sbr.rel (%p17) target = $region8
    $region5: #{tpu_custom_call.1} parent=1 // loop_body
      %s21 = ssub.s32 %s16, 1
      %s22 = ssub.s32 %s16, 2
      %s29 = sadd.s32 1, %s24
      %p30 = scmp.ge.s32.totalorder %s29, 1
      %s31 = scalar_select %p30, 0, %s29
      %s32 = sadd.s32 1, %s23
      %s33 = scalar_select %p30, %s32, %s23
      %p34 = scmp.ge.s32.totalorder %s33, 8
      %s35 = scalar_select %p34, 0, %s33
      %s37 = sadd.s32 %s36, 1
      %p40 = scmp.eq.s32.totalorder %s16, 7
      %p41 = scmp.ne.s32.totalorder %s36, %s38
      %p42 = scmp.eq.s32.totalorder %s16, 0
      %p43 = por %p41, %p42
      %p44 = scmp.ne.s32.totalorder %s36, %s38
      %p45 = scmp.eq.s32.totalorder %s21, 7
      %p46 = por %p44, %p45
      %p47 = scmp.ne.s32.totalorder %s38, %s39
      %p48 = scmp.eq.s32.totalorder %s21, 0
      %p49 = por %p47, %p48
      %p50 = scmp.ne.s32.totalorder %s38, %s39
      %p51 = scmp.eq.s32.totalorder %s22, 7
      %p52 = por %p50, %p51
      %p54 = scmp.ne.s32.totalorder %s39, %s53
      %p55 = scmp.eq.s32.totalorder %s22, 0
      %p56 = por %p54, %p55
      %s57 = ssub.s32 %s23, %s35
      %s58 = ssub.s32 %s24, %s31
      %s59 = sor.u32 %s57, %s58
      %p60 = scmp.eq.s32.totalorder %s59, 0
      %s62 = sadd.s32 %s61, 1
      %s63 = scalar_select %p60, %s61, %s62
      %p66 = pneg %p60
      %p67 = scmp.eq.s32.totalorder %s16, 7
      %p68 = por %p66, %p67
      %p69 = scmp.ne.s32.totalorder %s61, %s64
      %p70 = scmp.eq.s32.totalorder %s16, 0
      %p71 = por %p69, %p70
      %p72 = scmp.ne.s32.totalorder %s61, %s64
      %p73 = scmp.eq.s32.totalorder %s21, 7
      %p74 = por %p72, %p73
      %p75 = scmp.ne.s32.totalorder %s64, %s65
      %p76 = scmp.eq.s32.totalorder %s21, 0
      %p77 = por %p75, %p76
      %p78 = scmp.ne.s32.totalorder %s64, %s65
      %p79 = scmp.eq.s32.totalorder %s22, 7
      %p80 = por %p78, %p79
      %p82 = scmp.ne.s32.totalorder %s65, %s81
      %p83 = scmp.eq.s32.totalorder %s22, 0
      %p84 = por %p82, %p83
      %s85 = ssub.s32 %s23, %s35
      %s86 = ssub.s32 %s24, %s31
      %s87 = sor.u32 %s85, %s86
      %p88 = scmp.eq.s32.totalorder %s87, 0
      %s90 = sadd.s32 %s89, 1
      %s91 = scalar_select %p88, %s89, %s90
      %p94 = pneg %p88
      %p95 = scmp.eq.s32.totalorder %s16, 7
      %p96 = por %p94, %p95
      %p97 = scmp.ne.s32.totalorder %s89, %s92
      %p98 = scmp.eq.s32.totalorder %s16, 0
      %p99 = por %p97, %p98
      %p100 = scmp.ne.s32.totalorder %s89, %s92
      %p101 = scmp.eq.s32.totalorder %s21, 7
      %p102 = por %p100, %p101
      %p103 = scmp.ne.s32.totalorder %s92, %s93
      %p104 = scmp.eq.s32.totalorder %s21, 0
      %p105 = por %p103, %p104
      %p106 = scmp.ne.s32.totalorder %s92, %s93
      %p107 = scmp.eq.s32.totalorder %s22, 7
      %p108 = por %p106, %p107
      %p110 = scmp.ne.s32.totalorder %s93, %s109
      %p111 = scmp.eq.s32.totalorder %s22, 0
      %p112 = por %p110, %p111
      %p113 = scmp.le.s32.totalorder 1, %s16
      %p114 = scmp.lt.s32.totalorder %s16, 9
      %p115 = pnand %p113, %p114
      %p116 = pneg %p115
      // Predicated region
      $region9: #{tpu_custom_call.1} parent=5 // pred_check
        _
      $region10: #{tpu_custom_call.1} parent=5 // pred_check_branch
        %118 = sbr.rel (%p115) target = $region12
      $region11: #{tpu_custom_call.1} parent=5 // pred_region
        %s119 = ssub.s32 %s16, 1
        // Predicated region
        $region13: #{tpu_custom_call.1} parent=11 // pred_check
          %p120 = pneg %p49
        $region14: #{tpu_custom_call.1} parent=11 // pred_check_branch
          %122 = sbr.rel (%p120) target = $region16
        $region15: #{tpu_custom_call.1} parent=11 // pred_region
          %124 = vsyncadd [#allocation4], 0
          %s126 = sshll.u32 %s0, 4
          %s127 = int_to_ptr.hbm [resolvable:$true] %s126
          %129 = dma.hbm_to_smem %s127, 16, [#allocation2], [#allocation4]
        $region16: #{tpu_custom_call.1} parent=11 // pred_fallthru
          _
      $region12: #{tpu_custom_call.1} parent=5 // pred_fallthru
        _
      %p130 = scmp.lt.s32.totalorder %s16, 8
      // Predicated region
      $region17: #{tpu_custom_call.1} parent=5 // pred_check
        %p131 = pneg %p130
      $region18: #{tpu_custom_call.1} parent=5 // pred_check_branch
        %133 = sbr.rel (%p131) target = $region20
      $region19: #{tpu_custom_call.1} parent=5 // pred_region
        _
      $region20: #{tpu_custom_call.1} parent=5 // pred_fallthru
        _
      %p134 = scmp.le.s32.totalorder 1, %s16
      %p135 = scmp.lt.s32.totalorder %s16, 9
      %p136 = pnand %p134, %p135
      %p137 = pneg %p136
      // Predicated region
      $region21: #{tpu_custom_call.1} parent=5 // pred_check
        _
      $region22: #{tpu_custom_call.1} parent=5 // pred_check_branch
        %139 = sbr.rel (%p136) target = $region24
      $region23: #{tpu_custom_call.1} parent=5 // pred_region
        %s140 = ssub.s32 %s16, 1
        // Predicated region
        $region25: #{tpu_custom_call.1} parent=23 // pred_check
          %p141 = pneg %p49
        $region26: #{tpu_custom_call.1} parent=23 // pred_check_branch
          %143 = sbr.rel (%p141) target = $region28
        $region27: #{tpu_custom_call.1} parent=23 // pred_region
          %145 = dma.done [#allocation4], 16
        $region28: #{tpu_custom_call.1} parent=23 // pred_fallthru
          _
        %146 = sfence
        %p147 = pneg %p49
        %p148 = pneg %p46
        %p149 = pneg %p77
        %p150 = pneg %p74
        %s151 = sand.u32 %s64, 1
        %s152 = scalar_lea.sflag [#allocation3], %s151
        %s153 = sand.u32 %s64, 1
        %s154 = smul.addr %s153, 256
        %s155 = scalar_lea.vmem [#allocation5], %s154
        %p156 = pneg %p105
        %p157 = pneg %p102
        %s158 = sand.u32 %s92, 1
        %s159 = scalar_lea.sflag [#allocation7], %s158
        %s160 = sand.u32 %s92, 1
        %s161 = smul.addr %s160, 256
        %s162 = scalar_lea.vmem [#allocation6], %s161
        %s163 = smul.u32 32, %s26
        %s164 = smul.u32 32, %s26
        %v165 = vlaneseq
        %v166 = vand.u32 %v165, 127
        %v167 = vand.u32 %v166, 63
        %v168 = vcvt.s32.f32 %v167
        %v169 = vmul.f32 %v168, -0.14391157
        %v170 = vmul.f32 %v169, 1.442695
        %v171 = vpow.pop %v170
        %s172 = sld [smem:[#allocation2 + %s25]]
        %v173 = vstv %s172
        %v174 = vmul.f32 %v171, %v173
        %v175 = vlaneseq
        %v176 = vshrl.u32 %v175, 7
        %v177 = vadd.s32 %v176, 8
        %v178 = vadd.s32 %v176, 16
        %v179 = vadd.s32 %v176, 24
        %v180 = vadd.s32 %v176, 32
        %v181 = vadd.s32 %v176, 40
        %v182 = vadd.s32 %v176, 48
        %v183 = vadd.s32 %v176, 56
        %v184 = vadd.s32 %v176, 64
        %v185 = vadd.s32 %v176, 72
        %v186 = vadd.s32 %v176, 80
        %v187 = vadd.s32 %v176, 88
        %v188 = vadd.s32 %v176, 96
        %v189 = vadd.s32 %v176, 104
        %v190 = vadd.s32 %v176, 112
        %v191 = vadd.s32 %v176, 120
        %v192 = vadd.s32 %v176, 128
        %v193 = vadd.s32 %v176, 136
        %v194 = vadd.s32 %v176, 144
        %v195 = vadd.s32 %v176, 152
        %v196 = vadd.s32 %v176, 160
        %v197 = vadd.s32 %v176, 168
        %v198 = vadd.s32 %v176, 176
        %v199 = vadd.s32 %v176, 184
        %v200 = vadd.s32 %v176, 192
        %v201 = vadd.s32 %v176, 200
        %v202 = vadd.s32 %v176, 208
        %v203 = vadd.s32 %v176, 216
        %v204 = vadd.s32 %v176, 224
        %v205 = vadd.s32 %v176, 232
        %v206 = vadd.s32 %v176, 240
        %v207 = vadd.s32 %v176, 248
        %s208 = smul.u32 %s26, 256
        %v209 = vstv %s208
        %v210 = vadd.s32 %v176, %v209
        %v211 = vadd.s32 %v177, %v209
        %v212 = vadd.s32 %v178, %v209
        %v213 = vadd.s32 %v179, %v209
        %v214 = vadd.s32 %v180, %v209
        %v215 = vadd.s32 %v181, %v209
        %v216 = vadd.s32 %v182, %v209
        %v217 = vadd.s32 %v183, %v209
        %v218 = vadd.s32 %v184, %v209
        %v219 = vadd.s32 %v185, %v209
        %v220 = vadd.s32 %v186, %v209
        %v221 = vadd.s32 %v187, %v209
        %v222 = vadd.s32 %v188, %v209
        %v223 = vadd.s32 %v189, %v209
        %v224 = vadd.s32 %v190, %v209
        %v225 = vadd.s32 %v191, %v209
        %v226 = vadd.s32 %v192, %v209
        %v227 = vadd.s32 %v193, %v209
        %v228 = vadd.s32 %v194, %v209
        %v229 = vadd.s32 %v195, %v209
        %v230 = vadd.s32 %v196, %v209
        %v231 = vadd.s32 %v197, %v209
        %v232 = vadd.s32 %v198, %v209
        %v233 = vadd.s32 %v199, %v209
        %v234 = vadd.s32 %v200, %v209
        %v235 = vadd.s32 %v201, %v209
        %v236 = vadd.s32 %v202, %v209
        %v237 = vadd.s32 %v203, %v209
        %v238 = vadd.s32 %v204, %v209
        %v239 = vadd.s32 %v205, %v209
        %v240 = vadd.s32 %v206, %v209
        %v241 = vadd.s32 %v207, %v209
        %v242 = vcvt.s32.f32 %v210
        %v243 = vcvt.s32.f32 %v211
        %v244 = vcvt.s32.f32 %v212
        %v245 = vcvt.s32.f32 %v213
        %v246 = vcvt.s32.f32 %v214
        %v247 = vcvt.s32.f32 %v215
        %v248 = vcvt.s32.f32 %v216
        %v249 = vcvt.s32.f32 %v217
        %v250 = vcvt.s32.f32 %v218
        %v251 = vcvt.s32.f32 %v219
        %v252 = vcvt.s32.f32 %v220
        %v253 = vcvt.s32.f32 %v221
        %v254 = vcvt.s32.f32 %v222
        %v255 = vcvt.s32.f32 %v223
        %v256 = vcvt.s32.f32 %v224
        %v257 = vcvt.s32.f32 %v225
        %v258 = vcvt.s32.f32 %v226
        %v259 = vcvt.s32.f32 %v227
        %v260 = vcvt.s32.f32 %v228
        %v261 = vcvt.s32.f32 %v229
        %v262 = vcvt.s32.f32 %v230
        %v263 = vcvt.s32.f32 %v231
        %v264 = vcvt.s32.f32 %v232
        %v265 = vcvt.s32.f32 %v233
        %v266 = vcvt.s32.f32 %v234
        %v267 = vcvt.s32.f32 %v235
        %v268 = vcvt.s32.f32 %v236
        %v269 = vcvt.s32.f32 %v237
        %v270 = vcvt.s32.f32 %v238
        %v271 = vcvt.s32.f32 %v239
        %v272 = vcvt.s32.f32 %v240
        %v273 = vcvt.s32.f32 %v241
        %v274 = vmul.f32 %v242, %v174
        %v275 = vmul.f32 %v243, %v174
        %v276 = vmul.f32 %v244, %v174
        %v277 = vmul.f32 %v245, %v174
        %v278 = vmul.f32 %v246, %v174
        %v279 = vmul.f32 %v247, %v174
        %v280 = vmul.f32 %v248, %v174
        %v281 = vmul.f32 %v249, %v174
        %v282 = vmul.f32 %v250, %v174
        %v283 = vmul.f32 %v251, %v174
        %v284 = vmul.f32 %v252, %v174
        %v285 = vmul.f32 %v253, %v174
        %v286 = vmul.f32 %v254, %v174
        %v287 = vmul.f32 %v255, %v174
        %v288 = vmul.f32 %v256, %v174
        %v289 = vmul.f32 %v257, %v174
        %v290 = vmul.f32 %v258, %v174
        %v291 = vmul.f32 %v259, %v174
        %v292 = vmul.f32 %v260, %v174
        %v293 = vmul.f32 %v261, %v174
        %v294 = vmul.f32 %v262, %v174
        %v295 = vmul.f32 %v263, %v174
        %v296 = vmul.f32 %v264, %v174
        %v297 = vmul.f32 %v265, %v174
        %v298 = vmul.f32 %v266, %v174
        %v299 = vmul.f32 %v267, %v174
        %v300 = vmul.f32 %v268, %v174
        %v301 = vmul.f32 %v269, %v174
        %v302 = vmul.f32 %v270, %v174
        %v303 = vmul.f32 %v271, %v174
        %v304 = vmul.f32 %v272, %v174
        %v305 = vmul.f32 %v273, %v174
        %v306 = vand.u32 2147483647, %v274
        %vm307 = vcmp.le.f32.partialorder %v306, 0.7853982
        %vm308 = vcmp.lt.s32.totalorder %v274, 0
        %v309 = vand.u32 %v274, 2139095040
        %v310 = vshrl.u32 %v309, 23
        %v311 = vsub.s32 %v310, 127
        %v312 = vand.u32 2147483647, %v274
        %v313 = vand.u32 %v312, 8388607
        %v314 = vor.u32 %v313, 8388608
        %v315 = vsub.s32 0, %v314
        %v316 = vadd.s32 %v311, 1
        %vm317 = vcmp.gt.s32.totalorder %v316, 0
        %v318 = vsel %vm317, %v316, 0
        %v319 = vshrl.u32 %v318, 5
        %v320 = vand.u32 %v318, 31
        %v321 = vsub.s32 32, %v320
        %v322 = vshrl.u32 683565275, %v321
        %v323 = vshll.u32 683565275, %v320
        %v324 = vshrl.u32 2475754826, %v321
        %v325 = vor.u32 %v323, %v324
        %v326 = vshll.u32 2475754826, %v320
        %v327 = vshrl.u32 2131351028, %v321
        %v328 = vor.u32 %v326, %v327
        %v329 = vshll.u32 2131351028, %v320
        %v330 = vshrl.u32 2102212464, %v321
        %v331 = vor.u32 %v329, %v330
        %v332 = vshll.u32 2102212464, %v320
        %v333 = vshrl.u32 920167782, %v321
        %v334 = vor.u32 %v332, %v333
        %v335 = vshll.u32 920167782, %v320
        %v336 = vshrl.u32 1326507024, %v321
        %v337 = vor.u32 %v335, %v336
        %vm338 = vcmp.lt.s32.totalorder %v319, 1
        %vm339 = vcmp.lt.s32.totalorder %v319, 2
        %vm340 = vcmp.lt.s32.totalorder %v319, 3
        %vm341 = vcmp.lt.s32.totalorder %v319, 4
        %v342 = vsel %vm338, %v322, %v325
        %v343 = vsel %vm341, %v331, 2102212464
        %v344 = vsel %vm340, %v328, %v343
        %v345 = vsel %vm339, %v342, %v344
        %v346 = vsel %vm338, %v325, %v328
        %v347 = vsel %vm341, %v334, 920167782
        %v348 = vsel %vm340, %v331, %v347
        %v349 = vsel %vm339, %v346, %v348
        %v350 = vsel %vm338, %v328, %v331
        %v351 = vsel %vm341, %v337, 1326507024
        %v352 = vsel %vm340, %v334, %v351
        %v353 = vsel %vm339, %v350, %v352
        %v354 = vshll.u32 %v314, 8
        %v355 = vand.u32 %v354, 65535
        %v356 = vshrl.u32 %v354, 16
        %v357 = vand.u32 %v353, 65535
        %v358 = vshrl.u32 %v353, 16
        %v359 = vmul.u32 %v355, %v357
        %v360 = vmul.u32 %v355, %v358
        %v361 = vmul.u32 %v356, %v357
        %v362 = vmul.u32 %v356, %v358
        %v363 = vshll.u32 %v360, 16
        %v364 = vshrl.u32 %v360, 16
        %v365 = vshll.u32 %v361, 16
        %v366 = vshrl.u32 %v361, 16
        %vm367 = vc.u32 %v359, %v363
        %v368 = vsel %vm367, 1, 0
        %v369 = vadd.s32 %v359, %v363
        %v370 = vadd.s32 %v362, %v368
        %vm371 = vc.u32 %v369, %v365
        %v372 = vsel %vm371, 1, 0
        %v373 = vadd.s32 %v369, %v365
        %v374 = vadd.s32 %v370, %v372
        %v375 = vadd.s32 %v374, %v364
        %v376 = vadd.s32 %v375, %v366
        %v377 = vand.u32 %v354, 65535
        %v378 = vshrl.u32 %v354, 16
        %v379 = vand.u32 %v349, 65535
        %v380 = vshrl.u32 %v349, 16
        %v381 = vmul.u32 %v377, %v379
        %v382 = vmul.u32 %v377, %v380
        %v383 = vmul.u32 %v378, %v379
        %v384 = vmul.u32 %v378, %v380
        %v385 = vshll.u32 %v382, 16
        %v386 = vshrl.u32 %v382, 16
        %v387 = vshll.u32 %v383, 16
        %v388 = vshrl.u32 %v383, 16
        %vm389 = vc.u32 %v381, %v385
        %v390 = vsel %vm389, 1, 0
        %v391 = vadd.s32 %v381, %v385
        %v392 = vadd.s32 %v384, %v390
        %vm393 = vc.u32 %v391, %v387
        %v394 = vsel %vm393, 1, 0
        %v395 = vadd.s32 %v391, %v387
        %v396 = vadd.s32 %v392, %v394
        %v397 = vadd.s32 %v396, %v386
        %v398 = vadd.s32 %v397, %v388
        %v399 = vmul.u32 %v354, %v345
        %v400 = vadd.s32 %v376, %v395
        %vm401 = vc.u32 %v376, %v395
        %v402 = vadd.s32 %v398, 1
        %v403 = vsel %vm401, %v402, %v398
        %v404 = vadd.s32 %v399, %v403
        %v405 = vadd.s32 %v404, 536870912
        %v406 = vshrl.u32 %v405, 30
        %v407 = vshll.u32 %v406, 30
        %v408 = vsub.s32 %v404, %v407
        %vm409 = vcmp.lt.s32.totalorder %v408, 0
        %v410 = vsub.s32 0, %v408
        %v411 = vsel %vm409, %v410, %v408
        %v412 = vclz %v411
        %v413 = vsub.s32 %v412, 2
        %vm414 = vcmp.gt.s32.totalorder 0, %v413
        %v415 = vsel %vm414, 0, %v413
        %v416 = vsub.s32 32, %v415
        %v417 = vshll.u32 %v408, %v415
        %v418 = vshrl.u32 %v400, %v416
        %v419 = vor.u32 %v417, %v418
        %v420 = vsub.s32 4294967266, %v415
        %v421 = vadd.s32 %v420, 127
        %v422 = vshll.u32 %v421, 23
        %v423 = vor.u32 4788187, %v422
        %v424 = vand.u32 2147483647, %v423
        %v426 = vcvt.s32.f32 %v419
        %v427 = vmul.f32 %v426, %v424
        %v428 = vxor.u32 %v427, 2147483648
        %v429 = vsel %vm308, %v428, %v427
        %v430 = vsub.s32 4, %v406
        %v431 = vsel %vm308, %v430, %v406
        %v432 = vsel %vm307, %v274, %v429
        %v433 = vsel %vm307, 0, %v431
        %v434 = vmul.f32 %v432, %v432
        %v435 = vmul.f32 %v434, -0.001358992
        %v436 = vadd.f32 %v435, 0.041655596
        %v437 = vmul.f32 %v434, %v436
        %v438 = vadd.f32 %v437, -0.4999988
        %v439 = vmul.f32 %v434, %v438
        %v440 = vadd.f32 1.0, %v439
        %v441 = vmul.f32 %v432, %v432
        %v442 = vmul.f32 %v441, -0.00019511016
        %v443 = vadd.f32 %v442, 0.008332121
        %v444 = vmul.f32 %v441, %v443
        %v445 = vadd.f32 %v444, -0.16666654
        %v446 = vmul.f32 %v441, %v445
        %v447 = vadd.f32 %v446, 1.0
        %v448 = vmul.f32 %v447, %v432
        %vm449 = vweird.f32 %v274
        %v450 = vand.u32 %v433, 3
        %vm451 = vcmp.lt.s32.totalorder %v450, 2
        %vm452 = vcmp.eq.s32.totalorder %v450, 0
        %v453 = vxor.u32 %v448, 2147483648
        %v454 = vsel %vm452, %v440, %v453
        %vm455 = vcmp.eq.s32.totalorder %v450, 2
        %v456 = vxor.u32 %v440, 2147483648
        %v457 = vsel %vm455, %v456, %v448
        %v458 = vsel %vm451, %v454, %v457
        %v459 = vsel %vm449, nan, %v458
        %v460 = vand.u32 2147483647, %v275
        %vm461 = vcmp.le.f32.partialorder %v460, 0.7853982
        %vm462 = vcmp.lt.s32.totalorder %v275, 0
        %v463 = vand.u32 %v275, 2139095040
        %v464 = vshrl.u32 %v463, 23
        %v465 = vsub.s32 %v464, 127
        %v466 = vand.u32 2147483647, %v275
        %v467 = vand.u32 %v466, 8388607
        %v468 = vor.u32 %v467, 8388608
        %v469 = vsub.s32 0, %v468
        %v470 = vadd.s32 %v465, 1
        %vm471 = vcmp.gt.s32.totalorder %v470, 0
        %v472 = vsel %vm471, %v470, 0
        %v473 = vshrl.u32 %v472, 5
        %v474 = vand.u32 %v472, 31
        %v475 = vsub.s32 32, %v474
        %v476 = vshrl.u32 683565275, %v475
        %v477 = vshll.u32 683565275, %v474
        %v478 = vshrl.u32 2475754826, %v475
        %v479 = vor.u32 %v477, %v478
        %v480 = vshll.u32 2475754826, %v474
        %v481 = vshrl.u32 2131351028, %v475
        %v482 = vor.u32 %v480, %v481
        %v483 = vshll.u32 2131351028, %v474
        %v484 = vshrl.u32 2102212464, %v475
        %v485 = vor.u32 %v483, %v484
        %v486 = vshll.u32 2102212464, %v474
        %v487 = vshrl.u32 920167782, %v475
        %v488 = vor.u32 %v486, %v487
        %v489 = vshll.u32 920167782, %v474
        %v490 = vshrl.u32 1326507024, %v475
        %v491 = vor.u32 %v489, %v490
        %vm492 = vcmp.lt.s32.totalorder %v473, 1
        %vm493 = vcmp.lt.s32.totalorder %v473, 2
        %vm494 = vcmp.lt.s32.totalorder %v473, 3
        %vm495 = vcmp.lt.s32.totalorder %v473, 4
        %v496 = vsel %vm492, %v476, %v479
        %v497 = vsel %vm495, %v485, 2102212464
        %v498 = vsel %vm494, %v482, %v497
        %v499 = vsel %vm493, %v496, %v498
        %v500 = vsel %vm492, %v479, %v482
        %v501 = vsel %vm495, %v488, 920167782
        %v502 = vsel %vm494, %v485, %v501
        %v503 = vsel %vm493, %v500, %v502
        %v504 = vsel %vm492, %v482, %v485
        %v505 = vsel %vm495, %v491, 1326507024
        %v506 = vsel %vm494, %v488, %v505
        %v507 = vsel %vm493, %v504, %v506
        %v508 = vshll.u32 %v468, 8
        %v509 = vand.u32 %v508, 65535
        %v510 = vshrl.u32 %v508, 16
        %v511 = vand.u32 %v507, 65535
        %v512 = vshrl.u32 %v507, 16
        %v513 = vmul.u32 %v509, %v511
        %v514 = vmul.u32 %v509, %v512
        %v515 = vmul.u32 %v510, %v511
        %v516 = vmul.u32 %v510, %v512
        %v517 = vshll.u32 %v514, 16
        %v518 = vshrl.u32 %v514, 16
        %v519 = vshll.u32 %v515, 16
        %v520 = vshrl.u32 %v515, 16
        %vm521 = vc.u32 %v513, %v517
        %v522 = vsel %vm521, 1, 0
        %v523 = vadd.s32 %v513, %v517
        %v524 = vadd.s32 %v516, %v522
        %vm525 = vc.u32 %v523, %v519
        %v526 = vsel %vm525, 1, 0
        %v527 = vadd.s32 %v523, %v519
        %v528 = vadd.s32 %v524, %v526
        %v529 = vadd.s32 %v528, %v518
        %v530 = vadd.s32 %v529, %v520
        %v531 = vand.u32 %v508, 65535
        %v532 = vshrl.u32 %v508, 16
        %v533 = vand.u32 %v503, 65535
        %v534 = vshrl.u32 %v503, 16
        %v535 = vmul.u32 %v531, %v533
        %v536 = vmul.u32 %v531, %v534
        %v537 = vmul.u32 %v532, %v533
        %v538 = vmul.u32 %v532, %v534
        %v539 = vshll.u32 %v536, 16
        %v540 = vshrl.u32 %v536, 16
        %v541 = vshll.u32 %v537, 16
        %v542 = vshrl.u32 %v537, 16
        %vm543 = vc.u32 %v535, %v539
        %v544 = vsel %vm543, 1, 0
        %v545 = vadd.s32 %v535, %v539
        %v546 = vadd.s32 %v538, %v544
        %vm547 = vc.u32 %v545, %v541
        %v548 = vsel %vm547, 1, 0
        %v549 = vadd.s32 %v545, %v541
        %v550 = vadd.s32 %v546, %v548
        %v551 = vadd.s32 %v550, %v540
        %v552 = vadd.s32 %v551, %v542
        %v553 = vmul.u32 %v508, %v499
        %v554 = vadd.s32 %v530, %v549
        %vm555 = vc.u32 %v530, %v549
        %v556 = vadd.s32 %v552, 1
        %v557 = vsel %vm555, %v556, %v552
        %v558 = vadd.s32 %v553, %v557
        %v559 = vadd.s32 %v558, 536870912
        %v560 = vshrl.u32 %v559, 30
        %v561 = vshll.u32 %v560, 30
        %v562 = vsub.s32 %v558, %v561
        %vm563 = vcmp.lt.s32.totalorder %v562, 0
        %v564 = vsub.s32 0, %v562
        %v565 = vsel %vm563, %v564, %v562
        %v566 = vclz %v565
        %v567 = vsub.s32 %v566, 2
        %vm568 = vcmp.gt.s32.totalorder 0, %v567
        %v569 = vsel %vm568, 0, %v567
        %v570 = vsub.s32 32, %v569
        %v571 = vshll.u32 %v562, %v569
        %v572 = vshrl.u32 %v554, %v570
        %v573 = vor.u32 %v571, %v572
        %v574 = vsub.s32 4294967266, %v569
        %v575 = vadd.s32 %v574, 127
        %v576 = vshll.u32 %v575, 23
        %v577 = vor.u32 4788187, %v576
        %v578 = vand.u32 2147483647, %v577
        %v580 = vcvt.s32.f32 %v573
        %v581 = vmul.f32 %v580, %v578
        %v582 = vxor.u32 %v581, 2147483648
        %v583 = vsel %vm462, %v582, %v581
        %v584 = vsub.s32 4, %v560
        %v585 = vsel %vm462, %v584, %v560
        %v586 = vsel %vm461, %v275, %v583
        %v587 = vsel %vm461, 0, %v585
        %v588 = vmul.f32 %v586, %v586
        %v589 = vmul.f32 %v588, -0.001358992
        %v590 = vadd.f32 %v589, 0.041655596
        %v591 = vmul.f32 %v588, %v590
        %v592 = vadd.f32 %v591, -0.4999988
        %v593 = vmul.f32 %v588, %v592
        %v594 = vadd.f32 1.0, %v593
        %v595 = vmul.f32 %v586, %v586
        %v596 = vmul.f32 %v595, -0.00019511016
        %v597 = vadd.f32 %v596, 0.008332121
        %v598 = vmul.f32 %v595, %v597
        %v599 = vadd.f32 %v598, -0.16666654
        %v600 = vmul.f32 %v595, %v599
        %v601 = vadd.f32 %v600, 1.0
        %v602 = vmul.f32 %v601, %v586
        %vm603 = vweird.f32 %v275
        %v604 = vand.u32 %v587, 3
        %vm605 = vcmp.lt.s32.totalorder %v604, 2
        %vm606 = vcmp.eq.s32.totalorder %v604, 0
        %v607 = vxor.u32 %v602, 2147483648
        %v608 = vsel %vm606, %v594, %v607
        %vm609 = vcmp.eq.s32.totalorder %v604, 2
        %v610 = vxor.u32 %v594, 2147483648
        %v611 = vsel %vm609, %v610, %v602
        %v612 = vsel %vm605, %v608, %v611
        %v613 = vsel %vm603, nan, %v612
        %v614 = vand.u32 2147483647, %v276
        %vm615 = vcmp.le.f32.partialorder %v614, 0.7853982
        %vm616 = vcmp.lt.s32.totalorder %v276, 0
        %v617 = vand.u32 %v276, 2139095040
        %v618 = vshrl.u32 %v617, 23
        %v619 = vsub.s32 %v618, 127
        %v620 = vand.u32 2147483647, %v276
        %v621 = vand.u32 %v620, 8388607
        %v622 = vor.u32 %v621, 8388608
        %v623 = vsub.s32 0, %v622
        %v624 = vadd.s32 %v619, 1
        %vm625 = vcmp.gt.s32.totalorder %v624, 0
        %v626 = vsel %vm625, %v624, 0
        %v627 = vshrl.u32 %v626, 5
        %v628 = vand.u32 %v626, 31
        %v629 = vsub.s32 32, %v628
        %v630 = vshrl.u32 683565275, %v629
        %v631 = vshll.u32 683565275, %v628
        %v632 = vshrl.u32 2475754826, %v629
        %v633 = vor.u32 %v631, %v632
        %v634 = vshll.u32 2475754826, %v628
        %v635 = vshrl.u32 2131351028, %v629
        %v636 = vor.u32 %v634, %v635
        %v637 = vshll.u32 2131351028, %v628
        %v638 = vshrl.u32 2102212464, %v629
        %v639 = vor.u32 %v637, %v638
        %v640 = vshll.u32 2102212464, %v628
        %v641 = vshrl.u32 920167782, %v629
        %v642 = vor.u32 %v640, %v641
        %v643 = vshll.u32 920167782, %v628
        %v644 = vshrl.u32 1326507024, %v629
        %v645 = vor.u32 %v643, %v644
        %vm646 = vcmp.lt.s32.totalorder %v627, 1
        %vm647 = vcmp.lt.s32.totalorder %v627, 2
        %vm648 = vcmp.lt.s32.totalorder %v627, 3
        %vm649 = vcmp.lt.s32.totalorder %v627, 4
        %v650 = vsel %vm646, %v630, %v633
        %v651 = vsel %vm649, %v639, 2102212464
        %v652 = vsel %vm648, %v636, %v651
        %v653 = vsel %vm647, %v650, %v652
        %v654 = vsel %vm646, %v633, %v636
        %v655 = vsel %vm649, %v642, 920167782
        %v656 = vsel %vm648, %v639, %v655
        %v657 = vsel %vm647, %v654, %v656
        %v658 = vsel %vm646, %v636, %v639
        %v659 = vsel %vm649, %v645, 1326507024
        %v660 = vsel %vm648, %v642, %v659
        %v661 = vsel %vm647, %v658, %v660
        %v662 = vshll.u32 %v622, 8
        %v663 = vand.u32 %v662, 65535
        %v664 = vshrl.u32 %v662, 16
        %v665 = vand.u32 %v661, 65535
        %v666 = vshrl.u32 %v661, 16
        %v667 = vmul.u32 %v663, %v665
        %v668 = vmul.u32 %v663, %v666
        %v669 = vmul.u32 %v664, %v665
        %v670 = vmul.u32 %v664, %v666
        %v671 = vshll.u32 %v668, 16
        %v672 = vshrl.u32 %v668, 16
        %v673 = vshll.u32 %v669, 16
        %v674 = vshrl.u32 %v669, 16
        %vm675 = vc.u32 %v667, %v671
        %v676 = vsel %vm675, 1, 0
        %v677 = vadd.s32 %v667, %v671
        %v678 = vadd.s32 %v670, %v676
        %vm679 = vc.u32 %v677, %v673
        %v680 = vsel %vm679, 1, 0
        %v681 = vadd.s32 %v677, %v673
        %v682 = vadd.s32 %v678, %v680
        %v683 = vadd.s32 %v682, %v672
        %v684 = vadd.s32 %v683, %v674
        %v685 = vand.u32 %v662, 65535
        %v686 = vshrl.u32 %v662, 16
        %v687 = vand.u32 %v657, 65535
        %v688 = vshrl.u32 %v657, 16
        %v689 = vmul.u32 %v685, %v687
        %v690 = vmul.u32 %v685, %v688
        %v691 = vmul.u32 %v686, %v687
        %v692 = vmul.u32 %v686, %v688
        %v693 = vshll.u32 %v690, 16
        %v694 = vshrl.u32 %v690, 16
        %v695 = vshll.u32 %v691, 16
        %v696 = vshrl.u32 %v691, 16
        %vm697 = vc.u32 %v689, %v693
        %v698 = vsel %vm697, 1, 0
        %v699 = vadd.s32 %v689, %v693
        %v700 = vadd.s32 %v692, %v698
        %vm701 = vc.u32 %v699, %v695
        %v702 = vsel %vm701, 1, 0
        %v703 = vadd.s32 %v699, %v695
        %v704 = vadd.s32 %v700, %v702
        %v705 = vadd.s32 %v704, %v694
        %v706 = vadd.s32 %v705, %v696
        %v707 = vmul.u32 %v662, %v653
        %v708 = vadd.s32 %v684, %v703
        %vm709 = vc.u32 %v684, %v703
        %v710 = vadd.s32 %v706, 1
        %v711 = vsel %vm709, %v710, %v706
        %v712 = vadd.s32 %v707, %v711
        %v713 = vadd.s32 %v712, 536870912
        %v714 = vshrl.u32 %v713, 30
        %v715 = vshll.u32 %v714, 30
        %v716 = vsub.s32 %v712, %v715
        %vm717 = vcmp.lt.s32.totalorder %v716, 0
        %v718 = vsub.s32 0, %v716
        %v719 = vsel %vm717, %v718, %v716
        %v720 = vclz %v719
        %v721 = vsub.s32 %v720, 2
        %vm722 = vcmp.gt.s32.totalorder 0, %v721
        %v723 = vsel %vm722, 0, %v721
        %v724 = vsub.s32 32, %v723
        %v725 = vshll.u32 %v716, %v723
        %v726 = vshrl.u32 %v708, %v724
        %v727 = vor.u32 %v725, %v726
        %v728 = vsub.s32 4294967266, %v723
        %v729 = vadd.s32 %v728, 127
        %v730 = vshll.u32 %v729, 23
        %v731 = vor.u32 4788187, %v730
        %v732 = vand.u32 2147483647, %v731
        %v734 = vcvt.s32.f32 %v727
        %v735 = vmul.f32 %v734, %v732
        %v736 = vxor.u32 %v735, 2147483648
        %v737 = vsel %vm616, %v736, %v735
        %v738 = vsub.s32 4, %v714
        %v739 = vsel %vm616, %v738, %v714
        %v740 = vsel %vm615, %v276, %v737
        %v741 = vsel %vm615, 0, %v739
        %v742 = vmul.f32 %v740, %v740
        %v743 = vmul.f32 %v742, -0.001358992
        %v744 = vadd.f32 %v743, 0.041655596
        %v745 = vmul.f32 %v742, %v744
        %v746 = vadd.f32 %v745, -0.4999988
        %v747 = vmul.f32 %v742, %v746
        %v748 = vadd.f32 1.0, %v747
        %v749 = vmul.f32 %v740, %v740
        %v750 = vmul.f32 %v749, -0.00019511016
        %v751 = vadd.f32 %v750, 0.008332121
        %v752 = vmul.f32 %v749, %v751
        %v753 = vadd.f32 %v752, -0.16666654
        %v754 = vmul.f32 %v749, %v753
        %v755 = vadd.f32 %v754, 1.0
        %v756 = vmul.f32 %v755, %v740
        %vm757 = vweird.f32 %v276
        %v758 = vand.u32 %v741, 3
        %vm759 = vcmp.lt.s32.totalorder %v758, 2
        %vm760 = vcmp.eq.s32.totalorder %v758, 0
        %v761 = vxor.u32 %v756, 2147483648
        %v762 = vsel %vm760, %v748, %v761
        %vm763 = vcmp.eq.s32.totalorder %v758, 2
        %v764 = vxor.u32 %v748, 2147483648
        %v765 = vsel %vm763, %v764, %v756
        %v766 = vsel %vm759, %v762, %v765
        %v767 = vsel %vm757, nan, %v766
        %v768 = vand.u32 2147483647, %v277
        %vm769 = vcmp.le.f32.partialorder %v768, 0.7853982
        %vm770 = vcmp.lt.s32.totalorder %v277, 0
        %v771 = vand.u32 %v277, 2139095040
        %v772 = vshrl.u32 %v771, 23
        %v773 = vsub.s32 %v772, 127
        %v774 = vand.u32 2147483647, %v277
        %v775 = vand.u32 %v774, 8388607
        %v776 = vor.u32 %v775, 8388608
        %v777 = vsub.s32 0, %v776
        %v778 = vadd.s32 %v773, 1
        %vm779 = vcmp.gt.s32.totalorder %v778, 0
        %v780 = vsel %vm779, %v778, 0
        %v781 = vshrl.u32 %v780, 5
        %v782 = vand.u32 %v780, 31
        %v783 = vsub.s32 32, %v782
        %v784 = vshrl.u32 683565275, %v783
        %v785 = vshll.u32 683565275, %v782
        %v786 = vshrl.u32 2475754826, %v783
        %v787 = vor.u32 %v785, %v786
        %v788 = vshll.u32 2475754826, %v782
        %v789 = vshrl.u32 2131351028, %v783
        %v790 = vor.u32 %v788, %v789
        %v791 = vshll.u32 2131351028, %v782
        %v792 = vshrl.u32 2102212464, %v783
        %v793 = vor.u32 %v791, %v792
        %v794 = vshll.u32 2102212464, %v782
        %v795 = vshrl.u32 920167782, %v783
        %v796 = vor.u32 %v794, %v795
        %v797 = vshll.u32 920167782, %v782
        %v798 = vshrl.u32 1326507024, %v783
        %v799 = vor.u32 %v797, %v798
        %vm800 = vcmp.lt.s32.totalorder %v781, 1
        %vm801 = vcmp.lt.s32.totalorder %v781, 2
        %vm802 = vcmp.lt.s32.totalorder %v781, 3
        %vm803 = vcmp.lt.s32.totalorder %v781, 4
        %v804 = vsel %vm800, %v784, %v787
        %v805 = vsel %vm803, %v793, 2102212464
        %v806 = vsel %vm802, %v790, %v805
        %v807 = vsel %vm801, %v804, %v806
        %v808 = vsel %vm800, %v787, %v790
        %v809 = vsel %vm803, %v796, 920167782
        %v810 = vsel %vm802, %v793, %v809
        %v811 = vsel %vm801, %v808, %v810
        %v812 = vsel %vm800, %v790, %v793
        %v813 = vsel %vm803, %v799, 1326507024
        %v814 = vsel %vm802, %v796, %v813
        %v815 = vsel %vm801, %v812, %v814
        %v816 = vshll.u32 %v776, 8
        %v817 = vand.u32 %v816, 65535
        %v818 = vshrl.u32 %v816, 16
        %v819 = vand.u32 %v815, 65535
        %v820 = vshrl.u32 %v815, 16
        %v821 = vmul.u32 %v817, %v819
        %v822 = vmul.u32 %v817, %v820
        %v823 = vmul.u32 %v818, %v819
        %v824 = vmul.u32 %v818, %v820
        %v825 = vshll.u32 %v822, 16
        %v826 = vshrl.u32 %v822, 16
        %v827 = vshll.u32 %v823, 16
        %v828 = vshrl.u32 %v823, 16
        %vm829 = vc.u32 %v821, %v825
        %v830 = vsel %vm829, 1, 0
        %v831 = vadd.s32 %v821, %v825
        %v832 = vadd.s32 %v824, %v830
        %vm833 = vc.u32 %v831, %v827
        %v834 = vsel %vm833, 1, 0
        %v835 = vadd.s32 %v831, %v827
        %v836 = vadd.s32 %v832, %v834
        %v837 = vadd.s32 %v836, %v826
        %v838 = vadd.s32 %v837, %v828
        %v839 = vand.u32 %v816, 65535
        %v840 = vshrl.u32 %v816, 16
        %v841 = vand.u32 %v811, 65535
        %v842 = vshrl.u32 %v811, 16
        %v843 = vmul.u32 %v839, %v841
        %v844 = vmul.u32 %v839, %v842
        %v845 = vmul.u32 %v840, %v841
        %v846 = vmul.u32 %v840, %v842
        %v847 = vshll.u32 %v844, 16
        %v848 = vshrl.u32 %v844, 16
        %v849 = vshll.u32 %v845, 16
        %v850 = vshrl.u32 %v845, 16
        %vm851 = vc.u32 %v843, %v847
        %v852 = vsel %vm851, 1, 0
        %v853 = vadd.s32 %v843, %v847
        %v854 = vadd.s32 %v846, %v852
        %vm855 = vc.u32 %v853, %v849
        %v856 = vsel %vm855, 1, 0
        %v857 = vadd.s32 %v853, %v849
        %v858 = vadd.s32 %v854, %v856
        %v859 = vadd.s32 %v858, %v848
        %v860 = vadd.s32 %v859, %v850
        %v861 = vmul.u32 %v816, %v807
        %v862 = vadd.s32 %v838, %v857
        %vm863 = vc.u32 %v838, %v857
        %v864 = vadd.s32 %v860, 1
        %v865 = vsel %vm863, %v864, %v860
        %v866 = vadd.s32 %v861, %v865
        %v867 = vadd.s32 %v866, 536870912
        %v868 = vshrl.u32 %v867, 30
        %v869 = vshll.u32 %v868, 30
        %v870 = vsub.s32 %v866, %v869
        %vm871 = vcmp.lt.s32.totalorder %v870, 0
        %v872 = vsub.s32 0, %v870
        %v873 = vsel %vm871, %v872, %v870
        %v874 = vclz %v873
        %v875 = vsub.s32 %v874, 2
        %vm876 = vcmp.gt.s32.totalorder 0, %v875
        %v877 = vsel %vm876, 0, %v875
        %v878 = vsub.s32 32, %v877
        %v879 = vshll.u32 %v870, %v877
        %v880 = vshrl.u32 %v862, %v878
        %v881 = vor.u32 %v879, %v880
        %v882 = vsub.s32 4294967266, %v877
        %v883 = vadd.s32 %v882, 127
        %v884 = vshll.u32 %v883, 23
        %v885 = vor.u32 4788187, %v884
        %v886 = vand.u32 2147483647, %v885
        %v888 = vcvt.s32.f32 %v881
        %v889 = vmul.f32 %v888, %v886
        %v890 = vxor.u32 %v889, 2147483648
        %v891 = vsel %vm770, %v890, %v889
        %v892 = vsub.s32 4, %v868
        %v893 = vsel %vm770, %v892, %v868
        %v894 = vsel %vm769, %v277, %v891
        %v895 = vsel %vm769, 0, %v893
        %v896 = vmul.f32 %v894, %v894
        %v897 = vmul.f32 %v896, -0.001358992
        %v898 = vadd.f32 %v897, 0.041655596
        %v899 = vmul.f32 %v896, %v898
        %v900 = vadd.f32 %v899, -0.4999988
        %v901 = vmul.f32 %v896, %v900
        %v902 = vadd.f32 1.0, %v901
        %v903 = vmul.f32 %v894, %v894
        %v904 = vmul.f32 %v903, -0.00019511016
        %v905 = vadd.f32 %v904, 0.008332121
        %v906 = vmul.f32 %v903, %v905
        %v907 = vadd.f32 %v906, -0.16666654
        %v908 = vmul.f32 %v903, %v907
        %v909 = vadd.f32 %v908, 1.0
        %v910 = vmul.f32 %v909, %v894
        %vm911 = vweird.f32 %v277
        %v912 = vand.u32 %v895, 3
        %vm913 = vcmp.lt.s32.totalorder %v912, 2
        %vm914 = vcmp.eq.s32.totalorder %v912, 0
        %v915 = vxor.u32 %v910, 2147483648
        %v916 = vsel %vm914, %v902, %v915
        %vm917 = vcmp.eq.s32.totalorder %v912, 2
        %v918 = vxor.u32 %v902, 2147483648
        %v919 = vsel %vm917, %v918, %v910
        %v920 = vsel %vm913, %v916, %v919
        %v921 = vsel %vm911, nan, %v920
        %v922 = vand.u32 2147483647, %v278
        %vm923 = vcmp.le.f32.partialorder %v922, 0.7853982
        %vm924 = vcmp.lt.s32.totalorder %v278, 0
        %v925 = vand.u32 %v278, 2139095040
        %v926 = vshrl.u32 %v925, 23
        %v927 = vsub.s32 %v926, 127
        %v928 = vand.u32 2147483647, %v278
        %v929 = vand.u32 %v928, 8388607
        %v930 = vor.u32 %v929, 8388608
        %v931 = vsub.s32 0, %v930
        %v932 = vadd.s32 %v927, 1
        %vm933 = vcmp.gt.s32.totalorder %v932, 0
        %v934 = vsel %vm933, %v932, 0
        %v935 = vshrl.u32 %v934, 5
        %v936 = vand.u32 %v934, 31
        %v937 = vsub.s32 32, %v936
        %v938 = vshrl.u32 683565275, %v937
        %v939 = vshll.u32 683565275, %v936
        %v940 = vshrl.u32 2475754826, %v937
        %v941 = vor.u32 %v939, %v940
        %v942 = vshll.u32 2475754826, %v936
        %v943 = vshrl.u32 2131351028, %v937
        %v944 = vor.u32 %v942, %v943
        %v945 = vshll.u32 2131351028, %v936
        %v946 = vshrl.u32 2102212464, %v937
        %v947 = vor.u32 %v945, %v946
        %v948 = vshll.u32 2102212464, %v936
        %v949 = vshrl.u32 920167782, %v937
        %v950 = vor.u32 %v948, %v949
        %v951 = vshll.u32 920167782, %v936
        %v952 = vshrl.u32 1326507024, %v937
        %v953 = vor.u32 %v951, %v952
        %vm954 = vcmp.lt.s32.totalorder %v935, 1
        %vm955 = vcmp.lt.s32.totalorder %v935, 2
        %vm956 = vcmp.lt.s32.totalorder %v935, 3
        %vm957 = vcmp.lt.s32.totalorder %v935, 4
        %v958 = vsel %vm954, %v938, %v941
        %v959 = vsel %vm957, %v947, 2102212464
        %v960 = vsel %vm956, %v944, %v959
        %v961 = vsel %vm955, %v958, %v960
        %v962 = vsel %vm954, %v941, %v944
        %v963 = vsel %vm957, %v950, 920167782
        %v964 = vsel %vm956, %v947, %v963
        %v965 = vsel %vm955, %v962, %v964
        %v966 = vsel %vm954, %v944, %v947
        %v967 = vsel %vm957, %v953, 1326507024
        %v968 = vsel %vm956, %v950, %v967
        %v969 = vsel %vm955, %v966, %v968
        %v970 = vshll.u32 %v930, 8
        %v971 = vand.u32 %v970, 65535
        %v972 = vshrl.u32 %v970, 16
        %v973 = vand.u32 %v969, 65535
        %v974 = vshrl.u32 %v969, 16
        %v975 = vmul.u32 %v971, %v973
        %v976 = vmul.u32 %v971, %v974
        %v977 = vmul.u32 %v972, %v973
        %v978 = vmul.u32 %v972, %v974
        %v979 = vshll.u32 %v976, 16
        %v980 = vshrl.u32 %v976, 16
        %v981 = vshll.u32 %v977, 16
        %v982 = vshrl.u32 %v977, 16
        %vm983 = vc.u32 %v975, %v979
        %v984 = vsel %vm983, 1, 0
        %v985 = vadd.s32 %v975, %v979
        %v986 = vadd.s32 %v978, %v984
        %vm987 = vc.u32 %v985, %v981
        %v988 = vsel %vm987, 1, 0
        %v989 = vadd.s32 %v985, %v981
        %v990 = vadd.s32 %v986, %v988
        %v991 = vadd.s32 %v990, %v980
        %v992 = vadd.s32 %v991, %v982
        %v993 = vand.u32 %v970, 65535
        %v994 = vshrl.u32 %v970, 16
        %v995 = vand.u32 %v965, 65535
        %v996 = vshrl.u32 %v965, 16
        %v997 = vmul.u32 %v993, %v995
        %v998 = vmul.u32 %v993, %v996
        %v999 = vmul.u32 %v994, %v995
        %v1000 = vmul.u32 %v994, %v996
        %v1001 = vshll.u32 %v998, 16
        %v1002 = vshrl.u32 %v998, 16
        %v1003 = vshll.u32 %v999, 16
        %v1004 = vshrl.u32 %v999, 16
        %vm1005 = vc.u32 %v997, %v1001
        %v1006 = vsel %vm1005, 1, 0
        %v1007 = vadd.s32 %v997, %v1001
        %v1008 = vadd.s32 %v1000, %v1006
        %vm1009 = vc.u32 %v1007, %v1003
        %v1010 = vsel %vm1009, 1, 0
        %v1011 = vadd.s32 %v1007, %v1003
        %v1012 = vadd.s32 %v1008, %v1010
        %v1013 = vadd.s32 %v1012, %v1002
        %v1014 = vadd.s32 %v1013, %v1004
        %v1015 = vmul.u32 %v970, %v961
        %v1016 = vadd.s32 %v992, %v1011
        %vm1017 = vc.u32 %v992, %v1011
        %v1018 = vadd.s32 %v1014, 1
        %v1019 = vsel %vm1017, %v1018, %v1014
        %v1020 = vadd.s32 %v1015, %v1019
        %v1021 = vadd.s32 %v1020, 536870912
        %v1022 = vshrl.u32 %v1021, 30
        %v1023 = vshll.u32 %v1022, 30
        %v1024 = vsub.s32 %v1020, %v1023
        %vm1025 = vcmp.lt.s32.totalorder %v1024, 0
        %v1026 = vsub.s32 0, %v1024
        %v1027 = vsel %vm1025, %v1026, %v1024
        %v1028 = vclz %v1027
        %v1029 = vsub.s32 %v1028, 2
        %vm1030 = vcmp.gt.s32.totalorder 0, %v1029
        %v1031 = vsel %vm1030, 0, %v1029
        %v1032 = vsub.s32 32, %v1031
        %v1033 = vshll.u32 %v1024, %v1031
        %v1034 = vshrl.u32 %v1016, %v1032
        %v1035 = vor.u32 %v1033, %v1034
        %v1036 = vsub.s32 4294967266, %v1031
        %v1037 = vadd.s32 %v1036, 127
        %v1038 = vshll.u32 %v1037, 23
        %v1039 = vor.u32 4788187, %v1038
        %v1040 = vand.u32 2147483647, %v1039
        %v1042 = vcvt.s32.f32 %v1035
        %v1043 = vmul.f32 %v1042, %v1040
        %v1044 = vxor.u32 %v1043, 2147483648
        %v1045 = vsel %vm924, %v1044, %v1043
        %v1046 = vsub.s32 4, %v1022
        %v1047 = vsel %vm924, %v1046, %v1022
        %v1048 = vsel %vm923, %v278, %v1045
        %v1049 = vsel %vm923, 0, %v1047
        %v1050 = vmul.f32 %v1048, %v1048
        %v1051 = vmul.f32 %v1050, -0.001358992
        %v1052 = vadd.f32 %v1051, 0.041655596
        %v1053 = vmul.f32 %v1050, %v1052
        %v1054 = vadd.f32 %v1053, -0.4999988
        %v1055 = vmul.f32 %v1050, %v1054
        %v1056 = vadd.f32 1.0, %v1055
        %v1057 = vmul.f32 %v1048, %v1048
        %v1058 = vmul.f32 %v1057, -0.00019511016
        %v1059 = vadd.f32 %v1058, 0.008332121
        %v1060 = vmul.f32 %v1057, %v1059
        %v1061 = vadd.f32 %v1060, -0.16666654
        %v1062 = vmul.f32 %v1057, %v1061
        %v1063 = vadd.f32 %v1062, 1.0
        %v1064 = vmul.f32 %v1063, %v1048
        %vm1065 = vweird.f32 %v278
        %v1066 = vand.u32 %v1049, 3
        %vm1067 = vcmp.lt.s32.totalorder %v1066, 2
        %vm1068 = vcmp.eq.s32.totalorder %v1066, 0
        %v1069 = vxor.u32 %v1064, 2147483648
        %v1070 = vsel %vm1068, %v1056, %v1069
        %vm1071 = vcmp.eq.s32.totalorder %v1066, 2
        %v1072 = vxor.u32 %v1056, 2147483648
        %v1073 = vsel %vm1071, %v1072, %v1064
        %v1074 = vsel %vm1067, %v1070, %v1073
        %v1075 = vsel %vm1065, nan, %v1074
        %v1076 = vand.u32 2147483647, %v279
        %vm1077 = vcmp.le.f32.partialorder %v1076, 0.7853982
        %vm1078 = vcmp.lt.s32.totalorder %v279, 0
        %v1079 = vand.u32 %v279, 2139095040
        %v1080 = vshrl.u32 %v1079, 23
        %v1081 = vsub.s32 %v1080, 127
        %v1082 = vand.u32 2147483647, %v279
        %v1083 = vand.u32 %v1082, 8388607
        %v1084 = vor.u32 %v1083, 8388608
        %v1085 = vsub.s32 0, %v1084
        %v1086 = vadd.s32 %v1081, 1
        %vm1087 = vcmp.gt.s32.totalorder %v1086, 0
        %v1088 = vsel %vm1087, %v1086, 0
        %v1089 = vshrl.u32 %v1088, 5
        %v1090 = vand.u32 %v1088, 31
        %v1091 = vsub.s32 32, %v1090
        %v1092 = vshrl.u32 683565275, %v1091
        %v1093 = vshll.u32 683565275, %v1090
        %v1094 = vshrl.u32 2475754826, %v1091
        %v1095 = vor.u32 %v1093, %v1094
        %v1096 = vshll.u32 2475754826, %v1090
        %v1097 = vshrl.u32 2131351028, %v1091
        %v1098 = vor.u32 %v1096, %v1097
        %v1099 = vshll.u32 2131351028, %v1090
        %v1100 = vshrl.u32 2102212464, %v1091
        %v1101 = vor.u32 %v1099, %v1100
        %v1102 = vshll.u32 2102212464, %v1090
        %v1103 = vshrl.u32 920167782, %v1091
        %v1104 = vor.u32 %v1102, %v1103
        %v1105 = vshll.u32 920167782, %v1090
        %v1106 = vshrl.u32 1326507024, %v1091
        %v1107 = vor.u32 %v1105, %v1106
        %vm1108 = vcmp.lt.s32.totalorder %v1089, 1
        %vm1109 = vcmp.lt.s32.totalorder %v1089, 2
        %vm1110 = vcmp.lt.s32.totalorder %v1089, 3
        %vm1111 = vcmp.lt.s32.totalorder %v1089, 4
        %v1112 = vsel %vm1108, %v1092, %v1095
        %v1113 = vsel %vm1111, %v1101, 2102212464
        %v1114 = vsel %vm1110, %v1098, %v1113
        %v1115 = vsel %vm1109, %v1112, %v1114
        %v1116 = vsel %vm1108, %v1095, %v1098
        %v1117 = vsel %vm1111, %v1104, 920167782
        %v1118 = vsel %vm1110, %v1101, %v1117
        %v1119 = vsel %vm1109, %v1116, %v1118
        %v1120 = vsel %vm1108, %v1098, %v1101
        %v1121 = vsel %vm1111, %v1107, 1326507024
        %v1122 = vsel %vm1110, %v1104, %v1121
        %v1123 = vsel %vm1109, %v1120, %v1122
        %v1124 = vshll.u32 %v1084, 8
        %v1125 = vand.u32 %v1124, 65535
        %v1126 = vshrl.u32 %v1124, 16
        %v1127 = vand.u32 %v1123, 65535
        %v1128 = vshrl.u32 %v1123, 16
        %v1129 = vmul.u32 %v1125, %v1127
        %v1130 = vmul.u32 %v1125, %v1128
        %v1131 = vmul.u32 %v1126, %v1127
        %v1132 = vmul.u32 %v1126, %v1128
        %v1133 = vshll.u32 %v1130, 16
        %v1134 = vshrl.u32 %v1130, 16
        %v1135 = vshll.u32 %v1131, 16
        %v1136 = vshrl.u32 %v1131, 16
        %vm1137 = vc.u32 %v1129, %v1133
        %v1138 = vsel %vm1137, 1, 0
        %v1139 = vadd.s32 %v1129, %v1133
        %v1140 = vadd.s32 %v1132, %v1138
        %vm1141 = vc.u32 %v1139, %v1135
        %v1142 = vsel %vm1141, 1, 0
        %v1143 = vadd.s32 %v1139, %v1135
        %v1144 = vadd.s32 %v1140, %v1142
        %v1145 = vadd.s32 %v1144, %v1134
        %v1146 = vadd.s32 %v1145, %v1136
        %v1147 = vand.u32 %v1124, 65535
        %v1148 = vshrl.u32 %v1124, 16
        %v1149 = vand.u32 %v1119, 65535
        %v1150 = vshrl.u32 %v1119, 16
        %v1151 = vmul.u32 %v1147, %v1149
        %v1152 = vmul.u32 %v1147, %v1150
        %v1153 = vmul.u32 %v1148, %v1149
        %v1154 = vmul.u32 %v1148, %v1150
        %v1155 = vshll.u32 %v1152, 16
        %v1156 = vshrl.u32 %v1152, 16
        %v1157 = vshll.u32 %v1153, 16
        %v1158 = vshrl.u32 %v1153, 16
        %vm1159 = vc.u32 %v1151, %v1155
        %v1160 = vsel %vm1159, 1, 0
        %v1161 = vadd.s32 %v1151, %v1155
        %v1162 = vadd.s32 %v1154, %v1160
        %vm1163 = vc.u32 %v1161, %v1157
        %v1164 = vsel %vm1163, 1, 0
        %v1165 = vadd.s32 %v1161, %v1157
        %v1166 = vadd.s32 %v1162, %v1164
        %v1167 = vadd.s32 %v1166, %v1156
        %v1168 = vadd.s32 %v1167, %v1158
        %v1169 = vmul.u32 %v1124, %v1115
        %v1170 = vadd.s32 %v1146, %v1165
        %vm1171 = vc.u32 %v1146, %v1165
        %v1172 = vadd.s32 %v1168, 1
        %v1173 = vsel %vm1171, %v1172, %v1168
        %v1174 = vadd.s32 %v1169, %v1173
        %v1175 = vadd.s32 %v1174, 536870912
        %v1176 = vshrl.u32 %v1175, 30
        %v1177 = vshll.u32 %v1176, 30
        %v1178 = vsub.s32 %v1174, %v1177
        %vm1179 = vcmp.lt.s32.totalorder %v1178, 0
        %v1180 = vsub.s32 0, %v1178
        %v1181 = vsel %vm1179, %v1180, %v1178
        %v1182 = vclz %v1181
        %v1183 = vsub.s32 %v1182, 2
        %vm1184 = vcmp.gt.s32.totalorder 0, %v1183
        %v1185 = vsel %vm1184, 0, %v1183
        %v1186 = vsub.s32 32, %v1185
        %v1187 = vshll.u32 %v1178, %v1185
        %v1188 = vshrl.u32 %v1170, %v1186
        %v1189 = vor.u32 %v1187, %v1188
        %v1190 = vsub.s32 4294967266, %v1185
        %v1191 = vadd.s32 %v1190, 127
        %v1192 = vshll.u32 %v1191, 23
        %v1193 = vor.u32 4788187, %v1192
        %v1194 = vand.u32 2147483647, %v1193
        %v1196 = vcvt.s32.f32 %v1189
        %v1197 = vmul.f32 %v1196, %v1194
        %v1198 = vxor.u32 %v1197, 2147483648
        %v1199 = vsel %vm1078, %v1198, %v1197
        %v1200 = vsub.s32 4, %v1176
        %v1201 = vsel %vm1078, %v1200, %v1176
        %v1202 = vsel %vm1077, %v279, %v1199
        %v1203 = vsel %vm1077, 0, %v1201
        %v1204 = vmul.f32 %v1202, %v1202
        %v1205 = vmul.f32 %v1204, -0.001358992
        %v1206 = vadd.f32 %v1205, 0.041655596
        %v1207 = vmul.f32 %v1204, %v1206
        %v1208 = vadd.f32 %v1207, -0.4999988
        %v1209 = vmul.f32 %v1204, %v1208
        %v1210 = vadd.f32 1.0, %v1209
        %v1211 = vmul.f32 %v1202, %v1202
        %v1212 = vmul.f32 %v1211, -0.00019511016
        %v1213 = vadd.f32 %v1212, 0.008332121
        %v1214 = vmul.f32 %v1211, %v1213
        %v1215 = vadd.f32 %v1214, -0.16666654
        %v1216 = vmul.f32 %v1211, %v1215
        %v1217 = vadd.f32 %v1216, 1.0
        %v1218 = vmul.f32 %v1217, %v1202
        %vm1219 = vweird.f32 %v279
        %v1220 = vand.u32 %v1203, 3
        %vm1221 = vcmp.lt.s32.totalorder %v1220, 2
        %vm1222 = vcmp.eq.s32.totalorder %v1220, 0
        %v1223 = vxor.u32 %v1218, 2147483648
        %v1224 = vsel %vm1222, %v1210, %v1223
        %vm1225 = vcmp.eq.s32.totalorder %v1220, 2
        %v1226 = vxor.u32 %v1210, 2147483648
        %v1227 = vsel %vm1225, %v1226, %v1218
        %v1228 = vsel %vm1221, %v1224, %v1227
        %v1229 = vsel %vm1219, nan, %v1228
        %v1230 = vand.u32 2147483647, %v280
        %vm1231 = vcmp.le.f32.partialorder %v1230, 0.7853982
        %vm1232 = vcmp.lt.s32.totalorder %v280, 0
        %v1233 = vand.u32 %v280, 2139095040
        %v1234 = vshrl.u32 %v1233, 23
        %v1235 = vsub.s32 %v1234, 127
        %v1236 = vand.u32 2147483647, %v280
        %v1237 = vand.u32 %v1236, 8388607
        %v1238 = vor.u32 %v1237, 8388608
        %v1239 = vsub.s32 0, %v1238
        %v1240 = vadd.s32 %v1235, 1
        %vm1241 = vcmp.gt.s32.totalorder %v1240, 0
        %v1242 = vsel %vm1241, %v1240, 0
        %v1243 = vshrl.u32 %v1242, 5
        %v1244 = vand.u32 %v1242, 31
        %v1245 = vsub.s32 32, %v1244
        %v1246 = vshrl.u32 683565275, %v1245
        %v1247 = vshll.u32 683565275, %v1244
        %v1248 = vshrl.u32 2475754826, %v1245
        %v1249 = vor.u32 %v1247, %v1248
        %v1250 = vshll.u32 2475754826, %v1244
        %v1251 = vshrl.u32 2131351028, %v1245
        %v1252 = vor.u32 %v1250, %v1251
        %v1253 = vshll.u32 2131351028, %v1244
        %v1254 = vshrl.u32 2102212464, %v1245
        %v1255 = vor.u32 %v1253, %v1254
        %v1256 = vshll.u32 2102212464, %v1244
        %v1257 = vshrl.u32 920167782, %v1245
        %v1258 = vor.u32 %v1256, %v1257
        %v1259 = vshll.u32 920167782, %v1244
        %v1260 = vshrl.u32 1326507024, %v1245
        %v1261 = vor.u32 %v1259, %v1260
        %vm1262 = vcmp.lt.s32.totalorder %v1243, 1
        %vm1263 = vcmp.lt.s32.totalorder %v1243, 2
        %vm1264 = vcmp.lt.s32.totalorder %v1243, 3
        %vm1265 = vcmp.lt.s32.totalorder %v1243, 4
        %v1266 = vsel %vm1262, %v1246, %v1249
        %v1267 = vsel %vm1265, %v1255, 2102212464
        %v1268 = vsel %vm1264, %v1252, %v1267
        %v1269 = vsel %vm1263, %v1266, %v1268
        %v1270 = vsel %vm1262, %v1249, %v1252
        %v1271 = vsel %vm1265, %v1258, 920167782
        %v1272 = vsel %vm1264, %v1255, %v1271
        %v1273 = vsel %vm1263, %v1270, %v1272
        %v1274 = vsel %vm1262, %v1252, %v1255
        %v1275 = vsel %vm1265, %v1261, 1326507024
        %v1276 = vsel %vm1264, %v1258, %v1275
        %v1277 = vsel %vm1263, %v1274, %v1276
        %v1278 = vshll.u32 %v1238, 8
        %v1279 = vand.u32 %v1278, 65535
        %v1280 = vshrl.u32 %v1278, 16
        %v1281 = vand.u32 %v1277, 65535
        %v1282 = vshrl.u32 %v1277, 16
        %v1283 = vmul.u32 %v1279, %v1281
        %v1284 = vmul.u32 %v1279, %v1282
        %v1285 = vmul.u32 %v1280, %v1281
        %v1286 = vmul.u32 %v1280, %v1282
        %v1287 = vshll.u32 %v1284, 16
        %v1288 = vshrl.u32 %v1284, 16
        %v1289 = vshll.u32 %v1285, 16
        %v1290 = vshrl.u32 %v1285, 16
        %vm1291 = vc.u32 %v1283, %v1287
        %v1292 = vsel %vm1291, 1, 0
        %v1293 = vadd.s32 %v1283, %v1287
        %v1294 = vadd.s32 %v1286, %v1292
        %vm1295 = vc.u32 %v1293, %v1289
        %v1296 = vsel %vm1295, 1, 0
        %v1297 = vadd.s32 %v1293, %v1289
        %v1298 = vadd.s32 %v1294, %v1296
        %v1299 = vadd.s32 %v1298, %v1288
        %v1300 = vadd.s32 %v1299, %v1290
        %v1301 = vand.u32 %v1278, 65535
        %v1302 = vshrl.u32 %v1278, 16
        %v1303 = vand.u32 %v1273, 65535
        %v1304 = vshrl.u32 %v1273, 16
        %v1305 = vmul.u32 %v1301, %v1303
        %v1306 = vmul.u32 %v1301, %v1304
        %v1307 = vmul.u32 %v1302, %v1303
        %v1308 = vmul.u32 %v1302, %v1304
        %v1309 = vshll.u32 %v1306, 16
        %v1310 = vshrl.u32 %v1306, 16
        %v1311 = vshll.u32 %v1307, 16
        %v1312 = vshrl.u32 %v1307, 16
        %vm1313 = vc.u32 %v1305, %v1309
        %v1314 = vsel %vm1313, 1, 0
        %v1315 = vadd.s32 %v1305, %v1309
        %v1316 = vadd.s32 %v1308, %v1314
        %vm1317 = vc.u32 %v1315, %v1311
        %v1318 = vsel %vm1317, 1, 0
        %v1319 = vadd.s32 %v1315, %v1311
        %v1320 = vadd.s32 %v1316, %v1318
        %v1321 = vadd.s32 %v1320, %v1310
        %v1322 = vadd.s32 %v1321, %v1312
        %v1323 = vmul.u32 %v1278, %v1269
        %v1324 = vadd.s32 %v1300, %v1319
        %vm1325 = vc.u32 %v1300, %v1319
        %v1326 = vadd.s32 %v1322, 1
        %v1327 = vsel %vm1325, %v1326, %v1322
        %v1328 = vadd.s32 %v1323, %v1327
        %v1329 = vadd.s32 %v1328, 536870912
        %v1330 = vshrl.u32 %v1329, 30
        %v1331 = vshll.u32 %v1330, 30
        %v1332 = vsub.s32 %v1328, %v1331
        %vm1333 = vcmp.lt.s32.totalorder %v1332, 0
        %v1334 = vsub.s32 0, %v1332
        %v1335 = vsel %vm1333, %v1334, %v1332
        %v1336 = vclz %v1335
        %v1337 = vsub.s32 %v1336, 2
        %vm1338 = vcmp.gt.s32.totalorder 0, %v1337
        %v1339 = vsel %vm1338, 0, %v1337
        %v1340 = vsub.s32 32, %v1339
        %v1341 = vshll.u32 %v1332, %v1339
        %v1342 = vshrl.u32 %v1324, %v1340
        %v1343 = vor.u32 %v1341, %v1342
        %v1344 = vsub.s32 4294967266, %v1339
        %v1345 = vadd.s32 %v1344, 127
        %v1346 = vshll.u32 %v1345, 23
        %v1347 = vor.u32 4788187, %v1346
        %v1348 = vand.u32 2147483647, %v1347
        %v1350 = vcvt.s32.f32 %v1343
        %v1351 = vmul.f32 %v1350, %v1348
        %v1352 = vxor.u32 %v1351, 2147483648
        %v1353 = vsel %vm1232, %v1352, %v1351
        %v1354 = vsub.s32 4, %v1330
        %v1355 = vsel %vm1232, %v1354, %v1330
        %v1356 = vsel %vm1231, %v280, %v1353
        %v1357 = vsel %vm1231, 0, %v1355
        %v1358 = vmul.f32 %v1356, %v1356
        %v1359 = vmul.f32 %v1358, -0.001358992
        %v1360 = vadd.f32 %v1359, 0.041655596
        %v1361 = vmul.f32 %v1358, %v1360
        %v1362 = vadd.f32 %v1361, -0.4999988
        %v1363 = vmul.f32 %v1358, %v1362
        %v1364 = vadd.f32 1.0, %v1363
        %v1365 = vmul.f32 %v1356, %v1356
        %v1366 = vmul.f32 %v1365, -0.00019511016
        %v1367 = vadd.f32 %v1366, 0.008332121
        %v1368 = vmul.f32 %v1365, %v1367
        %v1369 = vadd.f32 %v1368, -0.16666654
        %v1370 = vmul.f32 %v1365, %v1369
        %v1371 = vadd.f32 %v1370, 1.0
        %v1372 = vmul.f32 %v1371, %v1356
        %vm1373 = vweird.f32 %v280
        %v1374 = vand.u32 %v1357, 3
        %vm1375 = vcmp.lt.s32.totalorder %v1374, 2
        %vm1376 = vcmp.eq.s32.totalorder %v1374, 0
        %v1377 = vxor.u32 %v1372, 2147483648
        %v1378 = vsel %vm1376, %v1364, %v1377
        %vm1379 = vcmp.eq.s32.totalorder %v1374, 2
        %v1380 = vxor.u32 %v1364, 2147483648
        %v1381 = vsel %vm1379, %v1380, %v1372
        %v1382 = vsel %vm1375, %v1378, %v1381
        %v1383 = vsel %vm1373, nan, %v1382
        %v1384 = vand.u32 2147483647, %v281
        %vm1385 = vcmp.le.f32.partialorder %v1384, 0.7853982
        %vm1386 = vcmp.lt.s32.totalorder %v281, 0
        %v1387 = vand.u32 %v281, 2139095040
        %v1388 = vshrl.u32 %v1387, 23
        %v1389 = vsub.s32 %v1388, 127
        %v1390 = vand.u32 2147483647, %v281
        %v1391 = vand.u32 %v1390, 8388607
        %v1392 = vor.u32 %v1391, 8388608
        %v1393 = vsub.s32 0, %v1392
        %v1394 = vadd.s32 %v1389, 1
        %vm1395 = vcmp.gt.s32.totalorder %v1394, 0
        %v1396 = vsel %vm1395, %v1394, 0
        %v1397 = vshrl.u32 %v1396, 5
        %v1398 = vand.u32 %v1396, 31
        %v1399 = vsub.s32 32, %v1398
        %v1400 = vshrl.u32 683565275, %v1399
        %v1401 = vshll.u32 683565275, %v1398
        %v1402 = vshrl.u32 2475754826, %v1399
        %v1403 = vor.u32 %v1401, %v1402
        %v1404 = vshll.u32 2475754826, %v1398
        %v1405 = vshrl.u32 2131351028, %v1399
        %v1406 = vor.u32 %v1404, %v1405
        %v1407 = vshll.u32 2131351028, %v1398
        %v1408 = vshrl.u32 2102212464, %v1399
        %v1409 = vor.u32 %v1407, %v1408
        %v1410 = vshll.u32 2102212464, %v1398
        %v1411 = vshrl.u32 920167782, %v1399
        %v1412 = vor.u32 %v1410, %v1411
        %v1413 = vshll.u32 920167782, %v1398
        %v1414 = vshrl.u32 1326507024, %v1399
        %v1415 = vor.u32 %v1413, %v1414
        %vm1416 = vcmp.lt.s32.totalorder %v1397, 1
        %vm1417 = vcmp.lt.s32.totalorder %v1397, 2
        %vm1418 = vcmp.lt.s32.totalorder %v1397, 3
        %vm1419 = vcmp.lt.s32.totalorder %v1397, 4
        %v1420 = vsel %vm1416, %v1400, %v1403
        %v1421 = vsel %vm1419, %v1409, 2102212464
        %v1422 = vsel %vm1418, %v1406, %v1421
        %v1423 = vsel %vm1417, %v1420, %v1422
        %v1424 = vsel %vm1416, %v1403, %v1406
        %v1425 = vsel %vm1419, %v1412, 920167782
        %v1426 = vsel %vm1418, %v1409, %v1425
        %v1427 = vsel %vm1417, %v1424, %v1426
        %v1428 = vsel %vm1416, %v1406, %v1409
        %v1429 = vsel %vm1419, %v1415, 1326507024
        %v1430 = vsel %vm1418, %v1412, %v1429
        %v1431 = vsel %vm1417, %v1428, %v1430
        %v1432 = vshll.u32 %v1392, 8
        %v1433 = vand.u32 %v1432, 65535
        %v1434 = vshrl.u32 %v1432, 16
        %v1435 = vand.u32 %v1431, 65535
        %v1436 = vshrl.u32 %v1431, 16
        %v1437 = vmul.u32 %v1433, %v1435
        %v1438 = vmul.u32 %v1433, %v1436
        %v1439 = vmul.u32 %v1434, %v1435
        %v1440 = vmul.u32 %v1434, %v1436
        %v1441 = vshll.u32 %v1438, 16
        %v1442 = vshrl.u32 %v1438, 16
        %v1443 = vshll.u32 %v1439, 16
        %v1444 = vshrl.u32 %v1439, 16
        %vm1445 = vc.u32 %v1437, %v1441
        %v1446 = vsel %vm1445, 1, 0
        %v1447 = vadd.s32 %v1437, %v1441
        %v1448 = vadd.s32 %v1440, %v1446
        %vm1449 = vc.u32 %v1447, %v1443
        %v1450 = vsel %vm1449, 1, 0
        %v1451 = vadd.s32 %v1447, %v1443
        %v1452 = vadd.s32 %v1448, %v1450
        %v1453 = vadd.s32 %v1452, %v1442
        %v1454 = vadd.s32 %v1453, %v1444
        %v1455 = vand.u32 %v1432, 65535
        %v1456 = vshrl.u32 %v1432, 16
        %v1457 = vand.u32 %v1427, 65535
        %v1458 = vshrl.u32 %v1427, 16
        %v1459 = vmul.u32 %v1455, %v1457
        %v1460 = vmul.u32 %v1455, %v1458
        %v1461 = vmul.u32 %v1456, %v1457
        %v1462 = vmul.u32 %v1456, %v1458
        %v1463 = vshll.u32 %v1460, 16
        %v1464 = vshrl.u32 %v1460, 16
        %v1465 = vshll.u32 %v1461, 16
        %v1466 = vshrl.u32 %v1461, 16
        %vm1467 = vc.u32 %v1459, %v1463
        %v1468 = vsel %vm1467, 1, 0
        %v1469 = vadd.s32 %v1459, %v1463
        %v1470 = vadd.s32 %v1462, %v1468
        %vm1471 = vc.u32 %v1469, %v1465
        %v1472 = vsel %vm1471, 1, 0
        %v1473 = vadd.s32 %v1469, %v1465
        %v1474 = vadd.s32 %v1470, %v1472
        %v1475 = vadd.s32 %v1474, %v1464
        %v1476 = vadd.s32 %v1475, %v1466
        %v1477 = vmul.u32 %v1432, %v1423
        %v1478 = vadd.s32 %v1454, %v1473
        %vm1479 = vc.u32 %v1454, %v1473
        %v1480 = vadd.s32 %v1476, 1
        %v1481 = vsel %vm1479, %v1480, %v1476
        %v1482 = vadd.s32 %v1477, %v1481
        %v1483 = vadd.s32 %v1482, 536870912
        %v1484 = vshrl.u32 %v1483, 30
        %v1485 = vshll.u32 %v1484, 30
        %v1486 = vsub.s32 %v1482, %v1485
        %vm1487 = vcmp.lt.s32.totalorder %v1486, 0
        %v1488 = vsub.s32 0, %v1486
        %v1489 = vsel %vm1487, %v1488, %v1486
        %v1490 = vclz %v1489
        %v1491 = vsub.s32 %v1490, 2
        %vm1492 = vcmp.gt.s32.totalorder 0, %v1491
        %v1493 = vsel %vm1492, 0, %v1491
        %v1494 = vsub.s32 32, %v1493
        %v1495 = vshll.u32 %v1486, %v1493
        %v1496 = vshrl.u32 %v1478, %v1494
        %v1497 = vor.u32 %v1495, %v1496
        %v1498 = vsub.s32 4294967266, %v1493
        %v1499 = vadd.s32 %v1498, 127
        %v1500 = vshll.u32 %v1499, 23
        %v1501 = vor.u32 4788187, %v1500
        %v1502 = vand.u32 2147483647, %v1501
        %v1504 = vcvt.s32.f32 %v1497
        %v1505 = vmul.f32 %v1504, %v1502
        %v1506 = vxor.u32 %v1505, 2147483648
        %v1507 = vsel %vm1386, %v1506, %v1505
        %v1508 = vsub.s32 4, %v1484
        %v1509 = vsel %vm1386, %v1508, %v1484
        %v1510 = vsel %vm1385, %v281, %v1507
        %v1511 = vsel %vm1385, 0, %v1509
        %v1512 = vmul.f32 %v1510, %v1510
        %v1513 = vmul.f32 %v1512, -0.001358992
        %v1514 = vadd.f32 %v1513, 0.041655596
        %v1515 = vmul.f32 %v1512, %v1514
        %v1516 = vadd.f32 %v1515, -0.4999988
        %v1517 = vmul.f32 %v1512, %v1516
        %v1518 = vadd.f32 1.0, %v1517
        %v1519 = vmul.f32 %v1510, %v1510
        %v1520 = vmul.f32 %v1519, -0.00019511016
        %v1521 = vadd.f32 %v1520, 0.008332121
        %v1522 = vmul.f32 %v1519, %v1521
        %v1523 = vadd.f32 %v1522, -0.16666654
        %v1524 = vmul.f32 %v1519, %v1523
        %v1525 = vadd.f32 %v1524, 1.0
        %v1526 = vmul.f32 %v1525, %v1510
        %vm1527 = vweird.f32 %v281
        %v1528 = vand.u32 %v1511, 3
        %vm1529 = vcmp.lt.s32.totalorder %v1528, 2
        %vm1530 = vcmp.eq.s32.totalorder %v1528, 0
        %v1531 = vxor.u32 %v1526, 2147483648
        %v1532 = vsel %vm1530, %v1518, %v1531
        %vm1533 = vcmp.eq.s32.totalorder %v1528, 2
        %v1534 = vxor.u32 %v1518, 2147483648
        %v1535 = vsel %vm1533, %v1534, %v1526
        %v1536 = vsel %vm1529, %v1532, %v1535
        %v1537 = vsel %vm1527, nan, %v1536
        %v1538 = vand.u32 2147483647, %v282
        %vm1539 = vcmp.le.f32.partialorder %v1538, 0.7853982
        %vm1540 = vcmp.lt.s32.totalorder %v282, 0
        %v1541 = vand.u32 %v282, 2139095040
        %v1542 = vshrl.u32 %v1541, 23
        %v1543 = vsub.s32 %v1542, 127
        %v1544 = vand.u32 2147483647, %v282
        %v1545 = vand.u32 %v1544, 8388607
        %v1546 = vor.u32 %v1545, 8388608
        %v1547 = vsub.s32 0, %v1546
        %v1548 = vadd.s32 %v1543, 1
        %vm1549 = vcmp.gt.s32.totalorder %v1548, 0
        %v1550 = vsel %vm1549, %v1548, 0
        %v1551 = vshrl.u32 %v1550, 5
        %v1552 = vand.u32 %v1550, 31
        %v1553 = vsub.s32 32, %v1552
        %v1554 = vshrl.u32 683565275, %v1553
        %v1555 = vshll.u32 683565275, %v1552
        %v1556 = vshrl.u32 2475754826, %v1553
        %v1557 = vor.u32 %v1555, %v1556
        %v1558 = vshll.u32 2475754826, %v1552
        %v1559 = vshrl.u32 2131351028, %v1553
        %v1560 = vor.u32 %v1558, %v1559
        %v1561 = vshll.u32 2131351028, %v1552
        %v1562 = vshrl.u32 2102212464, %v1553
        %v1563 = vor.u32 %v1561, %v1562
        %v1564 = vshll.u32 2102212464, %v1552
        %v1565 = vshrl.u32 920167782, %v1553
        %v1566 = vor.u32 %v1564, %v1565
        %v1567 = vshll.u32 920167782, %v1552
        %v1568 = vshrl.u32 1326507024, %v1553
        %v1569 = vor.u32 %v1567, %v1568
        %vm1570 = vcmp.lt.s32.totalorder %v1551, 1
        %vm1571 = vcmp.lt.s32.totalorder %v1551, 2
        %vm1572 = vcmp.lt.s32.totalorder %v1551, 3
        %vm1573 = vcmp.lt.s32.totalorder %v1551, 4
        %v1574 = vsel %vm1570, %v1554, %v1557
        %v1575 = vsel %vm1573, %v1563, 2102212464
        %v1576 = vsel %vm1572, %v1560, %v1575
        %v1577 = vsel %vm1571, %v1574, %v1576
        %v1578 = vsel %vm1570, %v1557, %v1560
        %v1579 = vsel %vm1573, %v1566, 920167782
        %v1580 = vsel %vm1572, %v1563, %v1579
        %v1581 = vsel %vm1571, %v1578, %v1580
        %v1582 = vsel %vm1570, %v1560, %v1563
        %v1583 = vsel %vm1573, %v1569, 1326507024
        %v1584 = vsel %vm1572, %v1566, %v1583
        %v1585 = vsel %vm1571, %v1582, %v1584
        %v1586 = vshll.u32 %v1546, 8
        %v1587 = vand.u32 %v1586, 65535
        %v1588 = vshrl.u32 %v1586, 16
        %v1589 = vand.u32 %v1585, 65535
        %v1590 = vshrl.u32 %v1585, 16
        %v1591 = vmul.u32 %v1587, %v1589
        %v1592 = vmul.u32 %v1587, %v1590
        %v1593 = vmul.u32 %v1588, %v1589
        %v1594 = vmul.u32 %v1588, %v1590
        %v1595 = vshll.u32 %v1592, 16
        %v1596 = vshrl.u32 %v1592, 16
        %v1597 = vshll.u32 %v1593, 16
        %v1598 = vshrl.u32 %v1593, 16
        %vm1599 = vc.u32 %v1591, %v1595
        %v1600 = vsel %vm1599, 1, 0
        %v1601 = vadd.s32 %v1591, %v1595
        %v1602 = vadd.s32 %v1594, %v1600
        %vm1603 = vc.u32 %v1601, %v1597
        %v1604 = vsel %vm1603, 1, 0
        %v1605 = vadd.s32 %v1601, %v1597
        %v1606 = vadd.s32 %v1602, %v1604
        %v1607 = vadd.s32 %v1606, %v1596
        %v1608 = vadd.s32 %v1607, %v1598
        %v1609 = vand.u32 %v1586, 65535
        %v1610 = vshrl.u32 %v1586, 16
        %v1611 = vand.u32 %v1581, 65535
        %v1612 = vshrl.u32 %v1581, 16
        %v1613 = vmul.u32 %v1609, %v1611
        %v1614 = vmul.u32 %v1609, %v1612
        %v1615 = vmul.u32 %v1610, %v1611
        %v1616 = vmul.u32 %v1610, %v1612
        %v1617 = vshll.u32 %v1614, 16
        %v1618 = vshrl.u32 %v1614, 16
        %v1619 = vshll.u32 %v1615, 16
        %v1620 = vshrl.u32 %v1615, 16
        %vm1621 = vc.u32 %v1613, %v1617
        %v1622 = vsel %vm1621, 1, 0
        %v1623 = vadd.s32 %v1613, %v1617
        %v1624 = vadd.s32 %v1616, %v1622
        %vm1625 = vc.u32 %v1623, %v1619
        %v1626 = vsel %vm1625, 1, 0
        %v1627 = vadd.s32 %v1623, %v1619
        %v1628 = vadd.s32 %v1624, %v1626
        %v1629 = vadd.s32 %v1628, %v1618
        %v1630 = vadd.s32 %v1629, %v1620
        %v1631 = vmul.u32 %v1586, %v1577
        %v1632 = vadd.s32 %v1608, %v1627
        %vm1633 = vc.u32 %v1608, %v1627
        %v1634 = vadd.s32 %v1630, 1
        %v1635 = vsel %vm1633, %v1634, %v1630
        %v1636 = vadd.s32 %v1631, %v1635
        %v1637 = vadd.s32 %v1636, 536870912
        %v1638 = vshrl.u32 %v1637, 30
        %v1639 = vshll.u32 %v1638, 30
        %v1640 = vsub.s32 %v1636, %v1639
        %vm1641 = vcmp.lt.s32.totalorder %v1640, 0
        %v1642 = vsub.s32 0, %v1640
        %v1643 = vsel %vm1641, %v1642, %v1640
        %v1644 = vclz %v1643
        %v1645 = vsub.s32 %v1644, 2
        %vm1646 = vcmp.gt.s32.totalorder 0, %v1645
        %v1647 = vsel %vm1646, 0, %v1645
        %v1648 = vsub.s32 32, %v1647
        %v1649 = vshll.u32 %v1640, %v1647
        %v1650 = vshrl.u32 %v1632, %v1648
        %v1651 = vor.u32 %v1649, %v1650
        %v1652 = vsub.s32 4294967266, %v1647
        %v1653 = vadd.s32 %v1652, 127
        %v1654 = vshll.u32 %v1653, 23
        %v1655 = vor.u32 4788187, %v1654
        %v1656 = vand.u32 2147483647, %v1655
        %v1658 = vcvt.s32.f32 %v1651
        %v1659 = vmul.f32 %v1658, %v1656
        %v1660 = vxor.u32 %v1659, 2147483648
        %v1661 = vsel %vm1540, %v1660, %v1659
        %v1662 = vsub.s32 4, %v1638
        %v1663 = vsel %vm1540, %v1662, %v1638
        %v1664 = vsel %vm1539, %v282, %v1661
        %v1665 = vsel %vm1539, 0, %v1663
        %v1666 = vmul.f32 %v1664, %v1664
        %v1667 = vmul.f32 %v1666, -0.001358992
        %v1668 = vadd.f32 %v1667, 0.041655596
        %v1669 = vmul.f32 %v1666, %v1668
        %v1670 = vadd.f32 %v1669, -0.4999988
        %v1671 = vmul.f32 %v1666, %v1670
        %v1672 = vadd.f32 1.0, %v1671
        %v1673 = vmul.f32 %v1664, %v1664
        %v1674 = vmul.f32 %v1673, -0.00019511016
        %v1675 = vadd.f32 %v1674, 0.008332121
        %v1676 = vmul.f32 %v1673, %v1675
        %v1677 = vadd.f32 %v1676, -0.16666654
        %v1678 = vmul.f32 %v1673, %v1677
        %v1679 = vadd.f32 %v1678, 1.0
        %v1680 = vmul.f32 %v1679, %v1664
        %vm1681 = vweird.f32 %v282
        %v1682 = vand.u32 %v1665, 3
        %vm1683 = vcmp.lt.s32.totalorder %v1682, 2
        %vm1684 = vcmp.eq.s32.totalorder %v1682, 0
        %v1685 = vxor.u32 %v1680, 2147483648
        %v1686 = vsel %vm1684, %v1672, %v1685
        %vm1687 = vcmp.eq.s32.totalorder %v1682, 2
        %v1688 = vxor.u32 %v1672, 2147483648
        %v1689 = vsel %vm1687, %v1688, %v1680
        %v1690 = vsel %vm1683, %v1686, %v1689
        %v1691 = vsel %vm1681, nan, %v1690
        %v1692 = vand.u32 2147483647, %v283
        %vm1693 = vcmp.le.f32.partialorder %v1692, 0.7853982
        %vm1694 = vcmp.lt.s32.totalorder %v283, 0
        %v1695 = vand.u32 %v283, 2139095040
        %v1696 = vshrl.u32 %v1695, 23
        %v1697 = vsub.s32 %v1696, 127
        %v1698 = vand.u32 2147483647, %v283
        %v1699 = vand.u32 %v1698, 8388607
        %v1700 = vor.u32 %v1699, 8388608
        %v1701 = vsub.s32 0, %v1700
        %v1702 = vadd.s32 %v1697, 1
        %vm1703 = vcmp.gt.s32.totalorder %v1702, 0
        %v1704 = vsel %vm1703, %v1702, 0
        %v1705 = vshrl.u32 %v1704, 5
        %v1706 = vand.u32 %v1704, 31
        %v1707 = vsub.s32 32, %v1706
        %v1708 = vshrl.u32 683565275, %v1707
        %v1709 = vshll.u32 683565275, %v1706
        %v1710 = vshrl.u32 2475754826, %v1707
        %v1711 = vor.u32 %v1709, %v1710
        %v1712 = vshll.u32 2475754826, %v1706
        %v1713 = vshrl.u32 2131351028, %v1707
        %v1714 = vor.u32 %v1712, %v1713
        %v1715 = vshll.u32 2131351028, %v1706
        %v1716 = vshrl.u32 2102212464, %v1707
        %v1717 = vor.u32 %v1715, %v1716
        %v1718 = vshll.u32 2102212464, %v1706
        %v1719 = vshrl.u32 920167782, %v1707
        %v1720 = vor.u32 %v1718, %v1719
        %v1721 = vshll.u32 920167782, %v1706
        %v1722 = vshrl.u32 1326507024, %v1707
        %v1723 = vor.u32 %v1721, %v1722
        %vm1724 = vcmp.lt.s32.totalorder %v1705, 1
        %vm1725 = vcmp.lt.s32.totalorder %v1705, 2
        %vm1726 = vcmp.lt.s32.totalorder %v1705, 3
        %vm1727 = vcmp.lt.s32.totalorder %v1705, 4
        %v1728 = vsel %vm1724, %v1708, %v1711
        %v1729 = vsel %vm1727, %v1717, 2102212464
        %v1730 = vsel %vm1726, %v1714, %v1729
        %v1731 = vsel %vm1725, %v1728, %v1730
        %v1732 = vsel %vm1724, %v1711, %v1714
        %v1733 = vsel %vm1727, %v1720, 920167782
        %v1734 = vsel %vm1726, %v1717, %v1733
        %v1735 = vsel %vm1725, %v1732, %v1734
        %v1736 = vsel %vm1724, %v1714, %v1717
        %v1737 = vsel %vm1727, %v1723, 1326507024
        %v1738 = vsel %vm1726, %v1720, %v1737
        %v1739 = vsel %vm1725, %v1736, %v1738
        %v1740 = vshll.u32 %v1700, 8
        %v1741 = vand.u32 %v1740, 65535
        %v1742 = vshrl.u32 %v1740, 16
        %v1743 = vand.u32 %v1739, 65535
        %v1744 = vshrl.u32 %v1739, 16
        %v1745 = vmul.u32 %v1741, %v1743
        %v1746 = vmul.u32 %v1741, %v1744
        %v1747 = vmul.u32 %v1742, %v1743
        %v1748 = vmul.u32 %v1742, %v1744
        %v1749 = vshll.u32 %v1746, 16
        %v1750 = vshrl.u32 %v1746, 16
        %v1751 = vshll.u32 %v1747, 16
        %v1752 = vshrl.u32 %v1747, 16
        %vm1753 = vc.u32 %v1745, %v1749
        %v1754 = vsel %vm1753, 1, 0
        %v1755 = vadd.s32 %v1745, %v1749
        %v1756 = vadd.s32 %v1748, %v1754
        %vm1757 = vc.u32 %v1755, %v1751
        %v1758 = vsel %vm1757, 1, 0
        %v1759 = vadd.s32 %v1755, %v1751
        %v1760 = vadd.s32 %v1756, %v1758
        %v1761 = vadd.s32 %v1760, %v1750
        %v1762 = vadd.s32 %v1761, %v1752
        %v1763 = vand.u32 %v1740, 65535
        %v1764 = vshrl.u32 %v1740, 16
        %v1765 = vand.u32 %v1735, 65535
        %v1766 = vshrl.u32 %v1735, 16
        %v1767 = vmul.u32 %v1763, %v1765
        %v1768 = vmul.u32 %v1763, %v1766
        %v1769 = vmul.u32 %v1764, %v1765
        %v1770 = vmul.u32 %v1764, %v1766
        %v1771 = vshll.u32 %v1768, 16
        %v1772 = vshrl.u32 %v1768, 16
        %v1773 = vshll.u32 %v1769, 16
        %v1774 = vshrl.u32 %v1769, 16
        %vm1775 = vc.u32 %v1767, %v1771
        %v1776 = vsel %vm1775, 1, 0
        %v1777 = vadd.s32 %v1767, %v1771
        %v1778 = vadd.s32 %v1770, %v1776
        %vm1779 = vc.u32 %v1777, %v1773
        %v1780 = vsel %vm1779, 1, 0
        %v1781 = vadd.s32 %v1777, %v1773
        %v1782 = vadd.s32 %v1778, %v1780
        %v1783 = vadd.s32 %v1782, %v1772
        %v1784 = vadd.s32 %v1783, %v1774
        %v1785 = vmul.u32 %v1740, %v1731
        %v1786 = vadd.s32 %v1762, %v1781
        %vm1787 = vc.u32 %v1762, %v1781
        %v1788 = vadd.s32 %v1784, 1
        %v1789 = vsel %vm1787, %v1788, %v1784
        %v1790 = vadd.s32 %v1785, %v1789
        %v1791 = vadd.s32 %v1790, 536870912
        %v1792 = vshrl.u32 %v1791, 30
        %v1793 = vshll.u32 %v1792, 30
        %v1794 = vsub.s32 %v1790, %v1793
        %vm1795 = vcmp.lt.s32.totalorder %v1794, 0
        %v1796 = vsub.s32 0, %v1794
        %v1797 = vsel %vm1795, %v1796, %v1794
        %v1798 = vclz %v1797
        %v1799 = vsub.s32 %v1798, 2
        %vm1800 = vcmp.gt.s32.totalorder 0, %v1799
        %v1801 = vsel %vm1800, 0, %v1799
        %v1802 = vsub.s32 32, %v1801
        %v1803 = vshll.u32 %v1794, %v1801
        %v1804 = vshrl.u32 %v1786, %v1802
        %v1805 = vor.u32 %v1803, %v1804
        %v1806 = vsub.s32 4294967266, %v1801
        %v1807 = vadd.s32 %v1806, 127
        %v1808 = vshll.u32 %v1807, 23
        %v1809 = vor.u32 4788187, %v1808
        %v1810 = vand.u32 2147483647, %v1809
        %v1812 = vcvt.s32.f32 %v1805
        %v1813 = vmul.f32 %v1812, %v1810
        %v1814 = vxor.u32 %v1813, 2147483648
        %v1815 = vsel %vm1694, %v1814, %v1813
        %v1816 = vsub.s32 4, %v1792
        %v1817 = vsel %vm1694, %v1816, %v1792
        %v1818 = vsel %vm1693, %v283, %v1815
        %v1819 = vsel %vm1693, 0, %v1817
        %v1820 = vmul.f32 %v1818, %v1818
        %v1821 = vmul.f32 %v1820, -0.001358992
        %v1822 = vadd.f32 %v1821, 0.041655596
        %v1823 = vmul.f32 %v1820, %v1822
        %v1824 = vadd.f32 %v1823, -0.4999988
        %v1825 = vmul.f32 %v1820, %v1824
        %v1826 = vadd.f32 1.0, %v1825
        %v1827 = vmul.f32 %v1818, %v1818
        %v1828 = vmul.f32 %v1827, -0.00019511016
        %v1829 = vadd.f32 %v1828, 0.008332121
        %v1830 = vmul.f32 %v1827, %v1829
        %v1831 = vadd.f32 %v1830, -0.16666654
        %v1832 = vmul.f32 %v1827, %v1831
        %v1833 = vadd.f32 %v1832, 1.0
        %v1834 = vmul.f32 %v1833, %v1818
        %vm1835 = vweird.f32 %v283
        %v1836 = vand.u32 %v1819, 3
        %vm1837 = vcmp.lt.s32.totalorder %v1836, 2
        %vm1838 = vcmp.eq.s32.totalorder %v1836, 0
        %v1839 = vxor.u32 %v1834, 2147483648
        %v1840 = vsel %vm1838, %v1826, %v1839
        %vm1841 = vcmp.eq.s32.totalorder %v1836, 2
        %v1842 = vxor.u32 %v1826, 2147483648
        %v1843 = vsel %vm1841, %v1842, %v1834
        %v1844 = vsel %vm1837, %v1840, %v1843
        %v1845 = vsel %vm1835, nan, %v1844
        %v1846 = vand.u32 2147483647, %v284
        %vm1847 = vcmp.le.f32.partialorder %v1846, 0.7853982
        %vm1848 = vcmp.lt.s32.totalorder %v284, 0
        %v1849 = vand.u32 %v284, 2139095040
        %v1850 = vshrl.u32 %v1849, 23
        %v1851 = vsub.s32 %v1850, 127
        %v1852 = vand.u32 2147483647, %v284
        %v1853 = vand.u32 %v1852, 8388607
        %v1854 = vor.u32 %v1853, 8388608
        %v1855 = vsub.s32 0, %v1854
        %v1856 = vadd.s32 %v1851, 1
        %vm1857 = vcmp.gt.s32.totalorder %v1856, 0
        %v1858 = vsel %vm1857, %v1856, 0
        %v1859 = vshrl.u32 %v1858, 5
        %v1860 = vand.u32 %v1858, 31
        %v1861 = vsub.s32 32, %v1860
        %v1862 = vshrl.u32 683565275, %v1861
        %v1863 = vshll.u32 683565275, %v1860
        %v1864 = vshrl.u32 2475754826, %v1861
        %v1865 = vor.u32 %v1863, %v1864
        %v1866 = vshll.u32 2475754826, %v1860
        %v1867 = vshrl.u32 2131351028, %v1861
        %v1868 = vor.u32 %v1866, %v1867
        %v1869 = vshll.u32 2131351028, %v1860
        %v1870 = vshrl.u32 2102212464, %v1861
        %v1871 = vor.u32 %v1869, %v1870
        %v1872 = vshll.u32 2102212464, %v1860
        %v1873 = vshrl.u32 920167782, %v1861
        %v1874 = vor.u32 %v1872, %v1873
        %v1875 = vshll.u32 920167782, %v1860
        %v1876 = vshrl.u32 1326507024, %v1861
        %v1877 = vor.u32 %v1875, %v1876
        %vm1878 = vcmp.lt.s32.totalorder %v1859, 1
        %vm1879 = vcmp.lt.s32.totalorder %v1859, 2
        %vm1880 = vcmp.lt.s32.totalorder %v1859, 3
        %vm1881 = vcmp.lt.s32.totalorder %v1859, 4
        %v1882 = vsel %vm1878, %v1862, %v1865
        %v1883 = vsel %vm1881, %v1871, 2102212464
        %v1884 = vsel %vm1880, %v1868, %v1883
        %v1885 = vsel %vm1879, %v1882, %v1884
        %v1886 = vsel %vm1878, %v1865, %v1868
        %v1887 = vsel %vm1881, %v1874, 920167782
        %v1888 = vsel %vm1880, %v1871, %v1887
        %v1889 = vsel %vm1879, %v1886, %v1888
        %v1890 = vsel %vm1878, %v1868, %v1871
        %v1891 = vsel %vm1881, %v1877, 1326507024
        %v1892 = vsel %vm1880, %v1874, %v1891
        %v1893 = vsel %vm1879, %v1890, %v1892
        %v1894 = vshll.u32 %v1854, 8
        %v1895 = vand.u32 %v1894, 65535
        %v1896 = vshrl.u32 %v1894, 16
        %v1897 = vand.u32 %v1893, 65535
        %v1898 = vshrl.u32 %v1893, 16
        %v1899 = vmul.u32 %v1895, %v1897
        %v1900 = vmul.u32 %v1895, %v1898
        %v1901 = vmul.u32 %v1896, %v1897
        %v1902 = vmul.u32 %v1896, %v1898
        %v1903 = vshll.u32 %v1900, 16
        %v1904 = vshrl.u32 %v1900, 16
        %v1905 = vshll.u32 %v1901, 16
        %v1906 = vshrl.u32 %v1901, 16
        %vm1907 = vc.u32 %v1899, %v1903
        %v1908 = vsel %vm1907, 1, 0
        %v1909 = vadd.s32 %v1899, %v1903
        %v1910 = vadd.s32 %v1902, %v1908
        %vm1911 = vc.u32 %v1909, %v1905
        %v1912 = vsel %vm1911, 1, 0
        %v1913 = vadd.s32 %v1909, %v1905
        %v1914 = vadd.s32 %v1910, %v1912
        %v1915 = vadd.s32 %v1914, %v1904
        %v1916 = vadd.s32 %v1915, %v1906
        %v1917 = vand.u32 %v1894, 65535
        %v1918 = vshrl.u32 %v1894, 16
        %v1919 = vand.u32 %v1889, 65535
        %v1920 = vshrl.u32 %v1889, 16
        %v1921 = vmul.u32 %v1917, %v1919
        %v1922 = vmul.u32 %v1917, %v1920
        %v1923 = vmul.u32 %v1918, %v1919
        %v1924 = vmul.u32 %v1918, %v1920
        %v1925 = vshll.u32 %v1922, 16
        %v1926 = vshrl.u32 %v1922, 16
        %v1927 = vshll.u32 %v1923, 16
        %v1928 = vshrl.u32 %v1923, 16
        %vm1929 = vc.u32 %v1921, %v1925
        %v1930 = vsel %vm1929, 1, 0
        %v1931 = vadd.s32 %v1921, %v1925
        %v1932 = vadd.s32 %v1924, %v1930
        %vm1933 = vc.u32 %v1931, %v1927
        %v1934 = vsel %vm1933, 1, 0
        %v1935 = vadd.s32 %v1931, %v1927
        %v1936 = vadd.s32 %v1932, %v1934
        %v1937 = vadd.s32 %v1936, %v1926
        %v1938 = vadd.s32 %v1937, %v1928
        %v1939 = vmul.u32 %v1894, %v1885
        %v1940 = vadd.s32 %v1916, %v1935
        %vm1941 = vc.u32 %v1916, %v1935
        %v1942 = vadd.s32 %v1938, 1
        %v1943 = vsel %vm1941, %v1942, %v1938
        %v1944 = vadd.s32 %v1939, %v1943
        %v1945 = vadd.s32 %v1944, 536870912
        %v1946 = vshrl.u32 %v1945, 30
        %v1947 = vshll.u32 %v1946, 30
        %v1948 = vsub.s32 %v1944, %v1947
        %vm1949 = vcmp.lt.s32.totalorder %v1948, 0
        %v1950 = vsub.s32 0, %v1948
        %v1951 = vsel %vm1949, %v1950, %v1948
        %v1952 = vclz %v1951
        %v1953 = vsub.s32 %v1952, 2
        %vm1954 = vcmp.gt.s32.totalorder 0, %v1953
        %v1955 = vsel %vm1954, 0, %v1953
        %v1956 = vsub.s32 32, %v1955
        %v1957 = vshll.u32 %v1948, %v1955
        %v1958 = vshrl.u32 %v1940, %v1956
        %v1959 = vor.u32 %v1957, %v1958
        %v1960 = vsub.s32 4294967266, %v1955
        %v1961 = vadd.s32 %v1960, 127
        %v1962 = vshll.u32 %v1961, 23
        %v1963 = vor.u32 4788187, %v1962
        %v1964 = vand.u32 2147483647, %v1963
        %v1966 = vcvt.s32.f32 %v1959
        %v1967 = vmul.f32 %v1966, %v1964
        %v1968 = vxor.u32 %v1967, 2147483648
        %v1969 = vsel %vm1848, %v1968, %v1967
        %v1970 = vsub.s32 4, %v1946
        %v1971 = vsel %vm1848, %v1970, %v1946
        %v1972 = vsel %vm1847, %v284, %v1969
        %v1973 = vsel %vm1847, 0, %v1971
        %v1974 = vmul.f32 %v1972, %v1972
        %v1975 = vmul.f32 %v1974, -0.001358992
        %v1976 = vadd.f32 %v1975, 0.041655596
        %v1977 = vmul.f32 %v1974, %v1976
        %v1978 = vadd.f32 %v1977, -0.4999988
        %v1979 = vmul.f32 %v1974, %v1978
        %v1980 = vadd.f32 1.0, %v1979
        %v1981 = vmul.f32 %v1972, %v1972
        %v1982 = vmul.f32 %v1981, -0.00019511016
        %v1983 = vadd.f32 %v1982, 0.008332121
        %v1984 = vmul.f32 %v1981, %v1983
        %v1985 = vadd.f32 %v1984, -0.16666654
        %v1986 = vmul.f32 %v1981, %v1985
        %v1987 = vadd.f32 %v1986, 1.0
        %v1988 = vmul.f32 %v1987, %v1972
        %vm1989 = vweird.f32 %v284
        %v1990 = vand.u32 %v1973, 3
        %vm1991 = vcmp.lt.s32.totalorder %v1990, 2
        %vm1992 = vcmp.eq.s32.totalorder %v1990, 0
        %v1993 = vxor.u32 %v1988, 2147483648
        %v1994 = vsel %vm1992, %v1980, %v1993
        %vm1995 = vcmp.eq.s32.totalorder %v1990, 2
        %v1996 = vxor.u32 %v1980, 2147483648
        %v1997 = vsel %vm1995, %v1996, %v1988
        %v1998 = vsel %vm1991, %v1994, %v1997
        %v1999 = vsel %vm1989, nan, %v1998
        %v2000 = vand.u32 2147483647, %v285
        %vm2001 = vcmp.le.f32.partialorder %v2000, 0.7853982
        %vm2002 = vcmp.lt.s32.totalorder %v285, 0
        %v2003 = vand.u32 %v285, 2139095040
        %v2004 = vshrl.u32 %v2003, 23
        %v2005 = vsub.s32 %v2004, 127
        %v2006 = vand.u32 2147483647, %v285
        %v2007 = vand.u32 %v2006, 8388607
        %v2008 = vor.u32 %v2007, 8388608
        %v2009 = vsub.s32 0, %v2008
        %v2010 = vadd.s32 %v2005, 1
        %vm2011 = vcmp.gt.s32.totalorder %v2010, 0
        %v2012 = vsel %vm2011, %v2010, 0
        %v2013 = vshrl.u32 %v2012, 5
        %v2014 = vand.u32 %v2012, 31
        %v2015 = vsub.s32 32, %v2014
        %v2016 = vshrl.u32 683565275, %v2015
        %v2017 = vshll.u32 683565275, %v2014
        %v2018 = vshrl.u32 2475754826, %v2015
        %v2019 = vor.u32 %v2017, %v2018
        %v2020 = vshll.u32 2475754826, %v2014
        %v2021 = vshrl.u32 2131351028, %v2015
        %v2022 = vor.u32 %v2020, %v2021
        %v2023 = vshll.u32 2131351028, %v2014
        %v2024 = vshrl.u32 2102212464, %v2015
        %v2025 = vor.u32 %v2023, %v2024
        %v2026 = vshll.u32 2102212464, %v2014
        %v2027 = vshrl.u32 920167782, %v2015
        %v2028 = vor.u32 %v2026, %v2027
        %v2029 = vshll.u32 920167782, %v2014
        %v2030 = vshrl.u32 1326507024, %v2015
        %v2031 = vor.u32 %v2029, %v2030
        %vm2032 = vcmp.lt.s32.totalorder %v2013, 1
        %vm2033 = vcmp.lt.s32.totalorder %v2013, 2
        %vm2034 = vcmp.lt.s32.totalorder %v2013, 3
        %vm2035 = vcmp.lt.s32.totalorder %v2013, 4
        %v2036 = vsel %vm2032, %v2016, %v2019
        %v2037 = vsel %vm2035, %v2025, 2102212464
        %v2038 = vsel %vm2034, %v2022, %v2037
        %v2039 = vsel %vm2033, %v2036, %v2038
        %v2040 = vsel %vm2032, %v2019, %v2022
        %v2041 = vsel %vm2035, %v2028, 920167782
        %v2042 = vsel %vm2034, %v2025, %v2041
        %v2043 = vsel %vm2033, %v2040, %v2042
        %v2044 = vsel %vm2032, %v2022, %v2025
        %v2045 = vsel %vm2035, %v2031, 1326507024
        %v2046 = vsel %vm2034, %v2028, %v2045
        %v2047 = vsel %vm2033, %v2044, %v2046
        %v2048 = vshll.u32 %v2008, 8
        %v2049 = vand.u32 %v2048, 65535
        %v2050 = vshrl.u32 %v2048, 16
        %v2051 = vand.u32 %v2047, 65535
        %v2052 = vshrl.u32 %v2047, 16
        %v2053 = vmul.u32 %v2049, %v2051
        %v2054 = vmul.u32 %v2049, %v2052
        %v2055 = vmul.u32 %v2050, %v2051
        %v2056 = vmul.u32 %v2050, %v2052
        %v2057 = vshll.u32 %v2054, 16
        %v2058 = vshrl.u32 %v2054, 16
        %v2059 = vshll.u32 %v2055, 16
        %v2060 = vshrl.u32 %v2055, 16
        %vm2061 = vc.u32 %v2053, %v2057
        %v2062 = vsel %vm2061, 1, 0
        %v2063 = vadd.s32 %v2053, %v2057
        %v2064 = vadd.s32 %v2056, %v2062
        %vm2065 = vc.u32 %v2063, %v2059
        %v2066 = vsel %vm2065, 1, 0
        %v2067 = vadd.s32 %v2063, %v2059
        %v2068 = vadd.s32 %v2064, %v2066
        %v2069 = vadd.s32 %v2068, %v2058
        %v2070 = vadd.s32 %v2069, %v2060
        %v2071 = vand.u32 %v2048, 65535
        %v2072 = vshrl.u32 %v2048, 16
        %v2073 = vand.u32 %v2043, 65535
        %v2074 = vshrl.u32 %v2043, 16
        %v2075 = vmul.u32 %v2071, %v2073
        %v2076 = vmul.u32 %v2071, %v2074
        %v2077 = vmul.u32 %v2072, %v2073
        %v2078 = vmul.u32 %v2072, %v2074
        %v2079 = vshll.u32 %v2076, 16
        %v2080 = vshrl.u32 %v2076, 16
        %v2081 = vshll.u32 %v2077, 16
        %v2082 = vshrl.u32 %v2077, 16
        %vm2083 = vc.u32 %v2075, %v2079
        %v2084 = vsel %vm2083, 1, 0
        %v2085 = vadd.s32 %v2075, %v2079
        %v2086 = vadd.s32 %v2078, %v2084
        %vm2087 = vc.u32 %v2085, %v2081
        %v2088 = vsel %vm2087, 1, 0
        %v2089 = vadd.s32 %v2085, %v2081
        %v2090 = vadd.s32 %v2086, %v2088
        %v2091 = vadd.s32 %v2090, %v2080
        %v2092 = vadd.s32 %v2091, %v2082
        %v2093 = vmul.u32 %v2048, %v2039
        %v2094 = vadd.s32 %v2070, %v2089
        %vm2095 = vc.u32 %v2070, %v2089
        %v2096 = vadd.s32 %v2092, 1
        %v2097 = vsel %vm2095, %v2096, %v2092
        %v2098 = vadd.s32 %v2093, %v2097
        %v2099 = vadd.s32 %v2098, 536870912
        %v2100 = vshrl.u32 %v2099, 30
        %v2101 = vshll.u32 %v2100, 30
        %v2102 = vsub.s32 %v2098, %v2101
        %vm2103 = vcmp.lt.s32.totalorder %v2102, 0
        %v2104 = vsub.s32 0, %v2102
        %v2105 = vsel %vm2103, %v2104, %v2102
        %v2106 = vclz %v2105
        %v2107 = vsub.s32 %v2106, 2
        %vm2108 = vcmp.gt.s32.totalorder 0, %v2107
        %v2109 = vsel %vm2108, 0, %v2107
        %v2110 = vsub.s32 32, %v2109
        %v2111 = vshll.u32 %v2102, %v2109
        %v2112 = vshrl.u32 %v2094, %v2110
        %v2113 = vor.u32 %v2111, %v2112
        %v2114 = vsub.s32 4294967266, %v2109
        %v2115 = vadd.s32 %v2114, 127
        %v2116 = vshll.u32 %v2115, 23
        %v2117 = vor.u32 4788187, %v2116
        %v2118 = vand.u32 2147483647, %v2117
        %v2120 = vcvt.s32.f32 %v2113
        %v2121 = vmul.f32 %v2120, %v2118
        %v2122 = vxor.u32 %v2121, 2147483648
        %v2123 = vsel %vm2002, %v2122, %v2121
        %v2124 = vsub.s32 4, %v2100
        %v2125 = vsel %vm2002, %v2124, %v2100
        %v2126 = vsel %vm2001, %v285, %v2123
        %v2127 = vsel %vm2001, 0, %v2125
        %v2128 = vmul.f32 %v2126, %v2126
        %v2129 = vmul.f32 %v2128, -0.001358992
        %v2130 = vadd.f32 %v2129, 0.041655596
        %v2131 = vmul.f32 %v2128, %v2130
        %v2132 = vadd.f32 %v2131, -0.4999988
        %v2133 = vmul.f32 %v2128, %v2132
        %v2134 = vadd.f32 1.0, %v2133
        %v2135 = vmul.f32 %v2126, %v2126
        %v2136 = vmul.f32 %v2135, -0.00019511016
        %v2137 = vadd.f32 %v2136, 0.008332121
        %v2138 = vmul.f32 %v2135, %v2137
        %v2139 = vadd.f32 %v2138, -0.16666654
        %v2140 = vmul.f32 %v2135, %v2139
        %v2141 = vadd.f32 %v2140, 1.0
        %v2142 = vmul.f32 %v2141, %v2126
        %vm2143 = vweird.f32 %v285
        %v2144 = vand.u32 %v2127, 3
        %vm2145 = vcmp.lt.s32.totalorder %v2144, 2
        %vm2146 = vcmp.eq.s32.totalorder %v2144, 0
        %v2147 = vxor.u32 %v2142, 2147483648
        %v2148 = vsel %vm2146, %v2134, %v2147
        %vm2149 = vcmp.eq.s32.totalorder %v2144, 2
        %v2150 = vxor.u32 %v2134, 2147483648
        %v2151 = vsel %vm2149, %v2150, %v2142
        %v2152 = vsel %vm2145, %v2148, %v2151
        %v2153 = vsel %vm2143, nan, %v2152
        %v2154 = vand.u32 2147483647, %v286
        %vm2155 = vcmp.le.f32.partialorder %v2154, 0.7853982
        %vm2156 = vcmp.lt.s32.totalorder %v286, 0
        %v2157 = vand.u32 %v286, 2139095040
        %v2158 = vshrl.u32 %v2157, 23
        %v2159 = vsub.s32 %v2158, 127
        %v2160 = vand.u32 2147483647, %v286
        %v2161 = vand.u32 %v2160, 8388607
        %v2162 = vor.u32 %v2161, 8388608
        %v2163 = vsub.s32 0, %v2162
        %v2164 = vadd.s32 %v2159, 1
        %vm2165 = vcmp.gt.s32.totalorder %v2164, 0
        %v2166 = vsel %vm2165, %v2164, 0
        %v2167 = vshrl.u32 %v2166, 5
        %v2168 = vand.u32 %v2166, 31
        %v2169 = vsub.s32 32, %v2168
        %v2170 = vshrl.u32 683565275, %v2169
        %v2171 = vshll.u32 683565275, %v2168
        %v2172 = vshrl.u32 2475754826, %v2169
        %v2173 = vor.u32 %v2171, %v2172
        %v2174 = vshll.u32 2475754826, %v2168
        %v2175 = vshrl.u32 2131351028, %v2169
        %v2176 = vor.u32 %v2174, %v2175
        %v2177 = vshll.u32 2131351028, %v2168
        %v2178 = vshrl.u32 2102212464, %v2169
        %v2179 = vor.u32 %v2177, %v2178
        %v2180 = vshll.u32 2102212464, %v2168
        %v2181 = vshrl.u32 920167782, %v2169
        %v2182 = vor.u32 %v2180, %v2181
        %v2183 = vshll.u32 920167782, %v2168
        %v2184 = vshrl.u32 1326507024, %v2169
        %v2185 = vor.u32 %v2183, %v2184
        %vm2186 = vcmp.lt.s32.totalorder %v2167, 1
        %vm2187 = vcmp.lt.s32.totalorder %v2167, 2
        %vm2188 = vcmp.lt.s32.totalorder %v2167, 3
        %vm2189 = vcmp.lt.s32.totalorder %v2167, 4
        %v2190 = vsel %vm2186, %v2170, %v2173
        %v2191 = vsel %vm2189, %v2179, 2102212464
        %v2192 = vsel %vm2188, %v2176, %v2191
        %v2193 = vsel %vm2187, %v2190, %v2192
        %v2194 = vsel %vm2186, %v2173, %v2176
        %v2195 = vsel %vm2189, %v2182, 920167782
        %v2196 = vsel %vm2188, %v2179, %v2195
        %v2197 = vsel %vm2187, %v2194, %v2196
        %v2198 = vsel %vm2186, %v2176, %v2179
        %v2199 = vsel %vm2189, %v2185, 1326507024
        %v2200 = vsel %vm2188, %v2182, %v2199
        %v2201 = vsel %vm2187, %v2198, %v2200
        %v2202 = vshll.u32 %v2162, 8
        %v2203 = vand.u32 %v2202, 65535
        %v2204 = vshrl.u32 %v2202, 16
        %v2205 = vand.u32 %v2201, 65535
        %v2206 = vshrl.u32 %v2201, 16
        %v2207 = vmul.u32 %v2203, %v2205
        %v2208 = vmul.u32 %v2203, %v2206
        %v2209 = vmul.u32 %v2204, %v2205
        %v2210 = vmul.u32 %v2204, %v2206
        %v2211 = vshll.u32 %v2208, 16
        %v2212 = vshrl.u32 %v2208, 16
        %v2213 = vshll.u32 %v2209, 16
        %v2214 = vshrl.u32 %v2209, 16
        %vm2215 = vc.u32 %v2207, %v2211
        %v2216 = vsel %vm2215, 1, 0
        %v2217 = vadd.s32 %v2207, %v2211
        %v2218 = vadd.s32 %v2210, %v2216
        %vm2219 = vc.u32 %v2217, %v2213
        %v2220 = vsel %vm2219, 1, 0
        %v2221 = vadd.s32 %v2217, %v2213
        %v2222 = vadd.s32 %v2218, %v2220
        %v2223 = vadd.s32 %v2222, %v2212
        %v2224 = vadd.s32 %v2223, %v2214
        %v2225 = vand.u32 %v2202, 65535
        %v2226 = vshrl.u32 %v2202, 16
        %v2227 = vand.u32 %v2197, 65535
        %v2228 = vshrl.u32 %v2197, 16
        %v2229 = vmul.u32 %v2225, %v2227
        %v2230 = vmul.u32 %v2225, %v2228
        %v2231 = vmul.u32 %v2226, %v2227
        %v2232 = vmul.u32 %v2226, %v2228
        %v2233 = vshll.u32 %v2230, 16
        %v2234 = vshrl.u32 %v2230, 16
        %v2235 = vshll.u32 %v2231, 16
        %v2236 = vshrl.u32 %v2231, 16
        %vm2237 = vc.u32 %v2229, %v2233
        %v2238 = vsel %vm2237, 1, 0
        %v2239 = vadd.s32 %v2229, %v2233
        %v2240 = vadd.s32 %v2232, %v2238
        %vm2241 = vc.u32 %v2239, %v2235
        %v2242 = vsel %vm2241, 1, 0
        %v2243 = vadd.s32 %v2239, %v2235
        %v2244 = vadd.s32 %v2240, %v2242
        %v2245 = vadd.s32 %v2244, %v2234
        %v2246 = vadd.s32 %v2245, %v2236
        %v2247 = vmul.u32 %v2202, %v2193
        %v2248 = vadd.s32 %v2224, %v2243
        %vm2249 = vc.u32 %v2224, %v2243
        %v2250 = vadd.s32 %v2246, 1
        %v2251 = vsel %vm2249, %v2250, %v2246
        %v2252 = vadd.s32 %v2247, %v2251
        %v2253 = vadd.s32 %v2252, 536870912
        %v2254 = vshrl.u32 %v2253, 30
        %v2255 = vshll.u32 %v2254, 30
        %v2256 = vsub.s32 %v2252, %v2255
        %vm2257 = vcmp.lt.s32.totalorder %v2256, 0
        %v2258 = vsub.s32 0, %v2256
        %v2259 = vsel %vm2257, %v2258, %v2256
        %v2260 = vclz %v2259
        %v2261 = vsub.s32 %v2260, 2
        %vm2262 = vcmp.gt.s32.totalorder 0, %v2261
        %v2263 = vsel %vm2262, 0, %v2261
        %v2264 = vsub.s32 32, %v2263
        %v2265 = vshll.u32 %v2256, %v2263
        %v2266 = vshrl.u32 %v2248, %v2264
        %v2267 = vor.u32 %v2265, %v2266
        %v2268 = vsub.s32 4294967266, %v2263
        %v2269 = vadd.s32 %v2268, 127
        %v2270 = vshll.u32 %v2269, 23
        %v2271 = vor.u32 4788187, %v2270
        %v2272 = vand.u32 2147483647, %v2271
        %v2274 = vcvt.s32.f32 %v2267
        %v2275 = vmul.f32 %v2274, %v2272
        %v2276 = vxor.u32 %v2275, 2147483648
        %v2277 = vsel %vm2156, %v2276, %v2275
        %v2278 = vsub.s32 4, %v2254
        %v2279 = vsel %vm2156, %v2278, %v2254
        %v2280 = vsel %vm2155, %v286, %v2277
        %v2281 = vsel %vm2155, 0, %v2279
        %v2282 = vmul.f32 %v2280, %v2280
        %v2283 = vmul.f32 %v2282, -0.001358992
        %v2284 = vadd.f32 %v2283, 0.041655596
        %v2285 = vmul.f32 %v2282, %v2284
        %v2286 = vadd.f32 %v2285, -0.4999988
        %v2287 = vmul.f32 %v2282, %v2286
        %v2288 = vadd.f32 1.0, %v2287
        %v2289 = vmul.f32 %v2280, %v2280
        %v2290 = vmul.f32 %v2289, -0.00019511016
        %v2291 = vadd.f32 %v2290, 0.008332121
        %v2292 = vmul.f32 %v2289, %v2291
        %v2293 = vadd.f32 %v2292, -0.16666654
        %v2294 = vmul.f32 %v2289, %v2293
        %v2295 = vadd.f32 %v2294, 1.0
        %v2296 = vmul.f32 %v2295, %v2280
        %vm2297 = vweird.f32 %v286
        %v2298 = vand.u32 %v2281, 3
        %vm2299 = vcmp.lt.s32.totalorder %v2298, 2
        %vm2300 = vcmp.eq.s32.totalorder %v2298, 0
        %v2301 = vxor.u32 %v2296, 2147483648
        %v2302 = vsel %vm2300, %v2288, %v2301
        %vm2303 = vcmp.eq.s32.totalorder %v2298, 2
        %v2304 = vxor.u32 %v2288, 2147483648
        %v2305 = vsel %vm2303, %v2304, %v2296
        %v2306 = vsel %vm2299, %v2302, %v2305
        %v2307 = vsel %vm2297, nan, %v2306
        %v2308 = vand.u32 2147483647, %v287
        %vm2309 = vcmp.le.f32.partialorder %v2308, 0.7853982
        %vm2310 = vcmp.lt.s32.totalorder %v287, 0
        %v2311 = vand.u32 %v287, 2139095040
        %v2312 = vshrl.u32 %v2311, 23
        %v2313 = vsub.s32 %v2312, 127
        %v2314 = vand.u32 2147483647, %v287
        %v2315 = vand.u32 %v2314, 8388607
        %v2316 = vor.u32 %v2315, 8388608
        %v2317 = vsub.s32 0, %v2316
        %v2318 = vadd.s32 %v2313, 1
        %vm2319 = vcmp.gt.s32.totalorder %v2318, 0
        %v2320 = vsel %vm2319, %v2318, 0
        %v2321 = vshrl.u32 %v2320, 5
        %v2322 = vand.u32 %v2320, 31
        %v2323 = vsub.s32 32, %v2322
        %v2324 = vshrl.u32 683565275, %v2323
        %v2325 = vshll.u32 683565275, %v2322
        %v2326 = vshrl.u32 2475754826, %v2323
        %v2327 = vor.u32 %v2325, %v2326
        %v2328 = vshll.u32 2475754826, %v2322
        %v2329 = vshrl.u32 2131351028, %v2323
        %v2330 = vor.u32 %v2328, %v2329
        %v2331 = vshll.u32 2131351028, %v2322
        %v2332 = vshrl.u32 2102212464, %v2323
        %v2333 = vor.u32 %v2331, %v2332
        %v2334 = vshll.u32 2102212464, %v2322
        %v2335 = vshrl.u32 920167782, %v2323
        %v2336 = vor.u32 %v2334, %v2335
        %v2337 = vshll.u32 920167782, %v2322
        %v2338 = vshrl.u32 1326507024, %v2323
        %v2339 = vor.u32 %v2337, %v2338
        %vm2340 = vcmp.lt.s32.totalorder %v2321, 1
        %vm2341 = vcmp.lt.s32.totalorder %v2321, 2
        %vm2342 = vcmp.lt.s32.totalorder %v2321, 3
        %vm2343 = vcmp.lt.s32.totalorder %v2321, 4
        %v2344 = vsel %vm2340, %v2324, %v2327
        %v2345 = vsel %vm2343, %v2333, 2102212464
        %v2346 = vsel %vm2342, %v2330, %v2345
        %v2347 = vsel %vm2341, %v2344, %v2346
        %v2348 = vsel %vm2340, %v2327, %v2330
        %v2349 = vsel %vm2343, %v2336, 920167782
        %v2350 = vsel %vm2342, %v2333, %v2349
        %v2351 = vsel %vm2341, %v2348, %v2350
        %v2352 = vsel %vm2340, %v2330, %v2333
        %v2353 = vsel %vm2343, %v2339, 1326507024
        %v2354 = vsel %vm2342, %v2336, %v2353
        %v2355 = vsel %vm2341, %v2352, %v2354
        %v2356 = vshll.u32 %v2316, 8
        %v2357 = vand.u32 %v2356, 65535
        %v2358 = vshrl.u32 %v2356, 16
        %v2359 = vand.u32 %v2355, 65535
        %v2360 = vshrl.u32 %v2355, 16
        %v2361 = vmul.u32 %v2357, %v2359
        %v2362 = vmul.u32 %v2357, %v2360
        %v2363 = vmul.u32 %v2358, %v2359
        %v2364 = vmul.u32 %v2358, %v2360
        %v2365 = vshll.u32 %v2362, 16
        %v2366 = vshrl.u32 %v2362, 16
        %v2367 = vshll.u32 %v2363, 16
        %v2368 = vshrl.u32 %v2363, 16
        %vm2369 = vc.u32 %v2361, %v2365
        %v2370 = vsel %vm2369, 1, 0
        %v2371 = vadd.s32 %v2361, %v2365
        %v2372 = vadd.s32 %v2364, %v2370
        %vm2373 = vc.u32 %v2371, %v2367
        %v2374 = vsel %vm2373, 1, 0
        %v2375 = vadd.s32 %v2371, %v2367
        %v2376 = vadd.s32 %v2372, %v2374
        %v2377 = vadd.s32 %v2376, %v2366
        %v2378 = vadd.s32 %v2377, %v2368
        %v2379 = vand.u32 %v2356, 65535
        %v2380 = vshrl.u32 %v2356, 16
        %v2381 = vand.u32 %v2351, 65535
        %v2382 = vshrl.u32 %v2351, 16
        %v2383 = vmul.u32 %v2379, %v2381
        %v2384 = vmul.u32 %v2379, %v2382
        %v2385 = vmul.u32 %v2380, %v2381
        %v2386 = vmul.u32 %v2380, %v2382
        %v2387 = vshll.u32 %v2384, 16
        %v2388 = vshrl.u32 %v2384, 16
        %v2389 = vshll.u32 %v2385, 16
        %v2390 = vshrl.u32 %v2385, 16
        %vm2391 = vc.u32 %v2383, %v2387
        %v2392 = vsel %vm2391, 1, 0
        %v2393 = vadd.s32 %v2383, %v2387
        %v2394 = vadd.s32 %v2386, %v2392
        %vm2395 = vc.u32 %v2393, %v2389
        %v2396 = vsel %vm2395, 1, 0
        %v2397 = vadd.s32 %v2393, %v2389
        %v2398 = vadd.s32 %v2394, %v2396
        %v2399 = vadd.s32 %v2398, %v2388
        %v2400 = vadd.s32 %v2399, %v2390
        %v2401 = vmul.u32 %v2356, %v2347
        %v2402 = vadd.s32 %v2378, %v2397
        %vm2403 = vc.u32 %v2378, %v2397
        %v2404 = vadd.s32 %v2400, 1
        %v2405 = vsel %vm2403, %v2404, %v2400
        %v2406 = vadd.s32 %v2401, %v2405
        %v2407 = vadd.s32 %v2406, 536870912
        %v2408 = vshrl.u32 %v2407, 30
        %v2409 = vshll.u32 %v2408, 30
        %v2410 = vsub.s32 %v2406, %v2409
        %vm2411 = vcmp.lt.s32.totalorder %v2410, 0
        %v2412 = vsub.s32 0, %v2410
        %v2413 = vsel %vm2411, %v2412, %v2410
        %v2414 = vclz %v2413
        %v2415 = vsub.s32 %v2414, 2
        %vm2416 = vcmp.gt.s32.totalorder 0, %v2415
        %v2417 = vsel %vm2416, 0, %v2415
        %v2418 = vsub.s32 32, %v2417
        %v2419 = vshll.u32 %v2410, %v2417
        %v2420 = vshrl.u32 %v2402, %v2418
        %v2421 = vor.u32 %v2419, %v2420
        %v2422 = vsub.s32 4294967266, %v2417
        %v2423 = vadd.s32 %v2422, 127
        %v2424 = vshll.u32 %v2423, 23
        %v2425 = vor.u32 4788187, %v2424
        %v2426 = vand.u32 2147483647, %v2425
        %v2428 = vcvt.s32.f32 %v2421
        %v2429 = vmul.f32 %v2428, %v2426
        %v2430 = vxor.u32 %v2429, 2147483648
        %v2431 = vsel %vm2310, %v2430, %v2429
        %v2432 = vsub.s32 4, %v2408
        %v2433 = vsel %vm2310, %v2432, %v2408
        %v2434 = vsel %vm2309, %v287, %v2431
        %v2435 = vsel %vm2309, 0, %v2433
        %v2436 = vmul.f32 %v2434, %v2434
        %v2437 = vmul.f32 %v2436, -0.001358992
        %v2438 = vadd.f32 %v2437, 0.041655596
        %v2439 = vmul.f32 %v2436, %v2438
        %v2440 = vadd.f32 %v2439, -0.4999988
        %v2441 = vmul.f32 %v2436, %v2440
        %v2442 = vadd.f32 1.0, %v2441
        %v2443 = vmul.f32 %v2434, %v2434
        %v2444 = vmul.f32 %v2443, -0.00019511016
        %v2445 = vadd.f32 %v2444, 0.008332121
        %v2446 = vmul.f32 %v2443, %v2445
        %v2447 = vadd.f32 %v2446, -0.16666654
        %v2448 = vmul.f32 %v2443, %v2447
        %v2449 = vadd.f32 %v2448, 1.0
        %v2450 = vmul.f32 %v2449, %v2434
        %vm2451 = vweird.f32 %v287
        %v2452 = vand.u32 %v2435, 3
        %vm2453 = vcmp.lt.s32.totalorder %v2452, 2
        %vm2454 = vcmp.eq.s32.totalorder %v2452, 0
        %v2455 = vxor.u32 %v2450, 2147483648
        %v2456 = vsel %vm2454, %v2442, %v2455
        %vm2457 = vcmp.eq.s32.totalorder %v2452, 2
        %v2458 = vxor.u32 %v2442, 2147483648
        %v2459 = vsel %vm2457, %v2458, %v2450
        %v2460 = vsel %vm2453, %v2456, %v2459
        %v2461 = vsel %vm2451, nan, %v2460
        %v2462 = vand.u32 2147483647, %v288
        %vm2463 = vcmp.le.f32.partialorder %v2462, 0.7853982
        %vm2464 = vcmp.lt.s32.totalorder %v288, 0
        %v2465 = vand.u32 %v288, 2139095040
        %v2466 = vshrl.u32 %v2465, 23
        %v2467 = vsub.s32 %v2466, 127
        %v2468 = vand.u32 2147483647, %v288
        %v2469 = vand.u32 %v2468, 8388607
        %v2470 = vor.u32 %v2469, 8388608
        %v2471 = vsub.s32 0, %v2470
        %v2472 = vadd.s32 %v2467, 1
        %vm2473 = vcmp.gt.s32.totalorder %v2472, 0
        %v2474 = vsel %vm2473, %v2472, 0
        %v2475 = vshrl.u32 %v2474, 5
        %v2476 = vand.u32 %v2474, 31
        %v2477 = vsub.s32 32, %v2476
        %v2478 = vshrl.u32 683565275, %v2477
        %v2479 = vshll.u32 683565275, %v2476
        %v2480 = vshrl.u32 2475754826, %v2477
        %v2481 = vor.u32 %v2479, %v2480
        %v2482 = vshll.u32 2475754826, %v2476
        %v2483 = vshrl.u32 2131351028, %v2477
        %v2484 = vor.u32 %v2482, %v2483
        %v2485 = vshll.u32 2131351028, %v2476
        %v2486 = vshrl.u32 2102212464, %v2477
        %v2487 = vor.u32 %v2485, %v2486
        %v2488 = vshll.u32 2102212464, %v2476
        %v2489 = vshrl.u32 920167782, %v2477
        %v2490 = vor.u32 %v2488, %v2489
        %v2491 = vshll.u32 920167782, %v2476
        %v2492 = vshrl.u32 1326507024, %v2477
        %v2493 = vor.u32 %v2491, %v2492
        %vm2494 = vcmp.lt.s32.totalorder %v2475, 1
        %vm2495 = vcmp.lt.s32.totalorder %v2475, 2
        %vm2496 = vcmp.lt.s32.totalorder %v2475, 3
        %vm2497 = vcmp.lt.s32.totalorder %v2475, 4
        %v2498 = vsel %vm2494, %v2478, %v2481
        %v2499 = vsel %vm2497, %v2487, 2102212464
        %v2500 = vsel %vm2496, %v2484, %v2499
        %v2501 = vsel %vm2495, %v2498, %v2500
        %v2502 = vsel %vm2494, %v2481, %v2484
        %v2503 = vsel %vm2497, %v2490, 920167782
        %v2504 = vsel %vm2496, %v2487, %v2503
        %v2505 = vsel %vm2495, %v2502, %v2504
        %v2506 = vsel %vm2494, %v2484, %v2487
        %v2507 = vsel %vm2497, %v2493, 1326507024
        %v2508 = vsel %vm2496, %v2490, %v2507
        %v2509 = vsel %vm2495, %v2506, %v2508
        %v2510 = vshll.u32 %v2470, 8
        %v2511 = vand.u32 %v2510, 65535
        %v2512 = vshrl.u32 %v2510, 16
        %v2513 = vand.u32 %v2509, 65535
        %v2514 = vshrl.u32 %v2509, 16
        %v2515 = vmul.u32 %v2511, %v2513
        %v2516 = vmul.u32 %v2511, %v2514
        %v2517 = vmul.u32 %v2512, %v2513
        %v2518 = vmul.u32 %v2512, %v2514
        %v2519 = vshll.u32 %v2516, 16
        %v2520 = vshrl.u32 %v2516, 16
        %v2521 = vshll.u32 %v2517, 16
        %v2522 = vshrl.u32 %v2517, 16
        %vm2523 = vc.u32 %v2515, %v2519
        %v2524 = vsel %vm2523, 1, 0
        %v2525 = vadd.s32 %v2515, %v2519
        %v2526 = vadd.s32 %v2518, %v2524
        %vm2527 = vc.u32 %v2525, %v2521
        %v2528 = vsel %vm2527, 1, 0
        %v2529 = vadd.s32 %v2525, %v2521
        %v2530 = vadd.s32 %v2526, %v2528
        %v2531 = vadd.s32 %v2530, %v2520
        %v2532 = vadd.s32 %v2531, %v2522
        %v2533 = vand.u32 %v2510, 65535
        %v2534 = vshrl.u32 %v2510, 16
        %v2535 = vand.u32 %v2505, 65535
        %v2536 = vshrl.u32 %v2505, 16
        %v2537 = vmul.u32 %v2533, %v2535
        %v2538 = vmul.u32 %v2533, %v2536
        %v2539 = vmul.u32 %v2534, %v2535
        %v2540 = vmul.u32 %v2534, %v2536
        %v2541 = vshll.u32 %v2538, 16
        %v2542 = vshrl.u32 %v2538, 16
        %v2543 = vshll.u32 %v2539, 16
        %v2544 = vshrl.u32 %v2539, 16
        %vm2545 = vc.u32 %v2537, %v2541
        %v2546 = vsel %vm2545, 1, 0
        %v2547 = vadd.s32 %v2537, %v2541
        %v2548 = vadd.s32 %v2540, %v2546
        %vm2549 = vc.u32 %v2547, %v2543
        %v2550 = vsel %vm2549, 1, 0
        %v2551 = vadd.s32 %v2547, %v2543
        %v2552 = vadd.s32 %v2548, %v2550
        %v2553 = vadd.s32 %v2552, %v2542
        %v2554 = vadd.s32 %v2553, %v2544
        %v2555 = vmul.u32 %v2510, %v2501
        %v2556 = vadd.s32 %v2532, %v2551
        %vm2557 = vc.u32 %v2532, %v2551
        %v2558 = vadd.s32 %v2554, 1
        %v2559 = vsel %vm2557, %v2558, %v2554
        %v2560 = vadd.s32 %v2555, %v2559
        %v2561 = vadd.s32 %v2560, 536870912
        %v2562 = vshrl.u32 %v2561, 30
        %v2563 = vshll.u32 %v2562, 30
        %v2564 = vsub.s32 %v2560, %v2563
        %vm2565 = vcmp.lt.s32.totalorder %v2564, 0
        %v2566 = vsub.s32 0, %v2564
        %v2567 = vsel %vm2565, %v2566, %v2564
        %v2568 = vclz %v2567
        %v2569 = vsub.s32 %v2568, 2
        %vm2570 = vcmp.gt.s32.totalorder 0, %v2569
        %v2571 = vsel %vm2570, 0, %v2569
        %v2572 = vsub.s32 32, %v2571
        %v2573 = vshll.u32 %v2564, %v2571
        %v2574 = vshrl.u32 %v2556, %v2572
        %v2575 = vor.u32 %v2573, %v2574
        %v2576 = vsub.s32 4294967266, %v2571
        %v2577 = vadd.s32 %v2576, 127
        %v2578 = vshll.u32 %v2577, 23
        %v2579 = vor.u32 4788187, %v2578
        %v2580 = vand.u32 2147483647, %v2579
        %v2582 = vcvt.s32.f32 %v2575
        %v2583 = vmul.f32 %v2582, %v2580
        %v2584 = vxor.u32 %v2583, 2147483648
        %v2585 = vsel %vm2464, %v2584, %v2583
        %v2586 = vsub.s32 4, %v2562
        %v2587 = vsel %vm2464, %v2586, %v2562
        %v2588 = vsel %vm2463, %v288, %v2585
        %v2589 = vsel %vm2463, 0, %v2587
        %v2590 = vmul.f32 %v2588, %v2588
        %v2591 = vmul.f32 %v2590, -0.001358992
        %v2592 = vadd.f32 %v2591, 0.041655596
        %v2593 = vmul.f32 %v2590, %v2592
        %v2594 = vadd.f32 %v2593, -0.4999988
        %v2595 = vmul.f32 %v2590, %v2594
        %v2596 = vadd.f32 1.0, %v2595
        %v2597 = vmul.f32 %v2588, %v2588
        %v2598 = vmul.f32 %v2597, -0.00019511016
        %v2599 = vadd.f32 %v2598, 0.008332121
        %v2600 = vmul.f32 %v2597, %v2599
        %v2601 = vadd.f32 %v2600, -0.16666654
        %v2602 = vmul.f32 %v2597, %v2601
        %v2603 = vadd.f32 %v2602, 1.0
        %v2604 = vmul.f32 %v2603, %v2588
        %vm2605 = vweird.f32 %v288
        %v2606 = vand.u32 %v2589, 3
        %vm2607 = vcmp.lt.s32.totalorder %v2606, 2
        %vm2608 = vcmp.eq.s32.totalorder %v2606, 0
        %v2609 = vxor.u32 %v2604, 2147483648
        %v2610 = vsel %vm2608, %v2596, %v2609
        %vm2611 = vcmp.eq.s32.totalorder %v2606, 2
        %v2612 = vxor.u32 %v2596, 2147483648
        %v2613 = vsel %vm2611, %v2612, %v2604
        %v2614 = vsel %vm2607, %v2610, %v2613
        %v2615 = vsel %vm2605, nan, %v2614
        %v2616 = vand.u32 2147483647, %v289
        %vm2617 = vcmp.le.f32.partialorder %v2616, 0.7853982
        %vm2618 = vcmp.lt.s32.totalorder %v289, 0
        %v2619 = vand.u32 %v289, 2139095040
        %v2620 = vshrl.u32 %v2619, 23
        %v2621 = vsub.s32 %v2620, 127
        %v2622 = vand.u32 2147483647, %v289
        %v2623 = vand.u32 %v2622, 8388607
        %v2624 = vor.u32 %v2623, 8388608
        %v2625 = vsub.s32 0, %v2624
        %v2626 = vadd.s32 %v2621, 1
        %vm2627 = vcmp.gt.s32.totalorder %v2626, 0
        %v2628 = vsel %vm2627, %v2626, 0
        %v2629 = vshrl.u32 %v2628, 5
        %v2630 = vand.u32 %v2628, 31
        %v2631 = vsub.s32 32, %v2630
        %v2632 = vshrl.u32 683565275, %v2631
        %v2633 = vshll.u32 683565275, %v2630
        %v2634 = vshrl.u32 2475754826, %v2631
        %v2635 = vor.u32 %v2633, %v2634
        %v2636 = vshll.u32 2475754826, %v2630
        %v2637 = vshrl.u32 2131351028, %v2631
        %v2638 = vor.u32 %v2636, %v2637
        %v2639 = vshll.u32 2131351028, %v2630
        %v2640 = vshrl.u32 2102212464, %v2631
        %v2641 = vor.u32 %v2639, %v2640
        %v2642 = vshll.u32 2102212464, %v2630
        %v2643 = vshrl.u32 920167782, %v2631
        %v2644 = vor.u32 %v2642, %v2643
        %v2645 = vshll.u32 920167782, %v2630
        %v2646 = vshrl.u32 1326507024, %v2631
        %v2647 = vor.u32 %v2645, %v2646
        %vm2648 = vcmp.lt.s32.totalorder %v2629, 1
        %vm2649 = vcmp.lt.s32.totalorder %v2629, 2
        %vm2650 = vcmp.lt.s32.totalorder %v2629, 3
        %vm2651 = vcmp.lt.s32.totalorder %v2629, 4
        %v2652 = vsel %vm2648, %v2632, %v2635
        %v2653 = vsel %vm2651, %v2641, 2102212464
        %v2654 = vsel %vm2650, %v2638, %v2653
        %v2655 = vsel %vm2649, %v2652, %v2654
        %v2656 = vsel %vm2648, %v2635, %v2638
        %v2657 = vsel %vm2651, %v2644, 920167782
        %v2658 = vsel %vm2650, %v2641, %v2657
        %v2659 = vsel %vm2649, %v2656, %v2658
        %v2660 = vsel %vm2648, %v2638, %v2641
        %v2661 = vsel %vm2651, %v2647, 1326507024
        %v2662 = vsel %vm2650, %v2644, %v2661
        %v2663 = vsel %vm2649, %v2660, %v2662
        %v2664 = vshll.u32 %v2624, 8
        %v2665 = vand.u32 %v2664, 65535
        %v2666 = vshrl.u32 %v2664, 16
        %v2667 = vand.u32 %v2663, 65535
        %v2668 = vshrl.u32 %v2663, 16
        %v2669 = vmul.u32 %v2665, %v2667
        %v2670 = vmul.u32 %v2665, %v2668
        %v2671 = vmul.u32 %v2666, %v2667
        %v2672 = vmul.u32 %v2666, %v2668
        %v2673 = vshll.u32 %v2670, 16
        %v2674 = vshrl.u32 %v2670, 16
        %v2675 = vshll.u32 %v2671, 16
        %v2676 = vshrl.u32 %v2671, 16
        %vm2677 = vc.u32 %v2669, %v2673
        %v2678 = vsel %vm2677, 1, 0
        %v2679 = vadd.s32 %v2669, %v2673
        %v2680 = vadd.s32 %v2672, %v2678
        %vm2681 = vc.u32 %v2679, %v2675
        %v2682 = vsel %vm2681, 1, 0
        %v2683 = vadd.s32 %v2679, %v2675
        %v2684 = vadd.s32 %v2680, %v2682
        %v2685 = vadd.s32 %v2684, %v2674
        %v2686 = vadd.s32 %v2685, %v2676
        %v2687 = vand.u32 %v2664, 65535
        %v2688 = vshrl.u32 %v2664, 16
        %v2689 = vand.u32 %v2659, 65535
        %v2690 = vshrl.u32 %v2659, 16
        %v2691 = vmul.u32 %v2687, %v2689
        %v2692 = vmul.u32 %v2687, %v2690
        %v2693 = vmul.u32 %v2688, %v2689
        %v2694 = vmul.u32 %v2688, %v2690
        %v2695 = vshll.u32 %v2692, 16
        %v2696 = vshrl.u32 %v2692, 16
        %v2697 = vshll.u32 %v2693, 16
        %v2698 = vshrl.u32 %v2693, 16
        %vm2699 = vc.u32 %v2691, %v2695
        %v2700 = vsel %vm2699, 1, 0
        %v2701 = vadd.s32 %v2691, %v2695
        %v2702 = vadd.s32 %v2694, %v2700
        %vm2703 = vc.u32 %v2701, %v2697
        %v2704 = vsel %vm2703, 1, 0
        %v2705 = vadd.s32 %v2701, %v2697
        %v2706 = vadd.s32 %v2702, %v2704
        %v2707 = vadd.s32 %v2706, %v2696
        %v2708 = vadd.s32 %v2707, %v2698
        %v2709 = vmul.u32 %v2664, %v2655
        %v2710 = vadd.s32 %v2686, %v2705
        %vm2711 = vc.u32 %v2686, %v2705
        %v2712 = vadd.s32 %v2708, 1
        %v2713 = vsel %vm2711, %v2712, %v2708
        %v2714 = vadd.s32 %v2709, %v2713
        %v2715 = vadd.s32 %v2714, 536870912
        %v2716 = vshrl.u32 %v2715, 30
        %v2717 = vshll.u32 %v2716, 30
        %v2718 = vsub.s32 %v2714, %v2717
        %vm2719 = vcmp.lt.s32.totalorder %v2718, 0
        %v2720 = vsub.s32 0, %v2718
        %v2721 = vsel %vm2719, %v2720, %v2718
        %v2722 = vclz %v2721
        %v2723 = vsub.s32 %v2722, 2
        %vm2724 = vcmp.gt.s32.totalorder 0, %v2723
        %v2725 = vsel %vm2724, 0, %v2723
        %v2726 = vsub.s32 32, %v2725
        %v2727 = vshll.u32 %v2718, %v2725
        %v2728 = vshrl.u32 %v2710, %v2726
        %v2729 = vor.u32 %v2727, %v2728
        %v2730 = vsub.s32 4294967266, %v2725
        %v2731 = vadd.s32 %v2730, 127
        %v2732 = vshll.u32 %v2731, 23
        %v2733 = vor.u32 4788187, %v2732
        %v2734 = vand.u32 2147483647, %v2733
        %v2736 = vcvt.s32.f32 %v2729
        %v2737 = vmul.f32 %v2736, %v2734
        %v2738 = vxor.u32 %v2737, 2147483648
        %v2739 = vsel %vm2618, %v2738, %v2737
        %v2740 = vsub.s32 4, %v2716
        %v2741 = vsel %vm2618, %v2740, %v2716
        %v2742 = vsel %vm2617, %v289, %v2739
        %v2743 = vsel %vm2617, 0, %v2741
        %v2744 = vmul.f32 %v2742, %v2742
        %v2745 = vmul.f32 %v2744, -0.001358992
        %v2746 = vadd.f32 %v2745, 0.041655596
        %v2747 = vmul.f32 %v2744, %v2746
        %v2748 = vadd.f32 %v2747, -0.4999988
        %v2749 = vmul.f32 %v2744, %v2748
        %v2750 = vadd.f32 1.0, %v2749
        %v2751 = vmul.f32 %v2742, %v2742
        %v2752 = vmul.f32 %v2751, -0.00019511016
        %v2753 = vadd.f32 %v2752, 0.008332121
        %v2754 = vmul.f32 %v2751, %v2753
        %v2755 = vadd.f32 %v2754, -0.16666654
        %v2756 = vmul.f32 %v2751, %v2755
        %v2757 = vadd.f32 %v2756, 1.0
        %v2758 = vmul.f32 %v2757, %v2742
        %vm2759 = vweird.f32 %v289
        %v2760 = vand.u32 %v2743, 3
        %vm2761 = vcmp.lt.s32.totalorder %v2760, 2
        %vm2762 = vcmp.eq.s32.totalorder %v2760, 0
        %v2763 = vxor.u32 %v2758, 2147483648
        %v2764 = vsel %vm2762, %v2750, %v2763
        %vm2765 = vcmp.eq.s32.totalorder %v2760, 2
        %v2766 = vxor.u32 %v2750, 2147483648
        %v2767 = vsel %vm2765, %v2766, %v2758
        %v2768 = vsel %vm2761, %v2764, %v2767
        %v2769 = vsel %vm2759, nan, %v2768
        %v2770 = vand.u32 2147483647, %v290
        %vm2771 = vcmp.le.f32.partialorder %v2770, 0.7853982
        %vm2772 = vcmp.lt.s32.totalorder %v290, 0
        %v2773 = vand.u32 %v290, 2139095040
        %v2774 = vshrl.u32 %v2773, 23
        %v2775 = vsub.s32 %v2774, 127
        %v2776 = vand.u32 2147483647, %v290
        %v2777 = vand.u32 %v2776, 8388607
        %v2778 = vor.u32 %v2777, 8388608
        %v2779 = vsub.s32 0, %v2778
        %v2780 = vadd.s32 %v2775, 1
        %vm2781 = vcmp.gt.s32.totalorder %v2780, 0
        %v2782 = vsel %vm2781, %v2780, 0
        %v2783 = vshrl.u32 %v2782, 5
        %v2784 = vand.u32 %v2782, 31
        %v2785 = vsub.s32 32, %v2784
        %v2786 = vshrl.u32 683565275, %v2785
        %v2787 = vshll.u32 683565275, %v2784
        %v2788 = vshrl.u32 2475754826, %v2785
        %v2789 = vor.u32 %v2787, %v2788
        %v2790 = vshll.u32 2475754826, %v2784
        %v2791 = vshrl.u32 2131351028, %v2785
        %v2792 = vor.u32 %v2790, %v2791
        %v2793 = vshll.u32 2131351028, %v2784
        %v2794 = vshrl.u32 2102212464, %v2785
        %v2795 = vor.u32 %v2793, %v2794
        %v2796 = vshll.u32 2102212464, %v2784
        %v2797 = vshrl.u32 920167782, %v2785
        %v2798 = vor.u32 %v2796, %v2797
        %v2799 = vshll.u32 920167782, %v2784
        %v2800 = vshrl.u32 1326507024, %v2785
        %v2801 = vor.u32 %v2799, %v2800
        %vm2802 = vcmp.lt.s32.totalorder %v2783, 1
        %vm2803 = vcmp.lt.s32.totalorder %v2783, 2
        %vm2804 = vcmp.lt.s32.totalorder %v2783, 3
        %vm2805 = vcmp.lt.s32.totalorder %v2783, 4
        %v2806 = vsel %vm2802, %v2786, %v2789
        %v2807 = vsel %vm2805, %v2795, 2102212464
        %v2808 = vsel %vm2804, %v2792, %v2807
        %v2809 = vsel %vm2803, %v2806, %v2808
        %v2810 = vsel %vm2802, %v2789, %v2792
        %v2811 = vsel %vm2805, %v2798, 920167782
        %v2812 = vsel %vm2804, %v2795, %v2811
        %v2813 = vsel %vm2803, %v2810, %v2812
        %v2814 = vsel %vm2802, %v2792, %v2795
        %v2815 = vsel %vm2805, %v2801, 1326507024
        %v2816 = vsel %vm2804, %v2798, %v2815
        %v2817 = vsel %vm2803, %v2814, %v2816
        %v2818 = vshll.u32 %v2778, 8
        %v2819 = vand.u32 %v2818, 65535
        %v2820 = vshrl.u32 %v2818, 16
        %v2821 = vand.u32 %v2817, 65535
        %v2822 = vshrl.u32 %v2817, 16
        %v2823 = vmul.u32 %v2819, %v2821
        %v2824 = vmul.u32 %v2819, %v2822
        %v2825 = vmul.u32 %v2820, %v2821
        %v2826 = vmul.u32 %v2820, %v2822
        %v2827 = vshll.u32 %v2824, 16
        %v2828 = vshrl.u32 %v2824, 16
        %v2829 = vshll.u32 %v2825, 16
        %v2830 = vshrl.u32 %v2825, 16
        %vm2831 = vc.u32 %v2823, %v2827
        %v2832 = vsel %vm2831, 1, 0
        %v2833 = vadd.s32 %v2823, %v2827
        %v2834 = vadd.s32 %v2826, %v2832
        %vm2835 = vc.u32 %v2833, %v2829
        %v2836 = vsel %vm2835, 1, 0
        %v2837 = vadd.s32 %v2833, %v2829
        %v2838 = vadd.s32 %v2834, %v2836
        %v2839 = vadd.s32 %v2838, %v2828
        %v2840 = vadd.s32 %v2839, %v2830
        %v2841 = vand.u32 %v2818, 65535
        %v2842 = vshrl.u32 %v2818, 16
        %v2843 = vand.u32 %v2813, 65535
        %v2844 = vshrl.u32 %v2813, 16
        %v2845 = vmul.u32 %v2841, %v2843
        %v2846 = vmul.u32 %v2841, %v2844
        %v2847 = vmul.u32 %v2842, %v2843
        %v2848 = vmul.u32 %v2842, %v2844
        %v2849 = vshll.u32 %v2846, 16
        %v2850 = vshrl.u32 %v2846, 16
        %v2851 = vshll.u32 %v2847, 16
        %v2852 = vshrl.u32 %v2847, 16
        %vm2853 = vc.u32 %v2845, %v2849
        %v2854 = vsel %vm2853, 1, 0
        %v2855 = vadd.s32 %v2845, %v2849
        %v2856 = vadd.s32 %v2848, %v2854
        %vm2857 = vc.u32 %v2855, %v2851
        %v2858 = vsel %vm2857, 1, 0
        %v2859 = vadd.s32 %v2855, %v2851
        %v2860 = vadd.s32 %v2856, %v2858
        %v2861 = vadd.s32 %v2860, %v2850
        %v2862 = vadd.s32 %v2861, %v2852
        %v2863 = vmul.u32 %v2818, %v2809
        %v2864 = vadd.s32 %v2840, %v2859
        %vm2865 = vc.u32 %v2840, %v2859
        %v2866 = vadd.s32 %v2862, 1
        %v2867 = vsel %vm2865, %v2866, %v2862
        %v2868 = vadd.s32 %v2863, %v2867
        %v2869 = vadd.s32 %v2868, 536870912
        %v2870 = vshrl.u32 %v2869, 30
        %v2871 = vshll.u32 %v2870, 30
        %v2872 = vsub.s32 %v2868, %v2871
        %vm2873 = vcmp.lt.s32.totalorder %v2872, 0
        %v2874 = vsub.s32 0, %v2872
        %v2875 = vsel %vm2873, %v2874, %v2872
        %v2876 = vclz %v2875
        %v2877 = vsub.s32 %v2876, 2
        %vm2878 = vcmp.gt.s32.totalorder 0, %v2877
        %v2879 = vsel %vm2878, 0, %v2877
        %v2880 = vsub.s32 32, %v2879
        %v2881 = vshll.u32 %v2872, %v2879
        %v2882 = vshrl.u32 %v2864, %v2880
        %v2883 = vor.u32 %v2881, %v2882
        %v2884 = vsub.s32 4294967266, %v2879
        %v2885 = vadd.s32 %v2884, 127
        %v2886 = vshll.u32 %v2885, 23
        %v2887 = vor.u32 4788187, %v2886
        %v2888 = vand.u32 2147483647, %v2887
        %v2890 = vcvt.s32.f32 %v2883
        %v2891 = vmul.f32 %v2890, %v2888
        %v2892 = vxor.u32 %v2891, 2147483648
        %v2893 = vsel %vm2772, %v2892, %v2891
        %v2894 = vsub.s32 4, %v2870
        %v2895 = vsel %vm2772, %v2894, %v2870
        %v2896 = vsel %vm2771, %v290, %v2893
        %v2897 = vsel %vm2771, 0, %v2895
        %v2898 = vmul.f32 %v2896, %v2896
        %v2899 = vmul.f32 %v2898, -0.001358992
        %v2900 = vadd.f32 %v2899, 0.041655596
        %v2901 = vmul.f32 %v2898, %v2900
        %v2902 = vadd.f32 %v2901, -0.4999988
        %v2903 = vmul.f32 %v2898, %v2902
        %v2904 = vadd.f32 1.0, %v2903
        %v2905 = vmul.f32 %v2896, %v2896
        %v2906 = vmul.f32 %v2905, -0.00019511016
        %v2907 = vadd.f32 %v2906, 0.008332121
        %v2908 = vmul.f32 %v2905, %v2907
        %v2909 = vadd.f32 %v2908, -0.16666654
        %v2910 = vmul.f32 %v2905, %v2909
        %v2911 = vadd.f32 %v2910, 1.0
        %v2912 = vmul.f32 %v2911, %v2896
        %vm2913 = vweird.f32 %v290
        %v2914 = vand.u32 %v2897, 3
        %vm2915 = vcmp.lt.s32.totalorder %v2914, 2
        %vm2916 = vcmp.eq.s32.totalorder %v2914, 0
        %v2917 = vxor.u32 %v2912, 2147483648
        %v2918 = vsel %vm2916, %v2904, %v2917
        %vm2919 = vcmp.eq.s32.totalorder %v2914, 2
        %v2920 = vxor.u32 %v2904, 2147483648
        %v2921 = vsel %vm2919, %v2920, %v2912
        %v2922 = vsel %vm2915, %v2918, %v2921
        %v2923 = vsel %vm2913, nan, %v2922
        %v2924 = vand.u32 2147483647, %v291
        %vm2925 = vcmp.le.f32.partialorder %v2924, 0.7853982
        %vm2926 = vcmp.lt.s32.totalorder %v291, 0
        %v2927 = vand.u32 %v291, 2139095040
        %v2928 = vshrl.u32 %v2927, 23
        %v2929 = vsub.s32 %v2928, 127
        %v2930 = vand.u32 2147483647, %v291
        %v2931 = vand.u32 %v2930, 8388607
        %v2932 = vor.u32 %v2931, 8388608
        %v2933 = vsub.s32 0, %v2932
        %v2934 = vadd.s32 %v2929, 1
        %vm2935 = vcmp.gt.s32.totalorder %v2934, 0
        %v2936 = vsel %vm2935, %v2934, 0
        %v2937 = vshrl.u32 %v2936, 5
        %v2938 = vand.u32 %v2936, 31
        %v2939 = vsub.s32 32, %v2938
        %v2940 = vshrl.u32 683565275, %v2939
        %v2941 = vshll.u32 683565275, %v2938
        %v2942 = vshrl.u32 2475754826, %v2939
        %v2943 = vor.u32 %v2941, %v2942
        %v2944 = vshll.u32 2475754826, %v2938
        %v2945 = vshrl.u32 2131351028, %v2939
        %v2946 = vor.u32 %v2944, %v2945
        %v2947 = vshll.u32 2131351028, %v2938
        %v2948 = vshrl.u32 2102212464, %v2939
        %v2949 = vor.u32 %v2947, %v2948
        %v2950 = vshll.u32 2102212464, %v2938
        %v2951 = vshrl.u32 920167782, %v2939
        %v2952 = vor.u32 %v2950, %v2951
        %v2953 = vshll.u32 920167782, %v2938
        %v2954 = vshrl.u32 1326507024, %v2939
        %v2955 = vor.u32 %v2953, %v2954
        %vm2956 = vcmp.lt.s32.totalorder %v2937, 1
        %vm2957 = vcmp.lt.s32.totalorder %v2937, 2
        %vm2958 = vcmp.lt.s32.totalorder %v2937, 3
        %vm2959 = vcmp.lt.s32.totalorder %v2937, 4
        %v2960 = vsel %vm2956, %v2940, %v2943
        %v2961 = vsel %vm2959, %v2949, 2102212464
        %v2962 = vsel %vm2958, %v2946, %v2961
        %v2963 = vsel %vm2957, %v2960, %v2962
        %v2964 = vsel %vm2956, %v2943, %v2946
        %v2965 = vsel %vm2959, %v2952, 920167782
        %v2966 = vsel %vm2958, %v2949, %v2965
        %v2967 = vsel %vm2957, %v2964, %v2966
        %v2968 = vsel %vm2956, %v2946, %v2949
        %v2969 = vsel %vm2959, %v2955, 1326507024
        %v2970 = vsel %vm2958, %v2952, %v2969
        %v2971 = vsel %vm2957, %v2968, %v2970
        %v2972 = vshll.u32 %v2932, 8
        %v2973 = vand.u32 %v2972, 65535
        %v2974 = vshrl.u32 %v2972, 16
        %v2975 = vand.u32 %v2971, 65535
        %v2976 = vshrl.u32 %v2971, 16
        %v2977 = vmul.u32 %v2973, %v2975
        %v2978 = vmul.u32 %v2973, %v2976
        %v2979 = vmul.u32 %v2974, %v2975
        %v2980 = vmul.u32 %v2974, %v2976
        %v2981 = vshll.u32 %v2978, 16
        %v2982 = vshrl.u32 %v2978, 16
        %v2983 = vshll.u32 %v2979, 16
        %v2984 = vshrl.u32 %v2979, 16
        %vm2985 = vc.u32 %v2977, %v2981
        %v2986 = vsel %vm2985, 1, 0
        %v2987 = vadd.s32 %v2977, %v2981
        %v2988 = vadd.s32 %v2980, %v2986
        %vm2989 = vc.u32 %v2987, %v2983
        %v2990 = vsel %vm2989, 1, 0
        %v2991 = vadd.s32 %v2987, %v2983
        %v2992 = vadd.s32 %v2988, %v2990
        %v2993 = vadd.s32 %v2992, %v2982
        %v2994 = vadd.s32 %v2993, %v2984
        %v2995 = vand.u32 %v2972, 65535
        %v2996 = vshrl.u32 %v2972, 16
        %v2997 = vand.u32 %v2967, 65535
        %v2998 = vshrl.u32 %v2967, 16
        %v2999 = vmul.u32 %v2995, %v2997
        %v3000 = vmul.u32 %v2995, %v2998
        %v3001 = vmul.u32 %v2996, %v2997
        %v3002 = vmul.u32 %v2996, %v2998
        %v3003 = vshll.u32 %v3000, 16
        %v3004 = vshrl.u32 %v3000, 16
        %v3005 = vshll.u32 %v3001, 16
        %v3006 = vshrl.u32 %v3001, 16
        %vm3007 = vc.u32 %v2999, %v3003
        %v3008 = vsel %vm3007, 1, 0
        %v3009 = vadd.s32 %v2999, %v3003
        %v3010 = vadd.s32 %v3002, %v3008
        %vm3011 = vc.u32 %v3009, %v3005
        %v3012 = vsel %vm3011, 1, 0
        %v3013 = vadd.s32 %v3009, %v3005
        %v3014 = vadd.s32 %v3010, %v3012
        %v3015 = vadd.s32 %v3014, %v3004
        %v3016 = vadd.s32 %v3015, %v3006
        %v3017 = vmul.u32 %v2972, %v2963
        %v3018 = vadd.s32 %v2994, %v3013
        %vm3019 = vc.u32 %v2994, %v3013
        %v3020 = vadd.s32 %v3016, 1
        %v3021 = vsel %vm3019, %v3020, %v3016
        %v3022 = vadd.s32 %v3017, %v3021
        %v3023 = vadd.s32 %v3022, 536870912
        %v3024 = vshrl.u32 %v3023, 30
        %v3025 = vshll.u32 %v3024, 30
        %v3026 = vsub.s32 %v3022, %v3025
        %vm3027 = vcmp.lt.s32.totalorder %v3026, 0
        %v3028 = vsub.s32 0, %v3026
        %v3029 = vsel %vm3027, %v3028, %v3026
        %v3030 = vclz %v3029
        %v3031 = vsub.s32 %v3030, 2
        %vm3032 = vcmp.gt.s32.totalorder 0, %v3031
        %v3033 = vsel %vm3032, 0, %v3031
        %v3034 = vsub.s32 32, %v3033
        %v3035 = vshll.u32 %v3026, %v3033
        %v3036 = vshrl.u32 %v3018, %v3034
        %v3037 = vor.u32 %v3035, %v3036
        %v3038 = vsub.s32 4294967266, %v3033
        %v3039 = vadd.s32 %v3038, 127
        %v3040 = vshll.u32 %v3039, 23
        %v3041 = vor.u32 4788187, %v3040
        %v3042 = vand.u32 2147483647, %v3041
        %v3044 = vcvt.s32.f32 %v3037
        %v3045 = vmul.f32 %v3044, %v3042
        %v3046 = vxor.u32 %v3045, 2147483648
        %v3047 = vsel %vm2926, %v3046, %v3045
        %v3048 = vsub.s32 4, %v3024
        %v3049 = vsel %vm2926, %v3048, %v3024
        %v3050 = vsel %vm2925, %v291, %v3047
        %v3051 = vsel %vm2925, 0, %v3049
        %v3052 = vmul.f32 %v3050, %v3050
        %v3053 = vmul.f32 %v3052, -0.001358992
        %v3054 = vadd.f32 %v3053, 0.041655596
        %v3055 = vmul.f32 %v3052, %v3054
        %v3056 = vadd.f32 %v3055, -0.4999988
        %v3057 = vmul.f32 %v3052, %v3056
        %v3058 = vadd.f32 1.0, %v3057
        %v3059 = vmul.f32 %v3050, %v3050
        %v3060 = vmul.f32 %v3059, -0.00019511016
        %v3061 = vadd.f32 %v3060, 0.008332121
        %v3062 = vmul.f32 %v3059, %v3061
        %v3063 = vadd.f32 %v3062, -0.16666654
        %v3064 = vmul.f32 %v3059, %v3063
        %v3065 = vadd.f32 %v3064, 1.0
        %v3066 = vmul.f32 %v3065, %v3050
        %vm3067 = vweird.f32 %v291
        %v3068 = vand.u32 %v3051, 3
        %vm3069 = vcmp.lt.s32.totalorder %v3068, 2
        %vm3070 = vcmp.eq.s32.totalorder %v3068, 0
        %v3071 = vxor.u32 %v3066, 2147483648
        %v3072 = vsel %vm3070, %v3058, %v3071
        %vm3073 = vcmp.eq.s32.totalorder %v3068, 2
        %v3074 = vxor.u32 %v3058, 2147483648
        %v3075 = vsel %vm3073, %v3074, %v3066
        %v3076 = vsel %vm3069, %v3072, %v3075
        %v3077 = vsel %vm3067, nan, %v3076
        %v3078 = vand.u32 2147483647, %v292
        %vm3079 = vcmp.le.f32.partialorder %v3078, 0.7853982
        %vm3080 = vcmp.lt.s32.totalorder %v292, 0
        %v3081 = vand.u32 %v292, 2139095040
        %v3082 = vshrl.u32 %v3081, 23
        %v3083 = vsub.s32 %v3082, 127
        %v3084 = vand.u32 2147483647, %v292
        %v3085 = vand.u32 %v3084, 8388607
        %v3086 = vor.u32 %v3085, 8388608
        %v3087 = vsub.s32 0, %v3086
        %v3088 = vadd.s32 %v3083, 1
        %vm3089 = vcmp.gt.s32.totalorder %v3088, 0
        %v3090 = vsel %vm3089, %v3088, 0
        %v3091 = vshrl.u32 %v3090, 5
        %v3092 = vand.u32 %v3090, 31
        %v3093 = vsub.s32 32, %v3092
        %v3094 = vshrl.u32 683565275, %v3093
        %v3095 = vshll.u32 683565275, %v3092
        %v3096 = vshrl.u32 2475754826, %v3093
        %v3097 = vor.u32 %v3095, %v3096
        %v3098 = vshll.u32 2475754826, %v3092
        %v3099 = vshrl.u32 2131351028, %v3093
        %v3100 = vor.u32 %v3098, %v3099
        %v3101 = vshll.u32 2131351028, %v3092
        %v3102 = vshrl.u32 2102212464, %v3093
        %v3103 = vor.u32 %v3101, %v3102
        %v3104 = vshll.u32 2102212464, %v3092
        %v3105 = vshrl.u32 920167782, %v3093
        %v3106 = vor.u32 %v3104, %v3105
        %v3107 = vshll.u32 920167782, %v3092
        %v3108 = vshrl.u32 1326507024, %v3093
        %v3109 = vor.u32 %v3107, %v3108
        %vm3110 = vcmp.lt.s32.totalorder %v3091, 1
        %vm3111 = vcmp.lt.s32.totalorder %v3091, 2
        %vm3112 = vcmp.lt.s32.totalorder %v3091, 3
        %vm3113 = vcmp.lt.s32.totalorder %v3091, 4
        %v3114 = vsel %vm3110, %v3094, %v3097
        %v3115 = vsel %vm3113, %v3103, 2102212464
        %v3116 = vsel %vm3112, %v3100, %v3115
        %v3117 = vsel %vm3111, %v3114, %v3116
        %v3118 = vsel %vm3110, %v3097, %v3100
        %v3119 = vsel %vm3113, %v3106, 920167782
        %v3120 = vsel %vm3112, %v3103, %v3119
        %v3121 = vsel %vm3111, %v3118, %v3120
        %v3122 = vsel %vm3110, %v3100, %v3103
        %v3123 = vsel %vm3113, %v3109, 1326507024
        %v3124 = vsel %vm3112, %v3106, %v3123
        %v3125 = vsel %vm3111, %v3122, %v3124
        %v3126 = vshll.u32 %v3086, 8
        %v3127 = vand.u32 %v3126, 65535
        %v3128 = vshrl.u32 %v3126, 16
        %v3129 = vand.u32 %v3125, 65535
        %v3130 = vshrl.u32 %v3125, 16
        %v3131 = vmul.u32 %v3127, %v3129
        %v3132 = vmul.u32 %v3127, %v3130
        %v3133 = vmul.u32 %v3128, %v3129
        %v3134 = vmul.u32 %v3128, %v3130
        %v3135 = vshll.u32 %v3132, 16
        %v3136 = vshrl.u32 %v3132, 16
        %v3137 = vshll.u32 %v3133, 16
        %v3138 = vshrl.u32 %v3133, 16
        %vm3139 = vc.u32 %v3131, %v3135
        %v3140 = vsel %vm3139, 1, 0
        %v3141 = vadd.s32 %v3131, %v3135
        %v3142 = vadd.s32 %v3134, %v3140
        %vm3143 = vc.u32 %v3141, %v3137
        %v3144 = vsel %vm3143, 1, 0
        %v3145 = vadd.s32 %v3141, %v3137
        %v3146 = vadd.s32 %v3142, %v3144
        %v3147 = vadd.s32 %v3146, %v3136
        %v3148 = vadd.s32 %v3147, %v3138
        %v3149 = vand.u32 %v3126, 65535
        %v3150 = vshrl.u32 %v3126, 16
        %v3151 = vand.u32 %v3121, 65535
        %v3152 = vshrl.u32 %v3121, 16
        %v3153 = vmul.u32 %v3149, %v3151
        %v3154 = vmul.u32 %v3149, %v3152
        %v3155 = vmul.u32 %v3150, %v3151
        %v3156 = vmul.u32 %v3150, %v3152
        %v3157 = vshll.u32 %v3154, 16
        %v3158 = vshrl.u32 %v3154, 16
        %v3159 = vshll.u32 %v3155, 16
        %v3160 = vshrl.u32 %v3155, 16
        %vm3161 = vc.u32 %v3153, %v3157
        %v3162 = vsel %vm3161, 1, 0
        %v3163 = vadd.s32 %v3153, %v3157
        %v3164 = vadd.s32 %v3156, %v3162
        %vm3165 = vc.u32 %v3163, %v3159
        %v3166 = vsel %vm3165, 1, 0
        %v3167 = vadd.s32 %v3163, %v3159
        %v3168 = vadd.s32 %v3164, %v3166
        %v3169 = vadd.s32 %v3168, %v3158
        %v3170 = vadd.s32 %v3169, %v3160
        %v3171 = vmul.u32 %v3126, %v3117
        %v3172 = vadd.s32 %v3148, %v3167
        %vm3173 = vc.u32 %v3148, %v3167
        %v3174 = vadd.s32 %v3170, 1
        %v3175 = vsel %vm3173, %v3174, %v3170
        %v3176 = vadd.s32 %v3171, %v3175
        %v3177 = vadd.s32 %v3176, 536870912
        %v3178 = vshrl.u32 %v3177, 30
        %v3179 = vshll.u32 %v3178, 30
        %v3180 = vsub.s32 %v3176, %v3179
        %vm3181 = vcmp.lt.s32.totalorder %v3180, 0
        %v3182 = vsub.s32 0, %v3180
        %v3183 = vsel %vm3181, %v3182, %v3180
        %v3184 = vclz %v3183
        %v3185 = vsub.s32 %v3184, 2
        %vm3186 = vcmp.gt.s32.totalorder 0, %v3185
        %v3187 = vsel %vm3186, 0, %v3185
        %v3188 = vsub.s32 32, %v3187
        %v3189 = vshll.u32 %v3180, %v3187
        %v3190 = vshrl.u32 %v3172, %v3188
        %v3191 = vor.u32 %v3189, %v3190
        %v3192 = vsub.s32 4294967266, %v3187
        %v3193 = vadd.s32 %v3192, 127
        %v3194 = vshll.u32 %v3193, 23
        %v3195 = vor.u32 4788187, %v3194
        %v3196 = vand.u32 2147483647, %v3195
        %v3198 = vcvt.s32.f32 %v3191
        %v3199 = vmul.f32 %v3198, %v3196
        %v3200 = vxor.u32 %v3199, 2147483648
        %v3201 = vsel %vm3080, %v3200, %v3199
        %v3202 = vsub.s32 4, %v3178
        %v3203 = vsel %vm3080, %v3202, %v3178
        %v3204 = vsel %vm3079, %v292, %v3201
        %v3205 = vsel %vm3079, 0, %v3203
        %v3206 = vmul.f32 %v3204, %v3204
        %v3207 = vmul.f32 %v3206, -0.001358992
        %v3208 = vadd.f32 %v3207, 0.041655596
        %v3209 = vmul.f32 %v3206, %v3208
        %v3210 = vadd.f32 %v3209, -0.4999988
        %v3211 = vmul.f32 %v3206, %v3210
        %v3212 = vadd.f32 1.0, %v3211
        %v3213 = vmul.f32 %v3204, %v3204
        %v3214 = vmul.f32 %v3213, -0.00019511016
        %v3215 = vadd.f32 %v3214, 0.008332121
        %v3216 = vmul.f32 %v3213, %v3215
        %v3217 = vadd.f32 %v3216, -0.16666654
        %v3218 = vmul.f32 %v3213, %v3217
        %v3219 = vadd.f32 %v3218, 1.0
        %v3220 = vmul.f32 %v3219, %v3204
        %vm3221 = vweird.f32 %v292
        %v3222 = vand.u32 %v3205, 3
        %vm3223 = vcmp.lt.s32.totalorder %v3222, 2
        %vm3224 = vcmp.eq.s32.totalorder %v3222, 0
        %v3225 = vxor.u32 %v3220, 2147483648
        %v3226 = vsel %vm3224, %v3212, %v3225
        %vm3227 = vcmp.eq.s32.totalorder %v3222, 2
        %v3228 = vxor.u32 %v3212, 2147483648
        %v3229 = vsel %vm3227, %v3228, %v3220
        %v3230 = vsel %vm3223, %v3226, %v3229
        %v3231 = vsel %vm3221, nan, %v3230
        %v3232 = vand.u32 2147483647, %v293
        %vm3233 = vcmp.le.f32.partialorder %v3232, 0.7853982
        %vm3234 = vcmp.lt.s32.totalorder %v293, 0
        %v3235 = vand.u32 %v293, 2139095040
        %v3236 = vshrl.u32 %v3235, 23
        %v3237 = vsub.s32 %v3236, 127
        %v3238 = vand.u32 2147483647, %v293
        %v3239 = vand.u32 %v3238, 8388607
        %v3240 = vor.u32 %v3239, 8388608
        %v3241 = vsub.s32 0, %v3240
        %v3242 = vadd.s32 %v3237, 1
        %vm3243 = vcmp.gt.s32.totalorder %v3242, 0
        %v3244 = vsel %vm3243, %v3242, 0
        %v3245 = vshrl.u32 %v3244, 5
        %v3246 = vand.u32 %v3244, 31
        %v3247 = vsub.s32 32, %v3246
        %v3248 = vshrl.u32 683565275, %v3247
        %v3249 = vshll.u32 683565275, %v3246
        %v3250 = vshrl.u32 2475754826, %v3247
        %v3251 = vor.u32 %v3249, %v3250
        %v3252 = vshll.u32 2475754826, %v3246
        %v3253 = vshrl.u32 2131351028, %v3247
        %v3254 = vor.u32 %v3252, %v3253
        %v3255 = vshll.u32 2131351028, %v3246
        %v3256 = vshrl.u32 2102212464, %v3247
        %v3257 = vor.u32 %v3255, %v3256
        %v3258 = vshll.u32 2102212464, %v3246
        %v3259 = vshrl.u32 920167782, %v3247
        %v3260 = vor.u32 %v3258, %v3259
        %v3261 = vshll.u32 920167782, %v3246
        %v3262 = vshrl.u32 1326507024, %v3247
        %v3263 = vor.u32 %v3261, %v3262
        %vm3264 = vcmp.lt.s32.totalorder %v3245, 1
        %vm3265 = vcmp.lt.s32.totalorder %v3245, 2
        %vm3266 = vcmp.lt.s32.totalorder %v3245, 3
        %vm3267 = vcmp.lt.s32.totalorder %v3245, 4
        %v3268 = vsel %vm3264, %v3248, %v3251
        %v3269 = vsel %vm3267, %v3257, 2102212464
        %v3270 = vsel %vm3266, %v3254, %v3269
        %v3271 = vsel %vm3265, %v3268, %v3270
        %v3272 = vsel %vm3264, %v3251, %v3254
        %v3273 = vsel %vm3267, %v3260, 920167782
        %v3274 = vsel %vm3266, %v3257, %v3273
        %v3275 = vsel %vm3265, %v3272, %v3274
        %v3276 = vsel %vm3264, %v3254, %v3257
        %v3277 = vsel %vm3267, %v3263, 1326507024
        %v3278 = vsel %vm3266, %v3260, %v3277
        %v3279 = vsel %vm3265, %v3276, %v3278
        %v3280 = vshll.u32 %v3240, 8
        %v3281 = vand.u32 %v3280, 65535
        %v3282 = vshrl.u32 %v3280, 16
        %v3283 = vand.u32 %v3279, 65535
        %v3284 = vshrl.u32 %v3279, 16
        %v3285 = vmul.u32 %v3281, %v3283
        %v3286 = vmul.u32 %v3281, %v3284
        %v3287 = vmul.u32 %v3282, %v3283
        %v3288 = vmul.u32 %v3282, %v3284
        %v3289 = vshll.u32 %v3286, 16
        %v3290 = vshrl.u32 %v3286, 16
        %v3291 = vshll.u32 %v3287, 16
        %v3292 = vshrl.u32 %v3287, 16
        %vm3293 = vc.u32 %v3285, %v3289
        %v3294 = vsel %vm3293, 1, 0
        %v3295 = vadd.s32 %v3285, %v3289
        %v3296 = vadd.s32 %v3288, %v3294
        %vm3297 = vc.u32 %v3295, %v3291
        %v3298 = vsel %vm3297, 1, 0
        %v3299 = vadd.s32 %v3295, %v3291
        %v3300 = vadd.s32 %v3296, %v3298
        %v3301 = vadd.s32 %v3300, %v3290
        %v3302 = vadd.s32 %v3301, %v3292
        %v3303 = vand.u32 %v3280, 65535
        %v3304 = vshrl.u32 %v3280, 16
        %v3305 = vand.u32 %v3275, 65535
        %v3306 = vshrl.u32 %v3275, 16
        %v3307 = vmul.u32 %v3303, %v3305
        %v3308 = vmul.u32 %v3303, %v3306
        %v3309 = vmul.u32 %v3304, %v3305
        %v3310 = vmul.u32 %v3304, %v3306
        %v3311 = vshll.u32 %v3308, 16
        %v3312 = vshrl.u32 %v3308, 16
        %v3313 = vshll.u32 %v3309, 16
        %v3314 = vshrl.u32 %v3309, 16
        %vm3315 = vc.u32 %v3307, %v3311
        %v3316 = vsel %vm3315, 1, 0
        %v3317 = vadd.s32 %v3307, %v3311
        %v3318 = vadd.s32 %v3310, %v3316
        %vm3319 = vc.u32 %v3317, %v3313
        %v3320 = vsel %vm3319, 1, 0
        %v3321 = vadd.s32 %v3317, %v3313
        %v3322 = vadd.s32 %v3318, %v3320
        %v3323 = vadd.s32 %v3322, %v3312
        %v3324 = vadd.s32 %v3323, %v3314
        %v3325 = vmul.u32 %v3280, %v3271
        %v3326 = vadd.s32 %v3302, %v3321
        %vm3327 = vc.u32 %v3302, %v3321
        %v3328 = vadd.s32 %v3324, 1
        %v3329 = vsel %vm3327, %v3328, %v3324
        %v3330 = vadd.s32 %v3325, %v3329
        %v3331 = vadd.s32 %v3330, 536870912
        %v3332 = vshrl.u32 %v3331, 30
        %v3333 = vshll.u32 %v3332, 30
        %v3334 = vsub.s32 %v3330, %v3333
        %vm3335 = vcmp.lt.s32.totalorder %v3334, 0
        %v3336 = vsub.s32 0, %v3334
        %v3337 = vsel %vm3335, %v3336, %v3334
        %v3338 = vclz %v3337
        %v3339 = vsub.s32 %v3338, 2
        %vm3340 = vcmp.gt.s32.totalorder 0, %v3339
        %v3341 = vsel %vm3340, 0, %v3339
        %v3342 = vsub.s32 32, %v3341
        %v3343 = vshll.u32 %v3334, %v3341
        %v3344 = vshrl.u32 %v3326, %v3342
        %v3345 = vor.u32 %v3343, %v3344
        %v3346 = vsub.s32 4294967266, %v3341
        %v3347 = vadd.s32 %v3346, 127
        %v3348 = vshll.u32 %v3347, 23
        %v3349 = vor.u32 4788187, %v3348
        %v3350 = vand.u32 2147483647, %v3349
        %v3352 = vcvt.s32.f32 %v3345
        %v3353 = vmul.f32 %v3352, %v3350
        %v3354 = vxor.u32 %v3353, 2147483648
        %v3355 = vsel %vm3234, %v3354, %v3353
        %v3356 = vsub.s32 4, %v3332
        %v3357 = vsel %vm3234, %v3356, %v3332
        %v3358 = vsel %vm3233, %v293, %v3355
        %v3359 = vsel %vm3233, 0, %v3357
        %v3360 = vmul.f32 %v3358, %v3358
        %v3361 = vmul.f32 %v3360, -0.001358992
        %v3362 = vadd.f32 %v3361, 0.041655596
        %v3363 = vmul.f32 %v3360, %v3362
        %v3364 = vadd.f32 %v3363, -0.4999988
        %v3365 = vmul.f32 %v3360, %v3364
        %v3366 = vadd.f32 1.0, %v3365
        %v3367 = vmul.f32 %v3358, %v3358
        %v3368 = vmul.f32 %v3367, -0.00019511016
        %v3369 = vadd.f32 %v3368, 0.008332121
        %v3370 = vmul.f32 %v3367, %v3369
        %v3371 = vadd.f32 %v3370, -0.16666654
        %v3372 = vmul.f32 %v3367, %v3371
        %v3373 = vadd.f32 %v3372, 1.0
        %v3374 = vmul.f32 %v3373, %v3358
        %vm3375 = vweird.f32 %v293
        %v3376 = vand.u32 %v3359, 3
        %vm3377 = vcmp.lt.s32.totalorder %v3376, 2
        %vm3378 = vcmp.eq.s32.totalorder %v3376, 0
        %v3379 = vxor.u32 %v3374, 2147483648
        %v3380 = vsel %vm3378, %v3366, %v3379
        %vm3381 = vcmp.eq.s32.totalorder %v3376, 2
        %v3382 = vxor.u32 %v3366, 2147483648
        %v3383 = vsel %vm3381, %v3382, %v3374
        %v3384 = vsel %vm3377, %v3380, %v3383
        %v3385 = vsel %vm3375, nan, %v3384
        %v3386 = vand.u32 2147483647, %v294
        %vm3387 = vcmp.le.f32.partialorder %v3386, 0.7853982
        %vm3388 = vcmp.lt.s32.totalorder %v294, 0
        %v3389 = vand.u32 %v294, 2139095040
        %v3390 = vshrl.u32 %v3389, 23
        %v3391 = vsub.s32 %v3390, 127
        %v3392 = vand.u32 2147483647, %v294
        %v3393 = vand.u32 %v3392, 8388607
        %v3394 = vor.u32 %v3393, 8388608
        %v3395 = vsub.s32 0, %v3394
        %v3396 = vadd.s32 %v3391, 1
        %vm3397 = vcmp.gt.s32.totalorder %v3396, 0
        %v3398 = vsel %vm3397, %v3396, 0
        %v3399 = vshrl.u32 %v3398, 5
        %v3400 = vand.u32 %v3398, 31
        %v3401 = vsub.s32 32, %v3400
        %v3402 = vshrl.u32 683565275, %v3401
        %v3403 = vshll.u32 683565275, %v3400
        %v3404 = vshrl.u32 2475754826, %v3401
        %v3405 = vor.u32 %v3403, %v3404
        %v3406 = vshll.u32 2475754826, %v3400
        %v3407 = vshrl.u32 2131351028, %v3401
        %v3408 = vor.u32 %v3406, %v3407
        %v3409 = vshll.u32 2131351028, %v3400
        %v3410 = vshrl.u32 2102212464, %v3401
        %v3411 = vor.u32 %v3409, %v3410
        %v3412 = vshll.u32 2102212464, %v3400
        %v3413 = vshrl.u32 920167782, %v3401
        %v3414 = vor.u32 %v3412, %v3413
        %v3415 = vshll.u32 920167782, %v3400
        %v3416 = vshrl.u32 1326507024, %v3401
        %v3417 = vor.u32 %v3415, %v3416
        %vm3418 = vcmp.lt.s32.totalorder %v3399, 1
        %vm3419 = vcmp.lt.s32.totalorder %v3399, 2
        %vm3420 = vcmp.lt.s32.totalorder %v3399, 3
        %vm3421 = vcmp.lt.s32.totalorder %v3399, 4
        %v3422 = vsel %vm3418, %v3402, %v3405
        %v3423 = vsel %vm3421, %v3411, 2102212464
        %v3424 = vsel %vm3420, %v3408, %v3423
        %v3425 = vsel %vm3419, %v3422, %v3424
        %v3426 = vsel %vm3418, %v3405, %v3408
        %v3427 = vsel %vm3421, %v3414, 920167782
        %v3428 = vsel %vm3420, %v3411, %v3427
        %v3429 = vsel %vm3419, %v3426, %v3428
        %v3430 = vsel %vm3418, %v3408, %v3411
        %v3431 = vsel %vm3421, %v3417, 1326507024
        %v3432 = vsel %vm3420, %v3414, %v3431
        %v3433 = vsel %vm3419, %v3430, %v3432
        %v3434 = vshll.u32 %v3394, 8
        %v3435 = vand.u32 %v3434, 65535
        %v3436 = vshrl.u32 %v3434, 16
        %v3437 = vand.u32 %v3433, 65535
        %v3438 = vshrl.u32 %v3433, 16
        %v3439 = vmul.u32 %v3435, %v3437
        %v3440 = vmul.u32 %v3435, %v3438
        %v3441 = vmul.u32 %v3436, %v3437
        %v3442 = vmul.u32 %v3436, %v3438
        %v3443 = vshll.u32 %v3440, 16
        %v3444 = vshrl.u32 %v3440, 16
        %v3445 = vshll.u32 %v3441, 16
        %v3446 = vshrl.u32 %v3441, 16
        %vm3447 = vc.u32 %v3439, %v3443
        %v3448 = vsel %vm3447, 1, 0
        %v3449 = vadd.s32 %v3439, %v3443
        %v3450 = vadd.s32 %v3442, %v3448
        %vm3451 = vc.u32 %v3449, %v3445
        %v3452 = vsel %vm3451, 1, 0
        %v3453 = vadd.s32 %v3449, %v3445
        %v3454 = vadd.s32 %v3450, %v3452
        %v3455 = vadd.s32 %v3454, %v3444
        %v3456 = vadd.s32 %v3455, %v3446
        %v3457 = vand.u32 %v3434, 65535
        %v3458 = vshrl.u32 %v3434, 16
        %v3459 = vand.u32 %v3429, 65535
        %v3460 = vshrl.u32 %v3429, 16
        %v3461 = vmul.u32 %v3457, %v3459
        %v3462 = vmul.u32 %v3457, %v3460
        %v3463 = vmul.u32 %v3458, %v3459
        %v3464 = vmul.u32 %v3458, %v3460
        %v3465 = vshll.u32 %v3462, 16
        %v3466 = vshrl.u32 %v3462, 16
        %v3467 = vshll.u32 %v3463, 16
        %v3468 = vshrl.u32 %v3463, 16
        %vm3469 = vc.u32 %v3461, %v3465
        %v3470 = vsel %vm3469, 1, 0
        %v3471 = vadd.s32 %v3461, %v3465
        %v3472 = vadd.s32 %v3464, %v3470
        %vm3473 = vc.u32 %v3471, %v3467
        %v3474 = vsel %vm3473, 1, 0
        %v3475 = vadd.s32 %v3471, %v3467
        %v3476 = vadd.s32 %v3472, %v3474
        %v3477 = vadd.s32 %v3476, %v3466
        %v3478 = vadd.s32 %v3477, %v3468
        %v3479 = vmul.u32 %v3434, %v3425
        %v3480 = vadd.s32 %v3456, %v3475
        %vm3481 = vc.u32 %v3456, %v3475
        %v3482 = vadd.s32 %v3478, 1
        %v3483 = vsel %vm3481, %v3482, %v3478
        %v3484 = vadd.s32 %v3479, %v3483
        %v3485 = vadd.s32 %v3484, 536870912
        %v3486 = vshrl.u32 %v3485, 30
        %v3487 = vshll.u32 %v3486, 30
        %v3488 = vsub.s32 %v3484, %v3487
        %vm3489 = vcmp.lt.s32.totalorder %v3488, 0
        %v3490 = vsub.s32 0, %v3488
        %v3491 = vsel %vm3489, %v3490, %v3488
        %v3492 = vclz %v3491
        %v3493 = vsub.s32 %v3492, 2
        %vm3494 = vcmp.gt.s32.totalorder 0, %v3493
        %v3495 = vsel %vm3494, 0, %v3493
        %v3496 = vsub.s32 32, %v3495
        %v3497 = vshll.u32 %v3488, %v3495
        %v3498 = vshrl.u32 %v3480, %v3496
        %v3499 = vor.u32 %v3497, %v3498
        %v3500 = vsub.s32 4294967266, %v3495
        %v3501 = vadd.s32 %v3500, 127
        %v3502 = vshll.u32 %v3501, 23
        %v3503 = vor.u32 4788187, %v3502
        %v3504 = vand.u32 2147483647, %v3503
        %v3506 = vcvt.s32.f32 %v3499
        %v3507 = vmul.f32 %v3506, %v3504
        %v3508 = vxor.u32 %v3507, 2147483648
        %v3509 = vsel %vm3388, %v3508, %v3507
        %v3510 = vsub.s32 4, %v3486
        %v3511 = vsel %vm3388, %v3510, %v3486
        %v3512 = vsel %vm3387, %v294, %v3509
        %v3513 = vsel %vm3387, 0, %v3511
        %v3514 = vmul.f32 %v3512, %v3512
        %v3515 = vmul.f32 %v3514, -0.001358992
        %v3516 = vadd.f32 %v3515, 0.041655596
        %v3517 = vmul.f32 %v3514, %v3516
        %v3518 = vadd.f32 %v3517, -0.4999988
        %v3519 = vmul.f32 %v3514, %v3518
        %v3520 = vadd.f32 1.0, %v3519
        %v3521 = vmul.f32 %v3512, %v3512
        %v3522 = vmul.f32 %v3521, -0.00019511016
        %v3523 = vadd.f32 %v3522, 0.008332121
        %v3524 = vmul.f32 %v3521, %v3523
        %v3525 = vadd.f32 %v3524, -0.16666654
        %v3526 = vmul.f32 %v3521, %v3525
        %v3527 = vadd.f32 %v3526, 1.0
        %v3528 = vmul.f32 %v3527, %v3512
        %vm3529 = vweird.f32 %v294
        %v3530 = vand.u32 %v3513, 3
        %vm3531 = vcmp.lt.s32.totalorder %v3530, 2
        %vm3532 = vcmp.eq.s32.totalorder %v3530, 0
        %v3533 = vxor.u32 %v3528, 2147483648
        %v3534 = vsel %vm3532, %v3520, %v3533
        %vm3535 = vcmp.eq.s32.totalorder %v3530, 2
        %v3536 = vxor.u32 %v3520, 2147483648
        %v3537 = vsel %vm3535, %v3536, %v3528
        %v3538 = vsel %vm3531, %v3534, %v3537
        %v3539 = vsel %vm3529, nan, %v3538
        %v3540 = vand.u32 2147483647, %v295
        %vm3541 = vcmp.le.f32.partialorder %v3540, 0.7853982
        %vm3542 = vcmp.lt.s32.totalorder %v295, 0
        %v3543 = vand.u32 %v295, 2139095040
        %v3544 = vshrl.u32 %v3543, 23
        %v3545 = vsub.s32 %v3544, 127
        %v3546 = vand.u32 2147483647, %v295
        %v3547 = vand.u32 %v3546, 8388607
        %v3548 = vor.u32 %v3547, 8388608
        %v3549 = vsub.s32 0, %v3548
        %v3550 = vadd.s32 %v3545, 1
        %vm3551 = vcmp.gt.s32.totalorder %v3550, 0
        %v3552 = vsel %vm3551, %v3550, 0
        %v3553 = vshrl.u32 %v3552, 5
        %v3554 = vand.u32 %v3552, 31
        %v3555 = vsub.s32 32, %v3554
        %v3556 = vshrl.u32 683565275, %v3555
        %v3557 = vshll.u32 683565275, %v3554
        %v3558 = vshrl.u32 2475754826, %v3555
        %v3559 = vor.u32 %v3557, %v3558
        %v3560 = vshll.u32 2475754826, %v3554
        %v3561 = vshrl.u32 2131351028, %v3555
        %v3562 = vor.u32 %v3560, %v3561
        %v3563 = vshll.u32 2131351028, %v3554
        %v3564 = vshrl.u32 2102212464, %v3555
        %v3565 = vor.u32 %v3563, %v3564
        %v3566 = vshll.u32 2102212464, %v3554
        %v3567 = vshrl.u32 920167782, %v3555
        %v3568 = vor.u32 %v3566, %v3567
        %v3569 = vshll.u32 920167782, %v3554
        %v3570 = vshrl.u32 1326507024, %v3555
        %v3571 = vor.u32 %v3569, %v3570
        %vm3572 = vcmp.lt.s32.totalorder %v3553, 1
        %vm3573 = vcmp.lt.s32.totalorder %v3553, 2
        %vm3574 = vcmp.lt.s32.totalorder %v3553, 3
        %vm3575 = vcmp.lt.s32.totalorder %v3553, 4
        %v3576 = vsel %vm3572, %v3556, %v3559
        %v3577 = vsel %vm3575, %v3565, 2102212464
        %v3578 = vsel %vm3574, %v3562, %v3577
        %v3579 = vsel %vm3573, %v3576, %v3578
        %v3580 = vsel %vm3572, %v3559, %v3562
        %v3581 = vsel %vm3575, %v3568, 920167782
        %v3582 = vsel %vm3574, %v3565, %v3581
        %v3583 = vsel %vm3573, %v3580, %v3582
        %v3584 = vsel %vm3572, %v3562, %v3565
        %v3585 = vsel %vm3575, %v3571, 1326507024
        %v3586 = vsel %vm3574, %v3568, %v3585
        %v3587 = vsel %vm3573, %v3584, %v3586
        %v3588 = vshll.u32 %v3548, 8
        %v3589 = vand.u32 %v3588, 65535
        %v3590 = vshrl.u32 %v3588, 16
        %v3591 = vand.u32 %v3587, 65535
        %v3592 = vshrl.u32 %v3587, 16
        %v3593 = vmul.u32 %v3589, %v3591
        %v3594 = vmul.u32 %v3589, %v3592
        %v3595 = vmul.u32 %v3590, %v3591
        %v3596 = vmul.u32 %v3590, %v3592
        %v3597 = vshll.u32 %v3594, 16
        %v3598 = vshrl.u32 %v3594, 16
        %v3599 = vshll.u32 %v3595, 16
        %v3600 = vshrl.u32 %v3595, 16
        %vm3601 = vc.u32 %v3593, %v3597
        %v3602 = vsel %vm3601, 1, 0
        %v3603 = vadd.s32 %v3593, %v3597
        %v3604 = vadd.s32 %v3596, %v3602
        %vm3605 = vc.u32 %v3603, %v3599
        %v3606 = vsel %vm3605, 1, 0
        %v3607 = vadd.s32 %v3603, %v3599
        %v3608 = vadd.s32 %v3604, %v3606
        %v3609 = vadd.s32 %v3608, %v3598
        %v3610 = vadd.s32 %v3609, %v3600
        %v3611 = vand.u32 %v3588, 65535
        %v3612 = vshrl.u32 %v3588, 16
        %v3613 = vand.u32 %v3583, 65535
        %v3614 = vshrl.u32 %v3583, 16
        %v3615 = vmul.u32 %v3611, %v3613
        %v3616 = vmul.u32 %v3611, %v3614
        %v3617 = vmul.u32 %v3612, %v3613
        %v3618 = vmul.u32 %v3612, %v3614
        %v3619 = vshll.u32 %v3616, 16
        %v3620 = vshrl.u32 %v3616, 16
        %v3621 = vshll.u32 %v3617, 16
        %v3622 = vshrl.u32 %v3617, 16
        %vm3623 = vc.u32 %v3615, %v3619
        %v3624 = vsel %vm3623, 1, 0
        %v3625 = vadd.s32 %v3615, %v3619
        %v3626 = vadd.s32 %v3618, %v3624
        %vm3627 = vc.u32 %v3625, %v3621
        %v3628 = vsel %vm3627, 1, 0
        %v3629 = vadd.s32 %v3625, %v3621
        %v3630 = vadd.s32 %v3626, %v3628
        %v3631 = vadd.s32 %v3630, %v3620
        %v3632 = vadd.s32 %v3631, %v3622
        %v3633 = vmul.u32 %v3588, %v3579
        %v3634 = vadd.s32 %v3610, %v3629
        %vm3635 = vc.u32 %v3610, %v3629
        %v3636 = vadd.s32 %v3632, 1
        %v3637 = vsel %vm3635, %v3636, %v3632
        %v3638 = vadd.s32 %v3633, %v3637
        %v3639 = vadd.s32 %v3638, 536870912
        %v3640 = vshrl.u32 %v3639, 30
        %v3641 = vshll.u32 %v3640, 30
        %v3642 = vsub.s32 %v3638, %v3641
        %vm3643 = vcmp.lt.s32.totalorder %v3642, 0
        %v3644 = vsub.s32 0, %v3642
        %v3645 = vsel %vm3643, %v3644, %v3642
        %v3646 = vclz %v3645
        %v3647 = vsub.s32 %v3646, 2
        %vm3648 = vcmp.gt.s32.totalorder 0, %v3647
        %v3649 = vsel %vm3648, 0, %v3647
        %v3650 = vsub.s32 32, %v3649
        %v3651 = vshll.u32 %v3642, %v3649
        %v3652 = vshrl.u32 %v3634, %v3650
        %v3653 = vor.u32 %v3651, %v3652
        %v3654 = vsub.s32 4294967266, %v3649
        %v3655 = vadd.s32 %v3654, 127
        %v3656 = vshll.u32 %v3655, 23
        %v3657 = vor.u32 4788187, %v3656
        %v3658 = vand.u32 2147483647, %v3657
        %v3660 = vcvt.s32.f32 %v3653
        %v3661 = vmul.f32 %v3660, %v3658
        %v3662 = vxor.u32 %v3661, 2147483648
        %v3663 = vsel %vm3542, %v3662, %v3661
        %v3664 = vsub.s32 4, %v3640
        %v3665 = vsel %vm3542, %v3664, %v3640
        %v3666 = vsel %vm3541, %v295, %v3663
        %v3667 = vsel %vm3541, 0, %v3665
        %v3668 = vmul.f32 %v3666, %v3666
        %v3669 = vmul.f32 %v3668, -0.001358992
        %v3670 = vadd.f32 %v3669, 0.041655596
        %v3671 = vmul.f32 %v3668, %v3670
        %v3672 = vadd.f32 %v3671, -0.4999988
        %v3673 = vmul.f32 %v3668, %v3672
        %v3674 = vadd.f32 1.0, %v3673
        %v3675 = vmul.f32 %v3666, %v3666
        %v3676 = vmul.f32 %v3675, -0.00019511016
        %v3677 = vadd.f32 %v3676, 0.008332121
        %v3678 = vmul.f32 %v3675, %v3677
        %v3679 = vadd.f32 %v3678, -0.16666654
        %v3680 = vmul.f32 %v3675, %v3679
        %v3681 = vadd.f32 %v3680, 1.0
        %v3682 = vmul.f32 %v3681, %v3666
        %vm3683 = vweird.f32 %v295
        %v3684 = vand.u32 %v3667, 3
        %vm3685 = vcmp.lt.s32.totalorder %v3684, 2
        %vm3686 = vcmp.eq.s32.totalorder %v3684, 0
        %v3687 = vxor.u32 %v3682, 2147483648
        %v3688 = vsel %vm3686, %v3674, %v3687
        %vm3689 = vcmp.eq.s32.totalorder %v3684, 2
        %v3690 = vxor.u32 %v3674, 2147483648
        %v3691 = vsel %vm3689, %v3690, %v3682
        %v3692 = vsel %vm3685, %v3688, %v3691
        %v3693 = vsel %vm3683, nan, %v3692
        %v3694 = vand.u32 2147483647, %v296
        %vm3695 = vcmp.le.f32.partialorder %v3694, 0.7853982
        %vm3696 = vcmp.lt.s32.totalorder %v296, 0
        %v3697 = vand.u32 %v296, 2139095040
        %v3698 = vshrl.u32 %v3697, 23
        %v3699 = vsub.s32 %v3698, 127
        %v3700 = vand.u32 2147483647, %v296
        %v3701 = vand.u32 %v3700, 8388607
        %v3702 = vor.u32 %v3701, 8388608
        %v3703 = vsub.s32 0, %v3702
        %v3704 = vadd.s32 %v3699, 1
        %vm3705 = vcmp.gt.s32.totalorder %v3704, 0
        %v3706 = vsel %vm3705, %v3704, 0
        %v3707 = vshrl.u32 %v3706, 5
        %v3708 = vand.u32 %v3706, 31
        %v3709 = vsub.s32 32, %v3708
        %v3710 = vshrl.u32 683565275, %v3709
        %v3711 = vshll.u32 683565275, %v3708
        %v3712 = vshrl.u32 2475754826, %v3709
        %v3713 = vor.u32 %v3711, %v3712
        %v3714 = vshll.u32 2475754826, %v3708
        %v3715 = vshrl.u32 2131351028, %v3709
        %v3716 = vor.u32 %v3714, %v3715
        %v3717 = vshll.u32 2131351028, %v3708
        %v3718 = vshrl.u32 2102212464, %v3709
        %v3719 = vor.u32 %v3717, %v3718
        %v3720 = vshll.u32 2102212464, %v3708
        %v3721 = vshrl.u32 920167782, %v3709
        %v3722 = vor.u32 %v3720, %v3721
        %v3723 = vshll.u32 920167782, %v3708
        %v3724 = vshrl.u32 1326507024, %v3709
        %v3725 = vor.u32 %v3723, %v3724
        %vm3726 = vcmp.lt.s32.totalorder %v3707, 1
        %vm3727 = vcmp.lt.s32.totalorder %v3707, 2
        %vm3728 = vcmp.lt.s32.totalorder %v3707, 3
        %vm3729 = vcmp.lt.s32.totalorder %v3707, 4
        %v3730 = vsel %vm3726, %v3710, %v3713
        %v3731 = vsel %vm3729, %v3719, 2102212464
        %v3732 = vsel %vm3728, %v3716, %v3731
        %v3733 = vsel %vm3727, %v3730, %v3732
        %v3734 = vsel %vm3726, %v3713, %v3716
        %v3735 = vsel %vm3729, %v3722, 920167782
        %v3736 = vsel %vm3728, %v3719, %v3735
        %v3737 = vsel %vm3727, %v3734, %v3736
        %v3738 = vsel %vm3726, %v3716, %v3719
        %v3739 = vsel %vm3729, %v3725, 1326507024
        %v3740 = vsel %vm3728, %v3722, %v3739
        %v3741 = vsel %vm3727, %v3738, %v3740
        %v3742 = vshll.u32 %v3702, 8
        %v3743 = vand.u32 %v3742, 65535
        %v3744 = vshrl.u32 %v3742, 16
        %v3745 = vand.u32 %v3741, 65535
        %v3746 = vshrl.u32 %v3741, 16
        %v3747 = vmul.u32 %v3743, %v3745
        %v3748 = vmul.u32 %v3743, %v3746
        %v3749 = vmul.u32 %v3744, %v3745
        %v3750 = vmul.u32 %v3744, %v3746
        %v3751 = vshll.u32 %v3748, 16
        %v3752 = vshrl.u32 %v3748, 16
        %v3753 = vshll.u32 %v3749, 16
        %v3754 = vshrl.u32 %v3749, 16
        %vm3755 = vc.u32 %v3747, %v3751
        %v3756 = vsel %vm3755, 1, 0
        %v3757 = vadd.s32 %v3747, %v3751
        %v3758 = vadd.s32 %v3750, %v3756
        %vm3759 = vc.u32 %v3757, %v3753
        %v3760 = vsel %vm3759, 1, 0
        %v3761 = vadd.s32 %v3757, %v3753
        %v3762 = vadd.s32 %v3758, %v3760
        %v3763 = vadd.s32 %v3762, %v3752
        %v3764 = vadd.s32 %v3763, %v3754
        %v3765 = vand.u32 %v3742, 65535
        %v3766 = vshrl.u32 %v3742, 16
        %v3767 = vand.u32 %v3737, 65535
        %v3768 = vshrl.u32 %v3737, 16
        %v3769 = vmul.u32 %v3765, %v3767
        %v3770 = vmul.u32 %v3765, %v3768
        %v3771 = vmul.u32 %v3766, %v3767
        %v3772 = vmul.u32 %v3766, %v3768
        %v3773 = vshll.u32 %v3770, 16
        %v3774 = vshrl.u32 %v3770, 16
        %v3775 = vshll.u32 %v3771, 16
        %v3776 = vshrl.u32 %v3771, 16
        %vm3777 = vc.u32 %v3769, %v3773
        %v3778 = vsel %vm3777, 1, 0
        %v3779 = vadd.s32 %v3769, %v3773
        %v3780 = vadd.s32 %v3772, %v3778
        %vm3781 = vc.u32 %v3779, %v3775
        %v3782 = vsel %vm3781, 1, 0
        %v3783 = vadd.s32 %v3779, %v3775
        %v3784 = vadd.s32 %v3780, %v3782
        %v3785 = vadd.s32 %v3784, %v3774
        %v3786 = vadd.s32 %v3785, %v3776
        %v3787 = vmul.u32 %v3742, %v3733
        %v3788 = vadd.s32 %v3764, %v3783
        %vm3789 = vc.u32 %v3764, %v3783
        %v3790 = vadd.s32 %v3786, 1
        %v3791 = vsel %vm3789, %v3790, %v3786
        %v3792 = vadd.s32 %v3787, %v3791
        %v3793 = vadd.s32 %v3792, 536870912
        %v3794 = vshrl.u32 %v3793, 30
        %v3795 = vshll.u32 %v3794, 30
        %v3796 = vsub.s32 %v3792, %v3795
        %vm3797 = vcmp.lt.s32.totalorder %v3796, 0
        %v3798 = vsub.s32 0, %v3796
        %v3799 = vsel %vm3797, %v3798, %v3796
        %v3800 = vclz %v3799
        %v3801 = vsub.s32 %v3800, 2
        %vm3802 = vcmp.gt.s32.totalorder 0, %v3801
        %v3803 = vsel %vm3802, 0, %v3801
        %v3804 = vsub.s32 32, %v3803
        %v3805 = vshll.u32 %v3796, %v3803
        %v3806 = vshrl.u32 %v3788, %v3804
        %v3807 = vor.u32 %v3805, %v3806
        %v3808 = vsub.s32 4294967266, %v3803
        %v3809 = vadd.s32 %v3808, 127
        %v3810 = vshll.u32 %v3809, 23
        %v3811 = vor.u32 4788187, %v3810
        %v3812 = vand.u32 2147483647, %v3811
        %v3814 = vcvt.s32.f32 %v3807
        %v3815 = vmul.f32 %v3814, %v3812
        %v3816 = vxor.u32 %v3815, 2147483648
        %v3817 = vsel %vm3696, %v3816, %v3815
        %v3818 = vsub.s32 4, %v3794
        %v3819 = vsel %vm3696, %v3818, %v3794
        %v3820 = vsel %vm3695, %v296, %v3817
        %v3821 = vsel %vm3695, 0, %v3819
        %v3822 = vmul.f32 %v3820, %v3820
        %v3823 = vmul.f32 %v3822, -0.001358992
        %v3824 = vadd.f32 %v3823, 0.041655596
        %v3825 = vmul.f32 %v3822, %v3824
        %v3826 = vadd.f32 %v3825, -0.4999988
        %v3827 = vmul.f32 %v3822, %v3826
        %v3828 = vadd.f32 1.0, %v3827
        %v3829 = vmul.f32 %v3820, %v3820
        %v3830 = vmul.f32 %v3829, -0.00019511016
        %v3831 = vadd.f32 %v3830, 0.008332121
        %v3832 = vmul.f32 %v3829, %v3831
        %v3833 = vadd.f32 %v3832, -0.16666654
        %v3834 = vmul.f32 %v3829, %v3833
        %v3835 = vadd.f32 %v3834, 1.0
        %v3836 = vmul.f32 %v3835, %v3820
        %vm3837 = vweird.f32 %v296
        %v3838 = vand.u32 %v3821, 3
        %vm3839 = vcmp.lt.s32.totalorder %v3838, 2
        %vm3840 = vcmp.eq.s32.totalorder %v3838, 0
        %v3841 = vxor.u32 %v3836, 2147483648
        %v3842 = vsel %vm3840, %v3828, %v3841
        %vm3843 = vcmp.eq.s32.totalorder %v3838, 2
        %v3844 = vxor.u32 %v3828, 2147483648
        %v3845 = vsel %vm3843, %v3844, %v3836
        %v3846 = vsel %vm3839, %v3842, %v3845
        %v3847 = vsel %vm3837, nan, %v3846
        %v3848 = vand.u32 2147483647, %v297
        %vm3849 = vcmp.le.f32.partialorder %v3848, 0.7853982
        %vm3850 = vcmp.lt.s32.totalorder %v297, 0
        %v3851 = vand.u32 %v297, 2139095040
        %v3852 = vshrl.u32 %v3851, 23
        %v3853 = vsub.s32 %v3852, 127
        %v3854 = vand.u32 2147483647, %v297
        %v3855 = vand.u32 %v3854, 8388607
        %v3856 = vor.u32 %v3855, 8388608
        %v3857 = vsub.s32 0, %v3856
        %v3858 = vadd.s32 %v3853, 1
        %vm3859 = vcmp.gt.s32.totalorder %v3858, 0
        %v3860 = vsel %vm3859, %v3858, 0
        %v3861 = vshrl.u32 %v3860, 5
        %v3862 = vand.u32 %v3860, 31
        %v3863 = vsub.s32 32, %v3862
        %v3864 = vshrl.u32 683565275, %v3863
        %v3865 = vshll.u32 683565275, %v3862
        %v3866 = vshrl.u32 2475754826, %v3863
        %v3867 = vor.u32 %v3865, %v3866
        %v3868 = vshll.u32 2475754826, %v3862
        %v3869 = vshrl.u32 2131351028, %v3863
        %v3870 = vor.u32 %v3868, %v3869
        %v3871 = vshll.u32 2131351028, %v3862
        %v3872 = vshrl.u32 2102212464, %v3863
        %v3873 = vor.u32 %v3871, %v3872
        %v3874 = vshll.u32 2102212464, %v3862
        %v3875 = vshrl.u32 920167782, %v3863
        %v3876 = vor.u32 %v3874, %v3875
        %v3877 = vshll.u32 920167782, %v3862
        %v3878 = vshrl.u32 1326507024, %v3863
        %v3879 = vor.u32 %v3877, %v3878
        %vm3880 = vcmp.lt.s32.totalorder %v3861, 1
        %vm3881 = vcmp.lt.s32.totalorder %v3861, 2
        %vm3882 = vcmp.lt.s32.totalorder %v3861, 3
        %vm3883 = vcmp.lt.s32.totalorder %v3861, 4
        %v3884 = vsel %vm3880, %v3864, %v3867
        %v3885 = vsel %vm3883, %v3873, 2102212464
        %v3886 = vsel %vm3882, %v3870, %v3885
        %v3887 = vsel %vm3881, %v3884, %v3886
        %v3888 = vsel %vm3880, %v3867, %v3870
        %v3889 = vsel %vm3883, %v3876, 920167782
        %v3890 = vsel %vm3882, %v3873, %v3889
        %v3891 = vsel %vm3881, %v3888, %v3890
        %v3892 = vsel %vm3880, %v3870, %v3873
        %v3893 = vsel %vm3883, %v3879, 1326507024
        %v3894 = vsel %vm3882, %v3876, %v3893
        %v3895 = vsel %vm3881, %v3892, %v3894
        %v3896 = vshll.u32 %v3856, 8
        %v3897 = vand.u32 %v3896, 65535
        %v3898 = vshrl.u32 %v3896, 16
        %v3899 = vand.u32 %v3895, 65535
        %v3900 = vshrl.u32 %v3895, 16
        %v3901 = vmul.u32 %v3897, %v3899
        %v3902 = vmul.u32 %v3897, %v3900
        %v3903 = vmul.u32 %v3898, %v3899
        %v3904 = vmul.u32 %v3898, %v3900
        %v3905 = vshll.u32 %v3902, 16
        %v3906 = vshrl.u32 %v3902, 16
        %v3907 = vshll.u32 %v3903, 16
        %v3908 = vshrl.u32 %v3903, 16
        %vm3909 = vc.u32 %v3901, %v3905
        %v3910 = vsel %vm3909, 1, 0
        %v3911 = vadd.s32 %v3901, %v3905
        %v3912 = vadd.s32 %v3904, %v3910
        %vm3913 = vc.u32 %v3911, %v3907
        %v3914 = vsel %vm3913, 1, 0
        %v3915 = vadd.s32 %v3911, %v3907
        %v3916 = vadd.s32 %v3912, %v3914
        %v3917 = vadd.s32 %v3916, %v3906
        %v3918 = vadd.s32 %v3917, %v3908
        %v3919 = vand.u32 %v3896, 65535
        %v3920 = vshrl.u32 %v3896, 16
        %v3921 = vand.u32 %v3891, 65535
        %v3922 = vshrl.u32 %v3891, 16
        %v3923 = vmul.u32 %v3919, %v3921
        %v3924 = vmul.u32 %v3919, %v3922
        %v3925 = vmul.u32 %v3920, %v3921
        %v3926 = vmul.u32 %v3920, %v3922
        %v3927 = vshll.u32 %v3924, 16
        %v3928 = vshrl.u32 %v3924, 16
        %v3929 = vshll.u32 %v3925, 16
        %v3930 = vshrl.u32 %v3925, 16
        %vm3931 = vc.u32 %v3923, %v3927
        %v3932 = vsel %vm3931, 1, 0
        %v3933 = vadd.s32 %v3923, %v3927
        %v3934 = vadd.s32 %v3926, %v3932
        %vm3935 = vc.u32 %v3933, %v3929
        %v3936 = vsel %vm3935, 1, 0
        %v3937 = vadd.s32 %v3933, %v3929
        %v3938 = vadd.s32 %v3934, %v3936
        %v3939 = vadd.s32 %v3938, %v3928
        %v3940 = vadd.s32 %v3939, %v3930
        %v3941 = vmul.u32 %v3896, %v3887
        %v3942 = vadd.s32 %v3918, %v3937
        %vm3943 = vc.u32 %v3918, %v3937
        %v3944 = vadd.s32 %v3940, 1
        %v3945 = vsel %vm3943, %v3944, %v3940
        %v3946 = vadd.s32 %v3941, %v3945
        %v3947 = vadd.s32 %v3946, 536870912
        %v3948 = vshrl.u32 %v3947, 30
        %v3949 = vshll.u32 %v3948, 30
        %v3950 = vsub.s32 %v3946, %v3949
        %vm3951 = vcmp.lt.s32.totalorder %v3950, 0
        %v3952 = vsub.s32 0, %v3950
        %v3953 = vsel %vm3951, %v3952, %v3950
        %v3954 = vclz %v3953
        %v3955 = vsub.s32 %v3954, 2
        %vm3956 = vcmp.gt.s32.totalorder 0, %v3955
        %v3957 = vsel %vm3956, 0, %v3955
        %v3958 = vsub.s32 32, %v3957
        %v3959 = vshll.u32 %v3950, %v3957
        %v3960 = vshrl.u32 %v3942, %v3958
        %v3961 = vor.u32 %v3959, %v3960
        %v3962 = vsub.s32 4294967266, %v3957
        %v3963 = vadd.s32 %v3962, 127
        %v3964 = vshll.u32 %v3963, 23
        %v3965 = vor.u32 4788187, %v3964
        %v3966 = vand.u32 2147483647, %v3965
        %v3968 = vcvt.s32.f32 %v3961
        %v3969 = vmul.f32 %v3968, %v3966
        %v3970 = vxor.u32 %v3969, 2147483648
        %v3971 = vsel %vm3850, %v3970, %v3969
        %v3972 = vsub.s32 4, %v3948
        %v3973 = vsel %vm3850, %v3972, %v3948
        %v3974 = vsel %vm3849, %v297, %v3971
        %v3975 = vsel %vm3849, 0, %v3973
        %v3976 = vmul.f32 %v3974, %v3974
        %v3977 = vmul.f32 %v3976, -0.001358992
        %v3978 = vadd.f32 %v3977, 0.041655596
        %v3979 = vmul.f32 %v3976, %v3978
        %v3980 = vadd.f32 %v3979, -0.4999988
        %v3981 = vmul.f32 %v3976, %v3980
        %v3982 = vadd.f32 1.0, %v3981
        %v3983 = vmul.f32 %v3974, %v3974
        %v3984 = vmul.f32 %v3983, -0.00019511016
        %v3985 = vadd.f32 %v3984, 0.008332121
        %v3986 = vmul.f32 %v3983, %v3985
        %v3987 = vadd.f32 %v3986, -0.16666654
        %v3988 = vmul.f32 %v3983, %v3987
        %v3989 = vadd.f32 %v3988, 1.0
        %v3990 = vmul.f32 %v3989, %v3974
        %vm3991 = vweird.f32 %v297
        %v3992 = vand.u32 %v3975, 3
        %vm3993 = vcmp.lt.s32.totalorder %v3992, 2
        %vm3994 = vcmp.eq.s32.totalorder %v3992, 0
        %v3995 = vxor.u32 %v3990, 2147483648
        %v3996 = vsel %vm3994, %v3982, %v3995
        %vm3997 = vcmp.eq.s32.totalorder %v3992, 2
        %v3998 = vxor.u32 %v3982, 2147483648
        %v3999 = vsel %vm3997, %v3998, %v3990
        %v4000 = vsel %vm3993, %v3996, %v3999
        %v4001 = vsel %vm3991, nan, %v4000
        %v4002 = vand.u32 2147483647, %v298
        %vm4003 = vcmp.le.f32.partialorder %v4002, 0.7853982
        %vm4004 = vcmp.lt.s32.totalorder %v298, 0
        %v4005 = vand.u32 %v298, 2139095040
        %v4006 = vshrl.u32 %v4005, 23
        %v4007 = vsub.s32 %v4006, 127
        %v4008 = vand.u32 2147483647, %v298
        %v4009 = vand.u32 %v4008, 8388607
        %v4010 = vor.u32 %v4009, 8388608
        %v4011 = vsub.s32 0, %v4010
        %v4012 = vadd.s32 %v4007, 1
        %vm4013 = vcmp.gt.s32.totalorder %v4012, 0
        %v4014 = vsel %vm4013, %v4012, 0
        %v4015 = vshrl.u32 %v4014, 5
        %v4016 = vand.u32 %v4014, 31
        %v4017 = vsub.s32 32, %v4016
        %v4018 = vshrl.u32 683565275, %v4017
        %v4019 = vshll.u32 683565275, %v4016
        %v4020 = vshrl.u32 2475754826, %v4017
        %v4021 = vor.u32 %v4019, %v4020
        %v4022 = vshll.u32 2475754826, %v4016
        %v4023 = vshrl.u32 2131351028, %v4017
        %v4024 = vor.u32 %v4022, %v4023
        %v4025 = vshll.u32 2131351028, %v4016
        %v4026 = vshrl.u32 2102212464, %v4017
        %v4027 = vor.u32 %v4025, %v4026
        %v4028 = vshll.u32 2102212464, %v4016
        %v4029 = vshrl.u32 920167782, %v4017
        %v4030 = vor.u32 %v4028, %v4029
        %v4031 = vshll.u32 920167782, %v4016
        %v4032 = vshrl.u32 1326507024, %v4017
        %v4033 = vor.u32 %v4031, %v4032
        %vm4034 = vcmp.lt.s32.totalorder %v4015, 1
        %vm4035 = vcmp.lt.s32.totalorder %v4015, 2
        %vm4036 = vcmp.lt.s32.totalorder %v4015, 3
        %vm4037 = vcmp.lt.s32.totalorder %v4015, 4
        %v4038 = vsel %vm4034, %v4018, %v4021
        %v4039 = vsel %vm4037, %v4027, 2102212464
        %v4040 = vsel %vm4036, %v4024, %v4039
        %v4041 = vsel %vm4035, %v4038, %v4040
        %v4042 = vsel %vm4034, %v4021, %v4024
        %v4043 = vsel %vm4037, %v4030, 920167782
        %v4044 = vsel %vm4036, %v4027, %v4043
        %v4045 = vsel %vm4035, %v4042, %v4044
        %v4046 = vsel %vm4034, %v4024, %v4027
        %v4047 = vsel %vm4037, %v4033, 1326507024
        %v4048 = vsel %vm4036, %v4030, %v4047
        %v4049 = vsel %vm4035, %v4046, %v4048
        %v4050 = vshll.u32 %v4010, 8
        %v4051 = vand.u32 %v4050, 65535
        %v4052 = vshrl.u32 %v4050, 16
        %v4053 = vand.u32 %v4049, 65535
        %v4054 = vshrl.u32 %v4049, 16
        %v4055 = vmul.u32 %v4051, %v4053
        %v4056 = vmul.u32 %v4051, %v4054
        %v4057 = vmul.u32 %v4052, %v4053
        %v4058 = vmul.u32 %v4052, %v4054
        %v4059 = vshll.u32 %v4056, 16
        %v4060 = vshrl.u32 %v4056, 16
        %v4061 = vshll.u32 %v4057, 16
        %v4062 = vshrl.u32 %v4057, 16
        %vm4063 = vc.u32 %v4055, %v4059
        %v4064 = vsel %vm4063, 1, 0
        %v4065 = vadd.s32 %v4055, %v4059
        %v4066 = vadd.s32 %v4058, %v4064
        %vm4067 = vc.u32 %v4065, %v4061
        %v4068 = vsel %vm4067, 1, 0
        %v4069 = vadd.s32 %v4065, %v4061
        %v4070 = vadd.s32 %v4066, %v4068
        %v4071 = vadd.s32 %v4070, %v4060
        %v4072 = vadd.s32 %v4071, %v4062
        %v4073 = vand.u32 %v4050, 65535
        %v4074 = vshrl.u32 %v4050, 16
        %v4075 = vand.u32 %v4045, 65535
        %v4076 = vshrl.u32 %v4045, 16
        %v4077 = vmul.u32 %v4073, %v4075
        %v4078 = vmul.u32 %v4073, %v4076
        %v4079 = vmul.u32 %v4074, %v4075
        %v4080 = vmul.u32 %v4074, %v4076
        %v4081 = vshll.u32 %v4078, 16
        %v4082 = vshrl.u32 %v4078, 16
        %v4083 = vshll.u32 %v4079, 16
        %v4084 = vshrl.u32 %v4079, 16
        %vm4085 = vc.u32 %v4077, %v4081
        %v4086 = vsel %vm4085, 1, 0
        %v4087 = vadd.s32 %v4077, %v4081
        %v4088 = vadd.s32 %v4080, %v4086
        %vm4089 = vc.u32 %v4087, %v4083
        %v4090 = vsel %vm4089, 1, 0
        %v4091 = vadd.s32 %v4087, %v4083
        %v4092 = vadd.s32 %v4088, %v4090
        %v4093 = vadd.s32 %v4092, %v4082
        %v4094 = vadd.s32 %v4093, %v4084
        %v4095 = vmul.u32 %v4050, %v4041
        %v4096 = vadd.s32 %v4072, %v4091
        %vm4097 = vc.u32 %v4072, %v4091
        %v4098 = vadd.s32 %v4094, 1
        %v4099 = vsel %vm4097, %v4098, %v4094
        %v4100 = vadd.s32 %v4095, %v4099
        %v4101 = vadd.s32 %v4100, 536870912
        %v4102 = vshrl.u32 %v4101, 30
        %v4103 = vshll.u32 %v4102, 30
        %v4104 = vsub.s32 %v4100, %v4103
        %vm4105 = vcmp.lt.s32.totalorder %v4104, 0
        %v4106 = vsub.s32 0, %v4104
        %v4107 = vsel %vm4105, %v4106, %v4104
        %v4108 = vclz %v4107
        %v4109 = vsub.s32 %v4108, 2
        %vm4110 = vcmp.gt.s32.totalorder 0, %v4109
        %v4111 = vsel %vm4110, 0, %v4109
        %v4112 = vsub.s32 32, %v4111
        %v4113 = vshll.u32 %v4104, %v4111
        %v4114 = vshrl.u32 %v4096, %v4112
        %v4115 = vor.u32 %v4113, %v4114
        %v4116 = vsub.s32 4294967266, %v4111
        %v4117 = vadd.s32 %v4116, 127
        %v4118 = vshll.u32 %v4117, 23
        %v4119 = vor.u32 4788187, %v4118
        %v4120 = vand.u32 2147483647, %v4119
        %v4122 = vcvt.s32.f32 %v4115
        %v4123 = vmul.f32 %v4122, %v4120
        %v4124 = vxor.u32 %v4123, 2147483648
        %v4125 = vsel %vm4004, %v4124, %v4123
        %v4126 = vsub.s32 4, %v4102
        %v4127 = vsel %vm4004, %v4126, %v4102
        %v4128 = vsel %vm4003, %v298, %v4125
        %v4129 = vsel %vm4003, 0, %v4127
        %v4130 = vmul.f32 %v4128, %v4128
        %v4131 = vmul.f32 %v4130, -0.001358992
        %v4132 = vadd.f32 %v4131, 0.041655596
        %v4133 = vmul.f32 %v4130, %v4132
        %v4134 = vadd.f32 %v4133, -0.4999988
        %v4135 = vmul.f32 %v4130, %v4134
        %v4136 = vadd.f32 1.0, %v4135
        %v4137 = vmul.f32 %v4128, %v4128
        %v4138 = vmul.f32 %v4137, -0.00019511016
        %v4139 = vadd.f32 %v4138, 0.008332121
        %v4140 = vmul.f32 %v4137, %v4139
        %v4141 = vadd.f32 %v4140, -0.16666654
        %v4142 = vmul.f32 %v4137, %v4141
        %v4143 = vadd.f32 %v4142, 1.0
        %v4144 = vmul.f32 %v4143, %v4128
        %vm4145 = vweird.f32 %v298
        %v4146 = vand.u32 %v4129, 3
        %vm4147 = vcmp.lt.s32.totalorder %v4146, 2
        %vm4148 = vcmp.eq.s32.totalorder %v4146, 0
        %v4149 = vxor.u32 %v4144, 2147483648
        %v4150 = vsel %vm4148, %v4136, %v4149
        %vm4151 = vcmp.eq.s32.totalorder %v4146, 2
        %v4152 = vxor.u32 %v4136, 2147483648
        %v4153 = vsel %vm4151, %v4152, %v4144
        %v4154 = vsel %vm4147, %v4150, %v4153
        %v4155 = vsel %vm4145, nan, %v4154
        %v4156 = vand.u32 2147483647, %v299
        %vm4157 = vcmp.le.f32.partialorder %v4156, 0.7853982
        %vm4158 = vcmp.lt.s32.totalorder %v299, 0
        %v4159 = vand.u32 %v299, 2139095040
        %v4160 = vshrl.u32 %v4159, 23
        %v4161 = vsub.s32 %v4160, 127
        %v4162 = vand.u32 2147483647, %v299
        %v4163 = vand.u32 %v4162, 8388607
        %v4164 = vor.u32 %v4163, 8388608
        %v4165 = vsub.s32 0, %v4164
        %v4166 = vadd.s32 %v4161, 1
        %vm4167 = vcmp.gt.s32.totalorder %v4166, 0
        %v4168 = vsel %vm4167, %v4166, 0
        %v4169 = vshrl.u32 %v4168, 5
        %v4170 = vand.u32 %v4168, 31
        %v4171 = vsub.s32 32, %v4170
        %v4172 = vshrl.u32 683565275, %v4171
        %v4173 = vshll.u32 683565275, %v4170
        %v4174 = vshrl.u32 2475754826, %v4171
        %v4175 = vor.u32 %v4173, %v4174
        %v4176 = vshll.u32 2475754826, %v4170
        %v4177 = vshrl.u32 2131351028, %v4171
        %v4178 = vor.u32 %v4176, %v4177
        %v4179 = vshll.u32 2131351028, %v4170
        %v4180 = vshrl.u32 2102212464, %v4171
        %v4181 = vor.u32 %v4179, %v4180
        %v4182 = vshll.u32 2102212464, %v4170
        %v4183 = vshrl.u32 920167782, %v4171
        %v4184 = vor.u32 %v4182, %v4183
        %v4185 = vshll.u32 920167782, %v4170
        %v4186 = vshrl.u32 1326507024, %v4171
        %v4187 = vor.u32 %v4185, %v4186
        %vm4188 = vcmp.lt.s32.totalorder %v4169, 1
        %vm4189 = vcmp.lt.s32.totalorder %v4169, 2
        %vm4190 = vcmp.lt.s32.totalorder %v4169, 3
        %vm4191 = vcmp.lt.s32.totalorder %v4169, 4
        %v4192 = vsel %vm4188, %v4172, %v4175
        %v4193 = vsel %vm4191, %v4181, 2102212464
        %v4194 = vsel %vm4190, %v4178, %v4193
        %v4195 = vsel %vm4189, %v4192, %v4194
        %v4196 = vsel %vm4188, %v4175, %v4178
        %v4197 = vsel %vm4191, %v4184, 920167782
        %v4198 = vsel %vm4190, %v4181, %v4197
        %v4199 = vsel %vm4189, %v4196, %v4198
        %v4200 = vsel %vm4188, %v4178, %v4181
        %v4201 = vsel %vm4191, %v4187, 1326507024
        %v4202 = vsel %vm4190, %v4184, %v4201
        %v4203 = vsel %vm4189, %v4200, %v4202
        %v4204 = vshll.u32 %v4164, 8
        %v4205 = vand.u32 %v4204, 65535
        %v4206 = vshrl.u32 %v4204, 16
        %v4207 = vand.u32 %v4203, 65535
        %v4208 = vshrl.u32 %v4203, 16
        %v4209 = vmul.u32 %v4205, %v4207
        %v4210 = vmul.u32 %v4205, %v4208
        %v4211 = vmul.u32 %v4206, %v4207
        %v4212 = vmul.u32 %v4206, %v4208
        %v4213 = vshll.u32 %v4210, 16
        %v4214 = vshrl.u32 %v4210, 16
        %v4215 = vshll.u32 %v4211, 16
        %v4216 = vshrl.u32 %v4211, 16
        %vm4217 = vc.u32 %v4209, %v4213
        %v4218 = vsel %vm4217, 1, 0
        %v4219 = vadd.s32 %v4209, %v4213
        %v4220 = vadd.s32 %v4212, %v4218
        %vm4221 = vc.u32 %v4219, %v4215
        %v4222 = vsel %vm4221, 1, 0
        %v4223 = vadd.s32 %v4219, %v4215
        %v4224 = vadd.s32 %v4220, %v4222
        %v4225 = vadd.s32 %v4224, %v4214
        %v4226 = vadd.s32 %v4225, %v4216
        %v4227 = vand.u32 %v4204, 65535
        %v4228 = vshrl.u32 %v4204, 16
        %v4229 = vand.u32 %v4199, 65535
        %v4230 = vshrl.u32 %v4199, 16
        %v4231 = vmul.u32 %v4227, %v4229
        %v4232 = vmul.u32 %v4227, %v4230
        %v4233 = vmul.u32 %v4228, %v4229
        %v4234 = vmul.u32 %v4228, %v4230
        %v4235 = vshll.u32 %v4232, 16
        %v4236 = vshrl.u32 %v4232, 16
        %v4237 = vshll.u32 %v4233, 16
        %v4238 = vshrl.u32 %v4233, 16
        %vm4239 = vc.u32 %v4231, %v4235
        %v4240 = vsel %vm4239, 1, 0
        %v4241 = vadd.s32 %v4231, %v4235
        %v4242 = vadd.s32 %v4234, %v4240
        %vm4243 = vc.u32 %v4241, %v4237
        %v4244 = vsel %vm4243, 1, 0
        %v4245 = vadd.s32 %v4241, %v4237
        %v4246 = vadd.s32 %v4242, %v4244
        %v4247 = vadd.s32 %v4246, %v4236
        %v4248 = vadd.s32 %v4247, %v4238
        %v4249 = vmul.u32 %v4204, %v4195
        %v4250 = vadd.s32 %v4226, %v4245
        %vm4251 = vc.u32 %v4226, %v4245
        %v4252 = vadd.s32 %v4248, 1
        %v4253 = vsel %vm4251, %v4252, %v4248
        %v4254 = vadd.s32 %v4249, %v4253
        %v4255 = vadd.s32 %v4254, 536870912
        %v4256 = vshrl.u32 %v4255, 30
        %v4257 = vshll.u32 %v4256, 30
        %v4258 = vsub.s32 %v4254, %v4257
        %vm4259 = vcmp.lt.s32.totalorder %v4258, 0
        %v4260 = vsub.s32 0, %v4258
        %v4261 = vsel %vm4259, %v4260, %v4258
        %v4262 = vclz %v4261
        %v4263 = vsub.s32 %v4262, 2
        %vm4264 = vcmp.gt.s32.totalorder 0, %v4263
        %v4265 = vsel %vm4264, 0, %v4263
        %v4266 = vsub.s32 32, %v4265
        %v4267 = vshll.u32 %v4258, %v4265
        %v4268 = vshrl.u32 %v4250, %v4266
        %v4269 = vor.u32 %v4267, %v4268
        %v4270 = vsub.s32 4294967266, %v4265
        %v4271 = vadd.s32 %v4270, 127
        %v4272 = vshll.u32 %v4271, 23
        %v4273 = vor.u32 4788187, %v4272
        %v4274 = vand.u32 2147483647, %v4273
        %v4276 = vcvt.s32.f32 %v4269
        %v4277 = vmul.f32 %v4276, %v4274
        %v4278 = vxor.u32 %v4277, 2147483648
        %v4279 = vsel %vm4158, %v4278, %v4277
        %v4280 = vsub.s32 4, %v4256
        %v4281 = vsel %vm4158, %v4280, %v4256
        %v4282 = vsel %vm4157, %v299, %v4279
        %v4283 = vsel %vm4157, 0, %v4281
        %v4284 = vmul.f32 %v4282, %v4282
        %v4285 = vmul.f32 %v4284, -0.001358992
        %v4286 = vadd.f32 %v4285, 0.041655596
        %v4287 = vmul.f32 %v4284, %v4286
        %v4288 = vadd.f32 %v4287, -0.4999988
        %v4289 = vmul.f32 %v4284, %v4288
        %v4290 = vadd.f32 1.0, %v4289
        %v4291 = vmul.f32 %v4282, %v4282
        %v4292 = vmul.f32 %v4291, -0.00019511016
        %v4293 = vadd.f32 %v4292, 0.008332121
        %v4294 = vmul.f32 %v4291, %v4293
        %v4295 = vadd.f32 %v4294, -0.16666654
        %v4296 = vmul.f32 %v4291, %v4295
        %v4297 = vadd.f32 %v4296, 1.0
        %v4298 = vmul.f32 %v4297, %v4282
        %vm4299 = vweird.f32 %v299
        %v4300 = vand.u32 %v4283, 3
        %vm4301 = vcmp.lt.s32.totalorder %v4300, 2
        %vm4302 = vcmp.eq.s32.totalorder %v4300, 0
        %v4303 = vxor.u32 %v4298, 2147483648
        %v4304 = vsel %vm4302, %v4290, %v4303
        %vm4305 = vcmp.eq.s32.totalorder %v4300, 2
        %v4306 = vxor.u32 %v4290, 2147483648
        %v4307 = vsel %vm4305, %v4306, %v4298
        %v4308 = vsel %vm4301, %v4304, %v4307
        %v4309 = vsel %vm4299, nan, %v4308
        %v4310 = vand.u32 2147483647, %v300
        %vm4311 = vcmp.le.f32.partialorder %v4310, 0.7853982
        %vm4312 = vcmp.lt.s32.totalorder %v300, 0
        %v4313 = vand.u32 %v300, 2139095040
        %v4314 = vshrl.u32 %v4313, 23
        %v4315 = vsub.s32 %v4314, 127
        %v4316 = vand.u32 2147483647, %v300
        %v4317 = vand.u32 %v4316, 8388607
        %v4318 = vor.u32 %v4317, 8388608
        %v4319 = vsub.s32 0, %v4318
        %v4320 = vadd.s32 %v4315, 1
        %vm4321 = vcmp.gt.s32.totalorder %v4320, 0
        %v4322 = vsel %vm4321, %v4320, 0
        %v4323 = vshrl.u32 %v4322, 5
        %v4324 = vand.u32 %v4322, 31
        %v4325 = vsub.s32 32, %v4324
        %v4326 = vshrl.u32 683565275, %v4325
        %v4327 = vshll.u32 683565275, %v4324
        %v4328 = vshrl.u32 2475754826, %v4325
        %v4329 = vor.u32 %v4327, %v4328
        %v4330 = vshll.u32 2475754826, %v4324
        %v4331 = vshrl.u32 2131351028, %v4325
        %v4332 = vor.u32 %v4330, %v4331
        %v4333 = vshll.u32 2131351028, %v4324
        %v4334 = vshrl.u32 2102212464, %v4325
        %v4335 = vor.u32 %v4333, %v4334
        %v4336 = vshll.u32 2102212464, %v4324
        %v4337 = vshrl.u32 920167782, %v4325
        %v4338 = vor.u32 %v4336, %v4337
        %v4339 = vshll.u32 920167782, %v4324
        %v4340 = vshrl.u32 1326507024, %v4325
        %v4341 = vor.u32 %v4339, %v4340
        %vm4342 = vcmp.lt.s32.totalorder %v4323, 1
        %vm4343 = vcmp.lt.s32.totalorder %v4323, 2
        %vm4344 = vcmp.lt.s32.totalorder %v4323, 3
        %vm4345 = vcmp.lt.s32.totalorder %v4323, 4
        %v4346 = vsel %vm4342, %v4326, %v4329
        %v4347 = vsel %vm4345, %v4335, 2102212464
        %v4348 = vsel %vm4344, %v4332, %v4347
        %v4349 = vsel %vm4343, %v4346, %v4348
        %v4350 = vsel %vm4342, %v4329, %v4332
        %v4351 = vsel %vm4345, %v4338, 920167782
        %v4352 = vsel %vm4344, %v4335, %v4351
        %v4353 = vsel %vm4343, %v4350, %v4352
        %v4354 = vsel %vm4342, %v4332, %v4335
        %v4355 = vsel %vm4345, %v4341, 1326507024
        %v4356 = vsel %vm4344, %v4338, %v4355
        %v4357 = vsel %vm4343, %v4354, %v4356
        %v4358 = vshll.u32 %v4318, 8
        %v4359 = vand.u32 %v4358, 65535
        %v4360 = vshrl.u32 %v4358, 16
        %v4361 = vand.u32 %v4357, 65535
        %v4362 = vshrl.u32 %v4357, 16
        %v4363 = vmul.u32 %v4359, %v4361
        %v4364 = vmul.u32 %v4359, %v4362
        %v4365 = vmul.u32 %v4360, %v4361
        %v4366 = vmul.u32 %v4360, %v4362
        %v4367 = vshll.u32 %v4364, 16
        %v4368 = vshrl.u32 %v4364, 16
        %v4369 = vshll.u32 %v4365, 16
        %v4370 = vshrl.u32 %v4365, 16
        %vm4371 = vc.u32 %v4363, %v4367
        %v4372 = vsel %vm4371, 1, 0
        %v4373 = vadd.s32 %v4363, %v4367
        %v4374 = vadd.s32 %v4366, %v4372
        %vm4375 = vc.u32 %v4373, %v4369
        %v4376 = vsel %vm4375, 1, 0
        %v4377 = vadd.s32 %v4373, %v4369
        %v4378 = vadd.s32 %v4374, %v4376
        %v4379 = vadd.s32 %v4378, %v4368
        %v4380 = vadd.s32 %v4379, %v4370
        %v4381 = vand.u32 %v4358, 65535
        %v4382 = vshrl.u32 %v4358, 16
        %v4383 = vand.u32 %v4353, 65535
        %v4384 = vshrl.u32 %v4353, 16
        %v4385 = vmul.u32 %v4381, %v4383
        %v4386 = vmul.u32 %v4381, %v4384
        %v4387 = vmul.u32 %v4382, %v4383
        %v4388 = vmul.u32 %v4382, %v4384
        %v4389 = vshll.u32 %v4386, 16
        %v4390 = vshrl.u32 %v4386, 16
        %v4391 = vshll.u32 %v4387, 16
        %v4392 = vshrl.u32 %v4387, 16
        %vm4393 = vc.u32 %v4385, %v4389
        %v4394 = vsel %vm4393, 1, 0
        %v4395 = vadd.s32 %v4385, %v4389
        %v4396 = vadd.s32 %v4388, %v4394
        %vm4397 = vc.u32 %v4395, %v4391
        %v4398 = vsel %vm4397, 1, 0
        %v4399 = vadd.s32 %v4395, %v4391
        %v4400 = vadd.s32 %v4396, %v4398
        %v4401 = vadd.s32 %v4400, %v4390
        %v4402 = vadd.s32 %v4401, %v4392
        %v4403 = vmul.u32 %v4358, %v4349
        %v4404 = vadd.s32 %v4380, %v4399
        %vm4405 = vc.u32 %v4380, %v4399
        %v4406 = vadd.s32 %v4402, 1
        %v4407 = vsel %vm4405, %v4406, %v4402
        %v4408 = vadd.s32 %v4403, %v4407
        %v4409 = vadd.s32 %v4408, 536870912
        %v4410 = vshrl.u32 %v4409, 30
        %v4411 = vshll.u32 %v4410, 30
        %v4412 = vsub.s32 %v4408, %v4411
        %vm4413 = vcmp.lt.s32.totalorder %v4412, 0
        %v4414 = vsub.s32 0, %v4412
        %v4415 = vsel %vm4413, %v4414, %v4412
        %v4416 = vclz %v4415
        %v4417 = vsub.s32 %v4416, 2
        %vm4418 = vcmp.gt.s32.totalorder 0, %v4417
        %v4419 = vsel %vm4418, 0, %v4417
        %v4420 = vsub.s32 32, %v4419
        %v4421 = vshll.u32 %v4412, %v4419
        %v4422 = vshrl.u32 %v4404, %v4420
        %v4423 = vor.u32 %v4421, %v4422
        %v4424 = vsub.s32 4294967266, %v4419
        %v4425 = vadd.s32 %v4424, 127
        %v4426 = vshll.u32 %v4425, 23
        %v4427 = vor.u32 4788187, %v4426
        %v4428 = vand.u32 2147483647, %v4427
        %v4430 = vcvt.s32.f32 %v4423
        %v4431 = vmul.f32 %v4430, %v4428
        %v4432 = vxor.u32 %v4431, 2147483648
        %v4433 = vsel %vm4312, %v4432, %v4431
        %v4434 = vsub.s32 4, %v4410
        %v4435 = vsel %vm4312, %v4434, %v4410
        %v4436 = vsel %vm4311, %v300, %v4433
        %v4437 = vsel %vm4311, 0, %v4435
        %v4438 = vmul.f32 %v4436, %v4436
        %v4439 = vmul.f32 %v4438, -0.001358992
        %v4440 = vadd.f32 %v4439, 0.041655596
        %v4441 = vmul.f32 %v4438, %v4440
        %v4442 = vadd.f32 %v4441, -0.4999988
        %v4443 = vmul.f32 %v4438, %v4442
        %v4444 = vadd.f32 1.0, %v4443
        %v4445 = vmul.f32 %v4436, %v4436
        %v4446 = vmul.f32 %v4445, -0.00019511016
        %v4447 = vadd.f32 %v4446, 0.008332121
        %v4448 = vmul.f32 %v4445, %v4447
        %v4449 = vadd.f32 %v4448, -0.16666654
        %v4450 = vmul.f32 %v4445, %v4449
        %v4451 = vadd.f32 %v4450, 1.0
        %v4452 = vmul.f32 %v4451, %v4436
        %vm4453 = vweird.f32 %v300
        %v4454 = vand.u32 %v4437, 3
        %vm4455 = vcmp.lt.s32.totalorder %v4454, 2
        %vm4456 = vcmp.eq.s32.totalorder %v4454, 0
        %v4457 = vxor.u32 %v4452, 2147483648
        %v4458 = vsel %vm4456, %v4444, %v4457
        %vm4459 = vcmp.eq.s32.totalorder %v4454, 2
        %v4460 = vxor.u32 %v4444, 2147483648
        %v4461 = vsel %vm4459, %v4460, %v4452
        %v4462 = vsel %vm4455, %v4458, %v4461
        %v4463 = vsel %vm4453, nan, %v4462
        %v4464 = vand.u32 2147483647, %v301
        %vm4465 = vcmp.le.f32.partialorder %v4464, 0.7853982
        %vm4466 = vcmp.lt.s32.totalorder %v301, 0
        %v4467 = vand.u32 %v301, 2139095040
        %v4468 = vshrl.u32 %v4467, 23
        %v4469 = vsub.s32 %v4468, 127
        %v4470 = vand.u32 2147483647, %v301
        %v4471 = vand.u32 %v4470, 8388607
        %v4472 = vor.u32 %v4471, 8388608
        %v4473 = vsub.s32 0, %v4472
        %v4474 = vadd.s32 %v4469, 1
        %vm4475 = vcmp.gt.s32.totalorder %v4474, 0
        %v4476 = vsel %vm4475, %v4474, 0
        %v4477 = vshrl.u32 %v4476, 5
        %v4478 = vand.u32 %v4476, 31
        %v4479 = vsub.s32 32, %v4478
        %v4480 = vshrl.u32 683565275, %v4479
        %v4481 = vshll.u32 683565275, %v4478
        %v4482 = vshrl.u32 2475754826, %v4479
        %v4483 = vor.u32 %v4481, %v4482
        %v4484 = vshll.u32 2475754826, %v4478
        %v4485 = vshrl.u32 2131351028, %v4479
        %v4486 = vor.u32 %v4484, %v4485
        %v4487 = vshll.u32 2131351028, %v4478
        %v4488 = vshrl.u32 2102212464, %v4479
        %v4489 = vor.u32 %v4487, %v4488
        %v4490 = vshll.u32 2102212464, %v4478
        %v4491 = vshrl.u32 920167782, %v4479
        %v4492 = vor.u32 %v4490, %v4491
        %v4493 = vshll.u32 920167782, %v4478
        %v4494 = vshrl.u32 1326507024, %v4479
        %v4495 = vor.u32 %v4493, %v4494
        %vm4496 = vcmp.lt.s32.totalorder %v4477, 1
        %vm4497 = vcmp.lt.s32.totalorder %v4477, 2
        %vm4498 = vcmp.lt.s32.totalorder %v4477, 3
        %vm4499 = vcmp.lt.s32.totalorder %v4477, 4
        %v4500 = vsel %vm4496, %v4480, %v4483
        %v4501 = vsel %vm4499, %v4489, 2102212464
        %v4502 = vsel %vm4498, %v4486, %v4501
        %v4503 = vsel %vm4497, %v4500, %v4502
        %v4504 = vsel %vm4496, %v4483, %v4486
        %v4505 = vsel %vm4499, %v4492, 920167782
        %v4506 = vsel %vm4498, %v4489, %v4505
        %v4507 = vsel %vm4497, %v4504, %v4506
        %v4508 = vsel %vm4496, %v4486, %v4489
        %v4509 = vsel %vm4499, %v4495, 1326507024
        %v4510 = vsel %vm4498, %v4492, %v4509
        %v4511 = vsel %vm4497, %v4508, %v4510
        %v4512 = vshll.u32 %v4472, 8
        %v4513 = vand.u32 %v4512, 65535
        %v4514 = vshrl.u32 %v4512, 16
        %v4515 = vand.u32 %v4511, 65535
        %v4516 = vshrl.u32 %v4511, 16
        %v4517 = vmul.u32 %v4513, %v4515
        %v4518 = vmul.u32 %v4513, %v4516
        %v4519 = vmul.u32 %v4514, %v4515
        %v4520 = vmul.u32 %v4514, %v4516
        %v4521 = vshll.u32 %v4518, 16
        %v4522 = vshrl.u32 %v4518, 16
        %v4523 = vshll.u32 %v4519, 16
        %v4524 = vshrl.u32 %v4519, 16
        %vm4525 = vc.u32 %v4517, %v4521
        %v4526 = vsel %vm4525, 1, 0
        %v4527 = vadd.s32 %v4517, %v4521
        %v4528 = vadd.s32 %v4520, %v4526
        %vm4529 = vc.u32 %v4527, %v4523
        %v4530 = vsel %vm4529, 1, 0
        %v4531 = vadd.s32 %v4527, %v4523
        %v4532 = vadd.s32 %v4528, %v4530
        %v4533 = vadd.s32 %v4532, %v4522
        %v4534 = vadd.s32 %v4533, %v4524
        %v4535 = vand.u32 %v4512, 65535
        %v4536 = vshrl.u32 %v4512, 16
        %v4537 = vand.u32 %v4507, 65535
        %v4538 = vshrl.u32 %v4507, 16
        %v4539 = vmul.u32 %v4535, %v4537
        %v4540 = vmul.u32 %v4535, %v4538
        %v4541 = vmul.u32 %v4536, %v4537
        %v4542 = vmul.u32 %v4536, %v4538
        %v4543 = vshll.u32 %v4540, 16
        %v4544 = vshrl.u32 %v4540, 16
        %v4545 = vshll.u32 %v4541, 16
        %v4546 = vshrl.u32 %v4541, 16
        %vm4547 = vc.u32 %v4539, %v4543
        %v4548 = vsel %vm4547, 1, 0
        %v4549 = vadd.s32 %v4539, %v4543
        %v4550 = vadd.s32 %v4542, %v4548
        %vm4551 = vc.u32 %v4549, %v4545
        %v4552 = vsel %vm4551, 1, 0
        %v4553 = vadd.s32 %v4549, %v4545
        %v4554 = vadd.s32 %v4550, %v4552
        %v4555 = vadd.s32 %v4554, %v4544
        %v4556 = vadd.s32 %v4555, %v4546
        %v4557 = vmul.u32 %v4512, %v4503
        %v4558 = vadd.s32 %v4534, %v4553
        %vm4559 = vc.u32 %v4534, %v4553
        %v4560 = vadd.s32 %v4556, 1
        %v4561 = vsel %vm4559, %v4560, %v4556
        %v4562 = vadd.s32 %v4557, %v4561
        %v4563 = vadd.s32 %v4562, 536870912
        %v4564 = vshrl.u32 %v4563, 30
        %v4565 = vshll.u32 %v4564, 30
        %v4566 = vsub.s32 %v4562, %v4565
        %vm4567 = vcmp.lt.s32.totalorder %v4566, 0
        %v4568 = vsub.s32 0, %v4566
        %v4569 = vsel %vm4567, %v4568, %v4566
        %v4570 = vclz %v4569
        %v4571 = vsub.s32 %v4570, 2
        %vm4572 = vcmp.gt.s32.totalorder 0, %v4571
        %v4573 = vsel %vm4572, 0, %v4571
        %v4574 = vsub.s32 32, %v4573
        %v4575 = vshll.u32 %v4566, %v4573
        %v4576 = vshrl.u32 %v4558, %v4574
        %v4577 = vor.u32 %v4575, %v4576
        %v4578 = vsub.s32 4294967266, %v4573
        %v4579 = vadd.s32 %v4578, 127
        %v4580 = vshll.u32 %v4579, 23
        %v4581 = vor.u32 4788187, %v4580
        %v4582 = vand.u32 2147483647, %v4581
        %v4584 = vcvt.s32.f32 %v4577
        %v4585 = vmul.f32 %v4584, %v4582
        %v4586 = vxor.u32 %v4585, 2147483648
        %v4587 = vsel %vm4466, %v4586, %v4585
        %v4588 = vsub.s32 4, %v4564
        %v4589 = vsel %vm4466, %v4588, %v4564
        %v4590 = vsel %vm4465, %v301, %v4587
        %v4591 = vsel %vm4465, 0, %v4589
        %v4592 = vmul.f32 %v4590, %v4590
        %v4593 = vmul.f32 %v4592, -0.001358992
        %v4594 = vadd.f32 %v4593, 0.041655596
        %v4595 = vmul.f32 %v4592, %v4594
        %v4596 = vadd.f32 %v4595, -0.4999988
        %v4597 = vmul.f32 %v4592, %v4596
        %v4598 = vadd.f32 1.0, %v4597
        %v4599 = vmul.f32 %v4590, %v4590
        %v4600 = vmul.f32 %v4599, -0.00019511016
        %v4601 = vadd.f32 %v4600, 0.008332121
        %v4602 = vmul.f32 %v4599, %v4601
        %v4603 = vadd.f32 %v4602, -0.16666654
        %v4604 = vmul.f32 %v4599, %v4603
        %v4605 = vadd.f32 %v4604, 1.0
        %v4606 = vmul.f32 %v4605, %v4590
        %vm4607 = vweird.f32 %v301
        %v4608 = vand.u32 %v4591, 3
        %vm4609 = vcmp.lt.s32.totalorder %v4608, 2
        %vm4610 = vcmp.eq.s32.totalorder %v4608, 0
        %v4611 = vxor.u32 %v4606, 2147483648
        %v4612 = vsel %vm4610, %v4598, %v4611
        %vm4613 = vcmp.eq.s32.totalorder %v4608, 2
        %v4614 = vxor.u32 %v4598, 2147483648
        %v4615 = vsel %vm4613, %v4614, %v4606
        %v4616 = vsel %vm4609, %v4612, %v4615
        %v4617 = vsel %vm4607, nan, %v4616
        %v4618 = vand.u32 2147483647, %v302
        %vm4619 = vcmp.le.f32.partialorder %v4618, 0.7853982
        %vm4620 = vcmp.lt.s32.totalorder %v302, 0
        %v4621 = vand.u32 %v302, 2139095040
        %v4622 = vshrl.u32 %v4621, 23
        %v4623 = vsub.s32 %v4622, 127
        %v4624 = vand.u32 2147483647, %v302
        %v4625 = vand.u32 %v4624, 8388607
        %v4626 = vor.u32 %v4625, 8388608
        %v4627 = vsub.s32 0, %v4626
        %v4628 = vadd.s32 %v4623, 1
        %vm4629 = vcmp.gt.s32.totalorder %v4628, 0
        %v4630 = vsel %vm4629, %v4628, 0
        %v4631 = vshrl.u32 %v4630, 5
        %v4632 = vand.u32 %v4630, 31
        %v4633 = vsub.s32 32, %v4632
        %v4634 = vshrl.u32 683565275, %v4633
        %v4635 = vshll.u32 683565275, %v4632
        %v4636 = vshrl.u32 2475754826, %v4633
        %v4637 = vor.u32 %v4635, %v4636
        %v4638 = vshll.u32 2475754826, %v4632
        %v4639 = vshrl.u32 2131351028, %v4633
        %v4640 = vor.u32 %v4638, %v4639
        %v4641 = vshll.u32 2131351028, %v4632
        %v4642 = vshrl.u32 2102212464, %v4633
        %v4643 = vor.u32 %v4641, %v4642
        %v4644 = vshll.u32 2102212464, %v4632
        %v4645 = vshrl.u32 920167782, %v4633
        %v4646 = vor.u32 %v4644, %v4645
        %v4647 = vshll.u32 920167782, %v4632
        %v4648 = vshrl.u32 1326507024, %v4633
        %v4649 = vor.u32 %v4647, %v4648
        %vm4650 = vcmp.lt.s32.totalorder %v4631, 1
        %vm4651 = vcmp.lt.s32.totalorder %v4631, 2
        %vm4652 = vcmp.lt.s32.totalorder %v4631, 3
        %vm4653 = vcmp.lt.s32.totalorder %v4631, 4
        %v4654 = vsel %vm4650, %v4634, %v4637
        %v4655 = vsel %vm4653, %v4643, 2102212464
        %v4656 = vsel %vm4652, %v4640, %v4655
        %v4657 = vsel %vm4651, %v4654, %v4656
        %v4658 = vsel %vm4650, %v4637, %v4640
        %v4659 = vsel %vm4653, %v4646, 920167782
        %v4660 = vsel %vm4652, %v4643, %v4659
        %v4661 = vsel %vm4651, %v4658, %v4660
        %v4662 = vsel %vm4650, %v4640, %v4643
        %v4663 = vsel %vm4653, %v4649, 1326507024
        %v4664 = vsel %vm4652, %v4646, %v4663
        %v4665 = vsel %vm4651, %v4662, %v4664
        %v4666 = vshll.u32 %v4626, 8
        %v4667 = vand.u32 %v4666, 65535
        %v4668 = vshrl.u32 %v4666, 16
        %v4669 = vand.u32 %v4665, 65535
        %v4670 = vshrl.u32 %v4665, 16
        %v4671 = vmul.u32 %v4667, %v4669
        %v4672 = vmul.u32 %v4667, %v4670
        %v4673 = vmul.u32 %v4668, %v4669
        %v4674 = vmul.u32 %v4668, %v4670
        %v4675 = vshll.u32 %v4672, 16
        %v4676 = vshrl.u32 %v4672, 16
        %v4677 = vshll.u32 %v4673, 16
        %v4678 = vshrl.u32 %v4673, 16
        %vm4679 = vc.u32 %v4671, %v4675
        %v4680 = vsel %vm4679, 1, 0
        %v4681 = vadd.s32 %v4671, %v4675
        %v4682 = vadd.s32 %v4674, %v4680
        %vm4683 = vc.u32 %v4681, %v4677
        %v4684 = vsel %vm4683, 1, 0
        %v4685 = vadd.s32 %v4681, %v4677
        %v4686 = vadd.s32 %v4682, %v4684
        %v4687 = vadd.s32 %v4686, %v4676
        %v4688 = vadd.s32 %v4687, %v4678
        %v4689 = vand.u32 %v4666, 65535
        %v4690 = vshrl.u32 %v4666, 16
        %v4691 = vand.u32 %v4661, 65535
        %v4692 = vshrl.u32 %v4661, 16
        %v4693 = vmul.u32 %v4689, %v4691
        %v4694 = vmul.u32 %v4689, %v4692
        %v4695 = vmul.u32 %v4690, %v4691
        %v4696 = vmul.u32 %v4690, %v4692
        %v4697 = vshll.u32 %v4694, 16
        %v4698 = vshrl.u32 %v4694, 16
        %v4699 = vshll.u32 %v4695, 16
        %v4700 = vshrl.u32 %v4695, 16
        %vm4701 = vc.u32 %v4693, %v4697
        %v4702 = vsel %vm4701, 1, 0
        %v4703 = vadd.s32 %v4693, %v4697
        %v4704 = vadd.s32 %v4696, %v4702
        %vm4705 = vc.u32 %v4703, %v4699
        %v4706 = vsel %vm4705, 1, 0
        %v4707 = vadd.s32 %v4703, %v4699
        %v4708 = vadd.s32 %v4704, %v4706
        %v4709 = vadd.s32 %v4708, %v4698
        %v4710 = vadd.s32 %v4709, %v4700
        %v4711 = vmul.u32 %v4666, %v4657
        %v4712 = vadd.s32 %v4688, %v4707
        %vm4713 = vc.u32 %v4688, %v4707
        %v4714 = vadd.s32 %v4710, 1
        %v4715 = vsel %vm4713, %v4714, %v4710
        %v4716 = vadd.s32 %v4711, %v4715
        %v4717 = vadd.s32 %v4716, 536870912
        %v4718 = vshrl.u32 %v4717, 30
        %v4719 = vshll.u32 %v4718, 30
        %v4720 = vsub.s32 %v4716, %v4719
        %vm4721 = vcmp.lt.s32.totalorder %v4720, 0
        %v4722 = vsub.s32 0, %v4720
        %v4723 = vsel %vm4721, %v4722, %v4720
        %v4724 = vclz %v4723
        %v4725 = vsub.s32 %v4724, 2
        %vm4726 = vcmp.gt.s32.totalorder 0, %v4725
        %v4727 = vsel %vm4726, 0, %v4725
        %v4728 = vsub.s32 32, %v4727
        %v4729 = vshll.u32 %v4720, %v4727
        %v4730 = vshrl.u32 %v4712, %v4728
        %v4731 = vor.u32 %v4729, %v4730
        %v4732 = vsub.s32 4294967266, %v4727
        %v4733 = vadd.s32 %v4732, 127
        %v4734 = vshll.u32 %v4733, 23
        %v4735 = vor.u32 4788187, %v4734
        %v4736 = vand.u32 2147483647, %v4735
        %v4738 = vcvt.s32.f32 %v4731
        %v4739 = vmul.f32 %v4738, %v4736
        %v4740 = vxor.u32 %v4739, 2147483648
        %v4741 = vsel %vm4620, %v4740, %v4739
        %v4742 = vsub.s32 4, %v4718
        %v4743 = vsel %vm4620, %v4742, %v4718
        %v4744 = vsel %vm4619, %v302, %v4741
        %v4745 = vsel %vm4619, 0, %v4743
        %v4746 = vmul.f32 %v4744, %v4744
        %v4747 = vmul.f32 %v4746, -0.001358992
        %v4748 = vadd.f32 %v4747, 0.041655596
        %v4749 = vmul.f32 %v4746, %v4748
        %v4750 = vadd.f32 %v4749, -0.4999988
        %v4751 = vmul.f32 %v4746, %v4750
        %v4752 = vadd.f32 1.0, %v4751
        %v4753 = vmul.f32 %v4744, %v4744
        %v4754 = vmul.f32 %v4753, -0.00019511016
        %v4755 = vadd.f32 %v4754, 0.008332121
        %v4756 = vmul.f32 %v4753, %v4755
        %v4757 = vadd.f32 %v4756, -0.16666654
        %v4758 = vmul.f32 %v4753, %v4757
        %v4759 = vadd.f32 %v4758, 1.0
        %v4760 = vmul.f32 %v4759, %v4744
        %vm4761 = vweird.f32 %v302
        %v4762 = vand.u32 %v4745, 3
        %vm4763 = vcmp.lt.s32.totalorder %v4762, 2
        %vm4764 = vcmp.eq.s32.totalorder %v4762, 0
        %v4765 = vxor.u32 %v4760, 2147483648
        %v4766 = vsel %vm4764, %v4752, %v4765
        %vm4767 = vcmp.eq.s32.totalorder %v4762, 2
        %v4768 = vxor.u32 %v4752, 2147483648
        %v4769 = vsel %vm4767, %v4768, %v4760
        %v4770 = vsel %vm4763, %v4766, %v4769
        %v4771 = vsel %vm4761, nan, %v4770
        %v4772 = vand.u32 2147483647, %v303
        %vm4773 = vcmp.le.f32.partialorder %v4772, 0.7853982
        %vm4774 = vcmp.lt.s32.totalorder %v303, 0
        %v4775 = vand.u32 %v303, 2139095040
        %v4776 = vshrl.u32 %v4775, 23
        %v4777 = vsub.s32 %v4776, 127
        %v4778 = vand.u32 2147483647, %v303
        %v4779 = vand.u32 %v4778, 8388607
        %v4780 = vor.u32 %v4779, 8388608
        %v4781 = vsub.s32 0, %v4780
        %v4782 = vadd.s32 %v4777, 1
        %vm4783 = vcmp.gt.s32.totalorder %v4782, 0
        %v4784 = vsel %vm4783, %v4782, 0
        %v4785 = vshrl.u32 %v4784, 5
        %v4786 = vand.u32 %v4784, 31
        %v4787 = vsub.s32 32, %v4786
        %v4788 = vshrl.u32 683565275, %v4787
        %v4789 = vshll.u32 683565275, %v4786
        %v4790 = vshrl.u32 2475754826, %v4787
        %v4791 = vor.u32 %v4789, %v4790
        %v4792 = vshll.u32 2475754826, %v4786
        %v4793 = vshrl.u32 2131351028, %v4787
        %v4794 = vor.u32 %v4792, %v4793
        %v4795 = vshll.u32 2131351028, %v4786
        %v4796 = vshrl.u32 2102212464, %v4787
        %v4797 = vor.u32 %v4795, %v4796
        %v4798 = vshll.u32 2102212464, %v4786
        %v4799 = vshrl.u32 920167782, %v4787
        %v4800 = vor.u32 %v4798, %v4799
        %v4801 = vshll.u32 920167782, %v4786
        %v4802 = vshrl.u32 1326507024, %v4787
        %v4803 = vor.u32 %v4801, %v4802
        %vm4804 = vcmp.lt.s32.totalorder %v4785, 1
        %vm4805 = vcmp.lt.s32.totalorder %v4785, 2
        %vm4806 = vcmp.lt.s32.totalorder %v4785, 3
        %vm4807 = vcmp.lt.s32.totalorder %v4785, 4
        %v4808 = vsel %vm4804, %v4788, %v4791
        %v4809 = vsel %vm4807, %v4797, 2102212464
        %v4810 = vsel %vm4806, %v4794, %v4809
        %v4811 = vsel %vm4805, %v4808, %v4810
        %v4812 = vsel %vm4804, %v4791, %v4794
        %v4813 = vsel %vm4807, %v4800, 920167782
        %v4814 = vsel %vm4806, %v4797, %v4813
        %v4815 = vsel %vm4805, %v4812, %v4814
        %v4816 = vsel %vm4804, %v4794, %v4797
        %v4817 = vsel %vm4807, %v4803, 1326507024
        %v4818 = vsel %vm4806, %v4800, %v4817
        %v4819 = vsel %vm4805, %v4816, %v4818
        %v4820 = vshll.u32 %v4780, 8
        %v4821 = vand.u32 %v4820, 65535
        %v4822 = vshrl.u32 %v4820, 16
        %v4823 = vand.u32 %v4819, 65535
        %v4824 = vshrl.u32 %v4819, 16
        %v4825 = vmul.u32 %v4821, %v4823
        %v4826 = vmul.u32 %v4821, %v4824
        %v4827 = vmul.u32 %v4822, %v4823
        %v4828 = vmul.u32 %v4822, %v4824
        %v4829 = vshll.u32 %v4826, 16
        %v4830 = vshrl.u32 %v4826, 16
        %v4831 = vshll.u32 %v4827, 16
        %v4832 = vshrl.u32 %v4827, 16
        %vm4833 = vc.u32 %v4825, %v4829
        %v4834 = vsel %vm4833, 1, 0
        %v4835 = vadd.s32 %v4825, %v4829
        %v4836 = vadd.s32 %v4828, %v4834
        %vm4837 = vc.u32 %v4835, %v4831
        %v4838 = vsel %vm4837, 1, 0
        %v4839 = vadd.s32 %v4835, %v4831
        %v4840 = vadd.s32 %v4836, %v4838
        %v4841 = vadd.s32 %v4840, %v4830
        %v4842 = vadd.s32 %v4841, %v4832
        %v4843 = vand.u32 %v4820, 65535
        %v4844 = vshrl.u32 %v4820, 16
        %v4845 = vand.u32 %v4815, 65535
        %v4846 = vshrl.u32 %v4815, 16
        %v4847 = vmul.u32 %v4843, %v4845
        %v4848 = vmul.u32 %v4843, %v4846
        %v4849 = vmul.u32 %v4844, %v4845
        %v4850 = vmul.u32 %v4844, %v4846
        %v4851 = vshll.u32 %v4848, 16
        %v4852 = vshrl.u32 %v4848, 16
        %v4853 = vshll.u32 %v4849, 16
        %v4854 = vshrl.u32 %v4849, 16
        %vm4855 = vc.u32 %v4847, %v4851
        %v4856 = vsel %vm4855, 1, 0
        %v4857 = vadd.s32 %v4847, %v4851
        %v4858 = vadd.s32 %v4850, %v4856
        %vm4859 = vc.u32 %v4857, %v4853
        %v4860 = vsel %vm4859, 1, 0
        %v4861 = vadd.s32 %v4857, %v4853
        %v4862 = vadd.s32 %v4858, %v4860
        %v4863 = vadd.s32 %v4862, %v4852
        %v4864 = vadd.s32 %v4863, %v4854
        %v4865 = vmul.u32 %v4820, %v4811
        %v4866 = vadd.s32 %v4842, %v4861
        %vm4867 = vc.u32 %v4842, %v4861
        %v4868 = vadd.s32 %v4864, 1
        %v4869 = vsel %vm4867, %v4868, %v4864
        %v4870 = vadd.s32 %v4865, %v4869
        %v4871 = vadd.s32 %v4870, 536870912
        %v4872 = vshrl.u32 %v4871, 30
        %v4873 = vshll.u32 %v4872, 30
        %v4874 = vsub.s32 %v4870, %v4873
        %vm4875 = vcmp.lt.s32.totalorder %v4874, 0
        %v4876 = vsub.s32 0, %v4874
        %v4877 = vsel %vm4875, %v4876, %v4874
        %v4878 = vclz %v4877
        %v4879 = vsub.s32 %v4878, 2
        %vm4880 = vcmp.gt.s32.totalorder 0, %v4879
        %v4881 = vsel %vm4880, 0, %v4879
        %v4882 = vsub.s32 32, %v4881
        %v4883 = vshll.u32 %v4874, %v4881
        %v4884 = vshrl.u32 %v4866, %v4882
        %v4885 = vor.u32 %v4883, %v4884
        %v4886 = vsub.s32 4294967266, %v4881
        %v4887 = vadd.s32 %v4886, 127
        %v4888 = vshll.u32 %v4887, 23
        %v4889 = vor.u32 4788187, %v4888
        %v4890 = vand.u32 2147483647, %v4889
        %v4892 = vcvt.s32.f32 %v4885
        %v4893 = vmul.f32 %v4892, %v4890
        %v4894 = vxor.u32 %v4893, 2147483648
        %v4895 = vsel %vm4774, %v4894, %v4893
        %v4896 = vsub.s32 4, %v4872
        %v4897 = vsel %vm4774, %v4896, %v4872
        %v4898 = vsel %vm4773, %v303, %v4895
        %v4899 = vsel %vm4773, 0, %v4897
        %v4900 = vmul.f32 %v4898, %v4898
        %v4901 = vmul.f32 %v4900, -0.001358992
        %v4902 = vadd.f32 %v4901, 0.041655596
        %v4903 = vmul.f32 %v4900, %v4902
        %v4904 = vadd.f32 %v4903, -0.4999988
        %v4905 = vmul.f32 %v4900, %v4904
        %v4906 = vadd.f32 1.0, %v4905
        %v4907 = vmul.f32 %v4898, %v4898
        %v4908 = vmul.f32 %v4907, -0.00019511016
        %v4909 = vadd.f32 %v4908, 0.008332121
        %v4910 = vmul.f32 %v4907, %v4909
        %v4911 = vadd.f32 %v4910, -0.16666654
        %v4912 = vmul.f32 %v4907, %v4911
        %v4913 = vadd.f32 %v4912, 1.0
        %v4914 = vmul.f32 %v4913, %v4898
        %vm4915 = vweird.f32 %v303
        %v4916 = vand.u32 %v4899, 3
        %vm4917 = vcmp.lt.s32.totalorder %v4916, 2
        %vm4918 = vcmp.eq.s32.totalorder %v4916, 0
        %v4919 = vxor.u32 %v4914, 2147483648
        %v4920 = vsel %vm4918, %v4906, %v4919
        %vm4921 = vcmp.eq.s32.totalorder %v4916, 2
        %v4922 = vxor.u32 %v4906, 2147483648
        %v4923 = vsel %vm4921, %v4922, %v4914
        %v4924 = vsel %vm4917, %v4920, %v4923
        %v4925 = vsel %vm4915, nan, %v4924
        %v4926 = vand.u32 2147483647, %v304
        %vm4927 = vcmp.le.f32.partialorder %v4926, 0.7853982
        %vm4928 = vcmp.lt.s32.totalorder %v304, 0
        %v4929 = vand.u32 %v304, 2139095040
        %v4930 = vshrl.u32 %v4929, 23
        %v4931 = vsub.s32 %v4930, 127
        %v4932 = vand.u32 2147483647, %v304
        %v4933 = vand.u32 %v4932, 8388607
        %v4934 = vor.u32 %v4933, 8388608
        %v4935 = vsub.s32 0, %v4934
        %v4936 = vadd.s32 %v4931, 1
        %vm4937 = vcmp.gt.s32.totalorder %v4936, 0
        %v4938 = vsel %vm4937, %v4936, 0
        %v4939 = vshrl.u32 %v4938, 5
        %v4940 = vand.u32 %v4938, 31
        %v4941 = vsub.s32 32, %v4940
        %v4942 = vshrl.u32 683565275, %v4941
        %v4943 = vshll.u32 683565275, %v4940
        %v4944 = vshrl.u32 2475754826, %v4941
        %v4945 = vor.u32 %v4943, %v4944
        %v4946 = vshll.u32 2475754826, %v4940
        %v4947 = vshrl.u32 2131351028, %v4941
        %v4948 = vor.u32 %v4946, %v4947
        %v4949 = vshll.u32 2131351028, %v4940
        %v4950 = vshrl.u32 2102212464, %v4941
        %v4951 = vor.u32 %v4949, %v4950
        %v4952 = vshll.u32 2102212464, %v4940
        %v4953 = vshrl.u32 920167782, %v4941
        %v4954 = vor.u32 %v4952, %v4953
        %v4955 = vshll.u32 920167782, %v4940
        %v4956 = vshrl.u32 1326507024, %v4941
        %v4957 = vor.u32 %v4955, %v4956
        %vm4958 = vcmp.lt.s32.totalorder %v4939, 1
        %vm4959 = vcmp.lt.s32.totalorder %v4939, 2
        %vm4960 = vcmp.lt.s32.totalorder %v4939, 3
        %vm4961 = vcmp.lt.s32.totalorder %v4939, 4
        %v4962 = vsel %vm4958, %v4942, %v4945
        %v4963 = vsel %vm4961, %v4951, 2102212464
        %v4964 = vsel %vm4960, %v4948, %v4963
        %v4965 = vsel %vm4959, %v4962, %v4964
        %v4966 = vsel %vm4958, %v4945, %v4948
        %v4967 = vsel %vm4961, %v4954, 920167782
        %v4968 = vsel %vm4960, %v4951, %v4967
        %v4969 = vsel %vm4959, %v4966, %v4968
        %v4970 = vsel %vm4958, %v4948, %v4951
        %v4971 = vsel %vm4961, %v4957, 1326507024
        %v4972 = vsel %vm4960, %v4954, %v4971
        %v4973 = vsel %vm4959, %v4970, %v4972
        %v4974 = vshll.u32 %v4934, 8
        %v4975 = vand.u32 %v4974, 65535
        %v4976 = vshrl.u32 %v4974, 16
        %v4977 = vand.u32 %v4973, 65535
        %v4978 = vshrl.u32 %v4973, 16
        %v4979 = vmul.u32 %v4975, %v4977
        %v4980 = vmul.u32 %v4975, %v4978
        %v4981 = vmul.u32 %v4976, %v4977
        %v4982 = vmul.u32 %v4976, %v4978
        %v4983 = vshll.u32 %v4980, 16
        %v4984 = vshrl.u32 %v4980, 16
        %v4985 = vshll.u32 %v4981, 16
        %v4986 = vshrl.u32 %v4981, 16
        %vm4987 = vc.u32 %v4979, %v4983
        %v4988 = vsel %vm4987, 1, 0
        %v4989 = vadd.s32 %v4979, %v4983
        %v4990 = vadd.s32 %v4982, %v4988
        %vm4991 = vc.u32 %v4989, %v4985
        %v4992 = vsel %vm4991, 1, 0
        %v4993 = vadd.s32 %v4989, %v4985
        %v4994 = vadd.s32 %v4990, %v4992
        %v4995 = vadd.s32 %v4994, %v4984
        %v4996 = vadd.s32 %v4995, %v4986
        %v4997 = vand.u32 %v4974, 65535
        %v4998 = vshrl.u32 %v4974, 16
        %v4999 = vand.u32 %v4969, 65535
        %v5000 = vshrl.u32 %v4969, 16
        %v5001 = vmul.u32 %v4997, %v4999
        %v5002 = vmul.u32 %v4997, %v5000
        %v5003 = vmul.u32 %v4998, %v4999
        %v5004 = vmul.u32 %v4998, %v5000
        %v5005 = vshll.u32 %v5002, 16
        %v5006 = vshrl.u32 %v5002, 16
        %v5007 = vshll.u32 %v5003, 16
        %v5008 = vshrl.u32 %v5003, 16
        %vm5009 = vc.u32 %v5001, %v5005
        %v5010 = vsel %vm5009, 1, 0
        %v5011 = vadd.s32 %v5001, %v5005
        %v5012 = vadd.s32 %v5004, %v5010
        %vm5013 = vc.u32 %v5011, %v5007
        %v5014 = vsel %vm5013, 1, 0
        %v5015 = vadd.s32 %v5011, %v5007
        %v5016 = vadd.s32 %v5012, %v5014
        %v5017 = vadd.s32 %v5016, %v5006
        %v5018 = vadd.s32 %v5017, %v5008
        %v5019 = vmul.u32 %v4974, %v4965
        %v5020 = vadd.s32 %v4996, %v5015
        %vm5021 = vc.u32 %v4996, %v5015
        %v5022 = vadd.s32 %v5018, 1
        %v5023 = vsel %vm5021, %v5022, %v5018
        %v5024 = vadd.s32 %v5019, %v5023
        %v5025 = vadd.s32 %v5024, 536870912
        %v5026 = vshrl.u32 %v5025, 30
        %v5027 = vshll.u32 %v5026, 30
        %v5028 = vsub.s32 %v5024, %v5027
        %vm5029 = vcmp.lt.s32.totalorder %v5028, 0
        %v5030 = vsub.s32 0, %v5028
        %v5031 = vsel %vm5029, %v5030, %v5028
        %v5032 = vclz %v5031
        %v5033 = vsub.s32 %v5032, 2
        %vm5034 = vcmp.gt.s32.totalorder 0, %v5033
        %v5035 = vsel %vm5034, 0, %v5033
        %v5036 = vsub.s32 32, %v5035
        %v5037 = vshll.u32 %v5028, %v5035
        %v5038 = vshrl.u32 %v5020, %v5036
        %v5039 = vor.u32 %v5037, %v5038
        %v5040 = vsub.s32 4294967266, %v5035
        %v5041 = vadd.s32 %v5040, 127
        %v5042 = vshll.u32 %v5041, 23
        %v5043 = vor.u32 4788187, %v5042
        %v5044 = vand.u32 2147483647, %v5043
        %v5046 = vcvt.s32.f32 %v5039
        %v5047 = vmul.f32 %v5046, %v5044
        %v5048 = vxor.u32 %v5047, 2147483648
        %v5049 = vsel %vm4928, %v5048, %v5047
        %v5050 = vsub.s32 4, %v5026
        %v5051 = vsel %vm4928, %v5050, %v5026
        %v5052 = vsel %vm4927, %v304, %v5049
        %v5053 = vsel %vm4927, 0, %v5051
        %v5054 = vmul.f32 %v5052, %v5052
        %v5055 = vmul.f32 %v5054, -0.001358992
        %v5056 = vadd.f32 %v5055, 0.041655596
        %v5057 = vmul.f32 %v5054, %v5056
        %v5058 = vadd.f32 %v5057, -0.4999988
        %v5059 = vmul.f32 %v5054, %v5058
        %v5060 = vadd.f32 1.0, %v5059
        %v5061 = vmul.f32 %v5052, %v5052
        %v5062 = vmul.f32 %v5061, -0.00019511016
        %v5063 = vadd.f32 %v5062, 0.008332121
        %v5064 = vmul.f32 %v5061, %v5063
        %v5065 = vadd.f32 %v5064, -0.16666654
        %v5066 = vmul.f32 %v5061, %v5065
        %v5067 = vadd.f32 %v5066, 1.0
        %v5068 = vmul.f32 %v5067, %v5052
        %vm5069 = vweird.f32 %v304
        %v5070 = vand.u32 %v5053, 3
        %vm5071 = vcmp.lt.s32.totalorder %v5070, 2
        %vm5072 = vcmp.eq.s32.totalorder %v5070, 0
        %v5073 = vxor.u32 %v5068, 2147483648
        %v5074 = vsel %vm5072, %v5060, %v5073
        %vm5075 = vcmp.eq.s32.totalorder %v5070, 2
        %v5076 = vxor.u32 %v5060, 2147483648
        %v5077 = vsel %vm5075, %v5076, %v5068
        %v5078 = vsel %vm5071, %v5074, %v5077
        %v5079 = vsel %vm5069, nan, %v5078
        %v5080 = vand.u32 2147483647, %v305
        %vm5081 = vcmp.le.f32.partialorder %v5080, 0.7853982
        %vm5082 = vcmp.lt.s32.totalorder %v305, 0
        %v5083 = vand.u32 %v305, 2139095040
        %v5084 = vshrl.u32 %v5083, 23
        %v5085 = vsub.s32 %v5084, 127
        %v5086 = vand.u32 2147483647, %v305
        %v5087 = vand.u32 %v5086, 8388607
        %v5088 = vor.u32 %v5087, 8388608
        %v5089 = vsub.s32 0, %v5088
        %v5090 = vadd.s32 %v5085, 1
        %vm5091 = vcmp.gt.s32.totalorder %v5090, 0
        %v5092 = vsel %vm5091, %v5090, 0
        %v5093 = vshrl.u32 %v5092, 5
        %v5094 = vand.u32 %v5092, 31
        %v5095 = vsub.s32 32, %v5094
        %v5096 = vshrl.u32 683565275, %v5095
        %v5097 = vshll.u32 683565275, %v5094
        %v5098 = vshrl.u32 2475754826, %v5095
        %v5099 = vor.u32 %v5097, %v5098
        %v5100 = vshll.u32 2475754826, %v5094
        %v5101 = vshrl.u32 2131351028, %v5095
        %v5102 = vor.u32 %v5100, %v5101
        %v5103 = vshll.u32 2131351028, %v5094
        %v5104 = vshrl.u32 2102212464, %v5095
        %v5105 = vor.u32 %v5103, %v5104
        %v5106 = vshll.u32 2102212464, %v5094
        %v5107 = vshrl.u32 920167782, %v5095
        %v5108 = vor.u32 %v5106, %v5107
        %v5109 = vshll.u32 920167782, %v5094
        %v5110 = vshrl.u32 1326507024, %v5095
        %v5111 = vor.u32 %v5109, %v5110
        %vm5112 = vcmp.lt.s32.totalorder %v5093, 1
        %vm5113 = vcmp.lt.s32.totalorder %v5093, 2
        %vm5114 = vcmp.lt.s32.totalorder %v5093, 3
        %vm5115 = vcmp.lt.s32.totalorder %v5093, 4
        %v5116 = vsel %vm5112, %v5096, %v5099
        %v5117 = vsel %vm5115, %v5105, 2102212464
        %v5118 = vsel %vm5114, %v5102, %v5117
        %v5119 = vsel %vm5113, %v5116, %v5118
        %v5120 = vsel %vm5112, %v5099, %v5102
        %v5121 = vsel %vm5115, %v5108, 920167782
        %v5122 = vsel %vm5114, %v5105, %v5121
        %v5123 = vsel %vm5113, %v5120, %v5122
        %v5124 = vsel %vm5112, %v5102, %v5105
        %v5125 = vsel %vm5115, %v5111, 1326507024
        %v5126 = vsel %vm5114, %v5108, %v5125
        %v5127 = vsel %vm5113, %v5124, %v5126
        %v5128 = vshll.u32 %v5088, 8
        %v5129 = vand.u32 %v5128, 65535
        %v5130 = vshrl.u32 %v5128, 16
        %v5131 = vand.u32 %v5127, 65535
        %v5132 = vshrl.u32 %v5127, 16
        %v5133 = vmul.u32 %v5129, %v5131
        %v5134 = vmul.u32 %v5129, %v5132
        %v5135 = vmul.u32 %v5130, %v5131
        %v5136 = vmul.u32 %v5130, %v5132
        %v5137 = vshll.u32 %v5134, 16
        %v5138 = vshrl.u32 %v5134, 16
        %v5139 = vshll.u32 %v5135, 16
        %v5140 = vshrl.u32 %v5135, 16
        %vm5141 = vc.u32 %v5133, %v5137
        %v5142 = vsel %vm5141, 1, 0
        %v5143 = vadd.s32 %v5133, %v5137
        %v5144 = vadd.s32 %v5136, %v5142
        %vm5145 = vc.u32 %v5143, %v5139
        %v5146 = vsel %vm5145, 1, 0
        %v5147 = vadd.s32 %v5143, %v5139
        %v5148 = vadd.s32 %v5144, %v5146
        %v5149 = vadd.s32 %v5148, %v5138
        %v5150 = vadd.s32 %v5149, %v5140
        %v5151 = vand.u32 %v5128, 65535
        %v5152 = vshrl.u32 %v5128, 16
        %v5153 = vand.u32 %v5123, 65535
        %v5154 = vshrl.u32 %v5123, 16
        %v5155 = vmul.u32 %v5151, %v5153
        %v5156 = vmul.u32 %v5151, %v5154
        %v5157 = vmul.u32 %v5152, %v5153
        %v5158 = vmul.u32 %v5152, %v5154
        %v5159 = vshll.u32 %v5156, 16
        %v5160 = vshrl.u32 %v5156, 16
        %v5161 = vshll.u32 %v5157, 16
        %v5162 = vshrl.u32 %v5157, 16
        %vm5163 = vc.u32 %v5155, %v5159
        %v5164 = vsel %vm5163, 1, 0
        %v5165 = vadd.s32 %v5155, %v5159
        %v5166 = vadd.s32 %v5158, %v5164
        %vm5167 = vc.u32 %v5165, %v5161
        %v5168 = vsel %vm5167, 1, 0
        %v5169 = vadd.s32 %v5165, %v5161
        %v5170 = vadd.s32 %v5166, %v5168
        %v5171 = vadd.s32 %v5170, %v5160
        %v5172 = vadd.s32 %v5171, %v5162
        %v5173 = vmul.u32 %v5128, %v5119
        %v5174 = vadd.s32 %v5150, %v5169
        %vm5175 = vc.u32 %v5150, %v5169
        %v5176 = vadd.s32 %v5172, 1
        %v5177 = vsel %vm5175, %v5176, %v5172
        %v5178 = vadd.s32 %v5173, %v5177
        %v5179 = vadd.s32 %v5178, 536870912
        %v5180 = vshrl.u32 %v5179, 30
        %v5181 = vshll.u32 %v5180, 30
        %v5182 = vsub.s32 %v5178, %v5181
        %vm5183 = vcmp.lt.s32.totalorder %v5182, 0
        %v5184 = vsub.s32 0, %v5182
        %v5185 = vsel %vm5183, %v5184, %v5182
        %v5186 = vclz %v5185
        %v5187 = vsub.s32 %v5186, 2
        %vm5188 = vcmp.gt.s32.totalorder 0, %v5187
        %v5189 = vsel %vm5188, 0, %v5187
        %v5190 = vsub.s32 32, %v5189
        %v5191 = vshll.u32 %v5182, %v5189
        %v5192 = vshrl.u32 %v5174, %v5190
        %v5193 = vor.u32 %v5191, %v5192
        %v5194 = vsub.s32 4294967266, %v5189
        %v5195 = vadd.s32 %v5194, 127
        %v5196 = vshll.u32 %v5195, 23
        %v5197 = vor.u32 4788187, %v5196
        %v5198 = vand.u32 2147483647, %v5197
        %v5200 = vcvt.s32.f32 %v5193
        %v5201 = vmul.f32 %v5200, %v5198
        %v5202 = vxor.u32 %v5201, 2147483648
        %v5203 = vsel %vm5082, %v5202, %v5201
        %v5204 = vsub.s32 4, %v5180
        %v5205 = vsel %vm5082, %v5204, %v5180
        %v5206 = vsel %vm5081, %v305, %v5203
        %v5207 = vsel %vm5081, 0, %v5205
        %v5208 = vmul.f32 %v5206, %v5206
        %v5209 = vmul.f32 %v5208, -0.001358992
        %v5210 = vadd.f32 %v5209, 0.041655596
        %v5211 = vmul.f32 %v5208, %v5210
        %v5212 = vadd.f32 %v5211, -0.4999988
        %v5213 = vmul.f32 %v5208, %v5212
        %v5214 = vadd.f32 1.0, %v5213
        %v5215 = vmul.f32 %v5206, %v5206
        %v5216 = vmul.f32 %v5215, -0.00019511016
        %v5217 = vadd.f32 %v5216, 0.008332121
        %v5218 = vmul.f32 %v5215, %v5217
        %v5219 = vadd.f32 %v5218, -0.16666654
        %v5220 = vmul.f32 %v5215, %v5219
        %v5221 = vadd.f32 %v5220, 1.0
        %v5222 = vmul.f32 %v5221, %v5206
        %vm5223 = vweird.f32 %v305
        %v5224 = vand.u32 %v5207, 3
        %vm5225 = vcmp.lt.s32.totalorder %v5224, 2
        %vm5226 = vcmp.eq.s32.totalorder %v5224, 0
        %v5227 = vxor.u32 %v5222, 2147483648
        %v5228 = vsel %vm5226, %v5214, %v5227
        %vm5229 = vcmp.eq.s32.totalorder %v5224, 2
        %v5230 = vxor.u32 %v5214, 2147483648
        %v5231 = vsel %vm5229, %v5230, %v5222
        %v5232 = vsel %vm5225, %v5228, %v5231
        %v5233 = vsel %vm5223, nan, %v5232
        %5234 = vst [vmem:[%s155] sm:$0xff] %v459
        %5235 = vst [vmem:[%s155 + $0x8] sm:$0xff] %v613
        %5236 = vst [vmem:[%s155 + $0x10] sm:$0xff] %v767
        %5237 = vst [vmem:[%s155 + $0x18] sm:$0xff] %v921
        %5238 = vst [vmem:[%s155 + $0x20] sm:$0xff] %v1075
        %5239 = vst [vmem:[%s155 + $0x28] sm:$0xff] %v1229
        %5240 = vst [vmem:[%s155 + $0x30] sm:$0xff] %v1383
        %5241 = vst [vmem:[%s155 + $0x38] sm:$0xff] %v1537
        %5242 = vst [vmem:[%s155 + $0x40] sm:$0xff] %v1691
        %5243 = vst [vmem:[%s155 + $0x48] sm:$0xff] %v1845
        %5244 = vst [vmem:[%s155 + $0x50] sm:$0xff] %v1999
        %5245 = vst [vmem:[%s155 + $0x58] sm:$0xff] %v2153
        %5246 = vst [vmem:[%s155 + $0x60] sm:$0xff] %v2307
        %5247 = vst [vmem:[%s155 + $0x68] sm:$0xff] %v2461
        %5248 = vst [vmem:[%s155 + $0x70] sm:$0xff] %v2615
        %5249 = vst [vmem:[%s155 + $0x78] sm:$0xff] %v2769
        %5250 = vst [vmem:[%s155 + $0x80] sm:$0xff] %v2923
        %5251 = vst [vmem:[%s155 + $0x88] sm:$0xff] %v3077
        %5252 = vst [vmem:[%s155 + $0x90] sm:$0xff] %v3231
        %5253 = vst [vmem:[%s155 + $0x98] sm:$0xff] %v3385
        %5254 = vst [vmem:[%s155 + $0xa0] sm:$0xff] %v3539
        %5255 = vst [vmem:[%s155 + $0xa8] sm:$0xff] %v3693
        %5256 = vst [vmem:[%s155 + $0xb0] sm:$0xff] %v3847
        %5257 = vst [vmem:[%s155 + $0xb8] sm:$0xff] %v4001
        %5258 = vst [vmem:[%s155 + $0xc0] sm:$0xff] %v4155
        %5259 = vst [vmem:[%s155 + $0xc8] sm:$0xff] %v4309
        %5260 = vst [vmem:[%s155 + $0xd0] sm:$0xff] %v4463
        %5261 = vst [vmem:[%s155 + $0xd8] sm:$0xff] %v4617
        %5262 = vst [vmem:[%s155 + $0xe0] sm:$0xff] %v4771
        %5263 = vst [vmem:[%s155 + $0xe8] sm:$0xff] %v4925
        %5264 = vst [vmem:[%s155 + $0xf0] sm:$0xff] %v5079
        %5265 = vst [vmem:[%s155 + $0xf8] sm:$0xff] %v5233
        %v5266 = vand.u32 2147483647, %v274
        %vm5267 = vcmp.le.f32.partialorder %v5266, 0.7853982
        %vm5268 = vcmp.lt.s32.totalorder %v274, 0
        %v5269 = vand.u32 %v274, 2139095040
        %v5270 = vshrl.u32 %v5269, 23
        %v5271 = vsub.s32 %v5270, 127
        %v5272 = vand.u32 2147483647, %v274
        %v5273 = vand.u32 %v5272, 8388607
        %v5274 = vor.u32 %v5273, 8388608
        %v5275 = vsub.s32 0, %v5274
        %v5276 = vadd.s32 %v5271, 1
        %vm5277 = vcmp.gt.s32.totalorder %v5276, 0
        %v5278 = vsel %vm5277, %v5276, 0
        %v5279 = vshrl.u32 %v5278, 5
        %v5280 = vand.u32 %v5278, 31
        %v5281 = vsub.s32 32, %v5280
        %v5282 = vshrl.u32 683565275, %v5281
        %v5283 = vshll.u32 683565275, %v5280
        %v5284 = vshrl.u32 2475754826, %v5281
        %v5285 = vor.u32 %v5283, %v5284
        %v5286 = vshll.u32 2475754826, %v5280
        %v5287 = vshrl.u32 2131351028, %v5281
        %v5288 = vor.u32 %v5286, %v5287
        %v5289 = vshll.u32 2131351028, %v5280
        %v5290 = vshrl.u32 2102212464, %v5281
        %v5291 = vor.u32 %v5289, %v5290
        %v5292 = vshll.u32 2102212464, %v5280
        %v5293 = vshrl.u32 920167782, %v5281
        %v5294 = vor.u32 %v5292, %v5293
        %v5295 = vshll.u32 920167782, %v5280
        %v5296 = vshrl.u32 1326507024, %v5281
        %v5297 = vor.u32 %v5295, %v5296
        %vm5298 = vcmp.lt.s32.totalorder %v5279, 1
        %vm5299 = vcmp.lt.s32.totalorder %v5279, 2
        %vm5300 = vcmp.lt.s32.totalorder %v5279, 3
        %vm5301 = vcmp.lt.s32.totalorder %v5279, 4
        %v5302 = vsel %vm5298, %v5282, %v5285
        %v5303 = vsel %vm5301, %v5291, 2102212464
        %v5304 = vsel %vm5300, %v5288, %v5303
        %v5305 = vsel %vm5299, %v5302, %v5304
        %v5306 = vsel %vm5298, %v5285, %v5288
        %v5307 = vsel %vm5301, %v5294, 920167782
        %v5308 = vsel %vm5300, %v5291, %v5307
        %v5309 = vsel %vm5299, %v5306, %v5308
        %v5310 = vsel %vm5298, %v5288, %v5291
        %v5311 = vsel %vm5301, %v5297, 1326507024
        %v5312 = vsel %vm5300, %v5294, %v5311
        %v5313 = vsel %vm5299, %v5310, %v5312
        %v5314 = vshll.u32 %v5274, 8
        %v5315 = vand.u32 %v5314, 65535
        %v5316 = vshrl.u32 %v5314, 16
        %v5317 = vand.u32 %v5313, 65535
        %v5318 = vshrl.u32 %v5313, 16
        %v5319 = vmul.u32 %v5315, %v5317
        %v5320 = vmul.u32 %v5315, %v5318
        %v5321 = vmul.u32 %v5316, %v5317
        %v5322 = vmul.u32 %v5316, %v5318
        %v5323 = vshll.u32 %v5320, 16
        %v5324 = vshrl.u32 %v5320, 16
        %v5325 = vshll.u32 %v5321, 16
        %v5326 = vshrl.u32 %v5321, 16
        %vm5327 = vc.u32 %v5319, %v5323
        %v5328 = vsel %vm5327, 1, 0
        %v5329 = vadd.s32 %v5319, %v5323
        %v5330 = vadd.s32 %v5322, %v5328
        %vm5331 = vc.u32 %v5329, %v5325
        %v5332 = vsel %vm5331, 1, 0
        %v5333 = vadd.s32 %v5329, %v5325
        %v5334 = vadd.s32 %v5330, %v5332
        %v5335 = vadd.s32 %v5334, %v5324
        %v5336 = vadd.s32 %v5335, %v5326
        %v5337 = vand.u32 %v5314, 65535
        %v5338 = vshrl.u32 %v5314, 16
        %v5339 = vand.u32 %v5309, 65535
        %v5340 = vshrl.u32 %v5309, 16
        %v5341 = vmul.u32 %v5337, %v5339
        %v5342 = vmul.u32 %v5337, %v5340
        %v5343 = vmul.u32 %v5338, %v5339
        %v5344 = vmul.u32 %v5338, %v5340
        %v5345 = vshll.u32 %v5342, 16
        %v5346 = vshrl.u32 %v5342, 16
        %v5347 = vshll.u32 %v5343, 16
        %v5348 = vshrl.u32 %v5343, 16
        %vm5349 = vc.u32 %v5341, %v5345
        %v5350 = vsel %vm5349, 1, 0
        %v5351 = vadd.s32 %v5341, %v5345
        %v5352 = vadd.s32 %v5344, %v5350
        %vm5353 = vc.u32 %v5351, %v5347
        %v5354 = vsel %vm5353, 1, 0
        %v5355 = vadd.s32 %v5351, %v5347
        %v5356 = vadd.s32 %v5352, %v5354
        %v5357 = vadd.s32 %v5356, %v5346
        %v5358 = vadd.s32 %v5357, %v5348
        %v5359 = vmul.u32 %v5314, %v5305
        %v5360 = vadd.s32 %v5336, %v5355
        %vm5361 = vc.u32 %v5336, %v5355
        %v5362 = vadd.s32 %v5358, 1
        %v5363 = vsel %vm5361, %v5362, %v5358
        %v5364 = vadd.s32 %v5359, %v5363
        %v5365 = vadd.s32 %v5364, 536870912
        %v5366 = vshrl.u32 %v5365, 30
        %v5367 = vshll.u32 %v5366, 30
        %v5368 = vsub.s32 %v5364, %v5367
        %vm5369 = vcmp.lt.s32.totalorder %v5368, 0
        %v5370 = vsub.s32 0, %v5368
        %v5371 = vsel %vm5369, %v5370, %v5368
        %v5372 = vclz %v5371
        %v5373 = vsub.s32 %v5372, 2
        %vm5374 = vcmp.gt.s32.totalorder 0, %v5373
        %v5375 = vsel %vm5374, 0, %v5373
        %v5376 = vsub.s32 32, %v5375
        %v5377 = vshll.u32 %v5368, %v5375
        %v5378 = vshrl.u32 %v5360, %v5376
        %v5379 = vor.u32 %v5377, %v5378
        %v5380 = vsub.s32 4294967266, %v5375
        %v5381 = vadd.s32 %v5380, 127
        %v5382 = vshll.u32 %v5381, 23
        %v5383 = vor.u32 4788187, %v5382
        %v5384 = vand.u32 2147483647, %v5383
        %v5386 = vcvt.s32.f32 %v5379
        %v5387 = vmul.f32 %v5386, %v5384
        %v5388 = vxor.u32 %v5387, 2147483648
        %v5389 = vsel %vm5268, %v5388, %v5387
        %v5390 = vsub.s32 4, %v5366
        %v5391 = vsel %vm5268, %v5390, %v5366
        %v5392 = vsel %vm5267, %v274, %v5389
        %v5393 = vsel %vm5267, 0, %v5391
        %v5394 = vmul.f32 %v5392, %v5392
        %v5395 = vmul.f32 %v5394, -0.001358992
        %v5396 = vadd.f32 %v5395, 0.041655596
        %v5397 = vmul.f32 %v5394, %v5396
        %v5398 = vadd.f32 %v5397, -0.4999988
        %v5399 = vmul.f32 %v5394, %v5398
        %v5400 = vadd.f32 1.0, %v5399
        %v5401 = vmul.f32 %v5392, %v5392
        %v5402 = vmul.f32 %v5401, -0.00019511016
        %v5403 = vadd.f32 %v5402, 0.008332121
        %v5404 = vmul.f32 %v5401, %v5403
        %v5405 = vadd.f32 %v5404, -0.16666654
        %v5406 = vmul.f32 %v5401, %v5405
        %v5407 = vadd.f32 %v5406, 1.0
        %v5408 = vmul.f32 %v5407, %v5392
        %vm5409 = vweird.f32 %v274
        %v5410 = vadd.s32 %v5393, 3
        %v5411 = vand.u32 %v5410, 3
        %vm5412 = vcmp.lt.s32.totalorder %v5411, 2
        %vm5413 = vcmp.eq.s32.totalorder %v5411, 0
        %v5414 = vxor.u32 %v5408, 2147483648
        %v5415 = vsel %vm5413, %v5400, %v5414
        %vm5416 = vcmp.eq.s32.totalorder %v5411, 2
        %v5417 = vxor.u32 %v5400, 2147483648
        %v5418 = vsel %vm5416, %v5417, %v5408
        %v5419 = vsel %vm5412, %v5415, %v5418
        %v5420 = vsel %vm5409, nan, %v5419
        %v5421 = vand.u32 2147483647, %v275
        %vm5422 = vcmp.le.f32.partialorder %v5421, 0.7853982
        %vm5423 = vcmp.lt.s32.totalorder %v275, 0
        %v5424 = vand.u32 %v275, 2139095040
        %v5425 = vshrl.u32 %v5424, 23
        %v5426 = vsub.s32 %v5425, 127
        %v5427 = vand.u32 2147483647, %v275
        %v5428 = vand.u32 %v5427, 8388607
        %v5429 = vor.u32 %v5428, 8388608
        %v5430 = vsub.s32 0, %v5429
        %v5431 = vadd.s32 %v5426, 1
        %vm5432 = vcmp.gt.s32.totalorder %v5431, 0
        %v5433 = vsel %vm5432, %v5431, 0
        %v5434 = vshrl.u32 %v5433, 5
        %v5435 = vand.u32 %v5433, 31
        %v5436 = vsub.s32 32, %v5435
        %v5437 = vshrl.u32 683565275, %v5436
        %v5438 = vshll.u32 683565275, %v5435
        %v5439 = vshrl.u32 2475754826, %v5436
        %v5440 = vor.u32 %v5438, %v5439
        %v5441 = vshll.u32 2475754826, %v5435
        %v5442 = vshrl.u32 2131351028, %v5436
        %v5443 = vor.u32 %v5441, %v5442
        %v5444 = vshll.u32 2131351028, %v5435
        %v5445 = vshrl.u32 2102212464, %v5436
        %v5446 = vor.u32 %v5444, %v5445
        %v5447 = vshll.u32 2102212464, %v5435
        %v5448 = vshrl.u32 920167782, %v5436
        %v5449 = vor.u32 %v5447, %v5448
        %v5450 = vshll.u32 920167782, %v5435
        %v5451 = vshrl.u32 1326507024, %v5436
        %v5452 = vor.u32 %v5450, %v5451
        %vm5453 = vcmp.lt.s32.totalorder %v5434, 1
        %vm5454 = vcmp.lt.s32.totalorder %v5434, 2
        %vm5455 = vcmp.lt.s32.totalorder %v5434, 3
        %vm5456 = vcmp.lt.s32.totalorder %v5434, 4
        %v5457 = vsel %vm5453, %v5437, %v5440
        %v5458 = vsel %vm5456, %v5446, 2102212464
        %v5459 = vsel %vm5455, %v5443, %v5458
        %v5460 = vsel %vm5454, %v5457, %v5459
        %v5461 = vsel %vm5453, %v5440, %v5443
        %v5462 = vsel %vm5456, %v5449, 920167782
        %v5463 = vsel %vm5455, %v5446, %v5462
        %v5464 = vsel %vm5454, %v5461, %v5463
        %v5465 = vsel %vm5453, %v5443, %v5446
        %v5466 = vsel %vm5456, %v5452, 1326507024
        %v5467 = vsel %vm5455, %v5449, %v5466
        %v5468 = vsel %vm5454, %v5465, %v5467
        %v5469 = vshll.u32 %v5429, 8
        %v5470 = vand.u32 %v5469, 65535
        %v5471 = vshrl.u32 %v5469, 16
        %v5472 = vand.u32 %v5468, 65535
        %v5473 = vshrl.u32 %v5468, 16
        %v5474 = vmul.u32 %v5470, %v5472
        %v5475 = vmul.u32 %v5470, %v5473
        %v5476 = vmul.u32 %v5471, %v5472
        %v5477 = vmul.u32 %v5471, %v5473
        %v5478 = vshll.u32 %v5475, 16
        %v5479 = vshrl.u32 %v5475, 16
        %v5480 = vshll.u32 %v5476, 16
        %v5481 = vshrl.u32 %v5476, 16
        %vm5482 = vc.u32 %v5474, %v5478
        %v5483 = vsel %vm5482, 1, 0
        %v5484 = vadd.s32 %v5474, %v5478
        %v5485 = vadd.s32 %v5477, %v5483
        %vm5486 = vc.u32 %v5484, %v5480
        %v5487 = vsel %vm5486, 1, 0
        %v5488 = vadd.s32 %v5484, %v5480
        %v5489 = vadd.s32 %v5485, %v5487
        %v5490 = vadd.s32 %v5489, %v5479
        %v5491 = vadd.s32 %v5490, %v5481
        %v5492 = vand.u32 %v5469, 65535
        %v5493 = vshrl.u32 %v5469, 16
        %v5494 = vand.u32 %v5464, 65535
        %v5495 = vshrl.u32 %v5464, 16
        %v5496 = vmul.u32 %v5492, %v5494
        %v5497 = vmul.u32 %v5492, %v5495
        %v5498 = vmul.u32 %v5493, %v5494
        %v5499 = vmul.u32 %v5493, %v5495
        %v5500 = vshll.u32 %v5497, 16
        %v5501 = vshrl.u32 %v5497, 16
        %v5502 = vshll.u32 %v5498, 16
        %v5503 = vshrl.u32 %v5498, 16
        %vm5504 = vc.u32 %v5496, %v5500
        %v5505 = vsel %vm5504, 1, 0
        %v5506 = vadd.s32 %v5496, %v5500
        %v5507 = vadd.s32 %v5499, %v5505
        %vm5508 = vc.u32 %v5506, %v5502
        %v5509 = vsel %vm5508, 1, 0
        %v5510 = vadd.s32 %v5506, %v5502
        %v5511 = vadd.s32 %v5507, %v5509
        %v5512 = vadd.s32 %v5511, %v5501
        %v5513 = vadd.s32 %v5512, %v5503
        %v5514 = vmul.u32 %v5469, %v5460
        %v5515 = vadd.s32 %v5491, %v5510
        %vm5516 = vc.u32 %v5491, %v5510
        %v5517 = vadd.s32 %v5513, 1
        %v5518 = vsel %vm5516, %v5517, %v5513
        %v5519 = vadd.s32 %v5514, %v5518
        %v5520 = vadd.s32 %v5519, 536870912
        %v5521 = vshrl.u32 %v5520, 30
        %v5522 = vshll.u32 %v5521, 30
        %v5523 = vsub.s32 %v5519, %v5522
        %vm5524 = vcmp.lt.s32.totalorder %v5523, 0
        %v5525 = vsub.s32 0, %v5523
        %v5526 = vsel %vm5524, %v5525, %v5523
        %v5527 = vclz %v5526
        %v5528 = vsub.s32 %v5527, 2
        %vm5529 = vcmp.gt.s32.totalorder 0, %v5528
        %v5530 = vsel %vm5529, 0, %v5528
        %v5531 = vsub.s32 32, %v5530
        %v5532 = vshll.u32 %v5523, %v5530
        %v5533 = vshrl.u32 %v5515, %v5531
        %v5534 = vor.u32 %v5532, %v5533
        %v5535 = vsub.s32 4294967266, %v5530
        %v5536 = vadd.s32 %v5535, 127
        %v5537 = vshll.u32 %v5536, 23
        %v5538 = vor.u32 4788187, %v5537
        %v5539 = vand.u32 2147483647, %v5538
        %v5541 = vcvt.s32.f32 %v5534
        %v5542 = vmul.f32 %v5541, %v5539
        %v5543 = vxor.u32 %v5542, 2147483648
        %v5544 = vsel %vm5423, %v5543, %v5542
        %v5545 = vsub.s32 4, %v5521
        %v5546 = vsel %vm5423, %v5545, %v5521
        %v5547 = vsel %vm5422, %v275, %v5544
        %v5548 = vsel %vm5422, 0, %v5546
        %v5549 = vmul.f32 %v5547, %v5547
        %v5550 = vmul.f32 %v5549, -0.001358992
        %v5551 = vadd.f32 %v5550, 0.041655596
        %v5552 = vmul.f32 %v5549, %v5551
        %v5553 = vadd.f32 %v5552, -0.4999988
        %v5554 = vmul.f32 %v5549, %v5553
        %v5555 = vadd.f32 1.0, %v5554
        %v5556 = vmul.f32 %v5547, %v5547
        %v5557 = vmul.f32 %v5556, -0.00019511016
        %v5558 = vadd.f32 %v5557, 0.008332121
        %v5559 = vmul.f32 %v5556, %v5558
        %v5560 = vadd.f32 %v5559, -0.16666654
        %v5561 = vmul.f32 %v5556, %v5560
        %v5562 = vadd.f32 %v5561, 1.0
        %v5563 = vmul.f32 %v5562, %v5547
        %vm5564 = vweird.f32 %v275
        %v5565 = vadd.s32 %v5548, 3
        %v5566 = vand.u32 %v5565, 3
        %vm5567 = vcmp.lt.s32.totalorder %v5566, 2
        %vm5568 = vcmp.eq.s32.totalorder %v5566, 0
        %v5569 = vxor.u32 %v5563, 2147483648
        %v5570 = vsel %vm5568, %v5555, %v5569
        %vm5571 = vcmp.eq.s32.totalorder %v5566, 2
        %v5572 = vxor.u32 %v5555, 2147483648
        %v5573 = vsel %vm5571, %v5572, %v5563
        %v5574 = vsel %vm5567, %v5570, %v5573
        %v5575 = vsel %vm5564, nan, %v5574
        %v5576 = vand.u32 2147483647, %v276
        %vm5577 = vcmp.le.f32.partialorder %v5576, 0.7853982
        %vm5578 = vcmp.lt.s32.totalorder %v276, 0
        %v5579 = vand.u32 %v276, 2139095040
        %v5580 = vshrl.u32 %v5579, 23
        %v5581 = vsub.s32 %v5580, 127
        %v5582 = vand.u32 2147483647, %v276
        %v5583 = vand.u32 %v5582, 8388607
        %v5584 = vor.u32 %v5583, 8388608
        %v5585 = vsub.s32 0, %v5584
        %v5586 = vadd.s32 %v5581, 1
        %vm5587 = vcmp.gt.s32.totalorder %v5586, 0
        %v5588 = vsel %vm5587, %v5586, 0
        %v5589 = vshrl.u32 %v5588, 5
        %v5590 = vand.u32 %v5588, 31
        %v5591 = vsub.s32 32, %v5590
        %v5592 = vshrl.u32 683565275, %v5591
        %v5593 = vshll.u32 683565275, %v5590
        %v5594 = vshrl.u32 2475754826, %v5591
        %v5595 = vor.u32 %v5593, %v5594
        %v5596 = vshll.u32 2475754826, %v5590
        %v5597 = vshrl.u32 2131351028, %v5591
        %v5598 = vor.u32 %v5596, %v5597
        %v5599 = vshll.u32 2131351028, %v5590
        %v5600 = vshrl.u32 2102212464, %v5591
        %v5601 = vor.u32 %v5599, %v5600
        %v5602 = vshll.u32 2102212464, %v5590
        %v5603 = vshrl.u32 920167782, %v5591
        %v5604 = vor.u32 %v5602, %v5603
        %v5605 = vshll.u32 920167782, %v5590
        %v5606 = vshrl.u32 1326507024, %v5591
        %v5607 = vor.u32 %v5605, %v5606
        %vm5608 = vcmp.lt.s32.totalorder %v5589, 1
        %vm5609 = vcmp.lt.s32.totalorder %v5589, 2
        %vm5610 = vcmp.lt.s32.totalorder %v5589, 3
        %vm5611 = vcmp.lt.s32.totalorder %v5589, 4
        %v5612 = vsel %vm5608, %v5592, %v5595
        %v5613 = vsel %vm5611, %v5601, 2102212464
        %v5614 = vsel %vm5610, %v5598, %v5613
        %v5615 = vsel %vm5609, %v5612, %v5614
        %v5616 = vsel %vm5608, %v5595, %v5598
        %v5617 = vsel %vm5611, %v5604, 920167782
        %v5618 = vsel %vm5610, %v5601, %v5617
        %v5619 = vsel %vm5609, %v5616, %v5618
        %v5620 = vsel %vm5608, %v5598, %v5601
        %v5621 = vsel %vm5611, %v5607, 1326507024
        %v5622 = vsel %vm5610, %v5604, %v5621
        %v5623 = vsel %vm5609, %v5620, %v5622
        %v5624 = vshll.u32 %v5584, 8
        %v5625 = vand.u32 %v5624, 65535
        %v5626 = vshrl.u32 %v5624, 16
        %v5627 = vand.u32 %v5623, 65535
        %v5628 = vshrl.u32 %v5623, 16
        %v5629 = vmul.u32 %v5625, %v5627
        %v5630 = vmul.u32 %v5625, %v5628
        %v5631 = vmul.u32 %v5626, %v5627
        %v5632 = vmul.u32 %v5626, %v5628
        %v5633 = vshll.u32 %v5630, 16
        %v5634 = vshrl.u32 %v5630, 16
        %v5635 = vshll.u32 %v5631, 16
        %v5636 = vshrl.u32 %v5631, 16
        %vm5637 = vc.u32 %v5629, %v5633
        %v5638 = vsel %vm5637, 1, 0
        %v5639 = vadd.s32 %v5629, %v5633
        %v5640 = vadd.s32 %v5632, %v5638
        %vm5641 = vc.u32 %v5639, %v5635
        %v5642 = vsel %vm5641, 1, 0
        %v5643 = vadd.s32 %v5639, %v5635
        %v5644 = vadd.s32 %v5640, %v5642
        %v5645 = vadd.s32 %v5644, %v5634
        %v5646 = vadd.s32 %v5645, %v5636
        %v5647 = vand.u32 %v5624, 65535
        %v5648 = vshrl.u32 %v5624, 16
        %v5649 = vand.u32 %v5619, 65535
        %v5650 = vshrl.u32 %v5619, 16
        %v5651 = vmul.u32 %v5647, %v5649
        %v5652 = vmul.u32 %v5647, %v5650
        %v5653 = vmul.u32 %v5648, %v5649
        %v5654 = vmul.u32 %v5648, %v5650
        %v5655 = vshll.u32 %v5652, 16
        %v5656 = vshrl.u32 %v5652, 16
        %v5657 = vshll.u32 %v5653, 16
        %v5658 = vshrl.u32 %v5653, 16
        %vm5659 = vc.u32 %v5651, %v5655
        %v5660 = vsel %vm5659, 1, 0
        %v5661 = vadd.s32 %v5651, %v5655
        %v5662 = vadd.s32 %v5654, %v5660
        %vm5663 = vc.u32 %v5661, %v5657
        %v5664 = vsel %vm5663, 1, 0
        %v5665 = vadd.s32 %v5661, %v5657
        %v5666 = vadd.s32 %v5662, %v5664
        %v5667 = vadd.s32 %v5666, %v5656
        %v5668 = vadd.s32 %v5667, %v5658
        %v5669 = vmul.u32 %v5624, %v5615
        %v5670 = vadd.s32 %v5646, %v5665
        %vm5671 = vc.u32 %v5646, %v5665
        %v5672 = vadd.s32 %v5668, 1
        %v5673 = vsel %vm5671, %v5672, %v5668
        %v5674 = vadd.s32 %v5669, %v5673
        %v5675 = vadd.s32 %v5674, 536870912
        %v5676 = vshrl.u32 %v5675, 30
        %v5677 = vshll.u32 %v5676, 30
        %v5678 = vsub.s32 %v5674, %v5677
        %vm5679 = vcmp.lt.s32.totalorder %v5678, 0
        %v5680 = vsub.s32 0, %v5678
        %v5681 = vsel %vm5679, %v5680, %v5678
        %v5682 = vclz %v5681
        %v5683 = vsub.s32 %v5682, 2
        %vm5684 = vcmp.gt.s32.totalorder 0, %v5683
        %v5685 = vsel %vm5684, 0, %v5683
        %v5686 = vsub.s32 32, %v5685
        %v5687 = vshll.u32 %v5678, %v5685
        %v5688 = vshrl.u32 %v5670, %v5686
        %v5689 = vor.u32 %v5687, %v5688
        %v5690 = vsub.s32 4294967266, %v5685
        %v5691 = vadd.s32 %v5690, 127
        %v5692 = vshll.u32 %v5691, 23
        %v5693 = vor.u32 4788187, %v5692
        %v5694 = vand.u32 2147483647, %v5693
        %v5696 = vcvt.s32.f32 %v5689
        %v5697 = vmul.f32 %v5696, %v5694
        %v5698 = vxor.u32 %v5697, 2147483648
        %v5699 = vsel %vm5578, %v5698, %v5697
        %v5700 = vsub.s32 4, %v5676
        %v5701 = vsel %vm5578, %v5700, %v5676
        %v5702 = vsel %vm5577, %v276, %v5699
        %v5703 = vsel %vm5577, 0, %v5701
        %v5704 = vmul.f32 %v5702, %v5702
        %v5705 = vmul.f32 %v5704, -0.001358992
        %v5706 = vadd.f32 %v5705, 0.041655596
        %v5707 = vmul.f32 %v5704, %v5706
        %v5708 = vadd.f32 %v5707, -0.4999988
        %v5709 = vmul.f32 %v5704, %v5708
        %v5710 = vadd.f32 1.0, %v5709
        %v5711 = vmul.f32 %v5702, %v5702
        %v5712 = vmul.f32 %v5711, -0.00019511016
        %v5713 = vadd.f32 %v5712, 0.008332121
        %v5714 = vmul.f32 %v5711, %v5713
        %v5715 = vadd.f32 %v5714, -0.16666654
        %v5716 = vmul.f32 %v5711, %v5715
        %v5717 = vadd.f32 %v5716, 1.0
        %v5718 = vmul.f32 %v5717, %v5702
        %vm5719 = vweird.f32 %v276
        %v5720 = vadd.s32 %v5703, 3
        %v5721 = vand.u32 %v5720, 3
        %vm5722 = vcmp.lt.s32.totalorder %v5721, 2
        %vm5723 = vcmp.eq.s32.totalorder %v5721, 0
        %v5724 = vxor.u32 %v5718, 2147483648
        %v5725 = vsel %vm5723, %v5710, %v5724
        %vm5726 = vcmp.eq.s32.totalorder %v5721, 2
        %v5727 = vxor.u32 %v5710, 2147483648
        %v5728 = vsel %vm5726, %v5727, %v5718
        %v5729 = vsel %vm5722, %v5725, %v5728
        %v5730 = vsel %vm5719, nan, %v5729
        %v5731 = vand.u32 2147483647, %v277
        %vm5732 = vcmp.le.f32.partialorder %v5731, 0.7853982
        %vm5733 = vcmp.lt.s32.totalorder %v277, 0
        %v5734 = vand.u32 %v277, 2139095040
        %v5735 = vshrl.u32 %v5734, 23
        %v5736 = vsub.s32 %v5735, 127
        %v5737 = vand.u32 2147483647, %v277
        %v5738 = vand.u32 %v5737, 8388607
        %v5739 = vor.u32 %v5738, 8388608
        %v5740 = vsub.s32 0, %v5739
        %v5741 = vadd.s32 %v5736, 1
        %vm5742 = vcmp.gt.s32.totalorder %v5741, 0
        %v5743 = vsel %vm5742, %v5741, 0
        %v5744 = vshrl.u32 %v5743, 5
        %v5745 = vand.u32 %v5743, 31
        %v5746 = vsub.s32 32, %v5745
        %v5747 = vshrl.u32 683565275, %v5746
        %v5748 = vshll.u32 683565275, %v5745
        %v5749 = vshrl.u32 2475754826, %v5746
        %v5750 = vor.u32 %v5748, %v5749
        %v5751 = vshll.u32 2475754826, %v5745
        %v5752 = vshrl.u32 2131351028, %v5746
        %v5753 = vor.u32 %v5751, %v5752
        %v5754 = vshll.u32 2131351028, %v5745
        %v5755 = vshrl.u32 2102212464, %v5746
        %v5756 = vor.u32 %v5754, %v5755
        %v5757 = vshll.u32 2102212464, %v5745
        %v5758 = vshrl.u32 920167782, %v5746
        %v5759 = vor.u32 %v5757, %v5758
        %v5760 = vshll.u32 920167782, %v5745
        %v5761 = vshrl.u32 1326507024, %v5746
        %v5762 = vor.u32 %v5760, %v5761
        %vm5763 = vcmp.lt.s32.totalorder %v5744, 1
        %vm5764 = vcmp.lt.s32.totalorder %v5744, 2
        %vm5765 = vcmp.lt.s32.totalorder %v5744, 3
        %vm5766 = vcmp.lt.s32.totalorder %v5744, 4
        %v5767 = vsel %vm5763, %v5747, %v5750
        %v5768 = vsel %vm5766, %v5756, 2102212464
        %v5769 = vsel %vm5765, %v5753, %v5768
        %v5770 = vsel %vm5764, %v5767, %v5769
        %v5771 = vsel %vm5763, %v5750, %v5753
        %v5772 = vsel %vm5766, %v5759, 920167782
        %v5773 = vsel %vm5765, %v5756, %v5772
        %v5774 = vsel %vm5764, %v5771, %v5773
        %v5775 = vsel %vm5763, %v5753, %v5756
        %v5776 = vsel %vm5766, %v5762, 1326507024
        %v5777 = vsel %vm5765, %v5759, %v5776
        %v5778 = vsel %vm5764, %v5775, %v5777
        %v5779 = vshll.u32 %v5739, 8
        %v5780 = vand.u32 %v5779, 65535
        %v5781 = vshrl.u32 %v5779, 16
        %v5782 = vand.u32 %v5778, 65535
        %v5783 = vshrl.u32 %v5778, 16
        %v5784 = vmul.u32 %v5780, %v5782
        %v5785 = vmul.u32 %v5780, %v5783
        %v5786 = vmul.u32 %v5781, %v5782
        %v5787 = vmul.u32 %v5781, %v5783
        %v5788 = vshll.u32 %v5785, 16
        %v5789 = vshrl.u32 %v5785, 16
        %v5790 = vshll.u32 %v5786, 16
        %v5791 = vshrl.u32 %v5786, 16
        %vm5792 = vc.u32 %v5784, %v5788
        %v5793 = vsel %vm5792, 1, 0
        %v5794 = vadd.s32 %v5784, %v5788
        %v5795 = vadd.s32 %v5787, %v5793
        %vm5796 = vc.u32 %v5794, %v5790
        %v5797 = vsel %vm5796, 1, 0
        %v5798 = vadd.s32 %v5794, %v5790
        %v5799 = vadd.s32 %v5795, %v5797
        %v5800 = vadd.s32 %v5799, %v5789
        %v5801 = vadd.s32 %v5800, %v5791
        %v5802 = vand.u32 %v5779, 65535
        %v5803 = vshrl.u32 %v5779, 16
        %v5804 = vand.u32 %v5774, 65535
        %v5805 = vshrl.u32 %v5774, 16
        %v5806 = vmul.u32 %v5802, %v5804
        %v5807 = vmul.u32 %v5802, %v5805
        %v5808 = vmul.u32 %v5803, %v5804
        %v5809 = vmul.u32 %v5803, %v5805
        %v5810 = vshll.u32 %v5807, 16
        %v5811 = vshrl.u32 %v5807, 16
        %v5812 = vshll.u32 %v5808, 16
        %v5813 = vshrl.u32 %v5808, 16
        %vm5814 = vc.u32 %v5806, %v5810
        %v5815 = vsel %vm5814, 1, 0
        %v5816 = vadd.s32 %v5806, %v5810
        %v5817 = vadd.s32 %v5809, %v5815
        %vm5818 = vc.u32 %v5816, %v5812
        %v5819 = vsel %vm5818, 1, 0
        %v5820 = vadd.s32 %v5816, %v5812
        %v5821 = vadd.s32 %v5817, %v5819
        %v5822 = vadd.s32 %v5821, %v5811
        %v5823 = vadd.s32 %v5822, %v5813
        %v5824 = vmul.u32 %v5779, %v5770
        %v5825 = vadd.s32 %v5801, %v5820
        %vm5826 = vc.u32 %v5801, %v5820
        %v5827 = vadd.s32 %v5823, 1
        %v5828 = vsel %vm5826, %v5827, %v5823
        %v5829 = vadd.s32 %v5824, %v5828
        %v5830 = vadd.s32 %v5829, 536870912
        %v5831 = vshrl.u32 %v5830, 30
        %v5832 = vshll.u32 %v5831, 30
        %v5833 = vsub.s32 %v5829, %v5832
        %vm5834 = vcmp.lt.s32.totalorder %v5833, 0
        %v5835 = vsub.s32 0, %v5833
        %v5836 = vsel %vm5834, %v5835, %v5833
        %v5837 = vclz %v5836
        %v5838 = vsub.s32 %v5837, 2
        %vm5839 = vcmp.gt.s32.totalorder 0, %v5838
        %v5840 = vsel %vm5839, 0, %v5838
        %v5841 = vsub.s32 32, %v5840
        %v5842 = vshll.u32 %v5833, %v5840
        %v5843 = vshrl.u32 %v5825, %v5841
        %v5844 = vor.u32 %v5842, %v5843
        %v5845 = vsub.s32 4294967266, %v5840
        %v5846 = vadd.s32 %v5845, 127
        %v5847 = vshll.u32 %v5846, 23
        %v5848 = vor.u32 4788187, %v5847
        %v5849 = vand.u32 2147483647, %v5848
        %v5851 = vcvt.s32.f32 %v5844
        %v5852 = vmul.f32 %v5851, %v5849
        %v5853 = vxor.u32 %v5852, 2147483648
        %v5854 = vsel %vm5733, %v5853, %v5852
        %v5855 = vsub.s32 4, %v5831
        %v5856 = vsel %vm5733, %v5855, %v5831
        %v5857 = vsel %vm5732, %v277, %v5854
        %v5858 = vsel %vm5732, 0, %v5856
        %v5859 = vmul.f32 %v5857, %v5857
        %v5860 = vmul.f32 %v5859, -0.001358992
        %v5861 = vadd.f32 %v5860, 0.041655596
        %v5862 = vmul.f32 %v5859, %v5861
        %v5863 = vadd.f32 %v5862, -0.4999988
        %v5864 = vmul.f32 %v5859, %v5863
        %v5865 = vadd.f32 1.0, %v5864
        %v5866 = vmul.f32 %v5857, %v5857
        %v5867 = vmul.f32 %v5866, -0.00019511016
        %v5868 = vadd.f32 %v5867, 0.008332121
        %v5869 = vmul.f32 %v5866, %v5868
        %v5870 = vadd.f32 %v5869, -0.16666654
        %v5871 = vmul.f32 %v5866, %v5870
        %v5872 = vadd.f32 %v5871, 1.0
        %v5873 = vmul.f32 %v5872, %v5857
        %vm5874 = vweird.f32 %v277
        %v5875 = vadd.s32 %v5858, 3
        %v5876 = vand.u32 %v5875, 3
        %vm5877 = vcmp.lt.s32.totalorder %v5876, 2
        %vm5878 = vcmp.eq.s32.totalorder %v5876, 0
        %v5879 = vxor.u32 %v5873, 2147483648
        %v5880 = vsel %vm5878, %v5865, %v5879
        %vm5881 = vcmp.eq.s32.totalorder %v5876, 2
        %v5882 = vxor.u32 %v5865, 2147483648
        %v5883 = vsel %vm5881, %v5882, %v5873
        %v5884 = vsel %vm5877, %v5880, %v5883
        %v5885 = vsel %vm5874, nan, %v5884
        %v5886 = vand.u32 2147483647, %v278
        %vm5887 = vcmp.le.f32.partialorder %v5886, 0.7853982
        %vm5888 = vcmp.lt.s32.totalorder %v278, 0
        %v5889 = vand.u32 %v278, 2139095040
        %v5890 = vshrl.u32 %v5889, 23
        %v5891 = vsub.s32 %v5890, 127
        %v5892 = vand.u32 2147483647, %v278
        %v5893 = vand.u32 %v5892, 8388607
        %v5894 = vor.u32 %v5893, 8388608
        %v5895 = vsub.s32 0, %v5894
        %v5896 = vadd.s32 %v5891, 1
        %vm5897 = vcmp.gt.s32.totalorder %v5896, 0
        %v5898 = vsel %vm5897, %v5896, 0
        %v5899 = vshrl.u32 %v5898, 5
        %v5900 = vand.u32 %v5898, 31
        %v5901 = vsub.s32 32, %v5900
        %v5902 = vshrl.u32 683565275, %v5901
        %v5903 = vshll.u32 683565275, %v5900
        %v5904 = vshrl.u32 2475754826, %v5901
        %v5905 = vor.u32 %v5903, %v5904
        %v5906 = vshll.u32 2475754826, %v5900
        %v5907 = vshrl.u32 2131351028, %v5901
        %v5908 = vor.u32 %v5906, %v5907
        %v5909 = vshll.u32 2131351028, %v5900
        %v5910 = vshrl.u32 2102212464, %v5901
        %v5911 = vor.u32 %v5909, %v5910
        %v5912 = vshll.u32 2102212464, %v5900
        %v5913 = vshrl.u32 920167782, %v5901
        %v5914 = vor.u32 %v5912, %v5913
        %v5915 = vshll.u32 920167782, %v5900
        %v5916 = vshrl.u32 1326507024, %v5901
        %v5917 = vor.u32 %v5915, %v5916
        %vm5918 = vcmp.lt.s32.totalorder %v5899, 1
        %vm5919 = vcmp.lt.s32.totalorder %v5899, 2
        %vm5920 = vcmp.lt.s32.totalorder %v5899, 3
        %vm5921 = vcmp.lt.s32.totalorder %v5899, 4
        %v5922 = vsel %vm5918, %v5902, %v5905
        %v5923 = vsel %vm5921, %v5911, 2102212464
        %v5924 = vsel %vm5920, %v5908, %v5923
        %v5925 = vsel %vm5919, %v5922, %v5924
        %v5926 = vsel %vm5918, %v5905, %v5908
        %v5927 = vsel %vm5921, %v5914, 920167782
        %v5928 = vsel %vm5920, %v5911, %v5927
        %v5929 = vsel %vm5919, %v5926, %v5928
        %v5930 = vsel %vm5918, %v5908, %v5911
        %v5931 = vsel %vm5921, %v5917, 1326507024
        %v5932 = vsel %vm5920, %v5914, %v5931
        %v5933 = vsel %vm5919, %v5930, %v5932
        %v5934 = vshll.u32 %v5894, 8
        %v5935 = vand.u32 %v5934, 65535
        %v5936 = vshrl.u32 %v5934, 16
        %v5937 = vand.u32 %v5933, 65535
        %v5938 = vshrl.u32 %v5933, 16
        %v5939 = vmul.u32 %v5935, %v5937
        %v5940 = vmul.u32 %v5935, %v5938
        %v5941 = vmul.u32 %v5936, %v5937
        %v5942 = vmul.u32 %v5936, %v5938
        %v5943 = vshll.u32 %v5940, 16
        %v5944 = vshrl.u32 %v5940, 16
        %v5945 = vshll.u32 %v5941, 16
        %v5946 = vshrl.u32 %v5941, 16
        %vm5947 = vc.u32 %v5939, %v5943
        %v5948 = vsel %vm5947, 1, 0
        %v5949 = vadd.s32 %v5939, %v5943
        %v5950 = vadd.s32 %v5942, %v5948
        %vm5951 = vc.u32 %v5949, %v5945
        %v5952 = vsel %vm5951, 1, 0
        %v5953 = vadd.s32 %v5949, %v5945
        %v5954 = vadd.s32 %v5950, %v5952
        %v5955 = vadd.s32 %v5954, %v5944
        %v5956 = vadd.s32 %v5955, %v5946
        %v5957 = vand.u32 %v5934, 65535
        %v5958 = vshrl.u32 %v5934, 16
        %v5959 = vand.u32 %v5929, 65535
        %v5960 = vshrl.u32 %v5929, 16
        %v5961 = vmul.u32 %v5957, %v5959
        %v5962 = vmul.u32 %v5957, %v5960
        %v5963 = vmul.u32 %v5958, %v5959
        %v5964 = vmul.u32 %v5958, %v5960
        %v5965 = vshll.u32 %v5962, 16
        %v5966 = vshrl.u32 %v5962, 16
        %v5967 = vshll.u32 %v5963, 16
        %v5968 = vshrl.u32 %v5963, 16
        %vm5969 = vc.u32 %v5961, %v5965
        %v5970 = vsel %vm5969, 1, 0
        %v5971 = vadd.s32 %v5961, %v5965
        %v5972 = vadd.s32 %v5964, %v5970
        %vm5973 = vc.u32 %v5971, %v5967
        %v5974 = vsel %vm5973, 1, 0
        %v5975 = vadd.s32 %v5971, %v5967
        %v5976 = vadd.s32 %v5972, %v5974
        %v5977 = vadd.s32 %v5976, %v5966
        %v5978 = vadd.s32 %v5977, %v5968
        %v5979 = vmul.u32 %v5934, %v5925
        %v5980 = vadd.s32 %v5956, %v5975
        %vm5981 = vc.u32 %v5956, %v5975
        %v5982 = vadd.s32 %v5978, 1
        %v5983 = vsel %vm5981, %v5982, %v5978
        %v5984 = vadd.s32 %v5979, %v5983
        %v5985 = vadd.s32 %v5984, 536870912
        %v5986 = vshrl.u32 %v5985, 30
        %v5987 = vshll.u32 %v5986, 30
        %v5988 = vsub.s32 %v5984, %v5987
        %vm5989 = vcmp.lt.s32.totalorder %v5988, 0
        %v5990 = vsub.s32 0, %v5988
        %v5991 = vsel %vm5989, %v5990, %v5988
        %v5992 = vclz %v5991
        %v5993 = vsub.s32 %v5992, 2
        %vm5994 = vcmp.gt.s32.totalorder 0, %v5993
        %v5995 = vsel %vm5994, 0, %v5993
        %v5996 = vsub.s32 32, %v5995
        %v5997 = vshll.u32 %v5988, %v5995
        %v5998 = vshrl.u32 %v5980, %v5996
        %v5999 = vor.u32 %v5997, %v5998
        %v6000 = vsub.s32 4294967266, %v5995
        %v6001 = vadd.s32 %v6000, 127
        %v6002 = vshll.u32 %v6001, 23
        %v6003 = vor.u32 4788187, %v6002
        %v6004 = vand.u32 2147483647, %v6003
        %v6006 = vcvt.s32.f32 %v5999
        %v6007 = vmul.f32 %v6006, %v6004
        %v6008 = vxor.u32 %v6007, 2147483648
        %v6009 = vsel %vm5888, %v6008, %v6007
        %v6010 = vsub.s32 4, %v5986
        %v6011 = vsel %vm5888, %v6010, %v5986
        %v6012 = vsel %vm5887, %v278, %v6009
        %v6013 = vsel %vm5887, 0, %v6011
        %v6014 = vmul.f32 %v6012, %v6012
        %v6015 = vmul.f32 %v6014, -0.001358992
        %v6016 = vadd.f32 %v6015, 0.041655596
        %v6017 = vmul.f32 %v6014, %v6016
        %v6018 = vadd.f32 %v6017, -0.4999988
        %v6019 = vmul.f32 %v6014, %v6018
        %v6020 = vadd.f32 1.0, %v6019
        %v6021 = vmul.f32 %v6012, %v6012
        %v6022 = vmul.f32 %v6021, -0.00019511016
        %v6023 = vadd.f32 %v6022, 0.008332121
        %v6024 = vmul.f32 %v6021, %v6023
        %v6025 = vadd.f32 %v6024, -0.16666654
        %v6026 = vmul.f32 %v6021, %v6025
        %v6027 = vadd.f32 %v6026, 1.0
        %v6028 = vmul.f32 %v6027, %v6012
        %vm6029 = vweird.f32 %v278
        %v6030 = vadd.s32 %v6013, 3
        %v6031 = vand.u32 %v6030, 3
        %vm6032 = vcmp.lt.s32.totalorder %v6031, 2
        %vm6033 = vcmp.eq.s32.totalorder %v6031, 0
        %v6034 = vxor.u32 %v6028, 2147483648
        %v6035 = vsel %vm6033, %v6020, %v6034
        %vm6036 = vcmp.eq.s32.totalorder %v6031, 2
        %v6037 = vxor.u32 %v6020, 2147483648
        %v6038 = vsel %vm6036, %v6037, %v6028
        %v6039 = vsel %vm6032, %v6035, %v6038
        %v6040 = vsel %vm6029, nan, %v6039
        %v6041 = vand.u32 2147483647, %v279
        %vm6042 = vcmp.le.f32.partialorder %v6041, 0.7853982
        %vm6043 = vcmp.lt.s32.totalorder %v279, 0
        %v6044 = vand.u32 %v279, 2139095040
        %v6045 = vshrl.u32 %v6044, 23
        %v6046 = vsub.s32 %v6045, 127
        %v6047 = vand.u32 2147483647, %v279
        %v6048 = vand.u32 %v6047, 8388607
        %v6049 = vor.u32 %v6048, 8388608
        %v6050 = vsub.s32 0, %v6049
        %v6051 = vadd.s32 %v6046, 1
        %vm6052 = vcmp.gt.s32.totalorder %v6051, 0
        %v6053 = vsel %vm6052, %v6051, 0
        %v6054 = vshrl.u32 %v6053, 5
        %v6055 = vand.u32 %v6053, 31
        %v6056 = vsub.s32 32, %v6055
        %v6057 = vshrl.u32 683565275, %v6056
        %v6058 = vshll.u32 683565275, %v6055
        %v6059 = vshrl.u32 2475754826, %v6056
        %v6060 = vor.u32 %v6058, %v6059
        %v6061 = vshll.u32 2475754826, %v6055
        %v6062 = vshrl.u32 2131351028, %v6056
        %v6063 = vor.u32 %v6061, %v6062
        %v6064 = vshll.u32 2131351028, %v6055
        %v6065 = vshrl.u32 2102212464, %v6056
        %v6066 = vor.u32 %v6064, %v6065
        %v6067 = vshll.u32 2102212464, %v6055
        %v6068 = vshrl.u32 920167782, %v6056
        %v6069 = vor.u32 %v6067, %v6068
        %v6070 = vshll.u32 920167782, %v6055
        %v6071 = vshrl.u32 1326507024, %v6056
        %v6072 = vor.u32 %v6070, %v6071
        %vm6073 = vcmp.lt.s32.totalorder %v6054, 1
        %vm6074 = vcmp.lt.s32.totalorder %v6054, 2
        %vm6075 = vcmp.lt.s32.totalorder %v6054, 3
        %vm6076 = vcmp.lt.s32.totalorder %v6054, 4
        %v6077 = vsel %vm6073, %v6057, %v6060
        %v6078 = vsel %vm6076, %v6066, 2102212464
        %v6079 = vsel %vm6075, %v6063, %v6078
        %v6080 = vsel %vm6074, %v6077, %v6079
        %v6081 = vsel %vm6073, %v6060, %v6063
        %v6082 = vsel %vm6076, %v6069, 920167782
        %v6083 = vsel %vm6075, %v6066, %v6082
        %v6084 = vsel %vm6074, %v6081, %v6083
        %v6085 = vsel %vm6073, %v6063, %v6066
        %v6086 = vsel %vm6076, %v6072, 1326507024
        %v6087 = vsel %vm6075, %v6069, %v6086
        %v6088 = vsel %vm6074, %v6085, %v6087
        %v6089 = vshll.u32 %v6049, 8
        %v6090 = vand.u32 %v6089, 65535
        %v6091 = vshrl.u32 %v6089, 16
        %v6092 = vand.u32 %v6088, 65535
        %v6093 = vshrl.u32 %v6088, 16
        %v6094 = vmul.u32 %v6090, %v6092
        %v6095 = vmul.u32 %v6090, %v6093
        %v6096 = vmul.u32 %v6091, %v6092
        %v6097 = vmul.u32 %v6091, %v6093
        %v6098 = vshll.u32 %v6095, 16
        %v6099 = vshrl.u32 %v6095, 16
        %v6100 = vshll.u32 %v6096, 16
        %v6101 = vshrl.u32 %v6096, 16
        %vm6102 = vc.u32 %v6094, %v6098
        %v6103 = vsel %vm6102, 1, 0
        %v6104 = vadd.s32 %v6094, %v6098
        %v6105 = vadd.s32 %v6097, %v6103
        %vm6106 = vc.u32 %v6104, %v6100
        %v6107 = vsel %vm6106, 1, 0
        %v6108 = vadd.s32 %v6104, %v6100
        %v6109 = vadd.s32 %v6105, %v6107
        %v6110 = vadd.s32 %v6109, %v6099
        %v6111 = vadd.s32 %v6110, %v6101
        %v6112 = vand.u32 %v6089, 65535
        %v6113 = vshrl.u32 %v6089, 16
        %v6114 = vand.u32 %v6084, 65535
        %v6115 = vshrl.u32 %v6084, 16
        %v6116 = vmul.u32 %v6112, %v6114
        %v6117 = vmul.u32 %v6112, %v6115
        %v6118 = vmul.u32 %v6113, %v6114
        %v6119 = vmul.u32 %v6113, %v6115
        %v6120 = vshll.u32 %v6117, 16
        %v6121 = vshrl.u32 %v6117, 16
        %v6122 = vshll.u32 %v6118, 16
        %v6123 = vshrl.u32 %v6118, 16
        %vm6124 = vc.u32 %v6116, %v6120
        %v6125 = vsel %vm6124, 1, 0
        %v6126 = vadd.s32 %v6116, %v6120
        %v6127 = vadd.s32 %v6119, %v6125
        %vm6128 = vc.u32 %v6126, %v6122
        %v6129 = vsel %vm6128, 1, 0
        %v6130 = vadd.s32 %v6126, %v6122
        %v6131 = vadd.s32 %v6127, %v6129
        %v6132 = vadd.s32 %v6131, %v6121
        %v6133 = vadd.s32 %v6132, %v6123
        %v6134 = vmul.u32 %v6089, %v6080
        %v6135 = vadd.s32 %v6111, %v6130
        %vm6136 = vc.u32 %v6111, %v6130
        %v6137 = vadd.s32 %v6133, 1
        %v6138 = vsel %vm6136, %v6137, %v6133
        %v6139 = vadd.s32 %v6134, %v6138
        %v6140 = vadd.s32 %v6139, 536870912
        %v6141 = vshrl.u32 %v6140, 30
        %v6142 = vshll.u32 %v6141, 30
        %v6143 = vsub.s32 %v6139, %v6142
        %vm6144 = vcmp.lt.s32.totalorder %v6143, 0
        %v6145 = vsub.s32 0, %v6143
        %v6146 = vsel %vm6144, %v6145, %v6143
        %v6147 = vclz %v6146
        %v6148 = vsub.s32 %v6147, 2
        %vm6149 = vcmp.gt.s32.totalorder 0, %v6148
        %v6150 = vsel %vm6149, 0, %v6148
        %v6151 = vsub.s32 32, %v6150
        %v6152 = vshll.u32 %v6143, %v6150
        %v6153 = vshrl.u32 %v6135, %v6151
        %v6154 = vor.u32 %v6152, %v6153
        %v6155 = vsub.s32 4294967266, %v6150
        %v6156 = vadd.s32 %v6155, 127
        %v6157 = vshll.u32 %v6156, 23
        %v6158 = vor.u32 4788187, %v6157
        %v6159 = vand.u32 2147483647, %v6158
        %v6161 = vcvt.s32.f32 %v6154
        %v6162 = vmul.f32 %v6161, %v6159
        %v6163 = vxor.u32 %v6162, 2147483648
        %v6164 = vsel %vm6043, %v6163, %v6162
        %v6165 = vsub.s32 4, %v6141
        %v6166 = vsel %vm6043, %v6165, %v6141
        %v6167 = vsel %vm6042, %v279, %v6164
        %v6168 = vsel %vm6042, 0, %v6166
        %v6169 = vmul.f32 %v6167, %v6167
        %v6170 = vmul.f32 %v6169, -0.001358992
        %v6171 = vadd.f32 %v6170, 0.041655596
        %v6172 = vmul.f32 %v6169, %v6171
        %v6173 = vadd.f32 %v6172, -0.4999988
        %v6174 = vmul.f32 %v6169, %v6173
        %v6175 = vadd.f32 1.0, %v6174
        %v6176 = vmul.f32 %v6167, %v6167
        %v6177 = vmul.f32 %v6176, -0.00019511016
        %v6178 = vadd.f32 %v6177, 0.008332121
        %v6179 = vmul.f32 %v6176, %v6178
        %v6180 = vadd.f32 %v6179, -0.16666654
        %v6181 = vmul.f32 %v6176, %v6180
        %v6182 = vadd.f32 %v6181, 1.0
        %v6183 = vmul.f32 %v6182, %v6167
        %vm6184 = vweird.f32 %v279
        %v6185 = vadd.s32 %v6168, 3
        %v6186 = vand.u32 %v6185, 3
        %vm6187 = vcmp.lt.s32.totalorder %v6186, 2
        %vm6188 = vcmp.eq.s32.totalorder %v6186, 0
        %v6189 = vxor.u32 %v6183, 2147483648
        %v6190 = vsel %vm6188, %v6175, %v6189
        %vm6191 = vcmp.eq.s32.totalorder %v6186, 2
        %v6192 = vxor.u32 %v6175, 2147483648
        %v6193 = vsel %vm6191, %v6192, %v6183
        %v6194 = vsel %vm6187, %v6190, %v6193
        %v6195 = vsel %vm6184, nan, %v6194
        %v6196 = vand.u32 2147483647, %v280
        %vm6197 = vcmp.le.f32.partialorder %v6196, 0.7853982
        %vm6198 = vcmp.lt.s32.totalorder %v280, 0
        %v6199 = vand.u32 %v280, 2139095040
        %v6200 = vshrl.u32 %v6199, 23
        %v6201 = vsub.s32 %v6200, 127
        %v6202 = vand.u32 2147483647, %v280
        %v6203 = vand.u32 %v6202, 8388607
        %v6204 = vor.u32 %v6203, 8388608
        %v6205 = vsub.s32 0, %v6204
        %v6206 = vadd.s32 %v6201, 1
        %vm6207 = vcmp.gt.s32.totalorder %v6206, 0
        %v6208 = vsel %vm6207, %v6206, 0
        %v6209 = vshrl.u32 %v6208, 5
        %v6210 = vand.u32 %v6208, 31
        %v6211 = vsub.s32 32, %v6210
        %v6212 = vshrl.u32 683565275, %v6211
        %v6213 = vshll.u32 683565275, %v6210
        %v6214 = vshrl.u32 2475754826, %v6211
        %v6215 = vor.u32 %v6213, %v6214
        %v6216 = vshll.u32 2475754826, %v6210
        %v6217 = vshrl.u32 2131351028, %v6211
        %v6218 = vor.u32 %v6216, %v6217
        %v6219 = vshll.u32 2131351028, %v6210
        %v6220 = vshrl.u32 2102212464, %v6211
        %v6221 = vor.u32 %v6219, %v6220
        %v6222 = vshll.u32 2102212464, %v6210
        %v6223 = vshrl.u32 920167782, %v6211
        %v6224 = vor.u32 %v6222, %v6223
        %v6225 = vshll.u32 920167782, %v6210
        %v6226 = vshrl.u32 1326507024, %v6211
        %v6227 = vor.u32 %v6225, %v6226
        %vm6228 = vcmp.lt.s32.totalorder %v6209, 1
        %vm6229 = vcmp.lt.s32.totalorder %v6209, 2
        %vm6230 = vcmp.lt.s32.totalorder %v6209, 3
        %vm6231 = vcmp.lt.s32.totalorder %v6209, 4
        %v6232 = vsel %vm6228, %v6212, %v6215
        %v6233 = vsel %vm6231, %v6221, 2102212464
        %v6234 = vsel %vm6230, %v6218, %v6233
        %v6235 = vsel %vm6229, %v6232, %v6234
        %v6236 = vsel %vm6228, %v6215, %v6218
        %v6237 = vsel %vm6231, %v6224, 920167782
        %v6238 = vsel %vm6230, %v6221, %v6237
        %v6239 = vsel %vm6229, %v6236, %v6238
        %v6240 = vsel %vm6228, %v6218, %v6221
        %v6241 = vsel %vm6231, %v6227, 1326507024
        %v6242 = vsel %vm6230, %v6224, %v6241
        %v6243 = vsel %vm6229, %v6240, %v6242
        %v6244 = vshll.u32 %v6204, 8
        %v6245 = vand.u32 %v6244, 65535
        %v6246 = vshrl.u32 %v6244, 16
        %v6247 = vand.u32 %v6243, 65535
        %v6248 = vshrl.u32 %v6243, 16
        %v6249 = vmul.u32 %v6245, %v6247
        %v6250 = vmul.u32 %v6245, %v6248
        %v6251 = vmul.u32 %v6246, %v6247
        %v6252 = vmul.u32 %v6246, %v6248
        %v6253 = vshll.u32 %v6250, 16
        %v6254 = vshrl.u32 %v6250, 16
        %v6255 = vshll.u32 %v6251, 16
        %v6256 = vshrl.u32 %v6251, 16
        %vm6257 = vc.u32 %v6249, %v6253
        %v6258 = vsel %vm6257, 1, 0
        %v6259 = vadd.s32 %v6249, %v6253
        %v6260 = vadd.s32 %v6252, %v6258
        %vm6261 = vc.u32 %v6259, %v6255
        %v6262 = vsel %vm6261, 1, 0
        %v6263 = vadd.s32 %v6259, %v6255
        %v6264 = vadd.s32 %v6260, %v6262
        %v6265 = vadd.s32 %v6264, %v6254
        %v6266 = vadd.s32 %v6265, %v6256
        %v6267 = vand.u32 %v6244, 65535
        %v6268 = vshrl.u32 %v6244, 16
        %v6269 = vand.u32 %v6239, 65535
        %v6270 = vshrl.u32 %v6239, 16
        %v6271 = vmul.u32 %v6267, %v6269
        %v6272 = vmul.u32 %v6267, %v6270
        %v6273 = vmul.u32 %v6268, %v6269
        %v6274 = vmul.u32 %v6268, %v6270
        %v6275 = vshll.u32 %v6272, 16
        %v6276 = vshrl.u32 %v6272, 16
        %v6277 = vshll.u32 %v6273, 16
        %v6278 = vshrl.u32 %v6273, 16
        %vm6279 = vc.u32 %v6271, %v6275
        %v6280 = vsel %vm6279, 1, 0
        %v6281 = vadd.s32 %v6271, %v6275
        %v6282 = vadd.s32 %v6274, %v6280
        %vm6283 = vc.u32 %v6281, %v6277
        %v6284 = vsel %vm6283, 1, 0
        %v6285 = vadd.s32 %v6281, %v6277
        %v6286 = vadd.s32 %v6282, %v6284
        %v6287 = vadd.s32 %v6286, %v6276
        %v6288 = vadd.s32 %v6287, %v6278
        %v6289 = vmul.u32 %v6244, %v6235
        %v6290 = vadd.s32 %v6266, %v6285
        %vm6291 = vc.u32 %v6266, %v6285
        %v6292 = vadd.s32 %v6288, 1
        %v6293 = vsel %vm6291, %v6292, %v6288
        %v6294 = vadd.s32 %v6289, %v6293
        %v6295 = vadd.s32 %v6294, 536870912
        %v6296 = vshrl.u32 %v6295, 30
        %v6297 = vshll.u32 %v6296, 30
        %v6298 = vsub.s32 %v6294, %v6297
        %vm6299 = vcmp.lt.s32.totalorder %v6298, 0
        %v6300 = vsub.s32 0, %v6298
        %v6301 = vsel %vm6299, %v6300, %v6298
        %v6302 = vclz %v6301
        %v6303 = vsub.s32 %v6302, 2
        %vm6304 = vcmp.gt.s32.totalorder 0, %v6303
        %v6305 = vsel %vm6304, 0, %v6303
        %v6306 = vsub.s32 32, %v6305
        %v6307 = vshll.u32 %v6298, %v6305
        %v6308 = vshrl.u32 %v6290, %v6306
        %v6309 = vor.u32 %v6307, %v6308
        %v6310 = vsub.s32 4294967266, %v6305
        %v6311 = vadd.s32 %v6310, 127
        %v6312 = vshll.u32 %v6311, 23
        %v6313 = vor.u32 4788187, %v6312
        %v6314 = vand.u32 2147483647, %v6313
        %v6316 = vcvt.s32.f32 %v6309
        %v6317 = vmul.f32 %v6316, %v6314
        %v6318 = vxor.u32 %v6317, 2147483648
        %v6319 = vsel %vm6198, %v6318, %v6317
        %v6320 = vsub.s32 4, %v6296
        %v6321 = vsel %vm6198, %v6320, %v6296
        %v6322 = vsel %vm6197, %v280, %v6319
        %v6323 = vsel %vm6197, 0, %v6321
        %v6324 = vmul.f32 %v6322, %v6322
        %v6325 = vmul.f32 %v6324, -0.001358992
        %v6326 = vadd.f32 %v6325, 0.041655596
        %v6327 = vmul.f32 %v6324, %v6326
        %v6328 = vadd.f32 %v6327, -0.4999988
        %v6329 = vmul.f32 %v6324, %v6328
        %v6330 = vadd.f32 1.0, %v6329
        %v6331 = vmul.f32 %v6322, %v6322
        %v6332 = vmul.f32 %v6331, -0.00019511016
        %v6333 = vadd.f32 %v6332, 0.008332121
        %v6334 = vmul.f32 %v6331, %v6333
        %v6335 = vadd.f32 %v6334, -0.16666654
        %v6336 = vmul.f32 %v6331, %v6335
        %v6337 = vadd.f32 %v6336, 1.0
        %v6338 = vmul.f32 %v6337, %v6322
        %vm6339 = vweird.f32 %v280
        %v6340 = vadd.s32 %v6323, 3
        %v6341 = vand.u32 %v6340, 3
        %vm6342 = vcmp.lt.s32.totalorder %v6341, 2
        %vm6343 = vcmp.eq.s32.totalorder %v6341, 0
        %v6344 = vxor.u32 %v6338, 2147483648
        %v6345 = vsel %vm6343, %v6330, %v6344
        %vm6346 = vcmp.eq.s32.totalorder %v6341, 2
        %v6347 = vxor.u32 %v6330, 2147483648
        %v6348 = vsel %vm6346, %v6347, %v6338
        %v6349 = vsel %vm6342, %v6345, %v6348
        %v6350 = vsel %vm6339, nan, %v6349
        %v6351 = vand.u32 2147483647, %v281
        %vm6352 = vcmp.le.f32.partialorder %v6351, 0.7853982
        %vm6353 = vcmp.lt.s32.totalorder %v281, 0
        %v6354 = vand.u32 %v281, 2139095040
        %v6355 = vshrl.u32 %v6354, 23
        %v6356 = vsub.s32 %v6355, 127
        %v6357 = vand.u32 2147483647, %v281
        %v6358 = vand.u32 %v6357, 8388607
        %v6359 = vor.u32 %v6358, 8388608
        %v6360 = vsub.s32 0, %v6359
        %v6361 = vadd.s32 %v6356, 1
        %vm6362 = vcmp.gt.s32.totalorder %v6361, 0
        %v6363 = vsel %vm6362, %v6361, 0
        %v6364 = vshrl.u32 %v6363, 5
        %v6365 = vand.u32 %v6363, 31
        %v6366 = vsub.s32 32, %v6365
        %v6367 = vshrl.u32 683565275, %v6366
        %v6368 = vshll.u32 683565275, %v6365
        %v6369 = vshrl.u32 2475754826, %v6366
        %v6370 = vor.u32 %v6368, %v6369
        %v6371 = vshll.u32 2475754826, %v6365
        %v6372 = vshrl.u32 2131351028, %v6366
        %v6373 = vor.u32 %v6371, %v6372
        %v6374 = vshll.u32 2131351028, %v6365
        %v6375 = vshrl.u32 2102212464, %v6366
        %v6376 = vor.u32 %v6374, %v6375
        %v6377 = vshll.u32 2102212464, %v6365
        %v6378 = vshrl.u32 920167782, %v6366
        %v6379 = vor.u32 %v6377, %v6378
        %v6380 = vshll.u32 920167782, %v6365
        %v6381 = vshrl.u32 1326507024, %v6366
        %v6382 = vor.u32 %v6380, %v6381
        %vm6383 = vcmp.lt.s32.totalorder %v6364, 1
        %vm6384 = vcmp.lt.s32.totalorder %v6364, 2
        %vm6385 = vcmp.lt.s32.totalorder %v6364, 3
        %vm6386 = vcmp.lt.s32.totalorder %v6364, 4
        %v6387 = vsel %vm6383, %v6367, %v6370
        %v6388 = vsel %vm6386, %v6376, 2102212464
        %v6389 = vsel %vm6385, %v6373, %v6388
        %v6390 = vsel %vm6384, %v6387, %v6389
        %v6391 = vsel %vm6383, %v6370, %v6373
        %v6392 = vsel %vm6386, %v6379, 920167782
        %v6393 = vsel %vm6385, %v6376, %v6392
        %v6394 = vsel %vm6384, %v6391, %v6393
        %v6395 = vsel %vm6383, %v6373, %v6376
        %v6396 = vsel %vm6386, %v6382, 1326507024
        %v6397 = vsel %vm6385, %v6379, %v6396
        %v6398 = vsel %vm6384, %v6395, %v6397
        %v6399 = vshll.u32 %v6359, 8
        %v6400 = vand.u32 %v6399, 65535
        %v6401 = vshrl.u32 %v6399, 16
        %v6402 = vand.u32 %v6398, 65535
        %v6403 = vshrl.u32 %v6398, 16
        %v6404 = vmul.u32 %v6400, %v6402
        %v6405 = vmul.u32 %v6400, %v6403
        %v6406 = vmul.u32 %v6401, %v6402
        %v6407 = vmul.u32 %v6401, %v6403
        %v6408 = vshll.u32 %v6405, 16
        %v6409 = vshrl.u32 %v6405, 16
        %v6410 = vshll.u32 %v6406, 16
        %v6411 = vshrl.u32 %v6406, 16
        %vm6412 = vc.u32 %v6404, %v6408
        %v6413 = vsel %vm6412, 1, 0
        %v6414 = vadd.s32 %v6404, %v6408
        %v6415 = vadd.s32 %v6407, %v6413
        %vm6416 = vc.u32 %v6414, %v6410
        %v6417 = vsel %vm6416, 1, 0
        %v6418 = vadd.s32 %v6414, %v6410
        %v6419 = vadd.s32 %v6415, %v6417
        %v6420 = vadd.s32 %v6419, %v6409
        %v6421 = vadd.s32 %v6420, %v6411
        %v6422 = vand.u32 %v6399, 65535
        %v6423 = vshrl.u32 %v6399, 16
        %v6424 = vand.u32 %v6394, 65535
        %v6425 = vshrl.u32 %v6394, 16
        %v6426 = vmul.u32 %v6422, %v6424
        %v6427 = vmul.u32 %v6422, %v6425
        %v6428 = vmul.u32 %v6423, %v6424
        %v6429 = vmul.u32 %v6423, %v6425
        %v6430 = vshll.u32 %v6427, 16
        %v6431 = vshrl.u32 %v6427, 16
        %v6432 = vshll.u32 %v6428, 16
        %v6433 = vshrl.u32 %v6428, 16
        %vm6434 = vc.u32 %v6426, %v6430
        %v6435 = vsel %vm6434, 1, 0
        %v6436 = vadd.s32 %v6426, %v6430
        %v6437 = vadd.s32 %v6429, %v6435
        %vm6438 = vc.u32 %v6436, %v6432
        %v6439 = vsel %vm6438, 1, 0
        %v6440 = vadd.s32 %v6436, %v6432
        %v6441 = vadd.s32 %v6437, %v6439
        %v6442 = vadd.s32 %v6441, %v6431
        %v6443 = vadd.s32 %v6442, %v6433
        %v6444 = vmul.u32 %v6399, %v6390
        %v6445 = vadd.s32 %v6421, %v6440
        %vm6446 = vc.u32 %v6421, %v6440
        %v6447 = vadd.s32 %v6443, 1
        %v6448 = vsel %vm6446, %v6447, %v6443
        %v6449 = vadd.s32 %v6444, %v6448
        %v6450 = vadd.s32 %v6449, 536870912
        %v6451 = vshrl.u32 %v6450, 30
        %v6452 = vshll.u32 %v6451, 30
        %v6453 = vsub.s32 %v6449, %v6452
        %vm6454 = vcmp.lt.s32.totalorder %v6453, 0
        %v6455 = vsub.s32 0, %v6453
        %v6456 = vsel %vm6454, %v6455, %v6453
        %v6457 = vclz %v6456
        %v6458 = vsub.s32 %v6457, 2
        %vm6459 = vcmp.gt.s32.totalorder 0, %v6458
        %v6460 = vsel %vm6459, 0, %v6458
        %v6461 = vsub.s32 32, %v6460
        %v6462 = vshll.u32 %v6453, %v6460
        %v6463 = vshrl.u32 %v6445, %v6461
        %v6464 = vor.u32 %v6462, %v6463
        %v6465 = vsub.s32 4294967266, %v6460
        %v6466 = vadd.s32 %v6465, 127
        %v6467 = vshll.u32 %v6466, 23
        %v6468 = vor.u32 4788187, %v6467
        %v6469 = vand.u32 2147483647, %v6468
        %v6471 = vcvt.s32.f32 %v6464
        %v6472 = vmul.f32 %v6471, %v6469
        %v6473 = vxor.u32 %v6472, 2147483648
        %v6474 = vsel %vm6353, %v6473, %v6472
        %v6475 = vsub.s32 4, %v6451
        %v6476 = vsel %vm6353, %v6475, %v6451
        %v6477 = vsel %vm6352, %v281, %v6474
        %v6478 = vsel %vm6352, 0, %v6476
        %v6479 = vmul.f32 %v6477, %v6477
        %v6480 = vmul.f32 %v6479, -0.001358992
        %v6481 = vadd.f32 %v6480, 0.041655596
        %v6482 = vmul.f32 %v6479, %v6481
        %v6483 = vadd.f32 %v6482, -0.4999988
        %v6484 = vmul.f32 %v6479, %v6483
        %v6485 = vadd.f32 1.0, %v6484
        %v6486 = vmul.f32 %v6477, %v6477
        %v6487 = vmul.f32 %v6486, -0.00019511016
        %v6488 = vadd.f32 %v6487, 0.008332121
        %v6489 = vmul.f32 %v6486, %v6488
        %v6490 = vadd.f32 %v6489, -0.16666654
        %v6491 = vmul.f32 %v6486, %v6490
        %v6492 = vadd.f32 %v6491, 1.0
        %v6493 = vmul.f32 %v6492, %v6477
        %vm6494 = vweird.f32 %v281
        %v6495 = vadd.s32 %v6478, 3
        %v6496 = vand.u32 %v6495, 3
        %vm6497 = vcmp.lt.s32.totalorder %v6496, 2
        %vm6498 = vcmp.eq.s32.totalorder %v6496, 0
        %v6499 = vxor.u32 %v6493, 2147483648
        %v6500 = vsel %vm6498, %v6485, %v6499
        %vm6501 = vcmp.eq.s32.totalorder %v6496, 2
        %v6502 = vxor.u32 %v6485, 2147483648
        %v6503 = vsel %vm6501, %v6502, %v6493
        %v6504 = vsel %vm6497, %v6500, %v6503
        %v6505 = vsel %vm6494, nan, %v6504
        %v6506 = vand.u32 2147483647, %v282
        %vm6507 = vcmp.le.f32.partialorder %v6506, 0.7853982
        %vm6508 = vcmp.lt.s32.totalorder %v282, 0
        %v6509 = vand.u32 %v282, 2139095040
        %v6510 = vshrl.u32 %v6509, 23
        %v6511 = vsub.s32 %v6510, 127
        %v6512 = vand.u32 2147483647, %v282
        %v6513 = vand.u32 %v6512, 8388607
        %v6514 = vor.u32 %v6513, 8388608
        %v6515 = vsub.s32 0, %v6514
        %v6516 = vadd.s32 %v6511, 1
        %vm6517 = vcmp.gt.s32.totalorder %v6516, 0
        %v6518 = vsel %vm6517, %v6516, 0
        %v6519 = vshrl.u32 %v6518, 5
        %v6520 = vand.u32 %v6518, 31
        %v6521 = vsub.s32 32, %v6520
        %v6522 = vshrl.u32 683565275, %v6521
        %v6523 = vshll.u32 683565275, %v6520
        %v6524 = vshrl.u32 2475754826, %v6521
        %v6525 = vor.u32 %v6523, %v6524
        %v6526 = vshll.u32 2475754826, %v6520
        %v6527 = vshrl.u32 2131351028, %v6521
        %v6528 = vor.u32 %v6526, %v6527
        %v6529 = vshll.u32 2131351028, %v6520
        %v6530 = vshrl.u32 2102212464, %v6521
        %v6531 = vor.u32 %v6529, %v6530
        %v6532 = vshll.u32 2102212464, %v6520
        %v6533 = vshrl.u32 920167782, %v6521
        %v6534 = vor.u32 %v6532, %v6533
        %v6535 = vshll.u32 920167782, %v6520
        %v6536 = vshrl.u32 1326507024, %v6521
        %v6537 = vor.u32 %v6535, %v6536
        %vm6538 = vcmp.lt.s32.totalorder %v6519, 1
        %vm6539 = vcmp.lt.s32.totalorder %v6519, 2
        %vm6540 = vcmp.lt.s32.totalorder %v6519, 3
        %vm6541 = vcmp.lt.s32.totalorder %v6519, 4
        %v6542 = vsel %vm6538, %v6522, %v6525
        %v6543 = vsel %vm6541, %v6531, 2102212464
        %v6544 = vsel %vm6540, %v6528, %v6543
        %v6545 = vsel %vm6539, %v6542, %v6544
        %v6546 = vsel %vm6538, %v6525, %v6528
        %v6547 = vsel %vm6541, %v6534, 920167782
        %v6548 = vsel %vm6540, %v6531, %v6547
        %v6549 = vsel %vm6539, %v6546, %v6548
        %v6550 = vsel %vm6538, %v6528, %v6531
        %v6551 = vsel %vm6541, %v6537, 1326507024
        %v6552 = vsel %vm6540, %v6534, %v6551
        %v6553 = vsel %vm6539, %v6550, %v6552
        %v6554 = vshll.u32 %v6514, 8
        %v6555 = vand.u32 %v6554, 65535
        %v6556 = vshrl.u32 %v6554, 16
        %v6557 = vand.u32 %v6553, 65535
        %v6558 = vshrl.u32 %v6553, 16
        %v6559 = vmul.u32 %v6555, %v6557
        %v6560 = vmul.u32 %v6555, %v6558
        %v6561 = vmul.u32 %v6556, %v6557
        %v6562 = vmul.u32 %v6556, %v6558
        %v6563 = vshll.u32 %v6560, 16
        %v6564 = vshrl.u32 %v6560, 16
        %v6565 = vshll.u32 %v6561, 16
        %v6566 = vshrl.u32 %v6561, 16
        %vm6567 = vc.u32 %v6559, %v6563
        %v6568 = vsel %vm6567, 1, 0
        %v6569 = vadd.s32 %v6559, %v6563
        %v6570 = vadd.s32 %v6562, %v6568
        %vm6571 = vc.u32 %v6569, %v6565
        %v6572 = vsel %vm6571, 1, 0
        %v6573 = vadd.s32 %v6569, %v6565
        %v6574 = vadd.s32 %v6570, %v6572
        %v6575 = vadd.s32 %v6574, %v6564
        %v6576 = vadd.s32 %v6575, %v6566
        %v6577 = vand.u32 %v6554, 65535
        %v6578 = vshrl.u32 %v6554, 16
        %v6579 = vand.u32 %v6549, 65535
        %v6580 = vshrl.u32 %v6549, 16
        %v6581 = vmul.u32 %v6577, %v6579
        %v6582 = vmul.u32 %v6577, %v6580
        %v6583 = vmul.u32 %v6578, %v6579
        %v6584 = vmul.u32 %v6578, %v6580
        %v6585 = vshll.u32 %v6582, 16
        %v6586 = vshrl.u32 %v6582, 16
        %v6587 = vshll.u32 %v6583, 16
        %v6588 = vshrl.u32 %v6583, 16
        %vm6589 = vc.u32 %v6581, %v6585
        %v6590 = vsel %vm6589, 1, 0
        %v6591 = vadd.s32 %v6581, %v6585
        %v6592 = vadd.s32 %v6584, %v6590
        %vm6593 = vc.u32 %v6591, %v6587
        %v6594 = vsel %vm6593, 1, 0
        %v6595 = vadd.s32 %v6591, %v6587
        %v6596 = vadd.s32 %v6592, %v6594
        %v6597 = vadd.s32 %v6596, %v6586
        %v6598 = vadd.s32 %v6597, %v6588
        %v6599 = vmul.u32 %v6554, %v6545
        %v6600 = vadd.s32 %v6576, %v6595
        %vm6601 = vc.u32 %v6576, %v6595
        %v6602 = vadd.s32 %v6598, 1
        %v6603 = vsel %vm6601, %v6602, %v6598
        %v6604 = vadd.s32 %v6599, %v6603
        %v6605 = vadd.s32 %v6604, 536870912
        %v6606 = vshrl.u32 %v6605, 30
        %v6607 = vshll.u32 %v6606, 30
        %v6608 = vsub.s32 %v6604, %v6607
        %vm6609 = vcmp.lt.s32.totalorder %v6608, 0
        %v6610 = vsub.s32 0, %v6608
        %v6611 = vsel %vm6609, %v6610, %v6608
        %v6612 = vclz %v6611
        %v6613 = vsub.s32 %v6612, 2
        %vm6614 = vcmp.gt.s32.totalorder 0, %v6613
        %v6615 = vsel %vm6614, 0, %v6613
        %v6616 = vsub.s32 32, %v6615
        %v6617 = vshll.u32 %v6608, %v6615
        %v6618 = vshrl.u32 %v6600, %v6616
        %v6619 = vor.u32 %v6617, %v6618
        %v6620 = vsub.s32 4294967266, %v6615
        %v6621 = vadd.s32 %v6620, 127
        %v6622 = vshll.u32 %v6621, 23
        %v6623 = vor.u32 4788187, %v6622
        %v6624 = vand.u32 2147483647, %v6623
        %v6626 = vcvt.s32.f32 %v6619
        %v6627 = vmul.f32 %v6626, %v6624
        %v6628 = vxor.u32 %v6627, 2147483648
        %v6629 = vsel %vm6508, %v6628, %v6627
        %v6630 = vsub.s32 4, %v6606
        %v6631 = vsel %vm6508, %v6630, %v6606
        %v6632 = vsel %vm6507, %v282, %v6629
        %v6633 = vsel %vm6507, 0, %v6631
        %v6634 = vmul.f32 %v6632, %v6632
        %v6635 = vmul.f32 %v6634, -0.001358992
        %v6636 = vadd.f32 %v6635, 0.041655596
        %v6637 = vmul.f32 %v6634, %v6636
        %v6638 = vadd.f32 %v6637, -0.4999988
        %v6639 = vmul.f32 %v6634, %v6638
        %v6640 = vadd.f32 1.0, %v6639
        %v6641 = vmul.f32 %v6632, %v6632
        %v6642 = vmul.f32 %v6641, -0.00019511016
        %v6643 = vadd.f32 %v6642, 0.008332121
        %v6644 = vmul.f32 %v6641, %v6643
        %v6645 = vadd.f32 %v6644, -0.16666654
        %v6646 = vmul.f32 %v6641, %v6645
        %v6647 = vadd.f32 %v6646, 1.0
        %v6648 = vmul.f32 %v6647, %v6632
        %vm6649 = vweird.f32 %v282
        %v6650 = vadd.s32 %v6633, 3
        %v6651 = vand.u32 %v6650, 3
        %vm6652 = vcmp.lt.s32.totalorder %v6651, 2
        %vm6653 = vcmp.eq.s32.totalorder %v6651, 0
        %v6654 = vxor.u32 %v6648, 2147483648
        %v6655 = vsel %vm6653, %v6640, %v6654
        %vm6656 = vcmp.eq.s32.totalorder %v6651, 2
        %v6657 = vxor.u32 %v6640, 2147483648
        %v6658 = vsel %vm6656, %v6657, %v6648
        %v6659 = vsel %vm6652, %v6655, %v6658
        %v6660 = vsel %vm6649, nan, %v6659
        %v6661 = vand.u32 2147483647, %v283
        %vm6662 = vcmp.le.f32.partialorder %v6661, 0.7853982
        %vm6663 = vcmp.lt.s32.totalorder %v283, 0
        %v6664 = vand.u32 %v283, 2139095040
        %v6665 = vshrl.u32 %v6664, 23
        %v6666 = vsub.s32 %v6665, 127
        %v6667 = vand.u32 2147483647, %v283
        %v6668 = vand.u32 %v6667, 8388607
        %v6669 = vor.u32 %v6668, 8388608
        %v6670 = vsub.s32 0, %v6669
        %v6671 = vadd.s32 %v6666, 1
        %vm6672 = vcmp.gt.s32.totalorder %v6671, 0
        %v6673 = vsel %vm6672, %v6671, 0
        %v6674 = vshrl.u32 %v6673, 5
        %v6675 = vand.u32 %v6673, 31
        %v6676 = vsub.s32 32, %v6675
        %v6677 = vshrl.u32 683565275, %v6676
        %v6678 = vshll.u32 683565275, %v6675
        %v6679 = vshrl.u32 2475754826, %v6676
        %v6680 = vor.u32 %v6678, %v6679
        %v6681 = vshll.u32 2475754826, %v6675
        %v6682 = vshrl.u32 2131351028, %v6676
        %v6683 = vor.u32 %v6681, %v6682
        %v6684 = vshll.u32 2131351028, %v6675
        %v6685 = vshrl.u32 2102212464, %v6676
        %v6686 = vor.u32 %v6684, %v6685
        %v6687 = vshll.u32 2102212464, %v6675
        %v6688 = vshrl.u32 920167782, %v6676
        %v6689 = vor.u32 %v6687, %v6688
        %v6690 = vshll.u32 920167782, %v6675
        %v6691 = vshrl.u32 1326507024, %v6676
        %v6692 = vor.u32 %v6690, %v6691
        %vm6693 = vcmp.lt.s32.totalorder %v6674, 1
        %vm6694 = vcmp.lt.s32.totalorder %v6674, 2
        %vm6695 = vcmp.lt.s32.totalorder %v6674, 3
        %vm6696 = vcmp.lt.s32.totalorder %v6674, 4
        %v6697 = vsel %vm6693, %v6677, %v6680
        %v6698 = vsel %vm6696, %v6686, 2102212464
        %v6699 = vsel %vm6695, %v6683, %v6698
        %v6700 = vsel %vm6694, %v6697, %v6699
        %v6701 = vsel %vm6693, %v6680, %v6683
        %v6702 = vsel %vm6696, %v6689, 920167782
        %v6703 = vsel %vm6695, %v6686, %v6702
        %v6704 = vsel %vm6694, %v6701, %v6703
        %v6705 = vsel %vm6693, %v6683, %v6686
        %v6706 = vsel %vm6696, %v6692, 1326507024
        %v6707 = vsel %vm6695, %v6689, %v6706
        %v6708 = vsel %vm6694, %v6705, %v6707
        %v6709 = vshll.u32 %v6669, 8
        %v6710 = vand.u32 %v6709, 65535
        %v6711 = vshrl.u32 %v6709, 16
        %v6712 = vand.u32 %v6708, 65535
        %v6713 = vshrl.u32 %v6708, 16
        %v6714 = vmul.u32 %v6710, %v6712
        %v6715 = vmul.u32 %v6710, %v6713
        %v6716 = vmul.u32 %v6711, %v6712
        %v6717 = vmul.u32 %v6711, %v6713
        %v6718 = vshll.u32 %v6715, 16
        %v6719 = vshrl.u32 %v6715, 16
        %v6720 = vshll.u32 %v6716, 16
        %v6721 = vshrl.u32 %v6716, 16
        %vm6722 = vc.u32 %v6714, %v6718
        %v6723 = vsel %vm6722, 1, 0
        %v6724 = vadd.s32 %v6714, %v6718
        %v6725 = vadd.s32 %v6717, %v6723
        %vm6726 = vc.u32 %v6724, %v6720
        %v6727 = vsel %vm6726, 1, 0
        %v6728 = vadd.s32 %v6724, %v6720
        %v6729 = vadd.s32 %v6725, %v6727
        %v6730 = vadd.s32 %v6729, %v6719
        %v6731 = vadd.s32 %v6730, %v6721
        %v6732 = vand.u32 %v6709, 65535
        %v6733 = vshrl.u32 %v6709, 16
        %v6734 = vand.u32 %v6704, 65535
        %v6735 = vshrl.u32 %v6704, 16
        %v6736 = vmul.u32 %v6732, %v6734
        %v6737 = vmul.u32 %v6732, %v6735
        %v6738 = vmul.u32 %v6733, %v6734
        %v6739 = vmul.u32 %v6733, %v6735
        %v6740 = vshll.u32 %v6737, 16
        %v6741 = vshrl.u32 %v6737, 16
        %v6742 = vshll.u32 %v6738, 16
        %v6743 = vshrl.u32 %v6738, 16
        %vm6744 = vc.u32 %v6736, %v6740
        %v6745 = vsel %vm6744, 1, 0
        %v6746 = vadd.s32 %v6736, %v6740
        %v6747 = vadd.s32 %v6739, %v6745
        %vm6748 = vc.u32 %v6746, %v6742
        %v6749 = vsel %vm6748, 1, 0
        %v6750 = vadd.s32 %v6746, %v6742
        %v6751 = vadd.s32 %v6747, %v6749
        %v6752 = vadd.s32 %v6751, %v6741
        %v6753 = vadd.s32 %v6752, %v6743
        %v6754 = vmul.u32 %v6709, %v6700
        %v6755 = vadd.s32 %v6731, %v6750
        %vm6756 = vc.u32 %v6731, %v6750
        %v6757 = vadd.s32 %v6753, 1
        %v6758 = vsel %vm6756, %v6757, %v6753
        %v6759 = vadd.s32 %v6754, %v6758
        %v6760 = vadd.s32 %v6759, 536870912
        %v6761 = vshrl.u32 %v6760, 30
        %v6762 = vshll.u32 %v6761, 30
        %v6763 = vsub.s32 %v6759, %v6762
        %vm6764 = vcmp.lt.s32.totalorder %v6763, 0
        %v6765 = vsub.s32 0, %v6763
        %v6766 = vsel %vm6764, %v6765, %v6763
        %v6767 = vclz %v6766
        %v6768 = vsub.s32 %v6767, 2
        %vm6769 = vcmp.gt.s32.totalorder 0, %v6768
        %v6770 = vsel %vm6769, 0, %v6768
        %v6771 = vsub.s32 32, %v6770
        %v6772 = vshll.u32 %v6763, %v6770
        %v6773 = vshrl.u32 %v6755, %v6771
        %v6774 = vor.u32 %v6772, %v6773
        %v6775 = vsub.s32 4294967266, %v6770
        %v6776 = vadd.s32 %v6775, 127
        %v6777 = vshll.u32 %v6776, 23
        %v6778 = vor.u32 4788187, %v6777
        %v6779 = vand.u32 2147483647, %v6778
        %v6781 = vcvt.s32.f32 %v6774
        %v6782 = vmul.f32 %v6781, %v6779
        %v6783 = vxor.u32 %v6782, 2147483648
        %v6784 = vsel %vm6663, %v6783, %v6782
        %v6785 = vsub.s32 4, %v6761
        %v6786 = vsel %vm6663, %v6785, %v6761
        %v6787 = vsel %vm6662, %v283, %v6784
        %v6788 = vsel %vm6662, 0, %v6786
        %v6789 = vmul.f32 %v6787, %v6787
        %v6790 = vmul.f32 %v6789, -0.001358992
        %v6791 = vadd.f32 %v6790, 0.041655596
        %v6792 = vmul.f32 %v6789, %v6791
        %v6793 = vadd.f32 %v6792, -0.4999988
        %v6794 = vmul.f32 %v6789, %v6793
        %v6795 = vadd.f32 1.0, %v6794
        %v6796 = vmul.f32 %v6787, %v6787
        %v6797 = vmul.f32 %v6796, -0.00019511016
        %v6798 = vadd.f32 %v6797, 0.008332121
        %v6799 = vmul.f32 %v6796, %v6798
        %v6800 = vadd.f32 %v6799, -0.16666654
        %v6801 = vmul.f32 %v6796, %v6800
        %v6802 = vadd.f32 %v6801, 1.0
        %v6803 = vmul.f32 %v6802, %v6787
        %vm6804 = vweird.f32 %v283
        %v6805 = vadd.s32 %v6788, 3
        %v6806 = vand.u32 %v6805, 3
        %vm6807 = vcmp.lt.s32.totalorder %v6806, 2
        %vm6808 = vcmp.eq.s32.totalorder %v6806, 0
        %v6809 = vxor.u32 %v6803, 2147483648
        %v6810 = vsel %vm6808, %v6795, %v6809
        %vm6811 = vcmp.eq.s32.totalorder %v6806, 2
        %v6812 = vxor.u32 %v6795, 2147483648
        %v6813 = vsel %vm6811, %v6812, %v6803
        %v6814 = vsel %vm6807, %v6810, %v6813
        %v6815 = vsel %vm6804, nan, %v6814
        %v6816 = vand.u32 2147483647, %v284
        %vm6817 = vcmp.le.f32.partialorder %v6816, 0.7853982
        %vm6818 = vcmp.lt.s32.totalorder %v284, 0
        %v6819 = vand.u32 %v284, 2139095040
        %v6820 = vshrl.u32 %v6819, 23
        %v6821 = vsub.s32 %v6820, 127
        %v6822 = vand.u32 2147483647, %v284
        %v6823 = vand.u32 %v6822, 8388607
        %v6824 = vor.u32 %v6823, 8388608
        %v6825 = vsub.s32 0, %v6824
        %v6826 = vadd.s32 %v6821, 1
        %vm6827 = vcmp.gt.s32.totalorder %v6826, 0
        %v6828 = vsel %vm6827, %v6826, 0
        %v6829 = vshrl.u32 %v6828, 5
        %v6830 = vand.u32 %v6828, 31
        %v6831 = vsub.s32 32, %v6830
        %v6832 = vshrl.u32 683565275, %v6831
        %v6833 = vshll.u32 683565275, %v6830
        %v6834 = vshrl.u32 2475754826, %v6831
        %v6835 = vor.u32 %v6833, %v6834
        %v6836 = vshll.u32 2475754826, %v6830
        %v6837 = vshrl.u32 2131351028, %v6831
        %v6838 = vor.u32 %v6836, %v6837
        %v6839 = vshll.u32 2131351028, %v6830
        %v6840 = vshrl.u32 2102212464, %v6831
        %v6841 = vor.u32 %v6839, %v6840
        %v6842 = vshll.u32 2102212464, %v6830
        %v6843 = vshrl.u32 920167782, %v6831
        %v6844 = vor.u32 %v6842, %v6843
        %v6845 = vshll.u32 920167782, %v6830
        %v6846 = vshrl.u32 1326507024, %v6831
        %v6847 = vor.u32 %v6845, %v6846
        %vm6848 = vcmp.lt.s32.totalorder %v6829, 1
        %vm6849 = vcmp.lt.s32.totalorder %v6829, 2
        %vm6850 = vcmp.lt.s32.totalorder %v6829, 3
        %vm6851 = vcmp.lt.s32.totalorder %v6829, 4
        %v6852 = vsel %vm6848, %v6832, %v6835
        %v6853 = vsel %vm6851, %v6841, 2102212464
        %v6854 = vsel %vm6850, %v6838, %v6853
        %v6855 = vsel %vm6849, %v6852, %v6854
        %v6856 = vsel %vm6848, %v6835, %v6838
        %v6857 = vsel %vm6851, %v6844, 920167782
        %v6858 = vsel %vm6850, %v6841, %v6857
        %v6859 = vsel %vm6849, %v6856, %v6858
        %v6860 = vsel %vm6848, %v6838, %v6841
        %v6861 = vsel %vm6851, %v6847, 1326507024
        %v6862 = vsel %vm6850, %v6844, %v6861
        %v6863 = vsel %vm6849, %v6860, %v6862
        %v6864 = vshll.u32 %v6824, 8
        %v6865 = vand.u32 %v6864, 65535
        %v6866 = vshrl.u32 %v6864, 16
        %v6867 = vand.u32 %v6863, 65535
        %v6868 = vshrl.u32 %v6863, 16
        %v6869 = vmul.u32 %v6865, %v6867
        %v6870 = vmul.u32 %v6865, %v6868
        %v6871 = vmul.u32 %v6866, %v6867
        %v6872 = vmul.u32 %v6866, %v6868
        %v6873 = vshll.u32 %v6870, 16
        %v6874 = vshrl.u32 %v6870, 16
        %v6875 = vshll.u32 %v6871, 16
        %v6876 = vshrl.u32 %v6871, 16
        %vm6877 = vc.u32 %v6869, %v6873
        %v6878 = vsel %vm6877, 1, 0
        %v6879 = vadd.s32 %v6869, %v6873
        %v6880 = vadd.s32 %v6872, %v6878
        %vm6881 = vc.u32 %v6879, %v6875
        %v6882 = vsel %vm6881, 1, 0
        %v6883 = vadd.s32 %v6879, %v6875
        %v6884 = vadd.s32 %v6880, %v6882
        %v6885 = vadd.s32 %v6884, %v6874
        %v6886 = vadd.s32 %v6885, %v6876
        %v6887 = vand.u32 %v6864, 65535
        %v6888 = vshrl.u32 %v6864, 16
        %v6889 = vand.u32 %v6859, 65535
        %v6890 = vshrl.u32 %v6859, 16
        %v6891 = vmul.u32 %v6887, %v6889
        %v6892 = vmul.u32 %v6887, %v6890
        %v6893 = vmul.u32 %v6888, %v6889
        %v6894 = vmul.u32 %v6888, %v6890
        %v6895 = vshll.u32 %v6892, 16
        %v6896 = vshrl.u32 %v6892, 16
        %v6897 = vshll.u32 %v6893, 16
        %v6898 = vshrl.u32 %v6893, 16
        %vm6899 = vc.u32 %v6891, %v6895
        %v6900 = vsel %vm6899, 1, 0
        %v6901 = vadd.s32 %v6891, %v6895
        %v6902 = vadd.s32 %v6894, %v6900
        %vm6903 = vc.u32 %v6901, %v6897
        %v6904 = vsel %vm6903, 1, 0
        %v6905 = vadd.s32 %v6901, %v6897
        %v6906 = vadd.s32 %v6902, %v6904
        %v6907 = vadd.s32 %v6906, %v6896
        %v6908 = vadd.s32 %v6907, %v6898
        %v6909 = vmul.u32 %v6864, %v6855
        %v6910 = vadd.s32 %v6886, %v6905
        %vm6911 = vc.u32 %v6886, %v6905
        %v6912 = vadd.s32 %v6908, 1
        %v6913 = vsel %vm6911, %v6912, %v6908
        %v6914 = vadd.s32 %v6909, %v6913
        %v6915 = vadd.s32 %v6914, 536870912
        %v6916 = vshrl.u32 %v6915, 30
        %v6917 = vshll.u32 %v6916, 30
        %v6918 = vsub.s32 %v6914, %v6917
        %vm6919 = vcmp.lt.s32.totalorder %v6918, 0
        %v6920 = vsub.s32 0, %v6918
        %v6921 = vsel %vm6919, %v6920, %v6918
        %v6922 = vclz %v6921
        %v6923 = vsub.s32 %v6922, 2
        %vm6924 = vcmp.gt.s32.totalorder 0, %v6923
        %v6925 = vsel %vm6924, 0, %v6923
        %v6926 = vsub.s32 32, %v6925
        %v6927 = vshll.u32 %v6918, %v6925
        %v6928 = vshrl.u32 %v6910, %v6926
        %v6929 = vor.u32 %v6927, %v6928
        %v6930 = vsub.s32 4294967266, %v6925
        %v6931 = vadd.s32 %v6930, 127
        %v6932 = vshll.u32 %v6931, 23
        %v6933 = vor.u32 4788187, %v6932
        %v6934 = vand.u32 2147483647, %v6933
        %v6936 = vcvt.s32.f32 %v6929
        %v6937 = vmul.f32 %v6936, %v6934
        %v6938 = vxor.u32 %v6937, 2147483648
        %v6939 = vsel %vm6818, %v6938, %v6937
        %v6940 = vsub.s32 4, %v6916
        %v6941 = vsel %vm6818, %v6940, %v6916
        %v6942 = vsel %vm6817, %v284, %v6939
        %v6943 = vsel %vm6817, 0, %v6941
        %v6944 = vmul.f32 %v6942, %v6942
        %v6945 = vmul.f32 %v6944, -0.001358992
        %v6946 = vadd.f32 %v6945, 0.041655596
        %v6947 = vmul.f32 %v6944, %v6946
        %v6948 = vadd.f32 %v6947, -0.4999988
        %v6949 = vmul.f32 %v6944, %v6948
        %v6950 = vadd.f32 1.0, %v6949
        %v6951 = vmul.f32 %v6942, %v6942
        %v6952 = vmul.f32 %v6951, -0.00019511016
        %v6953 = vadd.f32 %v6952, 0.008332121
        %v6954 = vmul.f32 %v6951, %v6953
        %v6955 = vadd.f32 %v6954, -0.16666654
        %v6956 = vmul.f32 %v6951, %v6955
        %v6957 = vadd.f32 %v6956, 1.0
        %v6958 = vmul.f32 %v6957, %v6942
        %vm6959 = vweird.f32 %v284
        %v6960 = vadd.s32 %v6943, 3
        %v6961 = vand.u32 %v6960, 3
        %vm6962 = vcmp.lt.s32.totalorder %v6961, 2
        %vm6963 = vcmp.eq.s32.totalorder %v6961, 0
        %v6964 = vxor.u32 %v6958, 2147483648
        %v6965 = vsel %vm6963, %v6950, %v6964
        %vm6966 = vcmp.eq.s32.totalorder %v6961, 2
        %v6967 = vxor.u32 %v6950, 2147483648
        %v6968 = vsel %vm6966, %v6967, %v6958
        %v6969 = vsel %vm6962, %v6965, %v6968
        %v6970 = vsel %vm6959, nan, %v6969
        %v6971 = vand.u32 2147483647, %v285
        %vm6972 = vcmp.le.f32.partialorder %v6971, 0.7853982
        %vm6973 = vcmp.lt.s32.totalorder %v285, 0
        %v6974 = vand.u32 %v285, 2139095040
        %v6975 = vshrl.u32 %v6974, 23
        %v6976 = vsub.s32 %v6975, 127
        %v6977 = vand.u32 2147483647, %v285
        %v6978 = vand.u32 %v6977, 8388607
        %v6979 = vor.u32 %v6978, 8388608
        %v6980 = vsub.s32 0, %v6979
        %v6981 = vadd.s32 %v6976, 1
        %vm6982 = vcmp.gt.s32.totalorder %v6981, 0
        %v6983 = vsel %vm6982, %v6981, 0
        %v6984 = vshrl.u32 %v6983, 5
        %v6985 = vand.u32 %v6983, 31
        %v6986 = vsub.s32 32, %v6985
        %v6987 = vshrl.u32 683565275, %v6986
        %v6988 = vshll.u32 683565275, %v6985
        %v6989 = vshrl.u32 2475754826, %v6986
        %v6990 = vor.u32 %v6988, %v6989
        %v6991 = vshll.u32 2475754826, %v6985
        %v6992 = vshrl.u32 2131351028, %v6986
        %v6993 = vor.u32 %v6991, %v6992
        %v6994 = vshll.u32 2131351028, %v6985
        %v6995 = vshrl.u32 2102212464, %v6986
        %v6996 = vor.u32 %v6994, %v6995
        %v6997 = vshll.u32 2102212464, %v6985
        %v6998 = vshrl.u32 920167782, %v6986
        %v6999 = vor.u32 %v6997, %v6998
        %v7000 = vshll.u32 920167782, %v6985
        %v7001 = vshrl.u32 1326507024, %v6986
        %v7002 = vor.u32 %v7000, %v7001
        %vm7003 = vcmp.lt.s32.totalorder %v6984, 1
        %vm7004 = vcmp.lt.s32.totalorder %v6984, 2
        %vm7005 = vcmp.lt.s32.totalorder %v6984, 3
        %vm7006 = vcmp.lt.s32.totalorder %v6984, 4
        %v7007 = vsel %vm7003, %v6987, %v6990
        %v7008 = vsel %vm7006, %v6996, 2102212464
        %v7009 = vsel %vm7005, %v6993, %v7008
        %v7010 = vsel %vm7004, %v7007, %v7009
        %v7011 = vsel %vm7003, %v6990, %v6993
        %v7012 = vsel %vm7006, %v6999, 920167782
        %v7013 = vsel %vm7005, %v6996, %v7012
        %v7014 = vsel %vm7004, %v7011, %v7013
        %v7015 = vsel %vm7003, %v6993, %v6996
        %v7016 = vsel %vm7006, %v7002, 1326507024
        %v7017 = vsel %vm7005, %v6999, %v7016
        %v7018 = vsel %vm7004, %v7015, %v7017
        %v7019 = vshll.u32 %v6979, 8
        %v7020 = vand.u32 %v7019, 65535
        %v7021 = vshrl.u32 %v7019, 16
        %v7022 = vand.u32 %v7018, 65535
        %v7023 = vshrl.u32 %v7018, 16
        %v7024 = vmul.u32 %v7020, %v7022
        %v7025 = vmul.u32 %v7020, %v7023
        %v7026 = vmul.u32 %v7021, %v7022
        %v7027 = vmul.u32 %v7021, %v7023
        %v7028 = vshll.u32 %v7025, 16
        %v7029 = vshrl.u32 %v7025, 16
        %v7030 = vshll.u32 %v7026, 16
        %v7031 = vshrl.u32 %v7026, 16
        %vm7032 = vc.u32 %v7024, %v7028
        %v7033 = vsel %vm7032, 1, 0
        %v7034 = vadd.s32 %v7024, %v7028
        %v7035 = vadd.s32 %v7027, %v7033
        %vm7036 = vc.u32 %v7034, %v7030
        %v7037 = vsel %vm7036, 1, 0
        %v7038 = vadd.s32 %v7034, %v7030
        %v7039 = vadd.s32 %v7035, %v7037
        %v7040 = vadd.s32 %v7039, %v7029
        %v7041 = vadd.s32 %v7040, %v7031
        %v7042 = vand.u32 %v7019, 65535
        %v7043 = vshrl.u32 %v7019, 16
        %v7044 = vand.u32 %v7014, 65535
        %v7045 = vshrl.u32 %v7014, 16
        %v7046 = vmul.u32 %v7042, %v7044
        %v7047 = vmul.u32 %v7042, %v7045
        %v7048 = vmul.u32 %v7043, %v7044
        %v7049 = vmul.u32 %v7043, %v7045
        %v7050 = vshll.u32 %v7047, 16
        %v7051 = vshrl.u32 %v7047, 16
        %v7052 = vshll.u32 %v7048, 16
        %v7053 = vshrl.u32 %v7048, 16
        %vm7054 = vc.u32 %v7046, %v7050
        %v7055 = vsel %vm7054, 1, 0
        %v7056 = vadd.s32 %v7046, %v7050
        %v7057 = vadd.s32 %v7049, %v7055
        %vm7058 = vc.u32 %v7056, %v7052
        %v7059 = vsel %vm7058, 1, 0
        %v7060 = vadd.s32 %v7056, %v7052
        %v7061 = vadd.s32 %v7057, %v7059
        %v7062 = vadd.s32 %v7061, %v7051
        %v7063 = vadd.s32 %v7062, %v7053
        %v7064 = vmul.u32 %v7019, %v7010
        %v7065 = vadd.s32 %v7041, %v7060
        %vm7066 = vc.u32 %v7041, %v7060
        %v7067 = vadd.s32 %v7063, 1
        %v7068 = vsel %vm7066, %v7067, %v7063
        %v7069 = vadd.s32 %v7064, %v7068
        %v7070 = vadd.s32 %v7069, 536870912
        %v7071 = vshrl.u32 %v7070, 30
        %v7072 = vshll.u32 %v7071, 30
        %v7073 = vsub.s32 %v7069, %v7072
        %vm7074 = vcmp.lt.s32.totalorder %v7073, 0
        %v7075 = vsub.s32 0, %v7073
        %v7076 = vsel %vm7074, %v7075, %v7073
        %v7077 = vclz %v7076
        %v7078 = vsub.s32 %v7077, 2
        %vm7079 = vcmp.gt.s32.totalorder 0, %v7078
        %v7080 = vsel %vm7079, 0, %v7078
        %v7081 = vsub.s32 32, %v7080
        %v7082 = vshll.u32 %v7073, %v7080
        %v7083 = vshrl.u32 %v7065, %v7081
        %v7084 = vor.u32 %v7082, %v7083
        %v7085 = vsub.s32 4294967266, %v7080
        %v7086 = vadd.s32 %v7085, 127
        %v7087 = vshll.u32 %v7086, 23
        %v7088 = vor.u32 4788187, %v7087
        %v7089 = vand.u32 2147483647, %v7088
        %v7091 = vcvt.s32.f32 %v7084
        %v7092 = vmul.f32 %v7091, %v7089
        %v7093 = vxor.u32 %v7092, 2147483648
        %v7094 = vsel %vm6973, %v7093, %v7092
        %v7095 = vsub.s32 4, %v7071
        %v7096 = vsel %vm6973, %v7095, %v7071
        %v7097 = vsel %vm6972, %v285, %v7094
        %v7098 = vsel %vm6972, 0, %v7096
        %v7099 = vmul.f32 %v7097, %v7097
        %v7100 = vmul.f32 %v7099, -0.001358992
        %v7101 = vadd.f32 %v7100, 0.041655596
        %v7102 = vmul.f32 %v7099, %v7101
        %v7103 = vadd.f32 %v7102, -0.4999988
        %v7104 = vmul.f32 %v7099, %v7103
        %v7105 = vadd.f32 1.0, %v7104
        %v7106 = vmul.f32 %v7097, %v7097
        %v7107 = vmul.f32 %v7106, -0.00019511016
        %v7108 = vadd.f32 %v7107, 0.008332121
        %v7109 = vmul.f32 %v7106, %v7108
        %v7110 = vadd.f32 %v7109, -0.16666654
        %v7111 = vmul.f32 %v7106, %v7110
        %v7112 = vadd.f32 %v7111, 1.0
        %v7113 = vmul.f32 %v7112, %v7097
        %vm7114 = vweird.f32 %v285
        %v7115 = vadd.s32 %v7098, 3
        %v7116 = vand.u32 %v7115, 3
        %vm7117 = vcmp.lt.s32.totalorder %v7116, 2
        %vm7118 = vcmp.eq.s32.totalorder %v7116, 0
        %v7119 = vxor.u32 %v7113, 2147483648
        %v7120 = vsel %vm7118, %v7105, %v7119
        %vm7121 = vcmp.eq.s32.totalorder %v7116, 2
        %v7122 = vxor.u32 %v7105, 2147483648
        %v7123 = vsel %vm7121, %v7122, %v7113
        %v7124 = vsel %vm7117, %v7120, %v7123
        %v7125 = vsel %vm7114, nan, %v7124
        %v7126 = vand.u32 2147483647, %v286
        %vm7127 = vcmp.le.f32.partialorder %v7126, 0.7853982
        %vm7128 = vcmp.lt.s32.totalorder %v286, 0
        %v7129 = vand.u32 %v286, 2139095040
        %v7130 = vshrl.u32 %v7129, 23
        %v7131 = vsub.s32 %v7130, 127
        %v7132 = vand.u32 2147483647, %v286
        %v7133 = vand.u32 %v7132, 8388607
        %v7134 = vor.u32 %v7133, 8388608
        %v7135 = vsub.s32 0, %v7134
        %v7136 = vadd.s32 %v7131, 1
        %vm7137 = vcmp.gt.s32.totalorder %v7136, 0
        %v7138 = vsel %vm7137, %v7136, 0
        %v7139 = vshrl.u32 %v7138, 5
        %v7140 = vand.u32 %v7138, 31
        %v7141 = vsub.s32 32, %v7140
        %v7142 = vshrl.u32 683565275, %v7141
        %v7143 = vshll.u32 683565275, %v7140
        %v7144 = vshrl.u32 2475754826, %v7141
        %v7145 = vor.u32 %v7143, %v7144
        %v7146 = vshll.u32 2475754826, %v7140
        %v7147 = vshrl.u32 2131351028, %v7141
        %v7148 = vor.u32 %v7146, %v7147
        %v7149 = vshll.u32 2131351028, %v7140
        %v7150 = vshrl.u32 2102212464, %v7141
        %v7151 = vor.u32 %v7149, %v7150
        %v7152 = vshll.u32 2102212464, %v7140
        %v7153 = vshrl.u32 920167782, %v7141
        %v7154 = vor.u32 %v7152, %v7153
        %v7155 = vshll.u32 920167782, %v7140
        %v7156 = vshrl.u32 1326507024, %v7141
        %v7157 = vor.u32 %v7155, %v7156
        %vm7158 = vcmp.lt.s32.totalorder %v7139, 1
        %vm7159 = vcmp.lt.s32.totalorder %v7139, 2
        %vm7160 = vcmp.lt.s32.totalorder %v7139, 3
        %vm7161 = vcmp.lt.s32.totalorder %v7139, 4
        %v7162 = vsel %vm7158, %v7142, %v7145
        %v7163 = vsel %vm7161, %v7151, 2102212464
        %v7164 = vsel %vm7160, %v7148, %v7163
        %v7165 = vsel %vm7159, %v7162, %v7164
        %v7166 = vsel %vm7158, %v7145, %v7148
        %v7167 = vsel %vm7161, %v7154, 920167782
        %v7168 = vsel %vm7160, %v7151, %v7167
        %v7169 = vsel %vm7159, %v7166, %v7168
        %v7170 = vsel %vm7158, %v7148, %v7151
        %v7171 = vsel %vm7161, %v7157, 1326507024
        %v7172 = vsel %vm7160, %v7154, %v7171
        %v7173 = vsel %vm7159, %v7170, %v7172
        %v7174 = vshll.u32 %v7134, 8
        %v7175 = vand.u32 %v7174, 65535
        %v7176 = vshrl.u32 %v7174, 16
        %v7177 = vand.u32 %v7173, 65535
        %v7178 = vshrl.u32 %v7173, 16
        %v7179 = vmul.u32 %v7175, %v7177
        %v7180 = vmul.u32 %v7175, %v7178
        %v7181 = vmul.u32 %v7176, %v7177
        %v7182 = vmul.u32 %v7176, %v7178
        %v7183 = vshll.u32 %v7180, 16
        %v7184 = vshrl.u32 %v7180, 16
        %v7185 = vshll.u32 %v7181, 16
        %v7186 = vshrl.u32 %v7181, 16
        %vm7187 = vc.u32 %v7179, %v7183
        %v7188 = vsel %vm7187, 1, 0
        %v7189 = vadd.s32 %v7179, %v7183
        %v7190 = vadd.s32 %v7182, %v7188
        %vm7191 = vc.u32 %v7189, %v7185
        %v7192 = vsel %vm7191, 1, 0
        %v7193 = vadd.s32 %v7189, %v7185
        %v7194 = vadd.s32 %v7190, %v7192
        %v7195 = vadd.s32 %v7194, %v7184
        %v7196 = vadd.s32 %v7195, %v7186
        %v7197 = vand.u32 %v7174, 65535
        %v7198 = vshrl.u32 %v7174, 16
        %v7199 = vand.u32 %v7169, 65535
        %v7200 = vshrl.u32 %v7169, 16
        %v7201 = vmul.u32 %v7197, %v7199
        %v7202 = vmul.u32 %v7197, %v7200
        %v7203 = vmul.u32 %v7198, %v7199
        %v7204 = vmul.u32 %v7198, %v7200
        %v7205 = vshll.u32 %v7202, 16
        %v7206 = vshrl.u32 %v7202, 16
        %v7207 = vshll.u32 %v7203, 16
        %v7208 = vshrl.u32 %v7203, 16
        %vm7209 = vc.u32 %v7201, %v7205
        %v7210 = vsel %vm7209, 1, 0
        %v7211 = vadd.s32 %v7201, %v7205
        %v7212 = vadd.s32 %v7204, %v7210
        %vm7213 = vc.u32 %v7211, %v7207
        %v7214 = vsel %vm7213, 1, 0
        %v7215 = vadd.s32 %v7211, %v7207
        %v7216 = vadd.s32 %v7212, %v7214
        %v7217 = vadd.s32 %v7216, %v7206
        %v7218 = vadd.s32 %v7217, %v7208
        %v7219 = vmul.u32 %v7174, %v7165
        %v7220 = vadd.s32 %v7196, %v7215
        %vm7221 = vc.u32 %v7196, %v7215
        %v7222 = vadd.s32 %v7218, 1
        %v7223 = vsel %vm7221, %v7222, %v7218
        %v7224 = vadd.s32 %v7219, %v7223
        %v7225 = vadd.s32 %v7224, 536870912
        %v7226 = vshrl.u32 %v7225, 30
        %v7227 = vshll.u32 %v7226, 30
        %v7228 = vsub.s32 %v7224, %v7227
        %vm7229 = vcmp.lt.s32.totalorder %v7228, 0
        %v7230 = vsub.s32 0, %v7228
        %v7231 = vsel %vm7229, %v7230, %v7228
        %v7232 = vclz %v7231
        %v7233 = vsub.s32 %v7232, 2
        %vm7234 = vcmp.gt.s32.totalorder 0, %v7233
        %v7235 = vsel %vm7234, 0, %v7233
        %v7236 = vsub.s32 32, %v7235
        %v7237 = vshll.u32 %v7228, %v7235
        %v7238 = vshrl.u32 %v7220, %v7236
        %v7239 = vor.u32 %v7237, %v7238
        %v7240 = vsub.s32 4294967266, %v7235
        %v7241 = vadd.s32 %v7240, 127
        %v7242 = vshll.u32 %v7241, 23
        %v7243 = vor.u32 4788187, %v7242
        %v7244 = vand.u32 2147483647, %v7243
        %v7246 = vcvt.s32.f32 %v7239
        %v7247 = vmul.f32 %v7246, %v7244
        %v7248 = vxor.u32 %v7247, 2147483648
        %v7249 = vsel %vm7128, %v7248, %v7247
        %v7250 = vsub.s32 4, %v7226
        %v7251 = vsel %vm7128, %v7250, %v7226
        %v7252 = vsel %vm7127, %v286, %v7249
        %v7253 = vsel %vm7127, 0, %v7251
        %v7254 = vmul.f32 %v7252, %v7252
        %v7255 = vmul.f32 %v7254, -0.001358992
        %v7256 = vadd.f32 %v7255, 0.041655596
        %v7257 = vmul.f32 %v7254, %v7256
        %v7258 = vadd.f32 %v7257, -0.4999988
        %v7259 = vmul.f32 %v7254, %v7258
        %v7260 = vadd.f32 1.0, %v7259
        %v7261 = vmul.f32 %v7252, %v7252
        %v7262 = vmul.f32 %v7261, -0.00019511016
        %v7263 = vadd.f32 %v7262, 0.008332121
        %v7264 = vmul.f32 %v7261, %v7263
        %v7265 = vadd.f32 %v7264, -0.16666654
        %v7266 = vmul.f32 %v7261, %v7265
        %v7267 = vadd.f32 %v7266, 1.0
        %v7268 = vmul.f32 %v7267, %v7252
        %vm7269 = vweird.f32 %v286
        %v7270 = vadd.s32 %v7253, 3
        %v7271 = vand.u32 %v7270, 3
        %vm7272 = vcmp.lt.s32.totalorder %v7271, 2
        %vm7273 = vcmp.eq.s32.totalorder %v7271, 0
        %v7274 = vxor.u32 %v7268, 2147483648
        %v7275 = vsel %vm7273, %v7260, %v7274
        %vm7276 = vcmp.eq.s32.totalorder %v7271, 2
        %v7277 = vxor.u32 %v7260, 2147483648
        %v7278 = vsel %vm7276, %v7277, %v7268
        %v7279 = vsel %vm7272, %v7275, %v7278
        %v7280 = vsel %vm7269, nan, %v7279
        %v7281 = vand.u32 2147483647, %v287
        %vm7282 = vcmp.le.f32.partialorder %v7281, 0.7853982
        %vm7283 = vcmp.lt.s32.totalorder %v287, 0
        %v7284 = vand.u32 %v287, 2139095040
        %v7285 = vshrl.u32 %v7284, 23
        %v7286 = vsub.s32 %v7285, 127
        %v7287 = vand.u32 2147483647, %v287
        %v7288 = vand.u32 %v7287, 8388607
        %v7289 = vor.u32 %v7288, 8388608
        %v7290 = vsub.s32 0, %v7289
        %v7291 = vadd.s32 %v7286, 1
        %vm7292 = vcmp.gt.s32.totalorder %v7291, 0
        %v7293 = vsel %vm7292, %v7291, 0
        %v7294 = vshrl.u32 %v7293, 5
        %v7295 = vand.u32 %v7293, 31
        %v7296 = vsub.s32 32, %v7295
        %v7297 = vshrl.u32 683565275, %v7296
        %v7298 = vshll.u32 683565275, %v7295
        %v7299 = vshrl.u32 2475754826, %v7296
        %v7300 = vor.u32 %v7298, %v7299
        %v7301 = vshll.u32 2475754826, %v7295
        %v7302 = vshrl.u32 2131351028, %v7296
        %v7303 = vor.u32 %v7301, %v7302
        %v7304 = vshll.u32 2131351028, %v7295
        %v7305 = vshrl.u32 2102212464, %v7296
        %v7306 = vor.u32 %v7304, %v7305
        %v7307 = vshll.u32 2102212464, %v7295
        %v7308 = vshrl.u32 920167782, %v7296
        %v7309 = vor.u32 %v7307, %v7308
        %v7310 = vshll.u32 920167782, %v7295
        %v7311 = vshrl.u32 1326507024, %v7296
        %v7312 = vor.u32 %v7310, %v7311
        %vm7313 = vcmp.lt.s32.totalorder %v7294, 1
        %vm7314 = vcmp.lt.s32.totalorder %v7294, 2
        %vm7315 = vcmp.lt.s32.totalorder %v7294, 3
        %vm7316 = vcmp.lt.s32.totalorder %v7294, 4
        %v7317 = vsel %vm7313, %v7297, %v7300
        %v7318 = vsel %vm7316, %v7306, 2102212464
        %v7319 = vsel %vm7315, %v7303, %v7318
        %v7320 = vsel %vm7314, %v7317, %v7319
        %v7321 = vsel %vm7313, %v7300, %v7303
        %v7322 = vsel %vm7316, %v7309, 920167782
        %v7323 = vsel %vm7315, %v7306, %v7322
        %v7324 = vsel %vm7314, %v7321, %v7323
        %v7325 = vsel %vm7313, %v7303, %v7306
        %v7326 = vsel %vm7316, %v7312, 1326507024
        %v7327 = vsel %vm7315, %v7309, %v7326
        %v7328 = vsel %vm7314, %v7325, %v7327
        %v7329 = vshll.u32 %v7289, 8
        %v7330 = vand.u32 %v7329, 65535
        %v7331 = vshrl.u32 %v7329, 16
        %v7332 = vand.u32 %v7328, 65535
        %v7333 = vshrl.u32 %v7328, 16
        %v7334 = vmul.u32 %v7330, %v7332
        %v7335 = vmul.u32 %v7330, %v7333
        %v7336 = vmul.u32 %v7331, %v7332
        %v7337 = vmul.u32 %v7331, %v7333
        %v7338 = vshll.u32 %v7335, 16
        %v7339 = vshrl.u32 %v7335, 16
        %v7340 = vshll.u32 %v7336, 16
        %v7341 = vshrl.u32 %v7336, 16
        %vm7342 = vc.u32 %v7334, %v7338
        %v7343 = vsel %vm7342, 1, 0
        %v7344 = vadd.s32 %v7334, %v7338
        %v7345 = vadd.s32 %v7337, %v7343
        %vm7346 = vc.u32 %v7344, %v7340
        %v7347 = vsel %vm7346, 1, 0
        %v7348 = vadd.s32 %v7344, %v7340
        %v7349 = vadd.s32 %v7345, %v7347
        %v7350 = vadd.s32 %v7349, %v7339
        %v7351 = vadd.s32 %v7350, %v7341
        %v7352 = vand.u32 %v7329, 65535
        %v7353 = vshrl.u32 %v7329, 16
        %v7354 = vand.u32 %v7324, 65535
        %v7355 = vshrl.u32 %v7324, 16
        %v7356 = vmul.u32 %v7352, %v7354
        %v7357 = vmul.u32 %v7352, %v7355
        %v7358 = vmul.u32 %v7353, %v7354
        %v7359 = vmul.u32 %v7353, %v7355
        %v7360 = vshll.u32 %v7357, 16
        %v7361 = vshrl.u32 %v7357, 16
        %v7362 = vshll.u32 %v7358, 16
        %v7363 = vshrl.u32 %v7358, 16
        %vm7364 = vc.u32 %v7356, %v7360
        %v7365 = vsel %vm7364, 1, 0
        %v7366 = vadd.s32 %v7356, %v7360
        %v7367 = vadd.s32 %v7359, %v7365
        %vm7368 = vc.u32 %v7366, %v7362
        %v7369 = vsel %vm7368, 1, 0
        %v7370 = vadd.s32 %v7366, %v7362
        %v7371 = vadd.s32 %v7367, %v7369
        %v7372 = vadd.s32 %v7371, %v7361
        %v7373 = vadd.s32 %v7372, %v7363
        %v7374 = vmul.u32 %v7329, %v7320
        %v7375 = vadd.s32 %v7351, %v7370
        %vm7376 = vc.u32 %v7351, %v7370
        %v7377 = vadd.s32 %v7373, 1
        %v7378 = vsel %vm7376, %v7377, %v7373
        %v7379 = vadd.s32 %v7374, %v7378
        %v7380 = vadd.s32 %v7379, 536870912
        %v7381 = vshrl.u32 %v7380, 30
        %v7382 = vshll.u32 %v7381, 30
        %v7383 = vsub.s32 %v7379, %v7382
        %vm7384 = vcmp.lt.s32.totalorder %v7383, 0
        %v7385 = vsub.s32 0, %v7383
        %v7386 = vsel %vm7384, %v7385, %v7383
        %v7387 = vclz %v7386
        %v7388 = vsub.s32 %v7387, 2
        %vm7389 = vcmp.gt.s32.totalorder 0, %v7388
        %v7390 = vsel %vm7389, 0, %v7388
        %v7391 = vsub.s32 32, %v7390
        %v7392 = vshll.u32 %v7383, %v7390
        %v7393 = vshrl.u32 %v7375, %v7391
        %v7394 = vor.u32 %v7392, %v7393
        %v7395 = vsub.s32 4294967266, %v7390
        %v7396 = vadd.s32 %v7395, 127
        %v7397 = vshll.u32 %v7396, 23
        %v7398 = vor.u32 4788187, %v7397
        %v7399 = vand.u32 2147483647, %v7398
        %v7401 = vcvt.s32.f32 %v7394
        %v7402 = vmul.f32 %v7401, %v7399
        %v7403 = vxor.u32 %v7402, 2147483648
        %v7404 = vsel %vm7283, %v7403, %v7402
        %v7405 = vsub.s32 4, %v7381
        %v7406 = vsel %vm7283, %v7405, %v7381
        %v7407 = vsel %vm7282, %v287, %v7404
        %v7408 = vsel %vm7282, 0, %v7406
        %v7409 = vmul.f32 %v7407, %v7407
        %v7410 = vmul.f32 %v7409, -0.001358992
        %v7411 = vadd.f32 %v7410, 0.041655596
        %v7412 = vmul.f32 %v7409, %v7411
        %v7413 = vadd.f32 %v7412, -0.4999988
        %v7414 = vmul.f32 %v7409, %v7413
        %v7415 = vadd.f32 1.0, %v7414
        %v7416 = vmul.f32 %v7407, %v7407
        %v7417 = vmul.f32 %v7416, -0.00019511016
        %v7418 = vadd.f32 %v7417, 0.008332121
        %v7419 = vmul.f32 %v7416, %v7418
        %v7420 = vadd.f32 %v7419, -0.16666654
        %v7421 = vmul.f32 %v7416, %v7420
        %v7422 = vadd.f32 %v7421, 1.0
        %v7423 = vmul.f32 %v7422, %v7407
        %vm7424 = vweird.f32 %v287
        %v7425 = vadd.s32 %v7408, 3
        %v7426 = vand.u32 %v7425, 3
        %vm7427 = vcmp.lt.s32.totalorder %v7426, 2
        %vm7428 = vcmp.eq.s32.totalorder %v7426, 0
        %v7429 = vxor.u32 %v7423, 2147483648
        %v7430 = vsel %vm7428, %v7415, %v7429
        %vm7431 = vcmp.eq.s32.totalorder %v7426, 2
        %v7432 = vxor.u32 %v7415, 2147483648
        %v7433 = vsel %vm7431, %v7432, %v7423
        %v7434 = vsel %vm7427, %v7430, %v7433
        %v7435 = vsel %vm7424, nan, %v7434
        %v7436 = vand.u32 2147483647, %v288
        %vm7437 = vcmp.le.f32.partialorder %v7436, 0.7853982
        %vm7438 = vcmp.lt.s32.totalorder %v288, 0
        %v7439 = vand.u32 %v288, 2139095040
        %v7440 = vshrl.u32 %v7439, 23
        %v7441 = vsub.s32 %v7440, 127
        %v7442 = vand.u32 2147483647, %v288
        %v7443 = vand.u32 %v7442, 8388607
        %v7444 = vor.u32 %v7443, 8388608
        %v7445 = vsub.s32 0, %v7444
        %v7446 = vadd.s32 %v7441, 1
        %vm7447 = vcmp.gt.s32.totalorder %v7446, 0
        %v7448 = vsel %vm7447, %v7446, 0
        %v7449 = vshrl.u32 %v7448, 5
        %v7450 = vand.u32 %v7448, 31
        %v7451 = vsub.s32 32, %v7450
        %v7452 = vshrl.u32 683565275, %v7451
        %v7453 = vshll.u32 683565275, %v7450
        %v7454 = vshrl.u32 2475754826, %v7451
        %v7455 = vor.u32 %v7453, %v7454
        %v7456 = vshll.u32 2475754826, %v7450
        %v7457 = vshrl.u32 2131351028, %v7451
        %v7458 = vor.u32 %v7456, %v7457
        %v7459 = vshll.u32 2131351028, %v7450
        %v7460 = vshrl.u32 2102212464, %v7451
        %v7461 = vor.u32 %v7459, %v7460
        %v7462 = vshll.u32 2102212464, %v7450
        %v7463 = vshrl.u32 920167782, %v7451
        %v7464 = vor.u32 %v7462, %v7463
        %v7465 = vshll.u32 920167782, %v7450
        %v7466 = vshrl.u32 1326507024, %v7451
        %v7467 = vor.u32 %v7465, %v7466
        %vm7468 = vcmp.lt.s32.totalorder %v7449, 1
        %vm7469 = vcmp.lt.s32.totalorder %v7449, 2
        %vm7470 = vcmp.lt.s32.totalorder %v7449, 3
        %vm7471 = vcmp.lt.s32.totalorder %v7449, 4
        %v7472 = vsel %vm7468, %v7452, %v7455
        %v7473 = vsel %vm7471, %v7461, 2102212464
        %v7474 = vsel %vm7470, %v7458, %v7473
        %v7475 = vsel %vm7469, %v7472, %v7474
        %v7476 = vsel %vm7468, %v7455, %v7458
        %v7477 = vsel %vm7471, %v7464, 920167782
        %v7478 = vsel %vm7470, %v7461, %v7477
        %v7479 = vsel %vm7469, %v7476, %v7478
        %v7480 = vsel %vm7468, %v7458, %v7461
        %v7481 = vsel %vm7471, %v7467, 1326507024
        %v7482 = vsel %vm7470, %v7464, %v7481
        %v7483 = vsel %vm7469, %v7480, %v7482
        %v7484 = vshll.u32 %v7444, 8
        %v7485 = vand.u32 %v7484, 65535
        %v7486 = vshrl.u32 %v7484, 16
        %v7487 = vand.u32 %v7483, 65535
        %v7488 = vshrl.u32 %v7483, 16
        %v7489 = vmul.u32 %v7485, %v7487
        %v7490 = vmul.u32 %v7485, %v7488
        %v7491 = vmul.u32 %v7486, %v7487
        %v7492 = vmul.u32 %v7486, %v7488
        %v7493 = vshll.u32 %v7490, 16
        %v7494 = vshrl.u32 %v7490, 16
        %v7495 = vshll.u32 %v7491, 16
        %v7496 = vshrl.u32 %v7491, 16
        %vm7497 = vc.u32 %v7489, %v7493
        %v7498 = vsel %vm7497, 1, 0
        %v7499 = vadd.s32 %v7489, %v7493
        %v7500 = vadd.s32 %v7492, %v7498
        %vm7501 = vc.u32 %v7499, %v7495
        %v7502 = vsel %vm7501, 1, 0
        %v7503 = vadd.s32 %v7499, %v7495
        %v7504 = vadd.s32 %v7500, %v7502
        %v7505 = vadd.s32 %v7504, %v7494
        %v7506 = vadd.s32 %v7505, %v7496
        %v7507 = vand.u32 %v7484, 65535
        %v7508 = vshrl.u32 %v7484, 16
        %v7509 = vand.u32 %v7479, 65535
        %v7510 = vshrl.u32 %v7479, 16
        %v7511 = vmul.u32 %v7507, %v7509
        %v7512 = vmul.u32 %v7507, %v7510
        %v7513 = vmul.u32 %v7508, %v7509
        %v7514 = vmul.u32 %v7508, %v7510
        %v7515 = vshll.u32 %v7512, 16
        %v7516 = vshrl.u32 %v7512, 16
        %v7517 = vshll.u32 %v7513, 16
        %v7518 = vshrl.u32 %v7513, 16
        %vm7519 = vc.u32 %v7511, %v7515
        %v7520 = vsel %vm7519, 1, 0
        %v7521 = vadd.s32 %v7511, %v7515
        %v7522 = vadd.s32 %v7514, %v7520
        %vm7523 = vc.u32 %v7521, %v7517
        %v7524 = vsel %vm7523, 1, 0
        %v7525 = vadd.s32 %v7521, %v7517
        %v7526 = vadd.s32 %v7522, %v7524
        %v7527 = vadd.s32 %v7526, %v7516
        %v7528 = vadd.s32 %v7527, %v7518
        %v7529 = vmul.u32 %v7484, %v7475
        %v7530 = vadd.s32 %v7506, %v7525
        %vm7531 = vc.u32 %v7506, %v7525
        %v7532 = vadd.s32 %v7528, 1
        %v7533 = vsel %vm7531, %v7532, %v7528
        %v7534 = vadd.s32 %v7529, %v7533
        %v7535 = vadd.s32 %v7534, 536870912
        %v7536 = vshrl.u32 %v7535, 30
        %v7537 = vshll.u32 %v7536, 30
        %v7538 = vsub.s32 %v7534, %v7537
        %vm7539 = vcmp.lt.s32.totalorder %v7538, 0
        %v7540 = vsub.s32 0, %v7538
        %v7541 = vsel %vm7539, %v7540, %v7538
        %v7542 = vclz %v7541
        %v7543 = vsub.s32 %v7542, 2
        %vm7544 = vcmp.gt.s32.totalorder 0, %v7543
        %v7545 = vsel %vm7544, 0, %v7543
        %v7546 = vsub.s32 32, %v7545
        %v7547 = vshll.u32 %v7538, %v7545
        %v7548 = vshrl.u32 %v7530, %v7546
        %v7549 = vor.u32 %v7547, %v7548
        %v7550 = vsub.s32 4294967266, %v7545
        %v7551 = vadd.s32 %v7550, 127
        %v7552 = vshll.u32 %v7551, 23
        %v7553 = vor.u32 4788187, %v7552
        %v7554 = vand.u32 2147483647, %v7553
        %v7556 = vcvt.s32.f32 %v7549
        %v7557 = vmul.f32 %v7556, %v7554
        %v7558 = vxor.u32 %v7557, 2147483648
        %v7559 = vsel %vm7438, %v7558, %v7557
        %v7560 = vsub.s32 4, %v7536
        %v7561 = vsel %vm7438, %v7560, %v7536
        %v7562 = vsel %vm7437, %v288, %v7559
        %v7563 = vsel %vm7437, 0, %v7561
        %v7564 = vmul.f32 %v7562, %v7562
        %v7565 = vmul.f32 %v7564, -0.001358992
        %v7566 = vadd.f32 %v7565, 0.041655596
        %v7567 = vmul.f32 %v7564, %v7566
        %v7568 = vadd.f32 %v7567, -0.4999988
        %v7569 = vmul.f32 %v7564, %v7568
        %v7570 = vadd.f32 1.0, %v7569
        %v7571 = vmul.f32 %v7562, %v7562
        %v7572 = vmul.f32 %v7571, -0.00019511016
        %v7573 = vadd.f32 %v7572, 0.008332121
        %v7574 = vmul.f32 %v7571, %v7573
        %v7575 = vadd.f32 %v7574, -0.16666654
        %v7576 = vmul.f32 %v7571, %v7575
        %v7577 = vadd.f32 %v7576, 1.0
        %v7578 = vmul.f32 %v7577, %v7562
        %vm7579 = vweird.f32 %v288
        %v7580 = vadd.s32 %v7563, 3
        %v7581 = vand.u32 %v7580, 3
        %vm7582 = vcmp.lt.s32.totalorder %v7581, 2
        %vm7583 = vcmp.eq.s32.totalorder %v7581, 0
        %v7584 = vxor.u32 %v7578, 2147483648
        %v7585 = vsel %vm7583, %v7570, %v7584
        %vm7586 = vcmp.eq.s32.totalorder %v7581, 2
        %v7587 = vxor.u32 %v7570, 2147483648
        %v7588 = vsel %vm7586, %v7587, %v7578
        %v7589 = vsel %vm7582, %v7585, %v7588
        %v7590 = vsel %vm7579, nan, %v7589
        %v7591 = vand.u32 2147483647, %v289
        %vm7592 = vcmp.le.f32.partialorder %v7591, 0.7853982
        %vm7593 = vcmp.lt.s32.totalorder %v289, 0
        %v7594 = vand.u32 %v289, 2139095040
        %v7595 = vshrl.u32 %v7594, 23
        %v7596 = vsub.s32 %v7595, 127
        %v7597 = vand.u32 2147483647, %v289
        %v7598 = vand.u32 %v7597, 8388607
        %v7599 = vor.u32 %v7598, 8388608
        %v7600 = vsub.s32 0, %v7599
        %v7601 = vadd.s32 %v7596, 1
        %vm7602 = vcmp.gt.s32.totalorder %v7601, 0
        %v7603 = vsel %vm7602, %v7601, 0
        %v7604 = vshrl.u32 %v7603, 5
        %v7605 = vand.u32 %v7603, 31
        %v7606 = vsub.s32 32, %v7605
        %v7607 = vshrl.u32 683565275, %v7606
        %v7608 = vshll.u32 683565275, %v7605
        %v7609 = vshrl.u32 2475754826, %v7606
        %v7610 = vor.u32 %v7608, %v7609
        %v7611 = vshll.u32 2475754826, %v7605
        %v7612 = vshrl.u32 2131351028, %v7606
        %v7613 = vor.u32 %v7611, %v7612
        %v7614 = vshll.u32 2131351028, %v7605
        %v7615 = vshrl.u32 2102212464, %v7606
        %v7616 = vor.u32 %v7614, %v7615
        %v7617 = vshll.u32 2102212464, %v7605
        %v7618 = vshrl.u32 920167782, %v7606
        %v7619 = vor.u32 %v7617, %v7618
        %v7620 = vshll.u32 920167782, %v7605
        %v7621 = vshrl.u32 1326507024, %v7606
        %v7622 = vor.u32 %v7620, %v7621
        %vm7623 = vcmp.lt.s32.totalorder %v7604, 1
        %vm7624 = vcmp.lt.s32.totalorder %v7604, 2
        %vm7625 = vcmp.lt.s32.totalorder %v7604, 3
        %vm7626 = vcmp.lt.s32.totalorder %v7604, 4
        %v7627 = vsel %vm7623, %v7607, %v7610
        %v7628 = vsel %vm7626, %v7616, 2102212464
        %v7629 = vsel %vm7625, %v7613, %v7628
        %v7630 = vsel %vm7624, %v7627, %v7629
        %v7631 = vsel %vm7623, %v7610, %v7613
        %v7632 = vsel %vm7626, %v7619, 920167782
        %v7633 = vsel %vm7625, %v7616, %v7632
        %v7634 = vsel %vm7624, %v7631, %v7633
        %v7635 = vsel %vm7623, %v7613, %v7616
        %v7636 = vsel %vm7626, %v7622, 1326507024
        %v7637 = vsel %vm7625, %v7619, %v7636
        %v7638 = vsel %vm7624, %v7635, %v7637
        %v7639 = vshll.u32 %v7599, 8
        %v7640 = vand.u32 %v7639, 65535
        %v7641 = vshrl.u32 %v7639, 16
        %v7642 = vand.u32 %v7638, 65535
        %v7643 = vshrl.u32 %v7638, 16
        %v7644 = vmul.u32 %v7640, %v7642
        %v7645 = vmul.u32 %v7640, %v7643
        %v7646 = vmul.u32 %v7641, %v7642
        %v7647 = vmul.u32 %v7641, %v7643
        %v7648 = vshll.u32 %v7645, 16
        %v7649 = vshrl.u32 %v7645, 16
        %v7650 = vshll.u32 %v7646, 16
        %v7651 = vshrl.u32 %v7646, 16
        %vm7652 = vc.u32 %v7644, %v7648
        %v7653 = vsel %vm7652, 1, 0
        %v7654 = vadd.s32 %v7644, %v7648
        %v7655 = vadd.s32 %v7647, %v7653
        %vm7656 = vc.u32 %v7654, %v7650
        %v7657 = vsel %vm7656, 1, 0
        %v7658 = vadd.s32 %v7654, %v7650
        %v7659 = vadd.s32 %v7655, %v7657
        %v7660 = vadd.s32 %v7659, %v7649
        %v7661 = vadd.s32 %v7660, %v7651
        %v7662 = vand.u32 %v7639, 65535
        %v7663 = vshrl.u32 %v7639, 16
        %v7664 = vand.u32 %v7634, 65535
        %v7665 = vshrl.u32 %v7634, 16
        %v7666 = vmul.u32 %v7662, %v7664
        %v7667 = vmul.u32 %v7662, %v7665
        %v7668 = vmul.u32 %v7663, %v7664
        %v7669 = vmul.u32 %v7663, %v7665
        %v7670 = vshll.u32 %v7667, 16
        %v7671 = vshrl.u32 %v7667, 16
        %v7672 = vshll.u32 %v7668, 16
        %v7673 = vshrl.u32 %v7668, 16
        %vm7674 = vc.u32 %v7666, %v7670
        %v7675 = vsel %vm7674, 1, 0
        %v7676 = vadd.s32 %v7666, %v7670
        %v7677 = vadd.s32 %v7669, %v7675
        %vm7678 = vc.u32 %v7676, %v7672
        %v7679 = vsel %vm7678, 1, 0
        %v7680 = vadd.s32 %v7676, %v7672
        %v7681 = vadd.s32 %v7677, %v7679
        %v7682 = vadd.s32 %v7681, %v7671
        %v7683 = vadd.s32 %v7682, %v7673
        %v7684 = vmul.u32 %v7639, %v7630
        %v7685 = vadd.s32 %v7661, %v7680
        %vm7686 = vc.u32 %v7661, %v7680
        %v7687 = vadd.s32 %v7683, 1
        %v7688 = vsel %vm7686, %v7687, %v7683
        %v7689 = vadd.s32 %v7684, %v7688
        %v7690 = vadd.s32 %v7689, 536870912
        %v7691 = vshrl.u32 %v7690, 30
        %v7692 = vshll.u32 %v7691, 30
        %v7693 = vsub.s32 %v7689, %v7692
        %vm7694 = vcmp.lt.s32.totalorder %v7693, 0
        %v7695 = vsub.s32 0, %v7693
        %v7696 = vsel %vm7694, %v7695, %v7693
        %v7697 = vclz %v7696
        %v7698 = vsub.s32 %v7697, 2
        %vm7699 = vcmp.gt.s32.totalorder 0, %v7698
        %v7700 = vsel %vm7699, 0, %v7698
        %v7701 = vsub.s32 32, %v7700
        %v7702 = vshll.u32 %v7693, %v7700
        %v7703 = vshrl.u32 %v7685, %v7701
        %v7704 = vor.u32 %v7702, %v7703
        %v7705 = vsub.s32 4294967266, %v7700
        %v7706 = vadd.s32 %v7705, 127
        %v7707 = vshll.u32 %v7706, 23
        %v7708 = vor.u32 4788187, %v7707
        %v7709 = vand.u32 2147483647, %v7708
        %v7711 = vcvt.s32.f32 %v7704
        %v7712 = vmul.f32 %v7711, %v7709
        %v7713 = vxor.u32 %v7712, 2147483648
        %v7714 = vsel %vm7593, %v7713, %v7712
        %v7715 = vsub.s32 4, %v7691
        %v7716 = vsel %vm7593, %v7715, %v7691
        %v7717 = vsel %vm7592, %v289, %v7714
        %v7718 = vsel %vm7592, 0, %v7716
        %v7719 = vmul.f32 %v7717, %v7717
        %v7720 = vmul.f32 %v7719, -0.001358992
        %v7721 = vadd.f32 %v7720, 0.041655596
        %v7722 = vmul.f32 %v7719, %v7721
        %v7723 = vadd.f32 %v7722, -0.4999988
        %v7724 = vmul.f32 %v7719, %v7723
        %v7725 = vadd.f32 1.0, %v7724
        %v7726 = vmul.f32 %v7717, %v7717
        %v7727 = vmul.f32 %v7726, -0.00019511016
        %v7728 = vadd.f32 %v7727, 0.008332121
        %v7729 = vmul.f32 %v7726, %v7728
        %v7730 = vadd.f32 %v7729, -0.16666654
        %v7731 = vmul.f32 %v7726, %v7730
        %v7732 = vadd.f32 %v7731, 1.0
        %v7733 = vmul.f32 %v7732, %v7717
        %vm7734 = vweird.f32 %v289
        %v7735 = vadd.s32 %v7718, 3
        %v7736 = vand.u32 %v7735, 3
        %vm7737 = vcmp.lt.s32.totalorder %v7736, 2
        %vm7738 = vcmp.eq.s32.totalorder %v7736, 0
        %v7739 = vxor.u32 %v7733, 2147483648
        %v7740 = vsel %vm7738, %v7725, %v7739
        %vm7741 = vcmp.eq.s32.totalorder %v7736, 2
        %v7742 = vxor.u32 %v7725, 2147483648
        %v7743 = vsel %vm7741, %v7742, %v7733
        %v7744 = vsel %vm7737, %v7740, %v7743
        %v7745 = vsel %vm7734, nan, %v7744
        %v7746 = vand.u32 2147483647, %v290
        %vm7747 = vcmp.le.f32.partialorder %v7746, 0.7853982
        %vm7748 = vcmp.lt.s32.totalorder %v290, 0
        %v7749 = vand.u32 %v290, 2139095040
        %v7750 = vshrl.u32 %v7749, 23
        %v7751 = vsub.s32 %v7750, 127
        %v7752 = vand.u32 2147483647, %v290
        %v7753 = vand.u32 %v7752, 8388607
        %v7754 = vor.u32 %v7753, 8388608
        %v7755 = vsub.s32 0, %v7754
        %v7756 = vadd.s32 %v7751, 1
        %vm7757 = vcmp.gt.s32.totalorder %v7756, 0
        %v7758 = vsel %vm7757, %v7756, 0
        %v7759 = vshrl.u32 %v7758, 5
        %v7760 = vand.u32 %v7758, 31
        %v7761 = vsub.s32 32, %v7760
        %v7762 = vshrl.u32 683565275, %v7761
        %v7763 = vshll.u32 683565275, %v7760
        %v7764 = vshrl.u32 2475754826, %v7761
        %v7765 = vor.u32 %v7763, %v7764
        %v7766 = vshll.u32 2475754826, %v7760
        %v7767 = vshrl.u32 2131351028, %v7761
        %v7768 = vor.u32 %v7766, %v7767
        %v7769 = vshll.u32 2131351028, %v7760
        %v7770 = vshrl.u32 2102212464, %v7761
        %v7771 = vor.u32 %v7769, %v7770
        %v7772 = vshll.u32 2102212464, %v7760
        %v7773 = vshrl.u32 920167782, %v7761
        %v7774 = vor.u32 %v7772, %v7773
        %v7775 = vshll.u32 920167782, %v7760
        %v7776 = vshrl.u32 1326507024, %v7761
        %v7777 = vor.u32 %v7775, %v7776
        %vm7778 = vcmp.lt.s32.totalorder %v7759, 1
        %vm7779 = vcmp.lt.s32.totalorder %v7759, 2
        %vm7780 = vcmp.lt.s32.totalorder %v7759, 3
        %vm7781 = vcmp.lt.s32.totalorder %v7759, 4
        %v7782 = vsel %vm7778, %v7762, %v7765
        %v7783 = vsel %vm7781, %v7771, 2102212464
        %v7784 = vsel %vm7780, %v7768, %v7783
        %v7785 = vsel %vm7779, %v7782, %v7784
        %v7786 = vsel %vm7778, %v7765, %v7768
        %v7787 = vsel %vm7781, %v7774, 920167782
        %v7788 = vsel %vm7780, %v7771, %v7787
        %v7789 = vsel %vm7779, %v7786, %v7788
        %v7790 = vsel %vm7778, %v7768, %v7771
        %v7791 = vsel %vm7781, %v7777, 1326507024
        %v7792 = vsel %vm7780, %v7774, %v7791
        %v7793 = vsel %vm7779, %v7790, %v7792
        %v7794 = vshll.u32 %v7754, 8
        %v7795 = vand.u32 %v7794, 65535
        %v7796 = vshrl.u32 %v7794, 16
        %v7797 = vand.u32 %v7793, 65535
        %v7798 = vshrl.u32 %v7793, 16
        %v7799 = vmul.u32 %v7795, %v7797
        %v7800 = vmul.u32 %v7795, %v7798
        %v7801 = vmul.u32 %v7796, %v7797
        %v7802 = vmul.u32 %v7796, %v7798
        %v7803 = vshll.u32 %v7800, 16
        %v7804 = vshrl.u32 %v7800, 16
        %v7805 = vshll.u32 %v7801, 16
        %v7806 = vshrl.u32 %v7801, 16
        %vm7807 = vc.u32 %v7799, %v7803
        %v7808 = vsel %vm7807, 1, 0
        %v7809 = vadd.s32 %v7799, %v7803
        %v7810 = vadd.s32 %v7802, %v7808
        %vm7811 = vc.u32 %v7809, %v7805
        %v7812 = vsel %vm7811, 1, 0
        %v7813 = vadd.s32 %v7809, %v7805
        %v7814 = vadd.s32 %v7810, %v7812
        %v7815 = vadd.s32 %v7814, %v7804
        %v7816 = vadd.s32 %v7815, %v7806
        %v7817 = vand.u32 %v7794, 65535
        %v7818 = vshrl.u32 %v7794, 16
        %v7819 = vand.u32 %v7789, 65535
        %v7820 = vshrl.u32 %v7789, 16
        %v7821 = vmul.u32 %v7817, %v7819
        %v7822 = vmul.u32 %v7817, %v7820
        %v7823 = vmul.u32 %v7818, %v7819
        %v7824 = vmul.u32 %v7818, %v7820
        %v7825 = vshll.u32 %v7822, 16
        %v7826 = vshrl.u32 %v7822, 16
        %v7827 = vshll.u32 %v7823, 16
        %v7828 = vshrl.u32 %v7823, 16
        %vm7829 = vc.u32 %v7821, %v7825
        %v7830 = vsel %vm7829, 1, 0
        %v7831 = vadd.s32 %v7821, %v7825
        %v7832 = vadd.s32 %v7824, %v7830
        %vm7833 = vc.u32 %v7831, %v7827
        %v7834 = vsel %vm7833, 1, 0
        %v7835 = vadd.s32 %v7831, %v7827
        %v7836 = vadd.s32 %v7832, %v7834
        %v7837 = vadd.s32 %v7836, %v7826
        %v7838 = vadd.s32 %v7837, %v7828
        %v7839 = vmul.u32 %v7794, %v7785
        %v7840 = vadd.s32 %v7816, %v7835
        %vm7841 = vc.u32 %v7816, %v7835
        %v7842 = vadd.s32 %v7838, 1
        %v7843 = vsel %vm7841, %v7842, %v7838
        %v7844 = vadd.s32 %v7839, %v7843
        %v7845 = vadd.s32 %v7844, 536870912
        %v7846 = vshrl.u32 %v7845, 30
        %v7847 = vshll.u32 %v7846, 30
        %v7848 = vsub.s32 %v7844, %v7847
        %vm7849 = vcmp.lt.s32.totalorder %v7848, 0
        %v7850 = vsub.s32 0, %v7848
        %v7851 = vsel %vm7849, %v7850, %v7848
        %v7852 = vclz %v7851
        %v7853 = vsub.s32 %v7852, 2
        %vm7854 = vcmp.gt.s32.totalorder 0, %v7853
        %v7855 = vsel %vm7854, 0, %v7853
        %v7856 = vsub.s32 32, %v7855
        %v7857 = vshll.u32 %v7848, %v7855
        %v7858 = vshrl.u32 %v7840, %v7856
        %v7859 = vor.u32 %v7857, %v7858
        %v7860 = vsub.s32 4294967266, %v7855
        %v7861 = vadd.s32 %v7860, 127
        %v7862 = vshll.u32 %v7861, 23
        %v7863 = vor.u32 4788187, %v7862
        %v7864 = vand.u32 2147483647, %v7863
        %v7866 = vcvt.s32.f32 %v7859
        %v7867 = vmul.f32 %v7866, %v7864
        %v7868 = vxor.u32 %v7867, 2147483648
        %v7869 = vsel %vm7748, %v7868, %v7867
        %v7870 = vsub.s32 4, %v7846
        %v7871 = vsel %vm7748, %v7870, %v7846
        %v7872 = vsel %vm7747, %v290, %v7869
        %v7873 = vsel %vm7747, 0, %v7871
        %v7874 = vmul.f32 %v7872, %v7872
        %v7875 = vmul.f32 %v7874, -0.001358992
        %v7876 = vadd.f32 %v7875, 0.041655596
        %v7877 = vmul.f32 %v7874, %v7876
        %v7878 = vadd.f32 %v7877, -0.4999988
        %v7879 = vmul.f32 %v7874, %v7878
        %v7880 = vadd.f32 1.0, %v7879
        %v7881 = vmul.f32 %v7872, %v7872
        %v7882 = vmul.f32 %v7881, -0.00019511016
        %v7883 = vadd.f32 %v7882, 0.008332121
        %v7884 = vmul.f32 %v7881, %v7883
        %v7885 = vadd.f32 %v7884, -0.16666654
        %v7886 = vmul.f32 %v7881, %v7885
        %v7887 = vadd.f32 %v7886, 1.0
        %v7888 = vmul.f32 %v7887, %v7872
        %vm7889 = vweird.f32 %v290
        %v7890 = vadd.s32 %v7873, 3
        %v7891 = vand.u32 %v7890, 3
        %vm7892 = vcmp.lt.s32.totalorder %v7891, 2
        %vm7893 = vcmp.eq.s32.totalorder %v7891, 0
        %v7894 = vxor.u32 %v7888, 2147483648
        %v7895 = vsel %vm7893, %v7880, %v7894
        %vm7896 = vcmp.eq.s32.totalorder %v7891, 2
        %v7897 = vxor.u32 %v7880, 2147483648
        %v7898 = vsel %vm7896, %v7897, %v7888
        %v7899 = vsel %vm7892, %v7895, %v7898
        %v7900 = vsel %vm7889, nan, %v7899
        %v7901 = vand.u32 2147483647, %v291
        %vm7902 = vcmp.le.f32.partialorder %v7901, 0.7853982
        %vm7903 = vcmp.lt.s32.totalorder %v291, 0
        %v7904 = vand.u32 %v291, 2139095040
        %v7905 = vshrl.u32 %v7904, 23
        %v7906 = vsub.s32 %v7905, 127
        %v7907 = vand.u32 2147483647, %v291
        %v7908 = vand.u32 %v7907, 8388607
        %v7909 = vor.u32 %v7908, 8388608
        %v7910 = vsub.s32 0, %v7909
        %v7911 = vadd.s32 %v7906, 1
        %vm7912 = vcmp.gt.s32.totalorder %v7911, 0
        %v7913 = vsel %vm7912, %v7911, 0
        %v7914 = vshrl.u32 %v7913, 5
        %v7915 = vand.u32 %v7913, 31
        %v7916 = vsub.s32 32, %v7915
        %v7917 = vshrl.u32 683565275, %v7916
        %v7918 = vshll.u32 683565275, %v7915
        %v7919 = vshrl.u32 2475754826, %v7916
        %v7920 = vor.u32 %v7918, %v7919
        %v7921 = vshll.u32 2475754826, %v7915
        %v7922 = vshrl.u32 2131351028, %v7916
        %v7923 = vor.u32 %v7921, %v7922
        %v7924 = vshll.u32 2131351028, %v7915
        %v7925 = vshrl.u32 2102212464, %v7916
        %v7926 = vor.u32 %v7924, %v7925
        %v7927 = vshll.u32 2102212464, %v7915
        %v7928 = vshrl.u32 920167782, %v7916
        %v7929 = vor.u32 %v7927, %v7928
        %v7930 = vshll.u32 920167782, %v7915
        %v7931 = vshrl.u32 1326507024, %v7916
        %v7932 = vor.u32 %v7930, %v7931
        %vm7933 = vcmp.lt.s32.totalorder %v7914, 1
        %vm7934 = vcmp.lt.s32.totalorder %v7914, 2
        %vm7935 = vcmp.lt.s32.totalorder %v7914, 3
        %vm7936 = vcmp.lt.s32.totalorder %v7914, 4
        %v7937 = vsel %vm7933, %v7917, %v7920
        %v7938 = vsel %vm7936, %v7926, 2102212464
        %v7939 = vsel %vm7935, %v7923, %v7938
        %v7940 = vsel %vm7934, %v7937, %v7939
        %v7941 = vsel %vm7933, %v7920, %v7923
        %v7942 = vsel %vm7936, %v7929, 920167782
        %v7943 = vsel %vm7935, %v7926, %v7942
        %v7944 = vsel %vm7934, %v7941, %v7943
        %v7945 = vsel %vm7933, %v7923, %v7926
        %v7946 = vsel %vm7936, %v7932, 1326507024
        %v7947 = vsel %vm7935, %v7929, %v7946
        %v7948 = vsel %vm7934, %v7945, %v7947
        %v7949 = vshll.u32 %v7909, 8
        %v7950 = vand.u32 %v7949, 65535
        %v7951 = vshrl.u32 %v7949, 16
        %v7952 = vand.u32 %v7948, 65535
        %v7953 = vshrl.u32 %v7948, 16
        %v7954 = vmul.u32 %v7950, %v7952
        %v7955 = vmul.u32 %v7950, %v7953
        %v7956 = vmul.u32 %v7951, %v7952
        %v7957 = vmul.u32 %v7951, %v7953
        %v7958 = vshll.u32 %v7955, 16
        %v7959 = vshrl.u32 %v7955, 16
        %v7960 = vshll.u32 %v7956, 16
        %v7961 = vshrl.u32 %v7956, 16
        %vm7962 = vc.u32 %v7954, %v7958
        %v7963 = vsel %vm7962, 1, 0
        %v7964 = vadd.s32 %v7954, %v7958
        %v7965 = vadd.s32 %v7957, %v7963
        %vm7966 = vc.u32 %v7964, %v7960
        %v7967 = vsel %vm7966, 1, 0
        %v7968 = vadd.s32 %v7964, %v7960
        %v7969 = vadd.s32 %v7965, %v7967
        %v7970 = vadd.s32 %v7969, %v7959
        %v7971 = vadd.s32 %v7970, %v7961
        %v7972 = vand.u32 %v7949, 65535
        %v7973 = vshrl.u32 %v7949, 16
        %v7974 = vand.u32 %v7944, 65535
        %v7975 = vshrl.u32 %v7944, 16
        %v7976 = vmul.u32 %v7972, %v7974
        %v7977 = vmul.u32 %v7972, %v7975
        %v7978 = vmul.u32 %v7973, %v7974
        %v7979 = vmul.u32 %v7973, %v7975
        %v7980 = vshll.u32 %v7977, 16
        %v7981 = vshrl.u32 %v7977, 16
        %v7982 = vshll.u32 %v7978, 16
        %v7983 = vshrl.u32 %v7978, 16
        %vm7984 = vc.u32 %v7976, %v7980
        %v7985 = vsel %vm7984, 1, 0
        %v7986 = vadd.s32 %v7976, %v7980
        %v7987 = vadd.s32 %v7979, %v7985
        %vm7988 = vc.u32 %v7986, %v7982
        %v7989 = vsel %vm7988, 1, 0
        %v7990 = vadd.s32 %v7986, %v7982
        %v7991 = vadd.s32 %v7987, %v7989
        %v7992 = vadd.s32 %v7991, %v7981
        %v7993 = vadd.s32 %v7992, %v7983
        %v7994 = vmul.u32 %v7949, %v7940
        %v7995 = vadd.s32 %v7971, %v7990
        %vm7996 = vc.u32 %v7971, %v7990
        %v7997 = vadd.s32 %v7993, 1
        %v7998 = vsel %vm7996, %v7997, %v7993
        %v7999 = vadd.s32 %v7994, %v7998
        %v8000 = vadd.s32 %v7999, 536870912
        %v8001 = vshrl.u32 %v8000, 30
        %v8002 = vshll.u32 %v8001, 30
        %v8003 = vsub.s32 %v7999, %v8002
        %vm8004 = vcmp.lt.s32.totalorder %v8003, 0
        %v8005 = vsub.s32 0, %v8003
        %v8006 = vsel %vm8004, %v8005, %v8003
        %v8007 = vclz %v8006
        %v8008 = vsub.s32 %v8007, 2
        %vm8009 = vcmp.gt.s32.totalorder 0, %v8008
        %v8010 = vsel %vm8009, 0, %v8008
        %v8011 = vsub.s32 32, %v8010
        %v8012 = vshll.u32 %v8003, %v8010
        %v8013 = vshrl.u32 %v7995, %v8011
        %v8014 = vor.u32 %v8012, %v8013
        %v8015 = vsub.s32 4294967266, %v8010
        %v8016 = vadd.s32 %v8015, 127
        %v8017 = vshll.u32 %v8016, 23
        %v8018 = vor.u32 4788187, %v8017
        %v8019 = vand.u32 2147483647, %v8018
        %v8021 = vcvt.s32.f32 %v8014
        %v8022 = vmul.f32 %v8021, %v8019
        %v8023 = vxor.u32 %v8022, 2147483648
        %v8024 = vsel %vm7903, %v8023, %v8022
        %v8025 = vsub.s32 4, %v8001
        %v8026 = vsel %vm7903, %v8025, %v8001
        %v8027 = vsel %vm7902, %v291, %v8024
        %v8028 = vsel %vm7902, 0, %v8026
        %v8029 = vmul.f32 %v8027, %v8027
        %v8030 = vmul.f32 %v8029, -0.001358992
        %v8031 = vadd.f32 %v8030, 0.041655596
        %v8032 = vmul.f32 %v8029, %v8031
        %v8033 = vadd.f32 %v8032, -0.4999988
        %v8034 = vmul.f32 %v8029, %v8033
        %v8035 = vadd.f32 1.0, %v8034
        %v8036 = vmul.f32 %v8027, %v8027
        %v8037 = vmul.f32 %v8036, -0.00019511016
        %v8038 = vadd.f32 %v8037, 0.008332121
        %v8039 = vmul.f32 %v8036, %v8038
        %v8040 = vadd.f32 %v8039, -0.16666654
        %v8041 = vmul.f32 %v8036, %v8040
        %v8042 = vadd.f32 %v8041, 1.0
        %v8043 = vmul.f32 %v8042, %v8027
        %vm8044 = vweird.f32 %v291
        %v8045 = vadd.s32 %v8028, 3
        %v8046 = vand.u32 %v8045, 3
        %vm8047 = vcmp.lt.s32.totalorder %v8046, 2
        %vm8048 = vcmp.eq.s32.totalorder %v8046, 0
        %v8049 = vxor.u32 %v8043, 2147483648
        %v8050 = vsel %vm8048, %v8035, %v8049
        %vm8051 = vcmp.eq.s32.totalorder %v8046, 2
        %v8052 = vxor.u32 %v8035, 2147483648
        %v8053 = vsel %vm8051, %v8052, %v8043
        %v8054 = vsel %vm8047, %v8050, %v8053
        %v8055 = vsel %vm8044, nan, %v8054
        %v8056 = vand.u32 2147483647, %v292
        %vm8057 = vcmp.le.f32.partialorder %v8056, 0.7853982
        %vm8058 = vcmp.lt.s32.totalorder %v292, 0
        %v8059 = vand.u32 %v292, 2139095040
        %v8060 = vshrl.u32 %v8059, 23
        %v8061 = vsub.s32 %v8060, 127
        %v8062 = vand.u32 2147483647, %v292
        %v8063 = vand.u32 %v8062, 8388607
        %v8064 = vor.u32 %v8063, 8388608
        %v8065 = vsub.s32 0, %v8064
        %v8066 = vadd.s32 %v8061, 1
        %vm8067 = vcmp.gt.s32.totalorder %v8066, 0
        %v8068 = vsel %vm8067, %v8066, 0
        %v8069 = vshrl.u32 %v8068, 5
        %v8070 = vand.u32 %v8068, 31
        %v8071 = vsub.s32 32, %v8070
        %v8072 = vshrl.u32 683565275, %v8071
        %v8073 = vshll.u32 683565275, %v8070
        %v8074 = vshrl.u32 2475754826, %v8071
        %v8075 = vor.u32 %v8073, %v8074
        %v8076 = vshll.u32 2475754826, %v8070
        %v8077 = vshrl.u32 2131351028, %v8071
        %v8078 = vor.u32 %v8076, %v8077
        %v8079 = vshll.u32 2131351028, %v8070
        %v8080 = vshrl.u32 2102212464, %v8071
        %v8081 = vor.u32 %v8079, %v8080
        %v8082 = vshll.u32 2102212464, %v8070
        %v8083 = vshrl.u32 920167782, %v8071
        %v8084 = vor.u32 %v8082, %v8083
        %v8085 = vshll.u32 920167782, %v8070
        %v8086 = vshrl.u32 1326507024, %v8071
        %v8087 = vor.u32 %v8085, %v8086
        %vm8088 = vcmp.lt.s32.totalorder %v8069, 1
        %vm8089 = vcmp.lt.s32.totalorder %v8069, 2
        %vm8090 = vcmp.lt.s32.totalorder %v8069, 3
        %vm8091 = vcmp.lt.s32.totalorder %v8069, 4
        %v8092 = vsel %vm8088, %v8072, %v8075
        %v8093 = vsel %vm8091, %v8081, 2102212464
        %v8094 = vsel %vm8090, %v8078, %v8093
        %v8095 = vsel %vm8089, %v8092, %v8094
        %v8096 = vsel %vm8088, %v8075, %v8078
        %v8097 = vsel %vm8091, %v8084, 920167782
        %v8098 = vsel %vm8090, %v8081, %v8097
        %v8099 = vsel %vm8089, %v8096, %v8098
        %v8100 = vsel %vm8088, %v8078, %v8081
        %v8101 = vsel %vm8091, %v8087, 1326507024
        %v8102 = vsel %vm8090, %v8084, %v8101
        %v8103 = vsel %vm8089, %v8100, %v8102
        %v8104 = vshll.u32 %v8064, 8
        %v8105 = vand.u32 %v8104, 65535
        %v8106 = vshrl.u32 %v8104, 16
        %v8107 = vand.u32 %v8103, 65535
        %v8108 = vshrl.u32 %v8103, 16
        %v8109 = vmul.u32 %v8105, %v8107
        %v8110 = vmul.u32 %v8105, %v8108
        %v8111 = vmul.u32 %v8106, %v8107
        %v8112 = vmul.u32 %v8106, %v8108
        %v8113 = vshll.u32 %v8110, 16
        %v8114 = vshrl.u32 %v8110, 16
        %v8115 = vshll.u32 %v8111, 16
        %v8116 = vshrl.u32 %v8111, 16
        %vm8117 = vc.u32 %v8109, %v8113
        %v8118 = vsel %vm8117, 1, 0
        %v8119 = vadd.s32 %v8109, %v8113
        %v8120 = vadd.s32 %v8112, %v8118
        %vm8121 = vc.u32 %v8119, %v8115
        %v8122 = vsel %vm8121, 1, 0
        %v8123 = vadd.s32 %v8119, %v8115
        %v8124 = vadd.s32 %v8120, %v8122
        %v8125 = vadd.s32 %v8124, %v8114
        %v8126 = vadd.s32 %v8125, %v8116
        %v8127 = vand.u32 %v8104, 65535
        %v8128 = vshrl.u32 %v8104, 16
        %v8129 = vand.u32 %v8099, 65535
        %v8130 = vshrl.u32 %v8099, 16
        %v8131 = vmul.u32 %v8127, %v8129
        %v8132 = vmul.u32 %v8127, %v8130
        %v8133 = vmul.u32 %v8128, %v8129
        %v8134 = vmul.u32 %v8128, %v8130
        %v8135 = vshll.u32 %v8132, 16
        %v8136 = vshrl.u32 %v8132, 16
        %v8137 = vshll.u32 %v8133, 16
        %v8138 = vshrl.u32 %v8133, 16
        %vm8139 = vc.u32 %v8131, %v8135
        %v8140 = vsel %vm8139, 1, 0
        %v8141 = vadd.s32 %v8131, %v8135
        %v8142 = vadd.s32 %v8134, %v8140
        %vm8143 = vc.u32 %v8141, %v8137
        %v8144 = vsel %vm8143, 1, 0
        %v8145 = vadd.s32 %v8141, %v8137
        %v8146 = vadd.s32 %v8142, %v8144
        %v8147 = vadd.s32 %v8146, %v8136
        %v8148 = vadd.s32 %v8147, %v8138
        %v8149 = vmul.u32 %v8104, %v8095
        %v8150 = vadd.s32 %v8126, %v8145
        %vm8151 = vc.u32 %v8126, %v8145
        %v8152 = vadd.s32 %v8148, 1
        %v8153 = vsel %vm8151, %v8152, %v8148
        %v8154 = vadd.s32 %v8149, %v8153
        %v8155 = vadd.s32 %v8154, 536870912
        %v8156 = vshrl.u32 %v8155, 30
        %v8157 = vshll.u32 %v8156, 30
        %v8158 = vsub.s32 %v8154, %v8157
        %vm8159 = vcmp.lt.s32.totalorder %v8158, 0
        %v8160 = vsub.s32 0, %v8158
        %v8161 = vsel %vm8159, %v8160, %v8158
        %v8162 = vclz %v8161
        %v8163 = vsub.s32 %v8162, 2
        %vm8164 = vcmp.gt.s32.totalorder 0, %v8163
        %v8165 = vsel %vm8164, 0, %v8163
        %v8166 = vsub.s32 32, %v8165
        %v8167 = vshll.u32 %v8158, %v8165
        %v8168 = vshrl.u32 %v8150, %v8166
        %v8169 = vor.u32 %v8167, %v8168
        %v8170 = vsub.s32 4294967266, %v8165
        %v8171 = vadd.s32 %v8170, 127
        %v8172 = vshll.u32 %v8171, 23
        %v8173 = vor.u32 4788187, %v8172
        %v8174 = vand.u32 2147483647, %v8173
        %v8176 = vcvt.s32.f32 %v8169
        %v8177 = vmul.f32 %v8176, %v8174
        %v8178 = vxor.u32 %v8177, 2147483648
        %v8179 = vsel %vm8058, %v8178, %v8177
        %v8180 = vsub.s32 4, %v8156
        %v8181 = vsel %vm8058, %v8180, %v8156
        %v8182 = vsel %vm8057, %v292, %v8179
        %v8183 = vsel %vm8057, 0, %v8181
        %v8184 = vmul.f32 %v8182, %v8182
        %v8185 = vmul.f32 %v8184, -0.001358992
        %v8186 = vadd.f32 %v8185, 0.041655596
        %v8187 = vmul.f32 %v8184, %v8186
        %v8188 = vadd.f32 %v8187, -0.4999988
        %v8189 = vmul.f32 %v8184, %v8188
        %v8190 = vadd.f32 1.0, %v8189
        %v8191 = vmul.f32 %v8182, %v8182
        %v8192 = vmul.f32 %v8191, -0.00019511016
        %v8193 = vadd.f32 %v8192, 0.008332121
        %v8194 = vmul.f32 %v8191, %v8193
        %v8195 = vadd.f32 %v8194, -0.16666654
        %v8196 = vmul.f32 %v8191, %v8195
        %v8197 = vadd.f32 %v8196, 1.0
        %v8198 = vmul.f32 %v8197, %v8182
        %vm8199 = vweird.f32 %v292
        %v8200 = vadd.s32 %v8183, 3
        %v8201 = vand.u32 %v8200, 3
        %vm8202 = vcmp.lt.s32.totalorder %v8201, 2
        %vm8203 = vcmp.eq.s32.totalorder %v8201, 0
        %v8204 = vxor.u32 %v8198, 2147483648
        %v8205 = vsel %vm8203, %v8190, %v8204
        %vm8206 = vcmp.eq.s32.totalorder %v8201, 2
        %v8207 = vxor.u32 %v8190, 2147483648
        %v8208 = vsel %vm8206, %v8207, %v8198
        %v8209 = vsel %vm8202, %v8205, %v8208
        %v8210 = vsel %vm8199, nan, %v8209
        %v8211 = vand.u32 2147483647, %v293
        %vm8212 = vcmp.le.f32.partialorder %v8211, 0.7853982
        %vm8213 = vcmp.lt.s32.totalorder %v293, 0
        %v8214 = vand.u32 %v293, 2139095040
        %v8215 = vshrl.u32 %v8214, 23
        %v8216 = vsub.s32 %v8215, 127
        %v8217 = vand.u32 2147483647, %v293
        %v8218 = vand.u32 %v8217, 8388607
        %v8219 = vor.u32 %v8218, 8388608
        %v8220 = vsub.s32 0, %v8219
        %v8221 = vadd.s32 %v8216, 1
        %vm8222 = vcmp.gt.s32.totalorder %v8221, 0
        %v8223 = vsel %vm8222, %v8221, 0
        %v8224 = vshrl.u32 %v8223, 5
        %v8225 = vand.u32 %v8223, 31
        %v8226 = vsub.s32 32, %v8225
        %v8227 = vshrl.u32 683565275, %v8226
        %v8228 = vshll.u32 683565275, %v8225
        %v8229 = vshrl.u32 2475754826, %v8226
        %v8230 = vor.u32 %v8228, %v8229
        %v8231 = vshll.u32 2475754826, %v8225
        %v8232 = vshrl.u32 2131351028, %v8226
        %v8233 = vor.u32 %v8231, %v8232
        %v8234 = vshll.u32 2131351028, %v8225
        %v8235 = vshrl.u32 2102212464, %v8226
        %v8236 = vor.u32 %v8234, %v8235
        %v8237 = vshll.u32 2102212464, %v8225
        %v8238 = vshrl.u32 920167782, %v8226
        %v8239 = vor.u32 %v8237, %v8238
        %v8240 = vshll.u32 920167782, %v8225
        %v8241 = vshrl.u32 1326507024, %v8226
        %v8242 = vor.u32 %v8240, %v8241
        %vm8243 = vcmp.lt.s32.totalorder %v8224, 1
        %vm8244 = vcmp.lt.s32.totalorder %v8224, 2
        %vm8245 = vcmp.lt.s32.totalorder %v8224, 3
        %vm8246 = vcmp.lt.s32.totalorder %v8224, 4
        %v8247 = vsel %vm8243, %v8227, %v8230
        %v8248 = vsel %vm8246, %v8236, 2102212464
        %v8249 = vsel %vm8245, %v8233, %v8248
        %v8250 = vsel %vm8244, %v8247, %v8249
        %v8251 = vsel %vm8243, %v8230, %v8233
        %v8252 = vsel %vm8246, %v8239, 920167782
        %v8253 = vsel %vm8245, %v8236, %v8252
        %v8254 = vsel %vm8244, %v8251, %v8253
        %v8255 = vsel %vm8243, %v8233, %v8236
        %v8256 = vsel %vm8246, %v8242, 1326507024
        %v8257 = vsel %vm8245, %v8239, %v8256
        %v8258 = vsel %vm8244, %v8255, %v8257
        %v8259 = vshll.u32 %v8219, 8
        %v8260 = vand.u32 %v8259, 65535
        %v8261 = vshrl.u32 %v8259, 16
        %v8262 = vand.u32 %v8258, 65535
        %v8263 = vshrl.u32 %v8258, 16
        %v8264 = vmul.u32 %v8260, %v8262
        %v8265 = vmul.u32 %v8260, %v8263
        %v8266 = vmul.u32 %v8261, %v8262
        %v8267 = vmul.u32 %v8261, %v8263
        %v8268 = vshll.u32 %v8265, 16
        %v8269 = vshrl.u32 %v8265, 16
        %v8270 = vshll.u32 %v8266, 16
        %v8271 = vshrl.u32 %v8266, 16
        %vm8272 = vc.u32 %v8264, %v8268
        %v8273 = vsel %vm8272, 1, 0
        %v8274 = vadd.s32 %v8264, %v8268
        %v8275 = vadd.s32 %v8267, %v8273
        %vm8276 = vc.u32 %v8274, %v8270
        %v8277 = vsel %vm8276, 1, 0
        %v8278 = vadd.s32 %v8274, %v8270
        %v8279 = vadd.s32 %v8275, %v8277
        %v8280 = vadd.s32 %v8279, %v8269
        %v8281 = vadd.s32 %v8280, %v8271
        %v8282 = vand.u32 %v8259, 65535
        %v8283 = vshrl.u32 %v8259, 16
        %v8284 = vand.u32 %v8254, 65535
        %v8285 = vshrl.u32 %v8254, 16
        %v8286 = vmul.u32 %v8282, %v8284
        %v8287 = vmul.u32 %v8282, %v8285
        %v8288 = vmul.u32 %v8283, %v8284
        %v8289 = vmul.u32 %v8283, %v8285
        %v8290 = vshll.u32 %v8287, 16
        %v8291 = vshrl.u32 %v8287, 16
        %v8292 = vshll.u32 %v8288, 16
        %v8293 = vshrl.u32 %v8288, 16
        %vm8294 = vc.u32 %v8286, %v8290
        %v8295 = vsel %vm8294, 1, 0
        %v8296 = vadd.s32 %v8286, %v8290
        %v8297 = vadd.s32 %v8289, %v8295
        %vm8298 = vc.u32 %v8296, %v8292
        %v8299 = vsel %vm8298, 1, 0
        %v8300 = vadd.s32 %v8296, %v8292
        %v8301 = vadd.s32 %v8297, %v8299
        %v8302 = vadd.s32 %v8301, %v8291
        %v8303 = vadd.s32 %v8302, %v8293
        %v8304 = vmul.u32 %v8259, %v8250
        %v8305 = vadd.s32 %v8281, %v8300
        %vm8306 = vc.u32 %v8281, %v8300
        %v8307 = vadd.s32 %v8303, 1
        %v8308 = vsel %vm8306, %v8307, %v8303
        %v8309 = vadd.s32 %v8304, %v8308
        %v8310 = vadd.s32 %v8309, 536870912
        %v8311 = vshrl.u32 %v8310, 30
        %v8312 = vshll.u32 %v8311, 30
        %v8313 = vsub.s32 %v8309, %v8312
        %vm8314 = vcmp.lt.s32.totalorder %v8313, 0
        %v8315 = vsub.s32 0, %v8313
        %v8316 = vsel %vm8314, %v8315, %v8313
        %v8317 = vclz %v8316
        %v8318 = vsub.s32 %v8317, 2
        %vm8319 = vcmp.gt.s32.totalorder 0, %v8318
        %v8320 = vsel %vm8319, 0, %v8318
        %v8321 = vsub.s32 32, %v8320
        %v8322 = vshll.u32 %v8313, %v8320
        %v8323 = vshrl.u32 %v8305, %v8321
        %v8324 = vor.u32 %v8322, %v8323
        %v8325 = vsub.s32 4294967266, %v8320
        %v8326 = vadd.s32 %v8325, 127
        %v8327 = vshll.u32 %v8326, 23
        %v8328 = vor.u32 4788187, %v8327
        %v8329 = vand.u32 2147483647, %v8328
        %v8331 = vcvt.s32.f32 %v8324
        %v8332 = vmul.f32 %v8331, %v8329
        %v8333 = vxor.u32 %v8332, 2147483648
        %v8334 = vsel %vm8213, %v8333, %v8332
        %v8335 = vsub.s32 4, %v8311
        %v8336 = vsel %vm8213, %v8335, %v8311
        %v8337 = vsel %vm8212, %v293, %v8334
        %v8338 = vsel %vm8212, 0, %v8336
        %v8339 = vmul.f32 %v8337, %v8337
        %v8340 = vmul.f32 %v8339, -0.001358992
        %v8341 = vadd.f32 %v8340, 0.041655596
        %v8342 = vmul.f32 %v8339, %v8341
        %v8343 = vadd.f32 %v8342, -0.4999988
        %v8344 = vmul.f32 %v8339, %v8343
        %v8345 = vadd.f32 1.0, %v8344
        %v8346 = vmul.f32 %v8337, %v8337
        %v8347 = vmul.f32 %v8346, -0.00019511016
        %v8348 = vadd.f32 %v8347, 0.008332121
        %v8349 = vmul.f32 %v8346, %v8348
        %v8350 = vadd.f32 %v8349, -0.16666654
        %v8351 = vmul.f32 %v8346, %v8350
        %v8352 = vadd.f32 %v8351, 1.0
        %v8353 = vmul.f32 %v8352, %v8337
        %vm8354 = vweird.f32 %v293
        %v8355 = vadd.s32 %v8338, 3
        %v8356 = vand.u32 %v8355, 3
        %vm8357 = vcmp.lt.s32.totalorder %v8356, 2
        %vm8358 = vcmp.eq.s32.totalorder %v8356, 0
        %v8359 = vxor.u32 %v8353, 2147483648
        %v8360 = vsel %vm8358, %v8345, %v8359
        %vm8361 = vcmp.eq.s32.totalorder %v8356, 2
        %v8362 = vxor.u32 %v8345, 2147483648
        %v8363 = vsel %vm8361, %v8362, %v8353
        %v8364 = vsel %vm8357, %v8360, %v8363
        %v8365 = vsel %vm8354, nan, %v8364
        %v8366 = vand.u32 2147483647, %v294
        %vm8367 = vcmp.le.f32.partialorder %v8366, 0.7853982
        %vm8368 = vcmp.lt.s32.totalorder %v294, 0
        %v8369 = vand.u32 %v294, 2139095040
        %v8370 = vshrl.u32 %v8369, 23
        %v8371 = vsub.s32 %v8370, 127
        %v8372 = vand.u32 2147483647, %v294
        %v8373 = vand.u32 %v8372, 8388607
        %v8374 = vor.u32 %v8373, 8388608
        %v8375 = vsub.s32 0, %v8374
        %v8376 = vadd.s32 %v8371, 1
        %vm8377 = vcmp.gt.s32.totalorder %v8376, 0
        %v8378 = vsel %vm8377, %v8376, 0
        %v8379 = vshrl.u32 %v8378, 5
        %v8380 = vand.u32 %v8378, 31
        %v8381 = vsub.s32 32, %v8380
        %v8382 = vshrl.u32 683565275, %v8381
        %v8383 = vshll.u32 683565275, %v8380
        %v8384 = vshrl.u32 2475754826, %v8381
        %v8385 = vor.u32 %v8383, %v8384
        %v8386 = vshll.u32 2475754826, %v8380
        %v8387 = vshrl.u32 2131351028, %v8381
        %v8388 = vor.u32 %v8386, %v8387
        %v8389 = vshll.u32 2131351028, %v8380
        %v8390 = vshrl.u32 2102212464, %v8381
        %v8391 = vor.u32 %v8389, %v8390
        %v8392 = vshll.u32 2102212464, %v8380
        %v8393 = vshrl.u32 920167782, %v8381
        %v8394 = vor.u32 %v8392, %v8393
        %v8395 = vshll.u32 920167782, %v8380
        %v8396 = vshrl.u32 1326507024, %v8381
        %v8397 = vor.u32 %v8395, %v8396
        %vm8398 = vcmp.lt.s32.totalorder %v8379, 1
        %vm8399 = vcmp.lt.s32.totalorder %v8379, 2
        %vm8400 = vcmp.lt.s32.totalorder %v8379, 3
        %vm8401 = vcmp.lt.s32.totalorder %v8379, 4
        %v8402 = vsel %vm8398, %v8382, %v8385
        %v8403 = vsel %vm8401, %v8391, 2102212464
        %v8404 = vsel %vm8400, %v8388, %v8403
        %v8405 = vsel %vm8399, %v8402, %v8404
        %v8406 = vsel %vm8398, %v8385, %v8388
        %v8407 = vsel %vm8401, %v8394, 920167782
        %v8408 = vsel %vm8400, %v8391, %v8407
        %v8409 = vsel %vm8399, %v8406, %v8408
        %v8410 = vsel %vm8398, %v8388, %v8391
        %v8411 = vsel %vm8401, %v8397, 1326507024
        %v8412 = vsel %vm8400, %v8394, %v8411
        %v8413 = vsel %vm8399, %v8410, %v8412
        %v8414 = vshll.u32 %v8374, 8
        %v8415 = vand.u32 %v8414, 65535
        %v8416 = vshrl.u32 %v8414, 16
        %v8417 = vand.u32 %v8413, 65535
        %v8418 = vshrl.u32 %v8413, 16
        %v8419 = vmul.u32 %v8415, %v8417
        %v8420 = vmul.u32 %v8415, %v8418
        %v8421 = vmul.u32 %v8416, %v8417
        %v8422 = vmul.u32 %v8416, %v8418
        %v8423 = vshll.u32 %v8420, 16
        %v8424 = vshrl.u32 %v8420, 16
        %v8425 = vshll.u32 %v8421, 16
        %v8426 = vshrl.u32 %v8421, 16
        %vm8427 = vc.u32 %v8419, %v8423
        %v8428 = vsel %vm8427, 1, 0
        %v8429 = vadd.s32 %v8419, %v8423
        %v8430 = vadd.s32 %v8422, %v8428
        %vm8431 = vc.u32 %v8429, %v8425
        %v8432 = vsel %vm8431, 1, 0
        %v8433 = vadd.s32 %v8429, %v8425
        %v8434 = vadd.s32 %v8430, %v8432
        %v8435 = vadd.s32 %v8434, %v8424
        %v8436 = vadd.s32 %v8435, %v8426
        %v8437 = vand.u32 %v8414, 65535
        %v8438 = vshrl.u32 %v8414, 16
        %v8439 = vand.u32 %v8409, 65535
        %v8440 = vshrl.u32 %v8409, 16
        %v8441 = vmul.u32 %v8437, %v8439
        %v8442 = vmul.u32 %v8437, %v8440
        %v8443 = vmul.u32 %v8438, %v8439
        %v8444 = vmul.u32 %v8438, %v8440
        %v8445 = vshll.u32 %v8442, 16
        %v8446 = vshrl.u32 %v8442, 16
        %v8447 = vshll.u32 %v8443, 16
        %v8448 = vshrl.u32 %v8443, 16
        %vm8449 = vc.u32 %v8441, %v8445
        %v8450 = vsel %vm8449, 1, 0
        %v8451 = vadd.s32 %v8441, %v8445
        %v8452 = vadd.s32 %v8444, %v8450
        %vm8453 = vc.u32 %v8451, %v8447
        %v8454 = vsel %vm8453, 1, 0
        %v8455 = vadd.s32 %v8451, %v8447
        %v8456 = vadd.s32 %v8452, %v8454
        %v8457 = vadd.s32 %v8456, %v8446
        %v8458 = vadd.s32 %v8457, %v8448
        %v8459 = vmul.u32 %v8414, %v8405
        %v8460 = vadd.s32 %v8436, %v8455
        %vm8461 = vc.u32 %v8436, %v8455
        %v8462 = vadd.s32 %v8458, 1
        %v8463 = vsel %vm8461, %v8462, %v8458
        %v8464 = vadd.s32 %v8459, %v8463
        %v8465 = vadd.s32 %v8464, 536870912
        %v8466 = vshrl.u32 %v8465, 30
        %v8467 = vshll.u32 %v8466, 30
        %v8468 = vsub.s32 %v8464, %v8467
        %vm8469 = vcmp.lt.s32.totalorder %v8468, 0
        %v8470 = vsub.s32 0, %v8468
        %v8471 = vsel %vm8469, %v8470, %v8468
        %v8472 = vclz %v8471
        %v8473 = vsub.s32 %v8472, 2
        %vm8474 = vcmp.gt.s32.totalorder 0, %v8473
        %v8475 = vsel %vm8474, 0, %v8473
        %v8476 = vsub.s32 32, %v8475
        %v8477 = vshll.u32 %v8468, %v8475
        %v8478 = vshrl.u32 %v8460, %v8476
        %v8479 = vor.u32 %v8477, %v8478
        %v8480 = vsub.s32 4294967266, %v8475
        %v8481 = vadd.s32 %v8480, 127
        %v8482 = vshll.u32 %v8481, 23
        %v8483 = vor.u32 4788187, %v8482
        %v8484 = vand.u32 2147483647, %v8483
        %v8486 = vcvt.s32.f32 %v8479
        %v8487 = vmul.f32 %v8486, %v8484
        %v8488 = vxor.u32 %v8487, 2147483648
        %v8489 = vsel %vm8368, %v8488, %v8487
        %v8490 = vsub.s32 4, %v8466
        %v8491 = vsel %vm8368, %v8490, %v8466
        %v8492 = vsel %vm8367, %v294, %v8489
        %v8493 = vsel %vm8367, 0, %v8491
        %v8494 = vmul.f32 %v8492, %v8492
        %v8495 = vmul.f32 %v8494, -0.001358992
        %v8496 = vadd.f32 %v8495, 0.041655596
        %v8497 = vmul.f32 %v8494, %v8496
        %v8498 = vadd.f32 %v8497, -0.4999988
        %v8499 = vmul.f32 %v8494, %v8498
        %v8500 = vadd.f32 1.0, %v8499
        %v8501 = vmul.f32 %v8492, %v8492
        %v8502 = vmul.f32 %v8501, -0.00019511016
        %v8503 = vadd.f32 %v8502, 0.008332121
        %v8504 = vmul.f32 %v8501, %v8503
        %v8505 = vadd.f32 %v8504, -0.16666654
        %v8506 = vmul.f32 %v8501, %v8505
        %v8507 = vadd.f32 %v8506, 1.0
        %v8508 = vmul.f32 %v8507, %v8492
        %vm8509 = vweird.f32 %v294
        %v8510 = vadd.s32 %v8493, 3
        %v8511 = vand.u32 %v8510, 3
        %vm8512 = vcmp.lt.s32.totalorder %v8511, 2
        %vm8513 = vcmp.eq.s32.totalorder %v8511, 0
        %v8514 = vxor.u32 %v8508, 2147483648
        %v8515 = vsel %vm8513, %v8500, %v8514
        %vm8516 = vcmp.eq.s32.totalorder %v8511, 2
        %v8517 = vxor.u32 %v8500, 2147483648
        %v8518 = vsel %vm8516, %v8517, %v8508
        %v8519 = vsel %vm8512, %v8515, %v8518
        %v8520 = vsel %vm8509, nan, %v8519
        %v8521 = vand.u32 2147483647, %v295
        %vm8522 = vcmp.le.f32.partialorder %v8521, 0.7853982
        %vm8523 = vcmp.lt.s32.totalorder %v295, 0
        %v8524 = vand.u32 %v295, 2139095040
        %v8525 = vshrl.u32 %v8524, 23
        %v8526 = vsub.s32 %v8525, 127
        %v8527 = vand.u32 2147483647, %v295
        %v8528 = vand.u32 %v8527, 8388607
        %v8529 = vor.u32 %v8528, 8388608
        %v8530 = vsub.s32 0, %v8529
        %v8531 = vadd.s32 %v8526, 1
        %vm8532 = vcmp.gt.s32.totalorder %v8531, 0
        %v8533 = vsel %vm8532, %v8531, 0
        %v8534 = vshrl.u32 %v8533, 5
        %v8535 = vand.u32 %v8533, 31
        %v8536 = vsub.s32 32, %v8535
        %v8537 = vshrl.u32 683565275, %v8536
        %v8538 = vshll.u32 683565275, %v8535
        %v8539 = vshrl.u32 2475754826, %v8536
        %v8540 = vor.u32 %v8538, %v8539
        %v8541 = vshll.u32 2475754826, %v8535
        %v8542 = vshrl.u32 2131351028, %v8536
        %v8543 = vor.u32 %v8541, %v8542
        %v8544 = vshll.u32 2131351028, %v8535
        %v8545 = vshrl.u32 2102212464, %v8536
        %v8546 = vor.u32 %v8544, %v8545
        %v8547 = vshll.u32 2102212464, %v8535
        %v8548 = vshrl.u32 920167782, %v8536
        %v8549 = vor.u32 %v8547, %v8548
        %v8550 = vshll.u32 920167782, %v8535
        %v8551 = vshrl.u32 1326507024, %v8536
        %v8552 = vor.u32 %v8550, %v8551
        %vm8553 = vcmp.lt.s32.totalorder %v8534, 1
        %vm8554 = vcmp.lt.s32.totalorder %v8534, 2
        %vm8555 = vcmp.lt.s32.totalorder %v8534, 3
        %vm8556 = vcmp.lt.s32.totalorder %v8534, 4
        %v8557 = vsel %vm8553, %v8537, %v8540
        %v8558 = vsel %vm8556, %v8546, 2102212464
        %v8559 = vsel %vm8555, %v8543, %v8558
        %v8560 = vsel %vm8554, %v8557, %v8559
        %v8561 = vsel %vm8553, %v8540, %v8543
        %v8562 = vsel %vm8556, %v8549, 920167782
        %v8563 = vsel %vm8555, %v8546, %v8562
        %v8564 = vsel %vm8554, %v8561, %v8563
        %v8565 = vsel %vm8553, %v8543, %v8546
        %v8566 = vsel %vm8556, %v8552, 1326507024
        %v8567 = vsel %vm8555, %v8549, %v8566
        %v8568 = vsel %vm8554, %v8565, %v8567
        %v8569 = vshll.u32 %v8529, 8
        %v8570 = vand.u32 %v8569, 65535
        %v8571 = vshrl.u32 %v8569, 16
        %v8572 = vand.u32 %v8568, 65535
        %v8573 = vshrl.u32 %v8568, 16
        %v8574 = vmul.u32 %v8570, %v8572
        %v8575 = vmul.u32 %v8570, %v8573
        %v8576 = vmul.u32 %v8571, %v8572
        %v8577 = vmul.u32 %v8571, %v8573
        %v8578 = vshll.u32 %v8575, 16
        %v8579 = vshrl.u32 %v8575, 16
        %v8580 = vshll.u32 %v8576, 16
        %v8581 = vshrl.u32 %v8576, 16
        %vm8582 = vc.u32 %v8574, %v8578
        %v8583 = vsel %vm8582, 1, 0
        %v8584 = vadd.s32 %v8574, %v8578
        %v8585 = vadd.s32 %v8577, %v8583
        %vm8586 = vc.u32 %v8584, %v8580
        %v8587 = vsel %vm8586, 1, 0
        %v8588 = vadd.s32 %v8584, %v8580
        %v8589 = vadd.s32 %v8585, %v8587
        %v8590 = vadd.s32 %v8589, %v8579
        %v8591 = vadd.s32 %v8590, %v8581
        %v8592 = vand.u32 %v8569, 65535
        %v8593 = vshrl.u32 %v8569, 16
        %v8594 = vand.u32 %v8564, 65535
        %v8595 = vshrl.u32 %v8564, 16
        %v8596 = vmul.u32 %v8592, %v8594
        %v8597 = vmul.u32 %v8592, %v8595
        %v8598 = vmul.u32 %v8593, %v8594
        %v8599 = vmul.u32 %v8593, %v8595
        %v8600 = vshll.u32 %v8597, 16
        %v8601 = vshrl.u32 %v8597, 16
        %v8602 = vshll.u32 %v8598, 16
        %v8603 = vshrl.u32 %v8598, 16
        %vm8604 = vc.u32 %v8596, %v8600
        %v8605 = vsel %vm8604, 1, 0
        %v8606 = vadd.s32 %v8596, %v8600
        %v8607 = vadd.s32 %v8599, %v8605
        %vm8608 = vc.u32 %v8606, %v8602
        %v8609 = vsel %vm8608, 1, 0
        %v8610 = vadd.s32 %v8606, %v8602
        %v8611 = vadd.s32 %v8607, %v8609
        %v8612 = vadd.s32 %v8611, %v8601
        %v8613 = vadd.s32 %v8612, %v8603
        %v8614 = vmul.u32 %v8569, %v8560
        %v8615 = vadd.s32 %v8591, %v8610
        %vm8616 = vc.u32 %v8591, %v8610
        %v8617 = vadd.s32 %v8613, 1
        %v8618 = vsel %vm8616, %v8617, %v8613
        %v8619 = vadd.s32 %v8614, %v8618
        %v8620 = vadd.s32 %v8619, 536870912
        %v8621 = vshrl.u32 %v8620, 30
        %v8622 = vshll.u32 %v8621, 30
        %v8623 = vsub.s32 %v8619, %v8622
        %vm8624 = vcmp.lt.s32.totalorder %v8623, 0
        %v8625 = vsub.s32 0, %v8623
        %v8626 = vsel %vm8624, %v8625, %v8623
        %v8627 = vclz %v8626
        %v8628 = vsub.s32 %v8627, 2
        %vm8629 = vcmp.gt.s32.totalorder 0, %v8628
        %v8630 = vsel %vm8629, 0, %v8628
        %v8631 = vsub.s32 32, %v8630
        %v8632 = vshll.u32 %v8623, %v8630
        %v8633 = vshrl.u32 %v8615, %v8631
        %v8634 = vor.u32 %v8632, %v8633
        %v8635 = vsub.s32 4294967266, %v8630
        %v8636 = vadd.s32 %v8635, 127
        %v8637 = vshll.u32 %v8636, 23
        %v8638 = vor.u32 4788187, %v8637
        %v8639 = vand.u32 2147483647, %v8638
        %v8641 = vcvt.s32.f32 %v8634
        %v8642 = vmul.f32 %v8641, %v8639
        %v8643 = vxor.u32 %v8642, 2147483648
        %v8644 = vsel %vm8523, %v8643, %v8642
        %v8645 = vsub.s32 4, %v8621
        %v8646 = vsel %vm8523, %v8645, %v8621
        %v8647 = vsel %vm8522, %v295, %v8644
        %v8648 = vsel %vm8522, 0, %v8646
        %v8649 = vmul.f32 %v8647, %v8647
        %v8650 = vmul.f32 %v8649, -0.001358992
        %v8651 = vadd.f32 %v8650, 0.041655596
        %v8652 = vmul.f32 %v8649, %v8651
        %v8653 = vadd.f32 %v8652, -0.4999988
        %v8654 = vmul.f32 %v8649, %v8653
        %v8655 = vadd.f32 1.0, %v8654
        %v8656 = vmul.f32 %v8647, %v8647
        %v8657 = vmul.f32 %v8656, -0.00019511016
        %v8658 = vadd.f32 %v8657, 0.008332121
        %v8659 = vmul.f32 %v8656, %v8658
        %v8660 = vadd.f32 %v8659, -0.16666654
        %v8661 = vmul.f32 %v8656, %v8660
        %v8662 = vadd.f32 %v8661, 1.0
        %v8663 = vmul.f32 %v8662, %v8647
        %vm8664 = vweird.f32 %v295
        %v8665 = vadd.s32 %v8648, 3
        %v8666 = vand.u32 %v8665, 3
        %vm8667 = vcmp.lt.s32.totalorder %v8666, 2
        %vm8668 = vcmp.eq.s32.totalorder %v8666, 0
        %v8669 = vxor.u32 %v8663, 2147483648
        %v8670 = vsel %vm8668, %v8655, %v8669
        %vm8671 = vcmp.eq.s32.totalorder %v8666, 2
        %v8672 = vxor.u32 %v8655, 2147483648
        %v8673 = vsel %vm8671, %v8672, %v8663
        %v8674 = vsel %vm8667, %v8670, %v8673
        %v8675 = vsel %vm8664, nan, %v8674
        %v8676 = vand.u32 2147483647, %v296
        %vm8677 = vcmp.le.f32.partialorder %v8676, 0.7853982
        %vm8678 = vcmp.lt.s32.totalorder %v296, 0
        %v8679 = vand.u32 %v296, 2139095040
        %v8680 = vshrl.u32 %v8679, 23
        %v8681 = vsub.s32 %v8680, 127
        %v8682 = vand.u32 2147483647, %v296
        %v8683 = vand.u32 %v8682, 8388607
        %v8684 = vor.u32 %v8683, 8388608
        %v8685 = vsub.s32 0, %v8684
        %v8686 = vadd.s32 %v8681, 1
        %vm8687 = vcmp.gt.s32.totalorder %v8686, 0
        %v8688 = vsel %vm8687, %v8686, 0
        %v8689 = vshrl.u32 %v8688, 5
        %v8690 = vand.u32 %v8688, 31
        %v8691 = vsub.s32 32, %v8690
        %v8692 = vshrl.u32 683565275, %v8691
        %v8693 = vshll.u32 683565275, %v8690
        %v8694 = vshrl.u32 2475754826, %v8691
        %v8695 = vor.u32 %v8693, %v8694
        %v8696 = vshll.u32 2475754826, %v8690
        %v8697 = vshrl.u32 2131351028, %v8691
        %v8698 = vor.u32 %v8696, %v8697
        %v8699 = vshll.u32 2131351028, %v8690
        %v8700 = vshrl.u32 2102212464, %v8691
        %v8701 = vor.u32 %v8699, %v8700
        %v8702 = vshll.u32 2102212464, %v8690
        %v8703 = vshrl.u32 920167782, %v8691
        %v8704 = vor.u32 %v8702, %v8703
        %v8705 = vshll.u32 920167782, %v8690
        %v8706 = vshrl.u32 1326507024, %v8691
        %v8707 = vor.u32 %v8705, %v8706
        %vm8708 = vcmp.lt.s32.totalorder %v8689, 1
        %vm8709 = vcmp.lt.s32.totalorder %v8689, 2
        %vm8710 = vcmp.lt.s32.totalorder %v8689, 3
        %vm8711 = vcmp.lt.s32.totalorder %v8689, 4
        %v8712 = vsel %vm8708, %v8692, %v8695
        %v8713 = vsel %vm8711, %v8701, 2102212464
        %v8714 = vsel %vm8710, %v8698, %v8713
        %v8715 = vsel %vm8709, %v8712, %v8714
        %v8716 = vsel %vm8708, %v8695, %v8698
        %v8717 = vsel %vm8711, %v8704, 920167782
        %v8718 = vsel %vm8710, %v8701, %v8717
        %v8719 = vsel %vm8709, %v8716, %v8718
        %v8720 = vsel %vm8708, %v8698, %v8701
        %v8721 = vsel %vm8711, %v8707, 1326507024
        %v8722 = vsel %vm8710, %v8704, %v8721
        %v8723 = vsel %vm8709, %v8720, %v8722
        %v8724 = vshll.u32 %v8684, 8
        %v8725 = vand.u32 %v8724, 65535
        %v8726 = vshrl.u32 %v8724, 16
        %v8727 = vand.u32 %v8723, 65535
        %v8728 = vshrl.u32 %v8723, 16
        %v8729 = vmul.u32 %v8725, %v8727
        %v8730 = vmul.u32 %v8725, %v8728
        %v8731 = vmul.u32 %v8726, %v8727
        %v8732 = vmul.u32 %v8726, %v8728
        %v8733 = vshll.u32 %v8730, 16
        %v8734 = vshrl.u32 %v8730, 16
        %v8735 = vshll.u32 %v8731, 16
        %v8736 = vshrl.u32 %v8731, 16
        %vm8737 = vc.u32 %v8729, %v8733
        %v8738 = vsel %vm8737, 1, 0
        %v8739 = vadd.s32 %v8729, %v8733
        %v8740 = vadd.s32 %v8732, %v8738
        %vm8741 = vc.u32 %v8739, %v8735
        %v8742 = vsel %vm8741, 1, 0
        %v8743 = vadd.s32 %v8739, %v8735
        %v8744 = vadd.s32 %v8740, %v8742
        %v8745 = vadd.s32 %v8744, %v8734
        %v8746 = vadd.s32 %v8745, %v8736
        %v8747 = vand.u32 %v8724, 65535
        %v8748 = vshrl.u32 %v8724, 16
        %v8749 = vand.u32 %v8719, 65535
        %v8750 = vshrl.u32 %v8719, 16
        %v8751 = vmul.u32 %v8747, %v8749
        %v8752 = vmul.u32 %v8747, %v8750
        %v8753 = vmul.u32 %v8748, %v8749
        %v8754 = vmul.u32 %v8748, %v8750
        %v8755 = vshll.u32 %v8752, 16
        %v8756 = vshrl.u32 %v8752, 16
        %v8757 = vshll.u32 %v8753, 16
        %v8758 = vshrl.u32 %v8753, 16
        %vm8759 = vc.u32 %v8751, %v8755
        %v8760 = vsel %vm8759, 1, 0
        %v8761 = vadd.s32 %v8751, %v8755
        %v8762 = vadd.s32 %v8754, %v8760
        %vm8763 = vc.u32 %v8761, %v8757
        %v8764 = vsel %vm8763, 1, 0
        %v8765 = vadd.s32 %v8761, %v8757
        %v8766 = vadd.s32 %v8762, %v8764
        %v8767 = vadd.s32 %v8766, %v8756
        %v8768 = vadd.s32 %v8767, %v8758
        %v8769 = vmul.u32 %v8724, %v8715
        %v8770 = vadd.s32 %v8746, %v8765
        %vm8771 = vc.u32 %v8746, %v8765
        %v8772 = vadd.s32 %v8768, 1
        %v8773 = vsel %vm8771, %v8772, %v8768
        %v8774 = vadd.s32 %v8769, %v8773
        %v8775 = vadd.s32 %v8774, 536870912
        %v8776 = vshrl.u32 %v8775, 30
        %v8777 = vshll.u32 %v8776, 30
        %v8778 = vsub.s32 %v8774, %v8777
        %vm8779 = vcmp.lt.s32.totalorder %v8778, 0
        %v8780 = vsub.s32 0, %v8778
        %v8781 = vsel %vm8779, %v8780, %v8778
        %v8782 = vclz %v8781
        %v8783 = vsub.s32 %v8782, 2
        %vm8784 = vcmp.gt.s32.totalorder 0, %v8783
        %v8785 = vsel %vm8784, 0, %v8783
        %v8786 = vsub.s32 32, %v8785
        %v8787 = vshll.u32 %v8778, %v8785
        %v8788 = vshrl.u32 %v8770, %v8786
        %v8789 = vor.u32 %v8787, %v8788
        %v8790 = vsub.s32 4294967266, %v8785
        %v8791 = vadd.s32 %v8790, 127
        %v8792 = vshll.u32 %v8791, 23
        %v8793 = vor.u32 4788187, %v8792
        %v8794 = vand.u32 2147483647, %v8793
        %v8796 = vcvt.s32.f32 %v8789
        %v8797 = vmul.f32 %v8796, %v8794
        %v8798 = vxor.u32 %v8797, 2147483648
        %v8799 = vsel %vm8678, %v8798, %v8797
        %v8800 = vsub.s32 4, %v8776
        %v8801 = vsel %vm8678, %v8800, %v8776
        %v8802 = vsel %vm8677, %v296, %v8799
        %v8803 = vsel %vm8677, 0, %v8801
        %v8804 = vmul.f32 %v8802, %v8802
        %v8805 = vmul.f32 %v8804, -0.001358992
        %v8806 = vadd.f32 %v8805, 0.041655596
        %v8807 = vmul.f32 %v8804, %v8806
        %v8808 = vadd.f32 %v8807, -0.4999988
        %v8809 = vmul.f32 %v8804, %v8808
        %v8810 = vadd.f32 1.0, %v8809
        %v8811 = vmul.f32 %v8802, %v8802
        %v8812 = vmul.f32 %v8811, -0.00019511016
        %v8813 = vadd.f32 %v8812, 0.008332121
        %v8814 = vmul.f32 %v8811, %v8813
        %v8815 = vadd.f32 %v8814, -0.16666654
        %v8816 = vmul.f32 %v8811, %v8815
        %v8817 = vadd.f32 %v8816, 1.0
        %v8818 = vmul.f32 %v8817, %v8802
        %vm8819 = vweird.f32 %v296
        %v8820 = vadd.s32 %v8803, 3
        %v8821 = vand.u32 %v8820, 3
        %vm8822 = vcmp.lt.s32.totalorder %v8821, 2
        %vm8823 = vcmp.eq.s32.totalorder %v8821, 0
        %v8824 = vxor.u32 %v8818, 2147483648
        %v8825 = vsel %vm8823, %v8810, %v8824
        %vm8826 = vcmp.eq.s32.totalorder %v8821, 2
        %v8827 = vxor.u32 %v8810, 2147483648
        %v8828 = vsel %vm8826, %v8827, %v8818
        %v8829 = vsel %vm8822, %v8825, %v8828
        %v8830 = vsel %vm8819, nan, %v8829
        %v8831 = vand.u32 2147483647, %v297
        %vm8832 = vcmp.le.f32.partialorder %v8831, 0.7853982
        %vm8833 = vcmp.lt.s32.totalorder %v297, 0
        %v8834 = vand.u32 %v297, 2139095040
        %v8835 = vshrl.u32 %v8834, 23
        %v8836 = vsub.s32 %v8835, 127
        %v8837 = vand.u32 2147483647, %v297
        %v8838 = vand.u32 %v8837, 8388607
        %v8839 = vor.u32 %v8838, 8388608
        %v8840 = vsub.s32 0, %v8839
        %v8841 = vadd.s32 %v8836, 1
        %vm8842 = vcmp.gt.s32.totalorder %v8841, 0
        %v8843 = vsel %vm8842, %v8841, 0
        %v8844 = vshrl.u32 %v8843, 5
        %v8845 = vand.u32 %v8843, 31
        %v8846 = vsub.s32 32, %v8845
        %v8847 = vshrl.u32 683565275, %v8846
        %v8848 = vshll.u32 683565275, %v8845
        %v8849 = vshrl.u32 2475754826, %v8846
        %v8850 = vor.u32 %v8848, %v8849
        %v8851 = vshll.u32 2475754826, %v8845
        %v8852 = vshrl.u32 2131351028, %v8846
        %v8853 = vor.u32 %v8851, %v8852
        %v8854 = vshll.u32 2131351028, %v8845
        %v8855 = vshrl.u32 2102212464, %v8846
        %v8856 = vor.u32 %v8854, %v8855
        %v8857 = vshll.u32 2102212464, %v8845
        %v8858 = vshrl.u32 920167782, %v8846
        %v8859 = vor.u32 %v8857, %v8858
        %v8860 = vshll.u32 920167782, %v8845
        %v8861 = vshrl.u32 1326507024, %v8846
        %v8862 = vor.u32 %v8860, %v8861
        %vm8863 = vcmp.lt.s32.totalorder %v8844, 1
        %vm8864 = vcmp.lt.s32.totalorder %v8844, 2
        %vm8865 = vcmp.lt.s32.totalorder %v8844, 3
        %vm8866 = vcmp.lt.s32.totalorder %v8844, 4
        %v8867 = vsel %vm8863, %v8847, %v8850
        %v8868 = vsel %vm8866, %v8856, 2102212464
        %v8869 = vsel %vm8865, %v8853, %v8868
        %v8870 = vsel %vm8864, %v8867, %v8869
        %v8871 = vsel %vm8863, %v8850, %v8853
        %v8872 = vsel %vm8866, %v8859, 920167782
        %v8873 = vsel %vm8865, %v8856, %v8872
        %v8874 = vsel %vm8864, %v8871, %v8873
        %v8875 = vsel %vm8863, %v8853, %v8856
        %v8876 = vsel %vm8866, %v8862, 1326507024
        %v8877 = vsel %vm8865, %v8859, %v8876
        %v8878 = vsel %vm8864, %v8875, %v8877
        %v8879 = vshll.u32 %v8839, 8
        %v8880 = vand.u32 %v8879, 65535
        %v8881 = vshrl.u32 %v8879, 16
        %v8882 = vand.u32 %v8878, 65535
        %v8883 = vshrl.u32 %v8878, 16
        %v8884 = vmul.u32 %v8880, %v8882
        %v8885 = vmul.u32 %v8880, %v8883
        %v8886 = vmul.u32 %v8881, %v8882
        %v8887 = vmul.u32 %v8881, %v8883
        %v8888 = vshll.u32 %v8885, 16
        %v8889 = vshrl.u32 %v8885, 16
        %v8890 = vshll.u32 %v8886, 16
        %v8891 = vshrl.u32 %v8886, 16
        %vm8892 = vc.u32 %v8884, %v8888
        %v8893 = vsel %vm8892, 1, 0
        %v8894 = vadd.s32 %v8884, %v8888
        %v8895 = vadd.s32 %v8887, %v8893
        %vm8896 = vc.u32 %v8894, %v8890
        %v8897 = vsel %vm8896, 1, 0
        %v8898 = vadd.s32 %v8894, %v8890
        %v8899 = vadd.s32 %v8895, %v8897
        %v8900 = vadd.s32 %v8899, %v8889
        %v8901 = vadd.s32 %v8900, %v8891
        %v8902 = vand.u32 %v8879, 65535
        %v8903 = vshrl.u32 %v8879, 16
        %v8904 = vand.u32 %v8874, 65535
        %v8905 = vshrl.u32 %v8874, 16
        %v8906 = vmul.u32 %v8902, %v8904
        %v8907 = vmul.u32 %v8902, %v8905
        %v8908 = vmul.u32 %v8903, %v8904
        %v8909 = vmul.u32 %v8903, %v8905
        %v8910 = vshll.u32 %v8907, 16
        %v8911 = vshrl.u32 %v8907, 16
        %v8912 = vshll.u32 %v8908, 16
        %v8913 = vshrl.u32 %v8908, 16
        %vm8914 = vc.u32 %v8906, %v8910
        %v8915 = vsel %vm8914, 1, 0
        %v8916 = vadd.s32 %v8906, %v8910
        %v8917 = vadd.s32 %v8909, %v8915
        %vm8918 = vc.u32 %v8916, %v8912
        %v8919 = vsel %vm8918, 1, 0
        %v8920 = vadd.s32 %v8916, %v8912
        %v8921 = vadd.s32 %v8917, %v8919
        %v8922 = vadd.s32 %v8921, %v8911
        %v8923 = vadd.s32 %v8922, %v8913
        %v8924 = vmul.u32 %v8879, %v8870
        %v8925 = vadd.s32 %v8901, %v8920
        %vm8926 = vc.u32 %v8901, %v8920
        %v8927 = vadd.s32 %v8923, 1
        %v8928 = vsel %vm8926, %v8927, %v8923
        %v8929 = vadd.s32 %v8924, %v8928
        %v8930 = vadd.s32 %v8929, 536870912
        %v8931 = vshrl.u32 %v8930, 30
        %v8932 = vshll.u32 %v8931, 30
        %v8933 = vsub.s32 %v8929, %v8932
        %vm8934 = vcmp.lt.s32.totalorder %v8933, 0
        %v8935 = vsub.s32 0, %v8933
        %v8936 = vsel %vm8934, %v8935, %v8933
        %v8937 = vclz %v8936
        %v8938 = vsub.s32 %v8937, 2
        %vm8939 = vcmp.gt.s32.totalorder 0, %v8938
        %v8940 = vsel %vm8939, 0, %v8938
        %v8941 = vsub.s32 32, %v8940
        %v8942 = vshll.u32 %v8933, %v8940
        %v8943 = vshrl.u32 %v8925, %v8941
        %v8944 = vor.u32 %v8942, %v8943
        %v8945 = vsub.s32 4294967266, %v8940
        %v8946 = vadd.s32 %v8945, 127
        %v8947 = vshll.u32 %v8946, 23
        %v8948 = vor.u32 4788187, %v8947
        %v8949 = vand.u32 2147483647, %v8948
        %v8951 = vcvt.s32.f32 %v8944
        %v8952 = vmul.f32 %v8951, %v8949
        %v8953 = vxor.u32 %v8952, 2147483648
        %v8954 = vsel %vm8833, %v8953, %v8952
        %v8955 = vsub.s32 4, %v8931
        %v8956 = vsel %vm8833, %v8955, %v8931
        %v8957 = vsel %vm8832, %v297, %v8954
        %v8958 = vsel %vm8832, 0, %v8956
        %v8959 = vmul.f32 %v8957, %v8957
        %v8960 = vmul.f32 %v8959, -0.001358992
        %v8961 = vadd.f32 %v8960, 0.041655596
        %v8962 = vmul.f32 %v8959, %v8961
        %v8963 = vadd.f32 %v8962, -0.4999988
        %v8964 = vmul.f32 %v8959, %v8963
        %v8965 = vadd.f32 1.0, %v8964
        %v8966 = vmul.f32 %v8957, %v8957
        %v8967 = vmul.f32 %v8966, -0.00019511016
        %v8968 = vadd.f32 %v8967, 0.008332121
        %v8969 = vmul.f32 %v8966, %v8968
        %v8970 = vadd.f32 %v8969, -0.16666654
        %v8971 = vmul.f32 %v8966, %v8970
        %v8972 = vadd.f32 %v8971, 1.0
        %v8973 = vmul.f32 %v8972, %v8957
        %vm8974 = vweird.f32 %v297
        %v8975 = vadd.s32 %v8958, 3
        %v8976 = vand.u32 %v8975, 3
        %vm8977 = vcmp.lt.s32.totalorder %v8976, 2
        %vm8978 = vcmp.eq.s32.totalorder %v8976, 0
        %v8979 = vxor.u32 %v8973, 2147483648
        %v8980 = vsel %vm8978, %v8965, %v8979
        %vm8981 = vcmp.eq.s32.totalorder %v8976, 2
        %v8982 = vxor.u32 %v8965, 2147483648
        %v8983 = vsel %vm8981, %v8982, %v8973
        %v8984 = vsel %vm8977, %v8980, %v8983
        %v8985 = vsel %vm8974, nan, %v8984
        %v8986 = vand.u32 2147483647, %v298
        %vm8987 = vcmp.le.f32.partialorder %v8986, 0.7853982
        %vm8988 = vcmp.lt.s32.totalorder %v298, 0
        %v8989 = vand.u32 %v298, 2139095040
        %v8990 = vshrl.u32 %v8989, 23
        %v8991 = vsub.s32 %v8990, 127
        %v8992 = vand.u32 2147483647, %v298
        %v8993 = vand.u32 %v8992, 8388607
        %v8994 = vor.u32 %v8993, 8388608
        %v8995 = vsub.s32 0, %v8994
        %v8996 = vadd.s32 %v8991, 1
        %vm8997 = vcmp.gt.s32.totalorder %v8996, 0
        %v8998 = vsel %vm8997, %v8996, 0
        %v8999 = vshrl.u32 %v8998, 5
        %v9000 = vand.u32 %v8998, 31
        %v9001 = vsub.s32 32, %v9000
        %v9002 = vshrl.u32 683565275, %v9001
        %v9003 = vshll.u32 683565275, %v9000
        %v9004 = vshrl.u32 2475754826, %v9001
        %v9005 = vor.u32 %v9003, %v9004
        %v9006 = vshll.u32 2475754826, %v9000
        %v9007 = vshrl.u32 2131351028, %v9001
        %v9008 = vor.u32 %v9006, %v9007
        %v9009 = vshll.u32 2131351028, %v9000
        %v9010 = vshrl.u32 2102212464, %v9001
        %v9011 = vor.u32 %v9009, %v9010
        %v9012 = vshll.u32 2102212464, %v9000
        %v9013 = vshrl.u32 920167782, %v9001
        %v9014 = vor.u32 %v9012, %v9013
        %v9015 = vshll.u32 920167782, %v9000
        %v9016 = vshrl.u32 1326507024, %v9001
        %v9017 = vor.u32 %v9015, %v9016
        %vm9018 = vcmp.lt.s32.totalorder %v8999, 1
        %vm9019 = vcmp.lt.s32.totalorder %v8999, 2
        %vm9020 = vcmp.lt.s32.totalorder %v8999, 3
        %vm9021 = vcmp.lt.s32.totalorder %v8999, 4
        %v9022 = vsel %vm9018, %v9002, %v9005
        %v9023 = vsel %vm9021, %v9011, 2102212464
        %v9024 = vsel %vm9020, %v9008, %v9023
        %v9025 = vsel %vm9019, %v9022, %v9024
        %v9026 = vsel %vm9018, %v9005, %v9008
        %v9027 = vsel %vm9021, %v9014, 920167782
        %v9028 = vsel %vm9020, %v9011, %v9027
        %v9029 = vsel %vm9019, %v9026, %v9028
        %v9030 = vsel %vm9018, %v9008, %v9011
        %v9031 = vsel %vm9021, %v9017, 1326507024
        %v9032 = vsel %vm9020, %v9014, %v9031
        %v9033 = vsel %vm9019, %v9030, %v9032
        %v9034 = vshll.u32 %v8994, 8
        %v9035 = vand.u32 %v9034, 65535
        %v9036 = vshrl.u32 %v9034, 16
        %v9037 = vand.u32 %v9033, 65535
        %v9038 = vshrl.u32 %v9033, 16
        %v9039 = vmul.u32 %v9035, %v9037
        %v9040 = vmul.u32 %v9035, %v9038
        %v9041 = vmul.u32 %v9036, %v9037
        %v9042 = vmul.u32 %v9036, %v9038
        %v9043 = vshll.u32 %v9040, 16
        %v9044 = vshrl.u32 %v9040, 16
        %v9045 = vshll.u32 %v9041, 16
        %v9046 = vshrl.u32 %v9041, 16
        %vm9047 = vc.u32 %v9039, %v9043
        %v9048 = vsel %vm9047, 1, 0
        %v9049 = vadd.s32 %v9039, %v9043
        %v9050 = vadd.s32 %v9042, %v9048
        %vm9051 = vc.u32 %v9049, %v9045
        %v9052 = vsel %vm9051, 1, 0
        %v9053 = vadd.s32 %v9049, %v9045
        %v9054 = vadd.s32 %v9050, %v9052
        %v9055 = vadd.s32 %v9054, %v9044
        %v9056 = vadd.s32 %v9055, %v9046
        %v9057 = vand.u32 %v9034, 65535
        %v9058 = vshrl.u32 %v9034, 16
        %v9059 = vand.u32 %v9029, 65535
        %v9060 = vshrl.u32 %v9029, 16
        %v9061 = vmul.u32 %v9057, %v9059
        %v9062 = vmul.u32 %v9057, %v9060
        %v9063 = vmul.u32 %v9058, %v9059
        %v9064 = vmul.u32 %v9058, %v9060
        %v9065 = vshll.u32 %v9062, 16
        %v9066 = vshrl.u32 %v9062, 16
        %v9067 = vshll.u32 %v9063, 16
        %v9068 = vshrl.u32 %v9063, 16
        %vm9069 = vc.u32 %v9061, %v9065
        %v9070 = vsel %vm9069, 1, 0
        %v9071 = vadd.s32 %v9061, %v9065
        %v9072 = vadd.s32 %v9064, %v9070
        %vm9073 = vc.u32 %v9071, %v9067
        %v9074 = vsel %vm9073, 1, 0
        %v9075 = vadd.s32 %v9071, %v9067
        %v9076 = vadd.s32 %v9072, %v9074
        %v9077 = vadd.s32 %v9076, %v9066
        %v9078 = vadd.s32 %v9077, %v9068
        %v9079 = vmul.u32 %v9034, %v9025
        %v9080 = vadd.s32 %v9056, %v9075
        %vm9081 = vc.u32 %v9056, %v9075
        %v9082 = vadd.s32 %v9078, 1
        %v9083 = vsel %vm9081, %v9082, %v9078
        %v9084 = vadd.s32 %v9079, %v9083
        %v9085 = vadd.s32 %v9084, 536870912
        %v9086 = vshrl.u32 %v9085, 30
        %v9087 = vshll.u32 %v9086, 30
        %v9088 = vsub.s32 %v9084, %v9087
        %vm9089 = vcmp.lt.s32.totalorder %v9088, 0
        %v9090 = vsub.s32 0, %v9088
        %v9091 = vsel %vm9089, %v9090, %v9088
        %v9092 = vclz %v9091
        %v9093 = vsub.s32 %v9092, 2
        %vm9094 = vcmp.gt.s32.totalorder 0, %v9093
        %v9095 = vsel %vm9094, 0, %v9093
        %v9096 = vsub.s32 32, %v9095
        %v9097 = vshll.u32 %v9088, %v9095
        %v9098 = vshrl.u32 %v9080, %v9096
        %v9099 = vor.u32 %v9097, %v9098
        %v9100 = vsub.s32 4294967266, %v9095
        %v9101 = vadd.s32 %v9100, 127
        %v9102 = vshll.u32 %v9101, 23
        %v9103 = vor.u32 4788187, %v9102
        %v9104 = vand.u32 2147483647, %v9103
        %v9106 = vcvt.s32.f32 %v9099
        %v9107 = vmul.f32 %v9106, %v9104
        %v9108 = vxor.u32 %v9107, 2147483648
        %v9109 = vsel %vm8988, %v9108, %v9107
        %v9110 = vsub.s32 4, %v9086
        %v9111 = vsel %vm8988, %v9110, %v9086
        %v9112 = vsel %vm8987, %v298, %v9109
        %v9113 = vsel %vm8987, 0, %v9111
        %v9114 = vmul.f32 %v9112, %v9112
        %v9115 = vmul.f32 %v9114, -0.001358992
        %v9116 = vadd.f32 %v9115, 0.041655596
        %v9117 = vmul.f32 %v9114, %v9116
        %v9118 = vadd.f32 %v9117, -0.4999988
        %v9119 = vmul.f32 %v9114, %v9118
        %v9120 = vadd.f32 1.0, %v9119
        %v9121 = vmul.f32 %v9112, %v9112
        %v9122 = vmul.f32 %v9121, -0.00019511016
        %v9123 = vadd.f32 %v9122, 0.008332121
        %v9124 = vmul.f32 %v9121, %v9123
        %v9125 = vadd.f32 %v9124, -0.16666654
        %v9126 = vmul.f32 %v9121, %v9125
        %v9127 = vadd.f32 %v9126, 1.0
        %v9128 = vmul.f32 %v9127, %v9112
        %vm9129 = vweird.f32 %v298
        %v9130 = vadd.s32 %v9113, 3
        %v9131 = vand.u32 %v9130, 3
        %vm9132 = vcmp.lt.s32.totalorder %v9131, 2
        %vm9133 = vcmp.eq.s32.totalorder %v9131, 0
        %v9134 = vxor.u32 %v9128, 2147483648
        %v9135 = vsel %vm9133, %v9120, %v9134
        %vm9136 = vcmp.eq.s32.totalorder %v9131, 2
        %v9137 = vxor.u32 %v9120, 2147483648
        %v9138 = vsel %vm9136, %v9137, %v9128
        %v9139 = vsel %vm9132, %v9135, %v9138
        %v9140 = vsel %vm9129, nan, %v9139
        %v9141 = vand.u32 2147483647, %v299
        %vm9142 = vcmp.le.f32.partialorder %v9141, 0.7853982
        %vm9143 = vcmp.lt.s32.totalorder %v299, 0
        %v9144 = vand.u32 %v299, 2139095040
        %v9145 = vshrl.u32 %v9144, 23
        %v9146 = vsub.s32 %v9145, 127
        %v9147 = vand.u32 2147483647, %v299
        %v9148 = vand.u32 %v9147, 8388607
        %v9149 = vor.u32 %v9148, 8388608
        %v9150 = vsub.s32 0, %v9149
        %v9151 = vadd.s32 %v9146, 1
        %vm9152 = vcmp.gt.s32.totalorder %v9151, 0
        %v9153 = vsel %vm9152, %v9151, 0
        %v9154 = vshrl.u32 %v9153, 5
        %v9155 = vand.u32 %v9153, 31
        %v9156 = vsub.s32 32, %v9155
        %v9157 = vshrl.u32 683565275, %v9156
        %v9158 = vshll.u32 683565275, %v9155
        %v9159 = vshrl.u32 2475754826, %v9156
        %v9160 = vor.u32 %v9158, %v9159
        %v9161 = vshll.u32 2475754826, %v9155
        %v9162 = vshrl.u32 2131351028, %v9156
        %v9163 = vor.u32 %v9161, %v9162
        %v9164 = vshll.u32 2131351028, %v9155
        %v9165 = vshrl.u32 2102212464, %v9156
        %v9166 = vor.u32 %v9164, %v9165
        %v9167 = vshll.u32 2102212464, %v9155
        %v9168 = vshrl.u32 920167782, %v9156
        %v9169 = vor.u32 %v9167, %v9168
        %v9170 = vshll.u32 920167782, %v9155
        %v9171 = vshrl.u32 1326507024, %v9156
        %v9172 = vor.u32 %v9170, %v9171
        %vm9173 = vcmp.lt.s32.totalorder %v9154, 1
        %vm9174 = vcmp.lt.s32.totalorder %v9154, 2
        %vm9175 = vcmp.lt.s32.totalorder %v9154, 3
        %vm9176 = vcmp.lt.s32.totalorder %v9154, 4
        %v9177 = vsel %vm9173, %v9157, %v9160
        %v9178 = vsel %vm9176, %v9166, 2102212464
        %v9179 = vsel %vm9175, %v9163, %v9178
        %v9180 = vsel %vm9174, %v9177, %v9179
        %v9181 = vsel %vm9173, %v9160, %v9163
        %v9182 = vsel %vm9176, %v9169, 920167782
        %v9183 = vsel %vm9175, %v9166, %v9182
        %v9184 = vsel %vm9174, %v9181, %v9183
        %v9185 = vsel %vm9173, %v9163, %v9166
        %v9186 = vsel %vm9176, %v9172, 1326507024
        %v9187 = vsel %vm9175, %v9169, %v9186
        %v9188 = vsel %vm9174, %v9185, %v9187
        %v9189 = vshll.u32 %v9149, 8
        %v9190 = vand.u32 %v9189, 65535
        %v9191 = vshrl.u32 %v9189, 16
        %v9192 = vand.u32 %v9188, 65535
        %v9193 = vshrl.u32 %v9188, 16
        %v9194 = vmul.u32 %v9190, %v9192
        %v9195 = vmul.u32 %v9190, %v9193
        %v9196 = vmul.u32 %v9191, %v9192
        %v9197 = vmul.u32 %v9191, %v9193
        %v9198 = vshll.u32 %v9195, 16
        %v9199 = vshrl.u32 %v9195, 16
        %v9200 = vshll.u32 %v9196, 16
        %v9201 = vshrl.u32 %v9196, 16
        %vm9202 = vc.u32 %v9194, %v9198
        %v9203 = vsel %vm9202, 1, 0
        %v9204 = vadd.s32 %v9194, %v9198
        %v9205 = vadd.s32 %v9197, %v9203
        %vm9206 = vc.u32 %v9204, %v9200
        %v9207 = vsel %vm9206, 1, 0
        %v9208 = vadd.s32 %v9204, %v9200
        %v9209 = vadd.s32 %v9205, %v9207
        %v9210 = vadd.s32 %v9209, %v9199
        %v9211 = vadd.s32 %v9210, %v9201
        %v9212 = vand.u32 %v9189, 65535
        %v9213 = vshrl.u32 %v9189, 16
        %v9214 = vand.u32 %v9184, 65535
        %v9215 = vshrl.u32 %v9184, 16
        %v9216 = vmul.u32 %v9212, %v9214
        %v9217 = vmul.u32 %v9212, %v9215
        %v9218 = vmul.u32 %v9213, %v9214
        %v9219 = vmul.u32 %v9213, %v9215
        %v9220 = vshll.u32 %v9217, 16
        %v9221 = vshrl.u32 %v9217, 16
        %v9222 = vshll.u32 %v9218, 16
        %v9223 = vshrl.u32 %v9218, 16
        %vm9224 = vc.u32 %v9216, %v9220
        %v9225 = vsel %vm9224, 1, 0
        %v9226 = vadd.s32 %v9216, %v9220
        %v9227 = vadd.s32 %v9219, %v9225
        %vm9228 = vc.u32 %v9226, %v9222
        %v9229 = vsel %vm9228, 1, 0
        %v9230 = vadd.s32 %v9226, %v9222
        %v9231 = vadd.s32 %v9227, %v9229
        %v9232 = vadd.s32 %v9231, %v9221
        %v9233 = vadd.s32 %v9232, %v9223
        %v9234 = vmul.u32 %v9189, %v9180
        %v9235 = vadd.s32 %v9211, %v9230
        %vm9236 = vc.u32 %v9211, %v9230
        %v9237 = vadd.s32 %v9233, 1
        %v9238 = vsel %vm9236, %v9237, %v9233
        %v9239 = vadd.s32 %v9234, %v9238
        %v9240 = vadd.s32 %v9239, 536870912
        %v9241 = vshrl.u32 %v9240, 30
        %v9242 = vshll.u32 %v9241, 30
        %v9243 = vsub.s32 %v9239, %v9242
        %vm9244 = vcmp.lt.s32.totalorder %v9243, 0
        %v9245 = vsub.s32 0, %v9243
        %v9246 = vsel %vm9244, %v9245, %v9243
        %v9247 = vclz %v9246
        %v9248 = vsub.s32 %v9247, 2
        %vm9249 = vcmp.gt.s32.totalorder 0, %v9248
        %v9250 = vsel %vm9249, 0, %v9248
        %v9251 = vsub.s32 32, %v9250
        %v9252 = vshll.u32 %v9243, %v9250
        %v9253 = vshrl.u32 %v9235, %v9251
        %v9254 = vor.u32 %v9252, %v9253
        %v9255 = vsub.s32 4294967266, %v9250
        %v9256 = vadd.s32 %v9255, 127
        %v9257 = vshll.u32 %v9256, 23
        %v9258 = vor.u32 4788187, %v9257
        %v9259 = vand.u32 2147483647, %v9258
        %v9261 = vcvt.s32.f32 %v9254
        %v9262 = vmul.f32 %v9261, %v9259
        %v9263 = vxor.u32 %v9262, 2147483648
        %v9264 = vsel %vm9143, %v9263, %v9262
        %v9265 = vsub.s32 4, %v9241
        %v9266 = vsel %vm9143, %v9265, %v9241
        %v9267 = vsel %vm9142, %v299, %v9264
        %v9268 = vsel %vm9142, 0, %v9266
        %v9269 = vmul.f32 %v9267, %v9267
        %v9270 = vmul.f32 %v9269, -0.001358992
        %v9271 = vadd.f32 %v9270, 0.041655596
        %v9272 = vmul.f32 %v9269, %v9271
        %v9273 = vadd.f32 %v9272, -0.4999988
        %v9274 = vmul.f32 %v9269, %v9273
        %v9275 = vadd.f32 1.0, %v9274
        %v9276 = vmul.f32 %v9267, %v9267
        %v9277 = vmul.f32 %v9276, -0.00019511016
        %v9278 = vadd.f32 %v9277, 0.008332121
        %v9279 = vmul.f32 %v9276, %v9278
        %v9280 = vadd.f32 %v9279, -0.16666654
        %v9281 = vmul.f32 %v9276, %v9280
        %v9282 = vadd.f32 %v9281, 1.0
        %v9283 = vmul.f32 %v9282, %v9267
        %vm9284 = vweird.f32 %v299
        %v9285 = vadd.s32 %v9268, 3
        %v9286 = vand.u32 %v9285, 3
        %vm9287 = vcmp.lt.s32.totalorder %v9286, 2
        %vm9288 = vcmp.eq.s32.totalorder %v9286, 0
        %v9289 = vxor.u32 %v9283, 2147483648
        %v9290 = vsel %vm9288, %v9275, %v9289
        %vm9291 = vcmp.eq.s32.totalorder %v9286, 2
        %v9292 = vxor.u32 %v9275, 2147483648
        %v9293 = vsel %vm9291, %v9292, %v9283
        %v9294 = vsel %vm9287, %v9290, %v9293
        %v9295 = vsel %vm9284, nan, %v9294
        %v9296 = vand.u32 2147483647, %v300
        %vm9297 = vcmp.le.f32.partialorder %v9296, 0.7853982
        %vm9298 = vcmp.lt.s32.totalorder %v300, 0
        %v9299 = vand.u32 %v300, 2139095040
        %v9300 = vshrl.u32 %v9299, 23
        %v9301 = vsub.s32 %v9300, 127
        %v9302 = vand.u32 2147483647, %v300
        %v9303 = vand.u32 %v9302, 8388607
        %v9304 = vor.u32 %v9303, 8388608
        %v9305 = vsub.s32 0, %v9304
        %v9306 = vadd.s32 %v9301, 1
        %vm9307 = vcmp.gt.s32.totalorder %v9306, 0
        %v9308 = vsel %vm9307, %v9306, 0
        %v9309 = vshrl.u32 %v9308, 5
        %v9310 = vand.u32 %v9308, 31
        %v9311 = vsub.s32 32, %v9310
        %v9312 = vshrl.u32 683565275, %v9311
        %v9313 = vshll.u32 683565275, %v9310
        %v9314 = vshrl.u32 2475754826, %v9311
        %v9315 = vor.u32 %v9313, %v9314
        %v9316 = vshll.u32 2475754826, %v9310
        %v9317 = vshrl.u32 2131351028, %v9311
        %v9318 = vor.u32 %v9316, %v9317
        %v9319 = vshll.u32 2131351028, %v9310
        %v9320 = vshrl.u32 2102212464, %v9311
        %v9321 = vor.u32 %v9319, %v9320
        %v9322 = vshll.u32 2102212464, %v9310
        %v9323 = vshrl.u32 920167782, %v9311
        %v9324 = vor.u32 %v9322, %v9323
        %v9325 = vshll.u32 920167782, %v9310
        %v9326 = vshrl.u32 1326507024, %v9311
        %v9327 = vor.u32 %v9325, %v9326
        %vm9328 = vcmp.lt.s32.totalorder %v9309, 1
        %vm9329 = vcmp.lt.s32.totalorder %v9309, 2
        %vm9330 = vcmp.lt.s32.totalorder %v9309, 3
        %vm9331 = vcmp.lt.s32.totalorder %v9309, 4
        %v9332 = vsel %vm9328, %v9312, %v9315
        %v9333 = vsel %vm9331, %v9321, 2102212464
        %v9334 = vsel %vm9330, %v9318, %v9333
        %v9335 = vsel %vm9329, %v9332, %v9334
        %v9336 = vsel %vm9328, %v9315, %v9318
        %v9337 = vsel %vm9331, %v9324, 920167782
        %v9338 = vsel %vm9330, %v9321, %v9337
        %v9339 = vsel %vm9329, %v9336, %v9338
        %v9340 = vsel %vm9328, %v9318, %v9321
        %v9341 = vsel %vm9331, %v9327, 1326507024
        %v9342 = vsel %vm9330, %v9324, %v9341
        %v9343 = vsel %vm9329, %v9340, %v9342
        %v9344 = vshll.u32 %v9304, 8
        %v9345 = vand.u32 %v9344, 65535
        %v9346 = vshrl.u32 %v9344, 16
        %v9347 = vand.u32 %v9343, 65535
        %v9348 = vshrl.u32 %v9343, 16
        %v9349 = vmul.u32 %v9345, %v9347
        %v9350 = vmul.u32 %v9345, %v9348
        %v9351 = vmul.u32 %v9346, %v9347
        %v9352 = vmul.u32 %v9346, %v9348
        %v9353 = vshll.u32 %v9350, 16
        %v9354 = vshrl.u32 %v9350, 16
        %v9355 = vshll.u32 %v9351, 16
        %v9356 = vshrl.u32 %v9351, 16
        %vm9357 = vc.u32 %v9349, %v9353
        %v9358 = vsel %vm9357, 1, 0
        %v9359 = vadd.s32 %v9349, %v9353
        %v9360 = vadd.s32 %v9352, %v9358
        %vm9361 = vc.u32 %v9359, %v9355
        %v9362 = vsel %vm9361, 1, 0
        %v9363 = vadd.s32 %v9359, %v9355
        %v9364 = vadd.s32 %v9360, %v9362
        %v9365 = vadd.s32 %v9364, %v9354
        %v9366 = vadd.s32 %v9365, %v9356
        %v9367 = vand.u32 %v9344, 65535
        %v9368 = vshrl.u32 %v9344, 16
        %v9369 = vand.u32 %v9339, 65535
        %v9370 = vshrl.u32 %v9339, 16
        %v9371 = vmul.u32 %v9367, %v9369
        %v9372 = vmul.u32 %v9367, %v9370
        %v9373 = vmul.u32 %v9368, %v9369
        %v9374 = vmul.u32 %v9368, %v9370
        %v9375 = vshll.u32 %v9372, 16
        %v9376 = vshrl.u32 %v9372, 16
        %v9377 = vshll.u32 %v9373, 16
        %v9378 = vshrl.u32 %v9373, 16
        %vm9379 = vc.u32 %v9371, %v9375
        %v9380 = vsel %vm9379, 1, 0
        %v9381 = vadd.s32 %v9371, %v9375
        %v9382 = vadd.s32 %v9374, %v9380
        %vm9383 = vc.u32 %v9381, %v9377
        %v9384 = vsel %vm9383, 1, 0
        %v9385 = vadd.s32 %v9381, %v9377
        %v9386 = vadd.s32 %v9382, %v9384
        %v9387 = vadd.s32 %v9386, %v9376
        %v9388 = vadd.s32 %v9387, %v9378
        %v9389 = vmul.u32 %v9344, %v9335
        %v9390 = vadd.s32 %v9366, %v9385
        %vm9391 = vc.u32 %v9366, %v9385
        %v9392 = vadd.s32 %v9388, 1
        %v9393 = vsel %vm9391, %v9392, %v9388
        %v9394 = vadd.s32 %v9389, %v9393
        %v9395 = vadd.s32 %v9394, 536870912
        %v9396 = vshrl.u32 %v9395, 30
        %v9397 = vshll.u32 %v9396, 30
        %v9398 = vsub.s32 %v9394, %v9397
        %vm9399 = vcmp.lt.s32.totalorder %v9398, 0
        %v9400 = vsub.s32 0, %v9398
        %v9401 = vsel %vm9399, %v9400, %v9398
        %v9402 = vclz %v9401
        %v9403 = vsub.s32 %v9402, 2
        %vm9404 = vcmp.gt.s32.totalorder 0, %v9403
        %v9405 = vsel %vm9404, 0, %v9403
        %v9406 = vsub.s32 32, %v9405
        %v9407 = vshll.u32 %v9398, %v9405
        %v9408 = vshrl.u32 %v9390, %v9406
        %v9409 = vor.u32 %v9407, %v9408
        %v9410 = vsub.s32 4294967266, %v9405
        %v9411 = vadd.s32 %v9410, 127
        %v9412 = vshll.u32 %v9411, 23
        %v9413 = vor.u32 4788187, %v9412
        %v9414 = vand.u32 2147483647, %v9413
        %v9416 = vcvt.s32.f32 %v9409
        %v9417 = vmul.f32 %v9416, %v9414
        %v9418 = vxor.u32 %v9417, 2147483648
        %v9419 = vsel %vm9298, %v9418, %v9417
        %v9420 = vsub.s32 4, %v9396
        %v9421 = vsel %vm9298, %v9420, %v9396
        %v9422 = vsel %vm9297, %v300, %v9419
        %v9423 = vsel %vm9297, 0, %v9421
        %v9424 = vmul.f32 %v9422, %v9422
        %v9425 = vmul.f32 %v9424, -0.001358992
        %v9426 = vadd.f32 %v9425, 0.041655596
        %v9427 = vmul.f32 %v9424, %v9426
        %v9428 = vadd.f32 %v9427, -0.4999988
        %v9429 = vmul.f32 %v9424, %v9428
        %v9430 = vadd.f32 1.0, %v9429
        %v9431 = vmul.f32 %v9422, %v9422
        %v9432 = vmul.f32 %v9431, -0.00019511016
        %v9433 = vadd.f32 %v9432, 0.008332121
        %v9434 = vmul.f32 %v9431, %v9433
        %v9435 = vadd.f32 %v9434, -0.16666654
        %v9436 = vmul.f32 %v9431, %v9435
        %v9437 = vadd.f32 %v9436, 1.0
        %v9438 = vmul.f32 %v9437, %v9422
        %vm9439 = vweird.f32 %v300
        %v9440 = vadd.s32 %v9423, 3
        %v9441 = vand.u32 %v9440, 3
        %vm9442 = vcmp.lt.s32.totalorder %v9441, 2
        %vm9443 = vcmp.eq.s32.totalorder %v9441, 0
        %v9444 = vxor.u32 %v9438, 2147483648
        %v9445 = vsel %vm9443, %v9430, %v9444
        %vm9446 = vcmp.eq.s32.totalorder %v9441, 2
        %v9447 = vxor.u32 %v9430, 2147483648
        %v9448 = vsel %vm9446, %v9447, %v9438
        %v9449 = vsel %vm9442, %v9445, %v9448
        %v9450 = vsel %vm9439, nan, %v9449
        %v9451 = vand.u32 2147483647, %v301
        %vm9452 = vcmp.le.f32.partialorder %v9451, 0.7853982
        %vm9453 = vcmp.lt.s32.totalorder %v301, 0
        %v9454 = vand.u32 %v301, 2139095040
        %v9455 = vshrl.u32 %v9454, 23
        %v9456 = vsub.s32 %v9455, 127
        %v9457 = vand.u32 2147483647, %v301
        %v9458 = vand.u32 %v9457, 8388607
        %v9459 = vor.u32 %v9458, 8388608
        %v9460 = vsub.s32 0, %v9459
        %v9461 = vadd.s32 %v9456, 1
        %vm9462 = vcmp.gt.s32.totalorder %v9461, 0
        %v9463 = vsel %vm9462, %v9461, 0
        %v9464 = vshrl.u32 %v9463, 5
        %v9465 = vand.u32 %v9463, 31
        %v9466 = vsub.s32 32, %v9465
        %v9467 = vshrl.u32 683565275, %v9466
        %v9468 = vshll.u32 683565275, %v9465
        %v9469 = vshrl.u32 2475754826, %v9466
        %v9470 = vor.u32 %v9468, %v9469
        %v9471 = vshll.u32 2475754826, %v9465
        %v9472 = vshrl.u32 2131351028, %v9466
        %v9473 = vor.u32 %v9471, %v9472
        %v9474 = vshll.u32 2131351028, %v9465
        %v9475 = vshrl.u32 2102212464, %v9466
        %v9476 = vor.u32 %v9474, %v9475
        %v9477 = vshll.u32 2102212464, %v9465
        %v9478 = vshrl.u32 920167782, %v9466
        %v9479 = vor.u32 %v9477, %v9478
        %v9480 = vshll.u32 920167782, %v9465
        %v9481 = vshrl.u32 1326507024, %v9466
        %v9482 = vor.u32 %v9480, %v9481
        %vm9483 = vcmp.lt.s32.totalorder %v9464, 1
        %vm9484 = vcmp.lt.s32.totalorder %v9464, 2
        %vm9485 = vcmp.lt.s32.totalorder %v9464, 3
        %vm9486 = vcmp.lt.s32.totalorder %v9464, 4
        %v9487 = vsel %vm9483, %v9467, %v9470
        %v9488 = vsel %vm9486, %v9476, 2102212464
        %v9489 = vsel %vm9485, %v9473, %v9488
        %v9490 = vsel %vm9484, %v9487, %v9489
        %v9491 = vsel %vm9483, %v9470, %v9473
        %v9492 = vsel %vm9486, %v9479, 920167782
        %v9493 = vsel %vm9485, %v9476, %v9492
        %v9494 = vsel %vm9484, %v9491, %v9493
        %v9495 = vsel %vm9483, %v9473, %v9476
        %v9496 = vsel %vm9486, %v9482, 1326507024
        %v9497 = vsel %vm9485, %v9479, %v9496
        %v9498 = vsel %vm9484, %v9495, %v9497
        %v9499 = vshll.u32 %v9459, 8
        %v9500 = vand.u32 %v9499, 65535
        %v9501 = vshrl.u32 %v9499, 16
        %v9502 = vand.u32 %v9498, 65535
        %v9503 = vshrl.u32 %v9498, 16
        %v9504 = vmul.u32 %v9500, %v9502
        %v9505 = vmul.u32 %v9500, %v9503
        %v9506 = vmul.u32 %v9501, %v9502
        %v9507 = vmul.u32 %v9501, %v9503
        %v9508 = vshll.u32 %v9505, 16
        %v9509 = vshrl.u32 %v9505, 16
        %v9510 = vshll.u32 %v9506, 16
        %v9511 = vshrl.u32 %v9506, 16
        %vm9512 = vc.u32 %v9504, %v9508
        %v9513 = vsel %vm9512, 1, 0
        %v9514 = vadd.s32 %v9504, %v9508
        %v9515 = vadd.s32 %v9507, %v9513
        %vm9516 = vc.u32 %v9514, %v9510
        %v9517 = vsel %vm9516, 1, 0
        %v9518 = vadd.s32 %v9514, %v9510
        %v9519 = vadd.s32 %v9515, %v9517
        %v9520 = vadd.s32 %v9519, %v9509
        %v9521 = vadd.s32 %v9520, %v9511
        %v9522 = vand.u32 %v9499, 65535
        %v9523 = vshrl.u32 %v9499, 16
        %v9524 = vand.u32 %v9494, 65535
        %v9525 = vshrl.u32 %v9494, 16
        %v9526 = vmul.u32 %v9522, %v9524
        %v9527 = vmul.u32 %v9522, %v9525
        %v9528 = vmul.u32 %v9523, %v9524
        %v9529 = vmul.u32 %v9523, %v9525
        %v9530 = vshll.u32 %v9527, 16
        %v9531 = vshrl.u32 %v9527, 16
        %v9532 = vshll.u32 %v9528, 16
        %v9533 = vshrl.u32 %v9528, 16
        %vm9534 = vc.u32 %v9526, %v9530
        %v9535 = vsel %vm9534, 1, 0
        %v9536 = vadd.s32 %v9526, %v9530
        %v9537 = vadd.s32 %v9529, %v9535
        %vm9538 = vc.u32 %v9536, %v9532
        %v9539 = vsel %vm9538, 1, 0
        %v9540 = vadd.s32 %v9536, %v9532
        %v9541 = vadd.s32 %v9537, %v9539
        %v9542 = vadd.s32 %v9541, %v9531
        %v9543 = vadd.s32 %v9542, %v9533
        %v9544 = vmul.u32 %v9499, %v9490
        %v9545 = vadd.s32 %v9521, %v9540
        %vm9546 = vc.u32 %v9521, %v9540
        %v9547 = vadd.s32 %v9543, 1
        %v9548 = vsel %vm9546, %v9547, %v9543
        %v9549 = vadd.s32 %v9544, %v9548
        %v9550 = vadd.s32 %v9549, 536870912
        %v9551 = vshrl.u32 %v9550, 30
        %v9552 = vshll.u32 %v9551, 30
        %v9553 = vsub.s32 %v9549, %v9552
        %vm9554 = vcmp.lt.s32.totalorder %v9553, 0
        %v9555 = vsub.s32 0, %v9553
        %v9556 = vsel %vm9554, %v9555, %v9553
        %v9557 = vclz %v9556
        %v9558 = vsub.s32 %v9557, 2
        %vm9559 = vcmp.gt.s32.totalorder 0, %v9558
        %v9560 = vsel %vm9559, 0, %v9558
        %v9561 = vsub.s32 32, %v9560
        %v9562 = vshll.u32 %v9553, %v9560
        %v9563 = vshrl.u32 %v9545, %v9561
        %v9564 = vor.u32 %v9562, %v9563
        %v9565 = vsub.s32 4294967266, %v9560
        %v9566 = vadd.s32 %v9565, 127
        %v9567 = vshll.u32 %v9566, 23
        %v9568 = vor.u32 4788187, %v9567
        %v9569 = vand.u32 2147483647, %v9568
        %v9571 = vcvt.s32.f32 %v9564
        %v9572 = vmul.f32 %v9571, %v9569
        %v9573 = vxor.u32 %v9572, 2147483648
        %v9574 = vsel %vm9453, %v9573, %v9572
        %v9575 = vsub.s32 4, %v9551
        %v9576 = vsel %vm9453, %v9575, %v9551
        %v9577 = vsel %vm9452, %v301, %v9574
        %v9578 = vsel %vm9452, 0, %v9576
        %v9579 = vmul.f32 %v9577, %v9577
        %v9580 = vmul.f32 %v9579, -0.001358992
        %v9581 = vadd.f32 %v9580, 0.041655596
        %v9582 = vmul.f32 %v9579, %v9581
        %v9583 = vadd.f32 %v9582, -0.4999988
        %v9584 = vmul.f32 %v9579, %v9583
        %v9585 = vadd.f32 1.0, %v9584
        %v9586 = vmul.f32 %v9577, %v9577
        %v9587 = vmul.f32 %v9586, -0.00019511016
        %v9588 = vadd.f32 %v9587, 0.008332121
        %v9589 = vmul.f32 %v9586, %v9588
        %v9590 = vadd.f32 %v9589, -0.16666654
        %v9591 = vmul.f32 %v9586, %v9590
        %v9592 = vadd.f32 %v9591, 1.0
        %v9593 = vmul.f32 %v9592, %v9577
        %vm9594 = vweird.f32 %v301
        %v9595 = vadd.s32 %v9578, 3
        %v9596 = vand.u32 %v9595, 3
        %vm9597 = vcmp.lt.s32.totalorder %v9596, 2
        %vm9598 = vcmp.eq.s32.totalorder %v9596, 0
        %v9599 = vxor.u32 %v9593, 2147483648
        %v9600 = vsel %vm9598, %v9585, %v9599
        %vm9601 = vcmp.eq.s32.totalorder %v9596, 2
        %v9602 = vxor.u32 %v9585, 2147483648
        %v9603 = vsel %vm9601, %v9602, %v9593
        %v9604 = vsel %vm9597, %v9600, %v9603
        %v9605 = vsel %vm9594, nan, %v9604
        %v9606 = vand.u32 2147483647, %v302
        %vm9607 = vcmp.le.f32.partialorder %v9606, 0.7853982
        %vm9608 = vcmp.lt.s32.totalorder %v302, 0
        %v9609 = vand.u32 %v302, 2139095040
        %v9610 = vshrl.u32 %v9609, 23
        %v9611 = vsub.s32 %v9610, 127
        %v9612 = vand.u32 2147483647, %v302
        %v9613 = vand.u32 %v9612, 8388607
        %v9614 = vor.u32 %v9613, 8388608
        %v9615 = vsub.s32 0, %v9614
        %v9616 = vadd.s32 %v9611, 1
        %vm9617 = vcmp.gt.s32.totalorder %v9616, 0
        %v9618 = vsel %vm9617, %v9616, 0
        %v9619 = vshrl.u32 %v9618, 5
        %v9620 = vand.u32 %v9618, 31
        %v9621 = vsub.s32 32, %v9620
        %v9622 = vshrl.u32 683565275, %v9621
        %v9623 = vshll.u32 683565275, %v9620
        %v9624 = vshrl.u32 2475754826, %v9621
        %v9625 = vor.u32 %v9623, %v9624
        %v9626 = vshll.u32 2475754826, %v9620
        %v9627 = vshrl.u32 2131351028, %v9621
        %v9628 = vor.u32 %v9626, %v9627
        %v9629 = vshll.u32 2131351028, %v9620
        %v9630 = vshrl.u32 2102212464, %v9621
        %v9631 = vor.u32 %v9629, %v9630
        %v9632 = vshll.u32 2102212464, %v9620
        %v9633 = vshrl.u32 920167782, %v9621
        %v9634 = vor.u32 %v9632, %v9633
        %v9635 = vshll.u32 920167782, %v9620
        %v9636 = vshrl.u32 1326507024, %v9621
        %v9637 = vor.u32 %v9635, %v9636
        %vm9638 = vcmp.lt.s32.totalorder %v9619, 1
        %vm9639 = vcmp.lt.s32.totalorder %v9619, 2
        %vm9640 = vcmp.lt.s32.totalorder %v9619, 3
        %vm9641 = vcmp.lt.s32.totalorder %v9619, 4
        %v9642 = vsel %vm9638, %v9622, %v9625
        %v9643 = vsel %vm9641, %v9631, 2102212464
        %v9644 = vsel %vm9640, %v9628, %v9643
        %v9645 = vsel %vm9639, %v9642, %v9644
        %v9646 = vsel %vm9638, %v9625, %v9628
        %v9647 = vsel %vm9641, %v9634, 920167782
        %v9648 = vsel %vm9640, %v9631, %v9647
        %v9649 = vsel %vm9639, %v9646, %v9648
        %v9650 = vsel %vm9638, %v9628, %v9631
        %v9651 = vsel %vm9641, %v9637, 1326507024
        %v9652 = vsel %vm9640, %v9634, %v9651
        %v9653 = vsel %vm9639, %v9650, %v9652
        %v9654 = vshll.u32 %v9614, 8
        %v9655 = vand.u32 %v9654, 65535
        %v9656 = vshrl.u32 %v9654, 16
        %v9657 = vand.u32 %v9653, 65535
        %v9658 = vshrl.u32 %v9653, 16
        %v9659 = vmul.u32 %v9655, %v9657
        %v9660 = vmul.u32 %v9655, %v9658
        %v9661 = vmul.u32 %v9656, %v9657
        %v9662 = vmul.u32 %v9656, %v9658
        %v9663 = vshll.u32 %v9660, 16
        %v9664 = vshrl.u32 %v9660, 16
        %v9665 = vshll.u32 %v9661, 16
        %v9666 = vshrl.u32 %v9661, 16
        %vm9667 = vc.u32 %v9659, %v9663
        %v9668 = vsel %vm9667, 1, 0
        %v9669 = vadd.s32 %v9659, %v9663
        %v9670 = vadd.s32 %v9662, %v9668
        %vm9671 = vc.u32 %v9669, %v9665
        %v9672 = vsel %vm9671, 1, 0
        %v9673 = vadd.s32 %v9669, %v9665
        %v9674 = vadd.s32 %v9670, %v9672
        %v9675 = vadd.s32 %v9674, %v9664
        %v9676 = vadd.s32 %v9675, %v9666
        %v9677 = vand.u32 %v9654, 65535
        %v9678 = vshrl.u32 %v9654, 16
        %v9679 = vand.u32 %v9649, 65535
        %v9680 = vshrl.u32 %v9649, 16
        %v9681 = vmul.u32 %v9677, %v9679
        %v9682 = vmul.u32 %v9677, %v9680
        %v9683 = vmul.u32 %v9678, %v9679
        %v9684 = vmul.u32 %v9678, %v9680
        %v9685 = vshll.u32 %v9682, 16
        %v9686 = vshrl.u32 %v9682, 16
        %v9687 = vshll.u32 %v9683, 16
        %v9688 = vshrl.u32 %v9683, 16
        %vm9689 = vc.u32 %v9681, %v9685
        %v9690 = vsel %vm9689, 1, 0
        %v9691 = vadd.s32 %v9681, %v9685
        %v9692 = vadd.s32 %v9684, %v9690
        %vm9693 = vc.u32 %v9691, %v9687
        %v9694 = vsel %vm9693, 1, 0
        %v9695 = vadd.s32 %v9691, %v9687
        %v9696 = vadd.s32 %v9692, %v9694
        %v9697 = vadd.s32 %v9696, %v9686
        %v9698 = vadd.s32 %v9697, %v9688
        %v9699 = vmul.u32 %v9654, %v9645
        %v9700 = vadd.s32 %v9676, %v9695
        %vm9701 = vc.u32 %v9676, %v9695
        %v9702 = vadd.s32 %v9698, 1
        %v9703 = vsel %vm9701, %v9702, %v9698
        %v9704 = vadd.s32 %v9699, %v9703
        %v9705 = vadd.s32 %v9704, 536870912
        %v9706 = vshrl.u32 %v9705, 30
        %v9707 = vshll.u32 %v9706, 30
        %v9708 = vsub.s32 %v9704, %v9707
        %vm9709 = vcmp.lt.s32.totalorder %v9708, 0
        %v9710 = vsub.s32 0, %v9708
        %v9711 = vsel %vm9709, %v9710, %v9708
        %v9712 = vclz %v9711
        %v9713 = vsub.s32 %v9712, 2
        %vm9714 = vcmp.gt.s32.totalorder 0, %v9713
        %v9715 = vsel %vm9714, 0, %v9713
        %v9716 = vsub.s32 32, %v9715
        %v9717 = vshll.u32 %v9708, %v9715
        %v9718 = vshrl.u32 %v9700, %v9716
        %v9719 = vor.u32 %v9717, %v9718
        %v9720 = vsub.s32 4294967266, %v9715
        %v9721 = vadd.s32 %v9720, 127
        %v9722 = vshll.u32 %v9721, 23
        %v9723 = vor.u32 4788187, %v9722
        %v9724 = vand.u32 2147483647, %v9723
        %v9726 = vcvt.s32.f32 %v9719
        %v9727 = vmul.f32 %v9726, %v9724
        %v9728 = vxor.u32 %v9727, 2147483648
        %v9729 = vsel %vm9608, %v9728, %v9727
        %v9730 = vsub.s32 4, %v9706
        %v9731 = vsel %vm9608, %v9730, %v9706
        %v9732 = vsel %vm9607, %v302, %v9729
        %v9733 = vsel %vm9607, 0, %v9731
        %v9734 = vmul.f32 %v9732, %v9732
        %v9735 = vmul.f32 %v9734, -0.001358992
        %v9736 = vadd.f32 %v9735, 0.041655596
        %v9737 = vmul.f32 %v9734, %v9736
        %v9738 = vadd.f32 %v9737, -0.4999988
        %v9739 = vmul.f32 %v9734, %v9738
        %v9740 = vadd.f32 1.0, %v9739
        %v9741 = vmul.f32 %v9732, %v9732
        %v9742 = vmul.f32 %v9741, -0.00019511016
        %v9743 = vadd.f32 %v9742, 0.008332121
        %v9744 = vmul.f32 %v9741, %v9743
        %v9745 = vadd.f32 %v9744, -0.16666654
        %v9746 = vmul.f32 %v9741, %v9745
        %v9747 = vadd.f32 %v9746, 1.0
        %v9748 = vmul.f32 %v9747, %v9732
        %vm9749 = vweird.f32 %v302
        %v9750 = vadd.s32 %v9733, 3
        %v9751 = vand.u32 %v9750, 3
        %vm9752 = vcmp.lt.s32.totalorder %v9751, 2
        %vm9753 = vcmp.eq.s32.totalorder %v9751, 0
        %v9754 = vxor.u32 %v9748, 2147483648
        %v9755 = vsel %vm9753, %v9740, %v9754
        %vm9756 = vcmp.eq.s32.totalorder %v9751, 2
        %v9757 = vxor.u32 %v9740, 2147483648
        %v9758 = vsel %vm9756, %v9757, %v9748
        %v9759 = vsel %vm9752, %v9755, %v9758
        %v9760 = vsel %vm9749, nan, %v9759
        %v9761 = vand.u32 2147483647, %v303
        %vm9762 = vcmp.le.f32.partialorder %v9761, 0.7853982
        %vm9763 = vcmp.lt.s32.totalorder %v303, 0
        %v9764 = vand.u32 %v303, 2139095040
        %v9765 = vshrl.u32 %v9764, 23
        %v9766 = vsub.s32 %v9765, 127
        %v9767 = vand.u32 2147483647, %v303
        %v9768 = vand.u32 %v9767, 8388607
        %v9769 = vor.u32 %v9768, 8388608
        %v9770 = vsub.s32 0, %v9769
        %v9771 = vadd.s32 %v9766, 1
        %vm9772 = vcmp.gt.s32.totalorder %v9771, 0
        %v9773 = vsel %vm9772, %v9771, 0
        %v9774 = vshrl.u32 %v9773, 5
        %v9775 = vand.u32 %v9773, 31
        %v9776 = vsub.s32 32, %v9775
        %v9777 = vshrl.u32 683565275, %v9776
        %v9778 = vshll.u32 683565275, %v9775
        %v9779 = vshrl.u32 2475754826, %v9776
        %v9780 = vor.u32 %v9778, %v9779
        %v9781 = vshll.u32 2475754826, %v9775
        %v9782 = vshrl.u32 2131351028, %v9776
        %v9783 = vor.u32 %v9781, %v9782
        %v9784 = vshll.u32 2131351028, %v9775
        %v9785 = vshrl.u32 2102212464, %v9776
        %v9786 = vor.u32 %v9784, %v9785
        %v9787 = vshll.u32 2102212464, %v9775
        %v9788 = vshrl.u32 920167782, %v9776
        %v9789 = vor.u32 %v9787, %v9788
        %v9790 = vshll.u32 920167782, %v9775
        %v9791 = vshrl.u32 1326507024, %v9776
        %v9792 = vor.u32 %v9790, %v9791
        %vm9793 = vcmp.lt.s32.totalorder %v9774, 1
        %vm9794 = vcmp.lt.s32.totalorder %v9774, 2
        %vm9795 = vcmp.lt.s32.totalorder %v9774, 3
        %vm9796 = vcmp.lt.s32.totalorder %v9774, 4
        %v9797 = vsel %vm9793, %v9777, %v9780
        %v9798 = vsel %vm9796, %v9786, 2102212464
        %v9799 = vsel %vm9795, %v9783, %v9798
        %v9800 = vsel %vm9794, %v9797, %v9799
        %v9801 = vsel %vm9793, %v9780, %v9783
        %v9802 = vsel %vm9796, %v9789, 920167782
        %v9803 = vsel %vm9795, %v9786, %v9802
        %v9804 = vsel %vm9794, %v9801, %v9803
        %v9805 = vsel %vm9793, %v9783, %v9786
        %v9806 = vsel %vm9796, %v9792, 1326507024
        %v9807 = vsel %vm9795, %v9789, %v9806
        %v9808 = vsel %vm9794, %v9805, %v9807
        %v9809 = vshll.u32 %v9769, 8
        %v9810 = vand.u32 %v9809, 65535
        %v9811 = vshrl.u32 %v9809, 16
        %v9812 = vand.u32 %v9808, 65535
        %v9813 = vshrl.u32 %v9808, 16
        %v9814 = vmul.u32 %v9810, %v9812
        %v9815 = vmul.u32 %v9810, %v9813
        %v9816 = vmul.u32 %v9811, %v9812
        %v9817 = vmul.u32 %v9811, %v9813
        %v9818 = vshll.u32 %v9815, 16
        %v9819 = vshrl.u32 %v9815, 16
        %v9820 = vshll.u32 %v9816, 16
        %v9821 = vshrl.u32 %v9816, 16
        %vm9822 = vc.u32 %v9814, %v9818
        %v9823 = vsel %vm9822, 1, 0
        %v9824 = vadd.s32 %v9814, %v9818
        %v9825 = vadd.s32 %v9817, %v9823
        %vm9826 = vc.u32 %v9824, %v9820
        %v9827 = vsel %vm9826, 1, 0
        %v9828 = vadd.s32 %v9824, %v9820
        %v9829 = vadd.s32 %v9825, %v9827
        %v9830 = vadd.s32 %v9829, %v9819
        %v9831 = vadd.s32 %v9830, %v9821
        %v9832 = vand.u32 %v9809, 65535
        %v9833 = vshrl.u32 %v9809, 16
        %v9834 = vand.u32 %v9804, 65535
        %v9835 = vshrl.u32 %v9804, 16
        %v9836 = vmul.u32 %v9832, %v9834
        %v9837 = vmul.u32 %v9832, %v9835
        %v9838 = vmul.u32 %v9833, %v9834
        %v9839 = vmul.u32 %v9833, %v9835
        %v9840 = vshll.u32 %v9837, 16
        %v9841 = vshrl.u32 %v9837, 16
        %v9842 = vshll.u32 %v9838, 16
        %v9843 = vshrl.u32 %v9838, 16
        %vm9844 = vc.u32 %v9836, %v9840
        %v9845 = vsel %vm9844, 1, 0
        %v9846 = vadd.s32 %v9836, %v9840
        %v9847 = vadd.s32 %v9839, %v9845
        %vm9848 = vc.u32 %v9846, %v9842
        %v9849 = vsel %vm9848, 1, 0
        %v9850 = vadd.s32 %v9846, %v9842
        %v9851 = vadd.s32 %v9847, %v9849
        %v9852 = vadd.s32 %v9851, %v9841
        %v9853 = vadd.s32 %v9852, %v9843
        %v9854 = vmul.u32 %v9809, %v9800
        %v9855 = vadd.s32 %v9831, %v9850
        %vm9856 = vc.u32 %v9831, %v9850
        %v9857 = vadd.s32 %v9853, 1
        %v9858 = vsel %vm9856, %v9857, %v9853
        %v9859 = vadd.s32 %v9854, %v9858
        %v9860 = vadd.s32 %v9859, 536870912
        %v9861 = vshrl.u32 %v9860, 30
        %v9862 = vshll.u32 %v9861, 30
        %v9863 = vsub.s32 %v9859, %v9862
        %vm9864 = vcmp.lt.s32.totalorder %v9863, 0
        %v9865 = vsub.s32 0, %v9863
        %v9866 = vsel %vm9864, %v9865, %v9863
        %v9867 = vclz %v9866
        %v9868 = vsub.s32 %v9867, 2
        %vm9869 = vcmp.gt.s32.totalorder 0, %v9868
        %v9870 = vsel %vm9869, 0, %v9868
        %v9871 = vsub.s32 32, %v9870
        %v9872 = vshll.u32 %v9863, %v9870
        %v9873 = vshrl.u32 %v9855, %v9871
        %v9874 = vor.u32 %v9872, %v9873
        %v9875 = vsub.s32 4294967266, %v9870
        %v9876 = vadd.s32 %v9875, 127
        %v9877 = vshll.u32 %v9876, 23
        %v9878 = vor.u32 4788187, %v9877
        %v9879 = vand.u32 2147483647, %v9878
        %v9881 = vcvt.s32.f32 %v9874
        %v9882 = vmul.f32 %v9881, %v9879
        %v9883 = vxor.u32 %v9882, 2147483648
        %v9884 = vsel %vm9763, %v9883, %v9882
        %v9885 = vsub.s32 4, %v9861
        %v9886 = vsel %vm9763, %v9885, %v9861
        %v9887 = vsel %vm9762, %v303, %v9884
        %v9888 = vsel %vm9762, 0, %v9886
        %v9889 = vmul.f32 %v9887, %v9887
        %v9890 = vmul.f32 %v9889, -0.001358992
        %v9891 = vadd.f32 %v9890, 0.041655596
        %v9892 = vmul.f32 %v9889, %v9891
        %v9893 = vadd.f32 %v9892, -0.4999988
        %v9894 = vmul.f32 %v9889, %v9893
        %v9895 = vadd.f32 1.0, %v9894
        %v9896 = vmul.f32 %v9887, %v9887
        %v9897 = vmul.f32 %v9896, -0.00019511016
        %v9898 = vadd.f32 %v9897, 0.008332121
        %v9899 = vmul.f32 %v9896, %v9898
        %v9900 = vadd.f32 %v9899, -0.16666654
        %v9901 = vmul.f32 %v9896, %v9900
        %v9902 = vadd.f32 %v9901, 1.0
        %v9903 = vmul.f32 %v9902, %v9887
        %vm9904 = vweird.f32 %v303
        %v9905 = vadd.s32 %v9888, 3
        %v9906 = vand.u32 %v9905, 3
        %vm9907 = vcmp.lt.s32.totalorder %v9906, 2
        %vm9908 = vcmp.eq.s32.totalorder %v9906, 0
        %v9909 = vxor.u32 %v9903, 2147483648
        %v9910 = vsel %vm9908, %v9895, %v9909
        %vm9911 = vcmp.eq.s32.totalorder %v9906, 2
        %v9912 = vxor.u32 %v9895, 2147483648
        %v9913 = vsel %vm9911, %v9912, %v9903
        %v9914 = vsel %vm9907, %v9910, %v9913
        %v9915 = vsel %vm9904, nan, %v9914
        %v9916 = vand.u32 2147483647, %v304
        %vm9917 = vcmp.le.f32.partialorder %v9916, 0.7853982
        %vm9918 = vcmp.lt.s32.totalorder %v304, 0
        %v9919 = vand.u32 %v304, 2139095040
        %v9920 = vshrl.u32 %v9919, 23
        %v9921 = vsub.s32 %v9920, 127
        %v9922 = vand.u32 2147483647, %v304
        %v9923 = vand.u32 %v9922, 8388607
        %v9924 = vor.u32 %v9923, 8388608
        %v9925 = vsub.s32 0, %v9924
        %v9926 = vadd.s32 %v9921, 1
        %vm9927 = vcmp.gt.s32.totalorder %v9926, 0
        %v9928 = vsel %vm9927, %v9926, 0
        %v9929 = vshrl.u32 %v9928, 5
        %v9930 = vand.u32 %v9928, 31
        %v9931 = vsub.s32 32, %v9930
        %v9932 = vshrl.u32 683565275, %v9931
        %v9933 = vshll.u32 683565275, %v9930
        %v9934 = vshrl.u32 2475754826, %v9931
        %v9935 = vor.u32 %v9933, %v9934
        %v9936 = vshll.u32 2475754826, %v9930
        %v9937 = vshrl.u32 2131351028, %v9931
        %v9938 = vor.u32 %v9936, %v9937
        %v9939 = vshll.u32 2131351028, %v9930
        %v9940 = vshrl.u32 2102212464, %v9931
        %v9941 = vor.u32 %v9939, %v9940
        %v9942 = vshll.u32 2102212464, %v9930
        %v9943 = vshrl.u32 920167782, %v9931
        %v9944 = vor.u32 %v9942, %v9943
        %v9945 = vshll.u32 920167782, %v9930
        %v9946 = vshrl.u32 1326507024, %v9931
        %v9947 = vor.u32 %v9945, %v9946
        %vm9948 = vcmp.lt.s32.totalorder %v9929, 1
        %vm9949 = vcmp.lt.s32.totalorder %v9929, 2
        %vm9950 = vcmp.lt.s32.totalorder %v9929, 3
        %vm9951 = vcmp.lt.s32.totalorder %v9929, 4
        %v9952 = vsel %vm9948, %v9932, %v9935
        %v9953 = vsel %vm9951, %v9941, 2102212464
        %v9954 = vsel %vm9950, %v9938, %v9953
        %v9955 = vsel %vm9949, %v9952, %v9954
        %v9956 = vsel %vm9948, %v9935, %v9938
        %v9957 = vsel %vm9951, %v9944, 920167782
        %v9958 = vsel %vm9950, %v9941, %v9957
        %v9959 = vsel %vm9949, %v9956, %v9958
        %v9960 = vsel %vm9948, %v9938, %v9941
        %v9961 = vsel %vm9951, %v9947, 1326507024
        %v9962 = vsel %vm9950, %v9944, %v9961
        %v9963 = vsel %vm9949, %v9960, %v9962
        %v9964 = vshll.u32 %v9924, 8
        %v9965 = vand.u32 %v9964, 65535
        %v9966 = vshrl.u32 %v9964, 16
        %v9967 = vand.u32 %v9963, 65535
        %v9968 = vshrl.u32 %v9963, 16
        %v9969 = vmul.u32 %v9965, %v9967
        %v9970 = vmul.u32 %v9965, %v9968
        %v9971 = vmul.u32 %v9966, %v9967
        %v9972 = vmul.u32 %v9966, %v9968
        %v9973 = vshll.u32 %v9970, 16
        %v9974 = vshrl.u32 %v9970, 16
        %v9975 = vshll.u32 %v9971, 16
        %v9976 = vshrl.u32 %v9971, 16
        %vm9977 = vc.u32 %v9969, %v9973
        %v9978 = vsel %vm9977, 1, 0
        %v9979 = vadd.s32 %v9969, %v9973
        %v9980 = vadd.s32 %v9972, %v9978
        %vm9981 = vc.u32 %v9979, %v9975
        %v9982 = vsel %vm9981, 1, 0
        %v9983 = vadd.s32 %v9979, %v9975
        %v9984 = vadd.s32 %v9980, %v9982
        %v9985 = vadd.s32 %v9984, %v9974
        %v9986 = vadd.s32 %v9985, %v9976
        %v9987 = vand.u32 %v9964, 65535
        %v9988 = vshrl.u32 %v9964, 16
        %v9989 = vand.u32 %v9959, 65535
        %v9990 = vshrl.u32 %v9959, 16
        %v9991 = vmul.u32 %v9987, %v9989
        %v9992 = vmul.u32 %v9987, %v9990
        %v9993 = vmul.u32 %v9988, %v9989
        %v9994 = vmul.u32 %v9988, %v9990
        %v9995 = vshll.u32 %v9992, 16
        %v9996 = vshrl.u32 %v9992, 16
        %v9997 = vshll.u32 %v9993, 16
        %v9998 = vshrl.u32 %v9993, 16
        %vm9999 = vc.u32 %v9991, %v9995
        %v10000 = vsel %vm9999, 1, 0
        %v10001 = vadd.s32 %v9991, %v9995
        %v10002 = vadd.s32 %v9994, %v10000
        %vm10003 = vc.u32 %v10001, %v9997
        %v10004 = vsel %vm10003, 1, 0
        %v10005 = vadd.s32 %v10001, %v9997
        %v10006 = vadd.s32 %v10002, %v10004
        %v10007 = vadd.s32 %v10006, %v9996
        %v10008 = vadd.s32 %v10007, %v9998
        %v10009 = vmul.u32 %v9964, %v9955
        %v10010 = vadd.s32 %v9986, %v10005
        %vm10011 = vc.u32 %v9986, %v10005
        %v10012 = vadd.s32 %v10008, 1
        %v10013 = vsel %vm10011, %v10012, %v10008
        %v10014 = vadd.s32 %v10009, %v10013
        %v10015 = vadd.s32 %v10014, 536870912
        %v10016 = vshrl.u32 %v10015, 30
        %v10017 = vshll.u32 %v10016, 30
        %v10018 = vsub.s32 %v10014, %v10017
        %vm10019 = vcmp.lt.s32.totalorder %v10018, 0
        %v10020 = vsub.s32 0, %v10018
        %v10021 = vsel %vm10019, %v10020, %v10018
        %v10022 = vclz %v10021
        %v10023 = vsub.s32 %v10022, 2
        %vm10024 = vcmp.gt.s32.totalorder 0, %v10023
        %v10025 = vsel %vm10024, 0, %v10023
        %v10026 = vsub.s32 32, %v10025
        %v10027 = vshll.u32 %v10018, %v10025
        %v10028 = vshrl.u32 %v10010, %v10026
        %v10029 = vor.u32 %v10027, %v10028
        %v10030 = vsub.s32 4294967266, %v10025
        %v10031 = vadd.s32 %v10030, 127
        %v10032 = vshll.u32 %v10031, 23
        %v10033 = vor.u32 4788187, %v10032
        %v10034 = vand.u32 2147483647, %v10033
        %v10036 = vcvt.s32.f32 %v10029
        %v10037 = vmul.f32 %v10036, %v10034
        %v10038 = vxor.u32 %v10037, 2147483648
        %v10039 = vsel %vm9918, %v10038, %v10037
        %v10040 = vsub.s32 4, %v10016
        %v10041 = vsel %vm9918, %v10040, %v10016
        %v10042 = vsel %vm9917, %v304, %v10039
        %v10043 = vsel %vm9917, 0, %v10041
        %v10044 = vmul.f32 %v10042, %v10042
        %v10045 = vmul.f32 %v10044, -0.001358992
        %v10046 = vadd.f32 %v10045, 0.041655596
        %v10047 = vmul.f32 %v10044, %v10046
        %v10048 = vadd.f32 %v10047, -0.4999988
        %v10049 = vmul.f32 %v10044, %v10048
        %v10050 = vadd.f32 1.0, %v10049
        %v10051 = vmul.f32 %v10042, %v10042
        %v10052 = vmul.f32 %v10051, -0.00019511016
        %v10053 = vadd.f32 %v10052, 0.008332121
        %v10054 = vmul.f32 %v10051, %v10053
        %v10055 = vadd.f32 %v10054, -0.16666654
        %v10056 = vmul.f32 %v10051, %v10055
        %v10057 = vadd.f32 %v10056, 1.0
        %v10058 = vmul.f32 %v10057, %v10042
        %vm10059 = vweird.f32 %v304
        %v10060 = vadd.s32 %v10043, 3
        %v10061 = vand.u32 %v10060, 3
        %vm10062 = vcmp.lt.s32.totalorder %v10061, 2
        %vm10063 = vcmp.eq.s32.totalorder %v10061, 0
        %v10064 = vxor.u32 %v10058, 2147483648
        %v10065 = vsel %vm10063, %v10050, %v10064
        %vm10066 = vcmp.eq.s32.totalorder %v10061, 2
        %v10067 = vxor.u32 %v10050, 2147483648
        %v10068 = vsel %vm10066, %v10067, %v10058
        %v10069 = vsel %vm10062, %v10065, %v10068
        %v10070 = vsel %vm10059, nan, %v10069
        %v10071 = vand.u32 2147483647, %v305
        %vm10072 = vcmp.le.f32.partialorder %v10071, 0.7853982
        %vm10073 = vcmp.lt.s32.totalorder %v305, 0
        %v10074 = vand.u32 %v305, 2139095040
        %v10075 = vshrl.u32 %v10074, 23
        %v10076 = vsub.s32 %v10075, 127
        %v10077 = vand.u32 2147483647, %v305
        %v10078 = vand.u32 %v10077, 8388607
        %v10079 = vor.u32 %v10078, 8388608
        %v10080 = vsub.s32 0, %v10079
        %v10081 = vadd.s32 %v10076, 1
        %vm10082 = vcmp.gt.s32.totalorder %v10081, 0
        %v10083 = vsel %vm10082, %v10081, 0
        %v10084 = vshrl.u32 %v10083, 5
        %v10085 = vand.u32 %v10083, 31
        %v10086 = vsub.s32 32, %v10085
        %v10087 = vshrl.u32 683565275, %v10086
        %v10088 = vshll.u32 683565275, %v10085
        %v10089 = vshrl.u32 2475754826, %v10086
        %v10090 = vor.u32 %v10088, %v10089
        %v10091 = vshll.u32 2475754826, %v10085
        %v10092 = vshrl.u32 2131351028, %v10086
        %v10093 = vor.u32 %v10091, %v10092
        %v10094 = vshll.u32 2131351028, %v10085
        %v10095 = vshrl.u32 2102212464, %v10086
        %v10096 = vor.u32 %v10094, %v10095
        %v10097 = vshll.u32 2102212464, %v10085
        %v10098 = vshrl.u32 920167782, %v10086
        %v10099 = vor.u32 %v10097, %v10098
        %v10100 = vshll.u32 920167782, %v10085
        %v10101 = vshrl.u32 1326507024, %v10086
        %v10102 = vor.u32 %v10100, %v10101
        %vm10103 = vcmp.lt.s32.totalorder %v10084, 1
        %vm10104 = vcmp.lt.s32.totalorder %v10084, 2
        %vm10105 = vcmp.lt.s32.totalorder %v10084, 3
        %vm10106 = vcmp.lt.s32.totalorder %v10084, 4
        %v10107 = vsel %vm10103, %v10087, %v10090
        %v10108 = vsel %vm10106, %v10096, 2102212464
        %v10109 = vsel %vm10105, %v10093, %v10108
        %v10110 = vsel %vm10104, %v10107, %v10109
        %v10111 = vsel %vm10103, %v10090, %v10093
        %v10112 = vsel %vm10106, %v10099, 920167782
        %v10113 = vsel %vm10105, %v10096, %v10112
        %v10114 = vsel %vm10104, %v10111, %v10113
        %v10115 = vsel %vm10103, %v10093, %v10096
        %v10116 = vsel %vm10106, %v10102, 1326507024
        %v10117 = vsel %vm10105, %v10099, %v10116
        %v10118 = vsel %vm10104, %v10115, %v10117
        %v10119 = vshll.u32 %v10079, 8
        %v10120 = vand.u32 %v10119, 65535
        %v10121 = vshrl.u32 %v10119, 16
        %v10122 = vand.u32 %v10118, 65535
        %v10123 = vshrl.u32 %v10118, 16
        %v10124 = vmul.u32 %v10120, %v10122
        %v10125 = vmul.u32 %v10120, %v10123
        %v10126 = vmul.u32 %v10121, %v10122
        %v10127 = vmul.u32 %v10121, %v10123
        %v10128 = vshll.u32 %v10125, 16
        %v10129 = vshrl.u32 %v10125, 16
        %v10130 = vshll.u32 %v10126, 16
        %v10131 = vshrl.u32 %v10126, 16
        %vm10132 = vc.u32 %v10124, %v10128
        %v10133 = vsel %vm10132, 1, 0
        %v10134 = vadd.s32 %v10124, %v10128
        %v10135 = vadd.s32 %v10127, %v10133
        %vm10136 = vc.u32 %v10134, %v10130
        %v10137 = vsel %vm10136, 1, 0
        %v10138 = vadd.s32 %v10134, %v10130
        %v10139 = vadd.s32 %v10135, %v10137
        %v10140 = vadd.s32 %v10139, %v10129
        %v10141 = vadd.s32 %v10140, %v10131
        %v10142 = vand.u32 %v10119, 65535
        %v10143 = vshrl.u32 %v10119, 16
        %v10144 = vand.u32 %v10114, 65535
        %v10145 = vshrl.u32 %v10114, 16
        %v10146 = vmul.u32 %v10142, %v10144
        %v10147 = vmul.u32 %v10142, %v10145
        %v10148 = vmul.u32 %v10143, %v10144
        %v10149 = vmul.u32 %v10143, %v10145
        %v10150 = vshll.u32 %v10147, 16
        %v10151 = vshrl.u32 %v10147, 16
        %v10152 = vshll.u32 %v10148, 16
        %v10153 = vshrl.u32 %v10148, 16
        %vm10154 = vc.u32 %v10146, %v10150
        %v10155 = vsel %vm10154, 1, 0
        %v10156 = vadd.s32 %v10146, %v10150
        %v10157 = vadd.s32 %v10149, %v10155
        %vm10158 = vc.u32 %v10156, %v10152
        %v10159 = vsel %vm10158, 1, 0
        %v10160 = vadd.s32 %v10156, %v10152
        %v10161 = vadd.s32 %v10157, %v10159
        %v10162 = vadd.s32 %v10161, %v10151
        %v10163 = vadd.s32 %v10162, %v10153
        %v10164 = vmul.u32 %v10119, %v10110
        %v10165 = vadd.s32 %v10141, %v10160
        %vm10166 = vc.u32 %v10141, %v10160
        %v10167 = vadd.s32 %v10163, 1
        %v10168 = vsel %vm10166, %v10167, %v10163
        %v10169 = vadd.s32 %v10164, %v10168
        %v10170 = vadd.s32 %v10169, 536870912
        %v10171 = vshrl.u32 %v10170, 30
        %v10172 = vshll.u32 %v10171, 30
        %v10173 = vsub.s32 %v10169, %v10172
        %vm10174 = vcmp.lt.s32.totalorder %v10173, 0
        %v10175 = vsub.s32 0, %v10173
        %v10176 = vsel %vm10174, %v10175, %v10173
        %v10177 = vclz %v10176
        %v10178 = vsub.s32 %v10177, 2
        %vm10179 = vcmp.gt.s32.totalorder 0, %v10178
        %v10180 = vsel %vm10179, 0, %v10178
        %v10181 = vsub.s32 32, %v10180
        %v10182 = vshll.u32 %v10173, %v10180
        %v10183 = vshrl.u32 %v10165, %v10181
        %v10184 = vor.u32 %v10182, %v10183
        %v10185 = vsub.s32 4294967266, %v10180
        %v10186 = vadd.s32 %v10185, 127
        %v10187 = vshll.u32 %v10186, 23
        %v10188 = vor.u32 4788187, %v10187
        %v10189 = vand.u32 2147483647, %v10188
        %v10191 = vcvt.s32.f32 %v10184
        %v10192 = vmul.f32 %v10191, %v10189
        %v10193 = vxor.u32 %v10192, 2147483648
        %v10194 = vsel %vm10073, %v10193, %v10192
        %v10195 = vsub.s32 4, %v10171
        %v10196 = vsel %vm10073, %v10195, %v10171
        %v10197 = vsel %vm10072, %v305, %v10194
        %v10198 = vsel %vm10072, 0, %v10196
        %v10199 = vmul.f32 %v10197, %v10197
        %v10200 = vmul.f32 %v10199, -0.001358992
        %v10201 = vadd.f32 %v10200, 0.041655596
        %v10202 = vmul.f32 %v10199, %v10201
        %v10203 = vadd.f32 %v10202, -0.4999988
        %v10204 = vmul.f32 %v10199, %v10203
        %v10205 = vadd.f32 1.0, %v10204
        %v10206 = vmul.f32 %v10197, %v10197
        %v10207 = vmul.f32 %v10206, -0.00019511016
        %v10208 = vadd.f32 %v10207, 0.008332121
        %v10209 = vmul.f32 %v10206, %v10208
        %v10210 = vadd.f32 %v10209, -0.16666654
        %v10211 = vmul.f32 %v10206, %v10210
        %v10212 = vadd.f32 %v10211, 1.0
        %v10213 = vmul.f32 %v10212, %v10197
        %vm10214 = vweird.f32 %v305
        %v10215 = vadd.s32 %v10198, 3
        %v10216 = vand.u32 %v10215, 3
        %vm10217 = vcmp.lt.s32.totalorder %v10216, 2
        %vm10218 = vcmp.eq.s32.totalorder %v10216, 0
        %v10219 = vxor.u32 %v10213, 2147483648
        %v10220 = vsel %vm10218, %v10205, %v10219
        %vm10221 = vcmp.eq.s32.totalorder %v10216, 2
        %v10222 = vxor.u32 %v10205, 2147483648
        %v10223 = vsel %vm10221, %v10222, %v10213
        %v10224 = vsel %vm10217, %v10220, %v10223
        %v10225 = vsel %vm10214, nan, %v10224
        %10226 = vst [vmem:[%s162] sm:$0xff] %v5420
        %10227 = vst [vmem:[%s162 + $0x8] sm:$0xff] %v5575
        %10228 = vst [vmem:[%s162 + $0x10] sm:$0xff] %v5730
        %10229 = vst [vmem:[%s162 + $0x18] sm:$0xff] %v5885
        %10230 = vst [vmem:[%s162 + $0x20] sm:$0xff] %v6040
        %10231 = vst [vmem:[%s162 + $0x28] sm:$0xff] %v6195
        %10232 = vst [vmem:[%s162 + $0x30] sm:$0xff] %v6350
        %10233 = vst [vmem:[%s162 + $0x38] sm:$0xff] %v6505
        %10234 = vst [vmem:[%s162 + $0x40] sm:$0xff] %v6660
        %10235 = vst [vmem:[%s162 + $0x48] sm:$0xff] %v6815
        %10236 = vst [vmem:[%s162 + $0x50] sm:$0xff] %v6970
        %10237 = vst [vmem:[%s162 + $0x58] sm:$0xff] %v7125
        %10238 = vst [vmem:[%s162 + $0x60] sm:$0xff] %v7280
        %10239 = vst [vmem:[%s162 + $0x68] sm:$0xff] %v7435
        %10240 = vst [vmem:[%s162 + $0x70] sm:$0xff] %v7590
        %10241 = vst [vmem:[%s162 + $0x78] sm:$0xff] %v7745
        %10242 = vst [vmem:[%s162 + $0x80] sm:$0xff] %v7900
        %10243 = vst [vmem:[%s162 + $0x88] sm:$0xff] %v8055
        %10244 = vst [vmem:[%s162 + $0x90] sm:$0xff] %v8210
        %10245 = vst [vmem:[%s162 + $0x98] sm:$0xff] %v8365
        %10246 = vst [vmem:[%s162 + $0xa0] sm:$0xff] %v8520
        %10247 = vst [vmem:[%s162 + $0xa8] sm:$0xff] %v8675
        %10248 = vst [vmem:[%s162 + $0xb0] sm:$0xff] %v8830
        %10249 = vst [vmem:[%s162 + $0xb8] sm:$0xff] %v8985
        %10250 = vst [vmem:[%s162 + $0xc0] sm:$0xff] %v9140
        %10251 = vst [vmem:[%s162 + $0xc8] sm:$0xff] %v9295
        %10252 = vst [vmem:[%s162 + $0xd0] sm:$0xff] %v9450
        %10253 = vst [vmem:[%s162 + $0xd8] sm:$0xff] %v9605
        %10254 = vst [vmem:[%s162 + $0xe0] sm:$0xff] %v9760
        %10255 = vst [vmem:[%s162 + $0xe8] sm:$0xff] %v9915
        %10256 = vst [vmem:[%s162 + $0xf0] sm:$0xff] %v10070
        %10257 = vst [vmem:[%s162 + $0xf8] sm:$0xff] %v10225
        %s10258 = sand.u32 %s64, 1
        %s10259 = scalar_lea.sflag [#allocation3], %s10258
        %s10260 = sand.u32 %s64, 1
        %s10261 = smul.addr %s10260, 256
        %s10262 = scalar_lea.vmem [#allocation5], %s10261
        %s10263 = sand.u32 %s92, 1
        %s10264 = scalar_lea.sflag [#allocation7], %s10263
        %s10265 = sand.u32 %s92, 1
        %s10266 = smul.addr %s10265, 256
        %s10267 = scalar_lea.vmem [#allocation6], %s10266
        // Predicated region
        $region29: #{tpu_custom_call.1} parent=23 // pred_check
          %p10268 = pneg %p74
        $region30: #{tpu_custom_call.1} parent=23 // pred_check_branch
          %10270 = sbr.rel (%p10268) target = $region32
        $region31: #{tpu_custom_call.1} parent=23 // pred_region
          %s10271 = smul.u32 32, %s26
          %10273 = vsyncadd %s10259, 0
          %s10274 = smul.addr %s25, 32
          %s10275 = sadd.s32 %s10271, %s10274
          %s10276 = smul.addr %s10275, 8
          %s10277 = scalar_lea.hbm %s1, %s10276
          %s10278 = sshll.u32 %s10262, 4
          %s10279 = int_to_ptr.vmem [resolvable:$true] %s10278
          %s10280 = sshll.u32 %s10277, 4
          %s10281 = int_to_ptr.hbm [resolvable:$true] %s10280
          %10286 = dma.vmem_to_hbm [thread:$0]  %s10279, 4096, %s10281, %s10259, 128, 128, 8
        $region32: #{tpu_custom_call.1} parent=23 // pred_fallthru
          _
        // Predicated region
        $region33: #{tpu_custom_call.1} parent=23 // pred_check
          %p10287 = pneg %p102
        $region34: #{tpu_custom_call.1} parent=23 // pred_check_branch
          %10289 = sbr.rel (%p10287) target = $region36
        $region35: #{tpu_custom_call.1} parent=23 // pred_region
          %s10290 = smul.u32 32, %s26
          %10292 = vsyncadd %s10264, 0
          %s10293 = smul.addr %s25, 32
          %s10294 = sadd.s32 %s10290, %s10293
          %s10295 = smul.addr %s10294, 8
          %s10296 = scalar_lea.hbm %s2, %s10295
          %s10297 = sshll.u32 %s10267, 4
          %s10298 = int_to_ptr.vmem [resolvable:$true] %s10297
          %s10299 = sshll.u32 %s10296, 4
          %s10300 = int_to_ptr.hbm [resolvable:$true] %s10299
          %10305 = dma.vmem_to_hbm [thread:$0]  %s10298, 4096, %s10300, %s10264, 128, 128, 8
        $region36: #{tpu_custom_call.1} parent=23 // pred_fallthru
          _
      $region24: #{tpu_custom_call.1} parent=5 // pred_fallthru
        _
      %p10306 = scmp.le.s32.totalorder 2, %s16
      // Predicated region
      $region37: #{tpu_custom_call.1} parent=5 // pred_check
        %p10307 = pneg %p10306
      $region38: #{tpu_custom_call.1} parent=5 // pred_check_branch
        %10309 = sbr.rel (%p10307) target = $region40
      $region39: #{tpu_custom_call.1} parent=5 // pred_region
        %s10310 = ssub.s32 %s16, 2
        // Predicated region
        $region41: #{tpu_custom_call.1} parent=39 // pred_check
          %p10311 = pneg %p80
        $region42: #{tpu_custom_call.1} parent=39 // pred_check_branch
          %10313 = sbr.rel (%p10311) target = $region44
        $region43: #{tpu_custom_call.1} parent=39 // pred_region
          %s10314 = sand.u32 %s65, 1
          %s10315 = scalar_lea.sflag [#allocation3], %s10314
          %s10316 = sand.u32 %s65, 1
          %s10317 = smul.addr %s10316, 256
          %s10318 = scalar_lea.vmem [#allocation5], %s10317
          %10320 = dma.done %s10315, 4096
        $region44: #{tpu_custom_call.1} parent=39 // pred_fallthru
          _
        // Predicated region
        $region45: #{tpu_custom_call.1} parent=39 // pred_check
          %p10321 = pneg %p108
        $region46: #{tpu_custom_call.1} parent=39 // pred_check_branch
          %10323 = sbr.rel (%p10321) target = $region48
        $region47: #{tpu_custom_call.1} parent=39 // pred_region
          %s10324 = sand.u32 %s93, 1
          %s10325 = scalar_lea.sflag [#allocation7], %s10324
          %s10326 = sand.u32 %s93, 1
          %s10327 = smul.addr %s10326, 256
          %s10328 = scalar_lea.vmem [#allocation6], %s10327
          %10330 = dma.done %s10325, 4096
        $region48: #{tpu_custom_call.1} parent=39 // pred_fallthru
          _
      $region40: #{tpu_custom_call.1} parent=5 // pred_fallthru
        _
    $region6: #{tpu_custom_call.1} parent=1 // loop_footer
      %s20 = sadd.s32 1, %s16
    $region7: #{tpu_custom_call.1} parent=1 // loop_footer_branch
      %15 = sbr.rel target = $region3
    $region8: #{tpu_custom_call.1} parent=1 // loop_exit
      _
    %10331 = vsyncpa [#allocation3], 1
    %s10332 = scalar_lea.sflag [#allocation3], 1
    %10333 = vsyncpa %s10332, 1
    %10334 = vsyncpa [#allocation7], 1
    %s10335 = scalar_lea.sflag [#allocation7], 1
    %10336 = vsyncpa %s10335, 1
    %10337 = vsyncpa [#allocation4], 1
    %s10338 = scalar_lea.sflag [#allocation4], 1
    %10339 = vsyncpa %s10338, 1

</llo_original>
